<compile_context>
chip_gen: v5e
topology: v5e:2x2
jax: 0.10.0
libtpu: 0.0.40
codegen_flags: <defaults>
</compile_context>

<pallas_src>
import jax
import jax.numpy as jnp
from jax import lax
from jax.experimental import pallas as pl
from jax.experimental.pallas import tpu as pltpu

BN_EPS = 1e-5


def down_sample_blk_kernel(xpad_ref,
                           w1_ref, b1_ref, g1_ref, bt1_ref,
                           w2_ref, b2_ref, g2_ref, bt2_ref,
                           o_ref,
                           y1pad_ref, rowmax_ref):
    # xpad_ref   : (N, H+2, W+2, Cin)   zero-padded NHWC input
    # w*_ref     : (9, Cin*, Cout)      3x3 taps on the leading axis
    # b/g/bt     : (1, Cout)            conv bias, BN gamma, BN beta
    # o_ref      : (N, H//2, W//2, Cout)
    # y1pad_ref  : (N, H+2, W+2, Cout)  VMEM scratch (padded conv1 output)
    # rowmax_ref : (N*H//2, W, Cout)    VMEM scratch (row-pooled conv2 output)
    N, Hp, Wp, Cin = xpad_ref.shape
    H, W = Hp - 2, Wp - 2
    H2, W2 = H // 2, W // 2
    Cout = o_ref.shape[-1]
    M = N * H * W
    inv_m = 1.0 / M

    def conv_bn_relu(src_ref, cin, w_ref, b_ref, g_ref, beta_ref):
        # 3x3 conv (pad=1): nine shifted VMEM views of the padded activation,
        # each an MXU matmul accumulated in f32 (no im2col in HBM).
        acc = jnp.zeros((M, Cout), jnp.float32)
        k = 0
        for dy in range(3):
            for dx in range(3):
                col = src_ref[:, dy:dy + H, dx:dx + W, :].reshape(M, cin)
                acc = acc + jnp.dot(col, w_ref[k],
                                    preferred_element_type=jnp.float32)
                k += 1
        acc = acc + b_ref[...]
        # BatchNorm2d (training mode): one-pass batch stats over N*H*W rows,
        # biased variance, eps = 1e-5.
        s = jnp.sum(acc, axis=0, keepdims=True)
        ss = jnp.sum(acc * acc, axis=0, keepdims=True)
        mean = s * inv_m
        var = ss * inv_m - mean * mean
        scale = g_ref[...] * lax.rsqrt(var + BN_EPS)
        shift = beta_ref[...] - mean * scale
        # ReLU
        return jnp.maximum(acc * scale + shift, 0.0)               # (M, Cout)

    # conv1 + BN + ReLU -> keep zero-padded in VMEM so conv2 can slice it.
    y1 = conv_bn_relu(xpad_ref, Cin, w1_ref, b1_ref, g1_ref, bt1_ref)
    y1pad_ref[...] = jnp.zeros_like(y1pad_ref)
    y1pad_ref[:, 1:H + 1, 1:W + 1, :] = y1.reshape(N, H, W, Cout)

    # conv2 + BN + ReLU (stays resident in VMEM as a value).
    y2 = conv_bn_relu(y1pad_ref, Cout, w2_ref, b2_ref, g2_ref, bt2_ref)

    # Fused 2x2 / stride-2 max pool.
    # 1) H pooling: expose the row parity on a leading axis (W stays the
    #    sublane dim -> layout-clean reshape), take the elementwise max.
    y2r = y2.reshape(N * H2, 2, W, Cout)
    rowmax_ref[...] = jnp.maximum(y2r[:, 0], y2r[:, 1])            # (N*H2, W, C)
    # 2) W pooling: stride-2 sublane reads from VMEM scratch.
    pooled = jnp.maximum(rowmax_ref[:, pl.ds(0, W2, stride=2), :],
                         rowmax_ref[:, pl.ds(1, W2, stride=2), :])  # (N*H2, W2, C)
    o_ref[...] = pooled.reshape(N, H2, W2, Cout)


_VMEM = pl.BlockSpec(memory_space=pltpu.MemorySpace.VMEM)


def down_sample_blk_forward(x_nchw, params):
    """Pallas forward of down_sample_blk. Input/output are NCHW float32."""
    (w1, b1, g1, bt1), (w2, b2, g2, bt2) = params
    x = jnp.transpose(x_nchw, (0, 2, 3, 1)).astype(jnp.float32)    # NHWC
    N, H, W, Cin = x.shape
    Cout = w1.shape[-1]
    assert H % 2 == 0 and W % 2 == 0, "MaxPool2d(2) needs even spatial dims"
    assert W % 8 == 0, "W should be a multiple of 8 for clean TPU layouts"
    H2, W2 = H // 2, W // 2

    # Whole block fits comfortably in VMEM at these sizes, so one fused call
    # with whole-array VMEM specs is used (an M-grid with cross-tile BN stats
    # would be needed for full-size SSD feature maps).
    xpad = jnp.pad(x, ((0, 0), (1, 1), (1, 1), (0, 0)))            # (N,H+2,W+2,Cin)
    rs = lambda v: v.reshape(1, Cout).astype(jnp.float32)

    out = pl.pallas_call(
        down_sample_blk_kernel,
        out_shape=jax.ShapeDtypeStruct((N, H2, W2, Cout), jnp.float32),
        in_specs=[_VMEM] * 9,
        out_specs=_VMEM,
        scratch_shapes=[
            pltpu.VMEM((N, H + 2, W + 2, Cout), jnp.float32),   # padded conv1 out
            pltpu.VMEM((N * H2, W, Cout), jnp.float32),         # row-pooled conv2
        ],
    )(xpad,
      w1.reshape(9, Cin, Cout).astype(jnp.float32), rs(b1), rs(g1), rs(bt1),
      w2.reshape(9, Cout, Cout).astype(jnp.float32), rs(b2), rs(g2), rs(bt2))
    return jnp.transpose(out, (0, 3, 1, 2))                       # NCHW


def init_params(key, in_channels, out_channels):
    """Deterministic synthetic params: (w [HWIO], conv bias, BN gamma, BN beta) x2."""
    params = []
    cin = in_channels
    for _ in range(2):
        key, kw, kb, kg, kbt = jax.random.split(key, 5)
        w = 0.1 * jax.random.normal(kw, (3, 3, cin, out_channels), jnp.float32)
        b = 0.1 * jax.random.normal(kb, (out_channels,), jnp.float32)
        gamma = 1.0 + 0.1 * jax.random.normal(kg, (out_channels,), jnp.float32)
        beta = 0.1 * jax.random.normal(kbt, (out_channels,), jnp.float32)
        params.append((w, b, gamma, beta))
        cin = out_channels
    return params


def down_sample_blk_reference(x_nchw, params):
    """Pure-JAX/XLA reference for the same forward pass."""
    x = jnp.transpose(x_nchw, (0, 2, 3, 1))
    for (w, b, g, bt) in params:
        y = lax.conv_general_dilated(
            x, w, window_strides=(1, 1), padding="SAME",
            dimension_numbers=("NHWC", "HWIO", "NHWC")) + b
        mean = y.mean(axis=(0, 1, 2))
        var = y.var(axis=(0, 1, 2))
        y = (y - mean) * lax.rsqrt(var + BN_EPS) * g + bt
        x = jnp.maximum(y, 0.0)
    x = lax.reduce_window(x, -jnp.inf, lax.max,
                          (1, 2, 2, 1), (1, 2, 2, 1), "VALID")
    return jnp.transpose(x, (0, 3, 1, 2))


if __name__ == "__main__":
    key = jax.random.PRNGKey(0)
    kx, kp = jax.random.split(key)
    in_ch, out_ch = 4, 16
    x = jax.random.normal(kx, (2, in_ch, 16, 16), jnp.float32)
    params = init_params(kp, in_ch, out_ch)

    fwd = jax.jit(down_sample_blk_forward)
    out = jax.block_until_ready(fwd(x, params))
    assert out.shape == (2, out_ch, 8, 8), out.shape

    ref = jax.block_until_ready(down_sample_blk_reference(x, params))
    max_err = float(jnp.max(jnp.abs(out - ref)))
    assert max_err < 2e-3, f"mismatch vs reference: {max_err}"

    print("KERNEL_OK")
</pallas_src>

<mosaic_0001>
module attributes {stable_mosaic.version = 11 : i64} {
  func.func @down_sample_blk_kernel(%arg0: memref<2x18x18x4xf32, #tpu.memory_space<vmem>>, %arg1: memref<9x4x16xf32, #tpu.memory_space<vmem>>, %arg2: memref<1x16xf32, #tpu.memory_space<vmem>>, %arg3: memref<1x16xf32, #tpu.memory_space<vmem>>, %arg4: memref<1x16xf32, #tpu.memory_space<vmem>>, %arg5: memref<9x16x16xf32, #tpu.memory_space<vmem>>, %arg6: memref<1x16xf32, #tpu.memory_space<vmem>>, %arg7: memref<1x16xf32, #tpu.memory_space<vmem>>, %arg8: memref<1x16xf32, #tpu.memory_space<vmem>>, %arg9: memref<2x8x8x16xf32, #tpu.memory_space<vmem>>, %arg10: memref<2x18x18x16xf32, #tpu.memory_space<vmem>>, %arg11: memref<16x16x16xf32, #tpu.memory_space<vmem>>) attributes {dimension_semantics = [], scalar_prefetch = 0 : i64, scratch_operands = 2 : i64, tpu.core_type = #tpu.core_type<tc>} {
    %cst = arith.constant 0.000000e+00 : f32
    %0 = vector.broadcast %cst : f32 to vector<512x16xf32>
    %c0 = arith.constant 0 : index
    %c0_0 = arith.constant 0 : index
    %c0_1 = arith.constant 0 : index
    %c0_2 = arith.constant 0 : index
    %1 = vector.load %arg0[%c0, %c0_0, %c0_1, %c0_2] : memref<2x18x18x4xf32, #tpu.memory_space<vmem>>, vector<2x16x16x4xf32>
    %2 = vector.shape_cast %1 : vector<2x16x16x4xf32> to vector<512x4xf32>
    %c0_3 = arith.constant 0 : index
    %c0_4 = arith.constant 0 : index
    %c0_5 = arith.constant 0 : index
    %3 = vector.load %arg1[%c0_3, %c0_4, %c0_5] : memref<9x4x16xf32, #tpu.memory_space<vmem>>, vector<1x4x16xf32>
    %4 = vector.shape_cast %3 : vector<1x4x16xf32> to vector<4x16xf32>
    %cst_6 = arith.constant dense<0.000000e+00> : vector<512x16xf32>
    %5 = tpu.matmul %2, %4, %cst_6 {dimension_numbers = #tpu.dot_dimension_numbers<[1], [0], [0], [1], [0, 0, 1, 1], [], []>} : vector<512x4xf32>, vector<4x16xf32>, vector<512x16xf32> -> vector<512x16xf32>
    %6 = arith.addf %0, %5 : vector<512x16xf32>
    %c0_7 = arith.constant 0 : index
    %c0_8 = arith.constant 0 : index
    %c1 = arith.constant 1 : index
    %c0_9 = arith.constant 0 : index
    %7 = vector.load %arg0[%c0_7, %c0_8, %c1, %c0_9] : memref<2x18x18x4xf32, #tpu.memory_space<vmem>>, vector<2x16x16x4xf32>
    %8 = vector.shape_cast %7 : vector<2x16x16x4xf32> to vector<512x4xf32>
    %c1_10 = arith.constant 1 : index
    %c0_11 = arith.constant 0 : index
    %c0_12 = arith.constant 0 : index
    %9 = vector.load %arg1[%c1_10, %c0_11, %c0_12] : memref<9x4x16xf32, #tpu.memory_space<vmem>>, vector<1x4x16xf32>
    %10 = vector.shape_cast %9 : vector<1x4x16xf32> to vector<4x16xf32>
    %cst_13 = arith.constant dense<0.000000e+00> : vector<512x16xf32>
    %11 = tpu.matmul %8, %10, %cst_13 {dimension_numbers = #tpu.dot_dimension_numbers<[1], [0], [0], [1], [0, 0, 1, 1], [], []>} : vector<512x4xf32>, vector<4x16xf32>, vector<512x16xf32> -> vector<512x16xf32>
    %12 = arith.addf %6, %11 : vector<512x16xf32>
    %c0_14 = arith.constant 0 : index
    %c0_15 = arith.constant 0 : index
    %c2 = arith.constant 2 : index
    %c0_16 = arith.constant 0 : index
    %13 = vector.load %arg0[%c0_14, %c0_15, %c2, %c0_16] : memref<2x18x18x4xf32, #tpu.memory_space<vmem>>, vector<2x16x16x4xf32>
    %14 = vector.shape_cast %13 : vector<2x16x16x4xf32> to vector<512x4xf32>
    %c2_17 = arith.constant 2 : index
    %c0_18 = arith.constant 0 : index
    %c0_19 = arith.constant 0 : index
    %15 = vector.load %arg1[%c2_17, %c0_18, %c0_19] : memref<9x4x16xf32, #tpu.memory_space<vmem>>, vector<1x4x16xf32>
    %16 = vector.shape_cast %15 : vector<1x4x16xf32> to vector<4x16xf32>
    %cst_20 = arith.constant dense<0.000000e+00> : vector<512x16xf32>
    %17 = tpu.matmul %14, %16, %cst_20 {dimension_numbers = #tpu.dot_dimension_numbers<[1], [0], [0], [1], [0, 0, 1, 1], [], []>} : vector<512x4xf32>, vector<4x16xf32>, vector<512x16xf32> -> vector<512x16xf32>
    %18 = arith.addf %12, %17 : vector<512x16xf32>
    %c0_21 = arith.constant 0 : index
    %c1_22 = arith.constant 1 : index
    %c0_23 = arith.constant 0 : index
    %c0_24 = arith.constant 0 : index
    %19 = vector.load %arg0[%c0_21, %c1_22, %c0_23, %c0_24] : memref<2x18x18x4xf32, #tpu.memory_space<vmem>>, vector<2x16x16x4xf32>
    %20 = vector.shape_cast %19 : vector<2x16x16x4xf32> to vector<512x4xf32>
    %c3 = arith.constant 3 : index
    %c0_25 = arith.constant 0 : index
    %c0_26 = arith.constant 0 : index
    %21 = vector.load %arg1[%c3, %c0_25, %c0_26] : memref<9x4x16xf32, #tpu.memory_space<vmem>>, vector<1x4x16xf32>
    %22 = vector.shape_cast %21 : vector<1x4x16xf32> to vector<4x16xf32>
    %cst_27 = arith.constant dense<0.000000e+00> : vector<512x16xf32>
    %23 = tpu.matmul %20, %22, %cst_27 {dimension_numbers = #tpu.dot_dimension_numbers<[1], [0], [0], [1], [0, 0, 1, 1], [], []>} : vector<512x4xf32>, vector<4x16xf32>, vector<512x16xf32> -> vector<512x16xf32>
    %24 = arith.addf %18, %23 : vector<512x16xf32>
    %c0_28 = arith.constant 0 : index
    %c1_29 = arith.constant 1 : index
    %c1_30 = arith.constant 1 : index
    %c0_31 = arith.constant 0 : index
    %25 = vector.load %arg0[%c0_28, %c1_29, %c1_30, %c0_31] : memref<2x18x18x4xf32, #tpu.memory_space<vmem>>, vector<2x16x16x4xf32>
    %26 = vector.shape_cast %25 : vector<2x16x16x4xf32> to vector<512x4xf32>
    %c4 = arith.constant 4 : index
    %c0_32 = arith.constant 0 : index
    %c0_33 = arith.constant 0 : index
    %27 = vector.load %arg1[%c4, %c0_32, %c0_33] : memref<9x4x16xf32, #tpu.memory_space<vmem>>, vector<1x4x16xf32>
    %28 = vector.shape_cast %27 : vector<1x4x16xf32> to vector<4x16xf32>
    %cst_34 = arith.constant dense<0.000000e+00> : vector<512x16xf32>
    %29 = tpu.matmul %26, %28, %cst_34 {dimension_numbers = #tpu.dot_dimension_numbers<[1], [0], [0], [1], [0, 0, 1, 1], [], []>} : vector<512x4xf32>, vector<4x16xf32>, vector<512x16xf32> -> vector<512x16xf32>
    %30 = arith.addf %24, %29 : vector<512x16xf32>
    %c0_35 = arith.constant 0 : index
    %c1_36 = arith.constant 1 : index
    %c2_37 = arith.constant 2 : index
    %c0_38 = arith.constant 0 : index
    %31 = vector.load %arg0[%c0_35, %c1_36, %c2_37, %c0_38] : memref<2x18x18x4xf32, #tpu.memory_space<vmem>>, vector<2x16x16x4xf32>
    %32 = vector.shape_cast %31 : vector<2x16x16x4xf32> to vector<512x4xf32>
    %c5 = arith.constant 5 : index
    %c0_39 = arith.constant 0 : index
    %c0_40 = arith.constant 0 : index
    %33 = vector.load %arg1[%c5, %c0_39, %c0_40] : memref<9x4x16xf32, #tpu.memory_space<vmem>>, vector<1x4x16xf32>
    %34 = vector.shape_cast %33 : vector<1x4x16xf32> to vector<4x16xf32>
    %cst_41 = arith.constant dense<0.000000e+00> : vector<512x16xf32>
    %35 = tpu.matmul %32, %34, %cst_41 {dimension_numbers = #tpu.dot_dimension_numbers<[1], [0], [0], [1], [0, 0, 1, 1], [], []>} : vector<512x4xf32>, vector<4x16xf32>, vector<512x16xf32> -> vector<512x16xf32>
    %36 = arith.addf %30, %35 : vector<512x16xf32>
    %c0_42 = arith.constant 0 : index
    %c2_43 = arith.constant 2 : index
    %c0_44 = arith.constant 0 : index
    %c0_45 = arith.constant 0 : index
    %37 = vector.load %arg0[%c0_42, %c2_43, %c0_44, %c0_45] : memref<2x18x18x4xf32, #tpu.memory_space<vmem>>, vector<2x16x16x4xf32>
    %38 = vector.shape_cast %37 : vector<2x16x16x4xf32> to vector<512x4xf32>
    %c6 = arith.constant 6 : index
    %c0_46 = arith.constant 0 : index
    %c0_47 = arith.constant 0 : index
    %39 = vector.load %arg1[%c6, %c0_46, %c0_47] : memref<9x4x16xf32, #tpu.memory_space<vmem>>, vector<1x4x16xf32>
    %40 = vector.shape_cast %39 : vector<1x4x16xf32> to vector<4x16xf32>
    %cst_48 = arith.constant dense<0.000000e+00> : vector<512x16xf32>
    %41 = tpu.matmul %38, %40, %cst_48 {dimension_numbers = #tpu.dot_dimension_numbers<[1], [0], [0], [1], [0, 0, 1, 1], [], []>} : vector<512x4xf32>, vector<4x16xf32>, vector<512x16xf32> -> vector<512x16xf32>
    %42 = arith.addf %36, %41 : vector<512x16xf32>
    %c0_49 = arith.constant 0 : index
    %c2_50 = arith.constant 2 : index
    %c1_51 = arith.constant 1 : index
    %c0_52 = arith.constant 0 : index
    %43 = vector.load %arg0[%c0_49, %c2_50, %c1_51, %c0_52] : memref<2x18x18x4xf32, #tpu.memory_space<vmem>>, vector<2x16x16x4xf32>
    %44 = vector.shape_cast %43 : vector<2x16x16x4xf32> to vector<512x4xf32>
    %c7 = arith.constant 7 : index
    %c0_53 = arith.constant 0 : index
    %c0_54 = arith.constant 0 : index
    %45 = vector.load %arg1[%c7, %c0_53, %c0_54] : memref<9x4x16xf32, #tpu.memory_space<vmem>>, vector<1x4x16xf32>
    %46 = vector.shape_cast %45 : vector<1x4x16xf32> to vector<4x16xf32>
    %cst_55 = arith.constant dense<0.000000e+00> : vector<512x16xf32>
    %47 = tpu.matmul %44, %46, %cst_55 {dimension_numbers = #tpu.dot_dimension_numbers<[1], [0], [0], [1], [0, 0, 1, 1], [], []>} : vector<512x4xf32>, vector<4x16xf32>, vector<512x16xf32> -> vector<512x16xf32>
    %48 = arith.addf %42, %47 : vector<512x16xf32>
    %c0_56 = arith.constant 0 : index
    %c2_57 = arith.constant 2 : index
    %c2_58 = arith.constant 2 : index
    %c0_59 = arith.constant 0 : index
    %49 = vector.load %arg0[%c0_56, %c2_57, %c2_58, %c0_59] : memref<2x18x18x4xf32, #tpu.memory_space<vmem>>, vector<2x16x16x4xf32>
    %50 = vector.shape_cast %49 : vector<2x16x16x4xf32> to vector<512x4xf32>
    %c8 = arith.constant 8 : index
    %c0_60 = arith.constant 0 : index
    %c0_61 = arith.constant 0 : index
    %51 = vector.load %arg1[%c8, %c0_60, %c0_61] : memref<9x4x16xf32, #tpu.memory_space<vmem>>, vector<1x4x16xf32>
    %52 = vector.shape_cast %51 : vector<1x4x16xf32> to vector<4x16xf32>
    %cst_62 = arith.constant dense<0.000000e+00> : vector<512x16xf32>
    %53 = tpu.matmul %50, %52, %cst_62 {dimension_numbers = #tpu.dot_dimension_numbers<[1], [0], [0], [1], [0, 0, 1, 1], [], []>} : vector<512x4xf32>, vector<4x16xf32>, vector<512x16xf32> -> vector<512x16xf32>
    %54 = arith.addf %48, %53 : vector<512x16xf32>
    %c0_63 = arith.constant 0 : index
    %c0_64 = arith.constant 0 : index
    %55 = vector.load %arg2[%c0_63, %c0_64] : memref<1x16xf32, #tpu.memory_space<vmem>>, vector<1x16xf32>
    %56 = vector.broadcast %55 : vector<1x16xf32> to vector<512x16xf32>
    %57 = arith.addf %54, %56 : vector<512x16xf32>
    %cst_65 = arith.constant dense<0.000000e+00> : vector<16xf32>
    %58 = vector.multi_reduction <add>, %57, %cst_65 [0] : vector<512x16xf32> to vector<16xf32>
    %59 = vector.shape_cast %58 : vector<16xf32> to vector<1x16xf32>
    %60 = arith.mulf %57, %57 : vector<512x16xf32>
    %cst_66 = arith.constant dense<0.000000e+00> : vector<16xf32>
    %61 = vector.multi_reduction <add>, %60, %cst_66 [0] : vector<512x16xf32> to vector<16xf32>
    %62 = vector.shape_cast %61 : vector<16xf32> to vector<1x16xf32>
    %cst_67 = arith.constant 0.001953125 : f32
    %63 = vector.broadcast %cst_67 : f32 to vector<1x16xf32>
    %64 = arith.mulf %59, %63 : vector<1x16xf32>
    %cst_68 = arith.constant 0.001953125 : f32
    %65 = vector.broadcast %cst_68 : f32 to vector<1x16xf32>
    %66 = arith.mulf %62, %65 : vector<1x16xf32>
    %67 = arith.mulf %64, %64 : vector<1x16xf32>
    %68 = arith.subf %66, %67 : vector<1x16xf32>
    %c0_69 = arith.constant 0 : index
    %c0_70 = arith.constant 0 : index
    %69 = vector.load %arg3[%c0_69, %c0_70] : memref<1x16xf32, #tpu.memory_space<vmem>>, vector<1x16xf32>
    %cst_71 = arith.constant 9.99999974E-6 : f32
    %70 = vector.broadcast %cst_71 : f32 to vector<1x16xf32>
    %71 = arith.addf %68, %70 : vector<1x16xf32>
    %72 = math.rsqrt %71 : vector<1x16xf32>
    %73 = arith.mulf %69, %72 : vector<1x16xf32>
    %c0_72 = arith.constant 0 : index
    %c0_73 = arith.constant 0 : index
    %74 = vector.load %arg4[%c0_72, %c0_73] : memref<1x16xf32, #tpu.memory_space<vmem>>, vector<1x16xf32>
    %75 = arith.mulf %64, %73 : vector<1x16xf32>
    %76 = arith.subf %74, %75 : vector<1x16xf32>
    %77 = vector.broadcast %73 : vector<1x16xf32> to vector<512x16xf32>
    %78 = arith.mulf %57, %77 : vector<512x16xf32>
    %79 = vector.broadcast %76 : vector<1x16xf32> to vector<512x16xf32>
    %80 = arith.addf %78, %79 : vector<512x16xf32>
    %cst_74 = arith.constant 0.000000e+00 : f32
    %81 = vector.broadcast %cst_74 : f32 to vector<512x16xf32>
    %82 = arith.maximumf %80, %81 : vector<512x16xf32>
    %cst_75 = arith.constant 0.000000e+00 : f32
    %83 = vector.broadcast %cst_75 : f32 to vector<2x18x18x16xf32>
    %c0_76 = arith.constant 0 : index
    %c0_77 = arith.constant 0 : index
    %c0_78 = arith.constant 0 : index
    %c0_79 = arith.constant 0 : index
    %84 = vector.load %arg10[%c0_76, %c0_77, %c0_78, %c0_79] : memref<2x18x18x16xf32, #tpu.memory_space<vmem>>, vector<2x18x18x16xf32>
    tpu.vector_store %arg10[%c0_76, %c0_77, %c0_78, %c0_79], %83 {strides = array<i32>} : memref<2x18x18x16xf32, #tpu.memory_space<vmem>>, vector<2x18x18x16xf32>,
    %85 = vector.shape_cast %82 : vector<512x16xf32> to vector<2x16x16x16xf32>
    %c0_80 = arith.constant 0 : index
    %c1_81 = arith.constant 1 : index
    %c1_82 = arith.constant 1 : index
    %c0_83 = arith.constant 0 : index
    %86 = vector.load %arg10[%c0_80, %c1_81, %c1_82, %c0_83] : memref<2x18x18x16xf32, #tpu.memory_space<vmem>>, vector<2x16x16x16xf32>
    tpu.vector_store %arg10[%c0_80, %c1_81, %c1_82, %c0_83], %85 {strides = array<i32>} : memref<2x18x18x16xf32, #tpu.memory_space<vmem>>, vector<2x16x16x16xf32>,
    %cst_84 = arith.constant 0.000000e+00 : f32
    %87 = vector.broadcast %cst_84 : f32 to vector<512x16xf32>
    %c0_85 = arith.constant 0 : index
    %c0_86 = arith.constant 0 : index
    %c0_87 = arith.constant 0 : index
    %c0_88 = arith.constant 0 : index
    %88 = vector.load %arg10[%c0_85, %c0_86, %c0_87, %c0_88] : memref<2x18x18x16xf32, #tpu.memory_space<vmem>>, vector<2x16x16x16xf32>
    %89 = vector.shape_cast %88 : vector<2x16x16x16xf32> to vector<512x16xf32>
    %c0_89 = arith.constant 0 : index
    %c0_90 = arith.constant 0 : index
    %c0_91 = arith.constant 0 : index
    %90 = vector.load %arg5[%c0_89, %c0_90, %c0_91] : memref<9x16x16xf32, #tpu.memory_space<vmem>>, vector<1x16x16xf32>
    %91 = vector.shape_cast %90 : vector<1x16x16xf32> to vector<16x16xf32>
    %cst_92 = arith.constant dense<0.000000e+00> : vector<512x16xf32>
    %92 = tpu.matmul %89, %91, %cst_92 {dimension_numbers = #tpu.dot_dimension_numbers<[1], [0], [0], [1], [0, 0, 1, 1], [], []>} : vector<512x16xf32>, vector<16x16xf32>, vector<512x16xf32> -> vector<512x16xf32>
    %93 = arith.addf %87, %92 : vector<512x16xf32>
    %c0_93 = arith.constant 0 : index
    %c0_94 = arith.constant 0 : index
    %c1_95 = arith.constant 1 : index
    %c0_96 = arith.constant 0 : index
    %94 = vector.load %arg10[%c0_93, %c0_94, %c1_95, %c0_96] : memref<2x18x18x16xf32, #tpu.memory_space<vmem>>, vector<2x16x16x16xf32>
    %95 = vector.shape_cast %94 : vector<2x16x16x16xf32> to vector<512x16xf32>
    %c1_97 = arith.constant 1 : index
    %c0_98 = arith.constant 0 : index
    %c0_99 = arith.constant 0 : index
    %96 = vector.load %arg5[%c1_97, %c0_98, %c0_99] : memref<9x16x16xf32, #tpu.memory_space<vmem>>, vector<1x16x16xf32>
    %97 = vector.shape_cast %96 : vector<1x16x16xf32> to vector<16x16xf32>
    %cst_100 = arith.constant dense<0.000000e+00> : vector<512x16xf32>
    %98 = tpu.matmul %95, %97, %cst_100 {dimension_numbers = #tpu.dot_dimension_numbers<[1], [0], [0], [1], [0, 0, 1, 1], [], []>} : vector<512x16xf32>, vector<16x16xf32>, vector<512x16xf32> -> vector<512x16xf32>
    %99 = arith.addf %93, %98 : vector<512x16xf32>
    %c0_101 = arith.constant 0 : index
    %c0_102 = arith.constant 0 : index
    %c2_103 = arith.constant 2 : index
    %c0_104 = arith.constant 0 : index
    %100 = vector.load %arg10[%c0_101, %c0_102, %c2_103, %c0_104] : memref<2x18x18x16xf32, #tpu.memory_space<vmem>>, vector<2x16x16x16xf32>
    %101 = vector.shape_cast %100 : vector<2x16x16x16xf32> to vector<512x16xf32>
    %c2_105 = arith.constant 2 : index
    %c0_106 = arith.constant 0 : index
    %c0_107 = arith.constant 0 : index
    %102 = vector.load %arg5[%c2_105, %c0_106, %c0_107] : memref<9x16x16xf32, #tpu.memory_space<vmem>>, vector<1x16x16xf32>
    %103 = vector.shape_cast %102 : vector<1x16x16xf32> to vector<16x16xf32>
    %cst_108 = arith.constant dense<0.000000e+00> : vector<512x16xf32>
    %104 = tpu.matmul %101, %103, %cst_108 {dimension_numbers = #tpu.dot_dimension_numbers<[1], [0], [0], [1], [0, 0, 1, 1], [], []>} : vector<512x16xf32>, vector<16x16xf32>, vector<512x16xf32> -> vector<512x16xf32>
    %105 = arith.addf %99, %104 : vector<512x16xf32>
    %c0_109 = arith.constant 0 : index
    %c1_110 = arith.constant 1 : index
    %c0_111 = arith.constant 0 : index
    %c0_112 = arith.constant 0 : index
    %106 = vector.load %arg10[%c0_109, %c1_110, %c0_111, %c0_112] : memref<2x18x18x16xf32, #tpu.memory_space<vmem>>, vector<2x16x16x16xf32>
    %107 = vector.shape_cast %106 : vector<2x16x16x16xf32> to vector<512x16xf32>
    %c3_113 = arith.constant 3 : index
    %c0_114 = arith.constant 0 : index
    %c0_115 = arith.constant 0 : index
    %108 = vector.load %arg5[%c3_113, %c0_114, %c0_115] : memref<9x16x16xf32, #tpu.memory_space<vmem>>, vector<1x16x16xf32>
    %109 = vector.shape_cast %108 : vector<1x16x16xf32> to vector<16x16xf32>
    %cst_116 = arith.constant dense<0.000000e+00> : vector<512x16xf32>
    %110 = tpu.matmul %107, %109, %cst_116 {dimension_numbers = #tpu.dot_dimension_numbers<[1], [0], [0], [1], [0, 0, 1, 1], [], []>} : vector<512x16xf32>, vector<16x16xf32>, vector<512x16xf32> -> vector<512x16xf32>
    %111 = arith.addf %105, %110 : vector<512x16xf32>
    %c0_117 = arith.constant 0 : index
    %c1_118 = arith.constant 1 : index
    %c1_119 = arith.constant 1 : index
    %c0_120 = arith.constant 0 : index
    %112 = vector.load %arg10[%c0_117, %c1_118, %c1_119, %c0_120] : memref<2x18x18x16xf32, #tpu.memory_space<vmem>>, vector<2x16x16x16xf32>
    %113 = vector.shape_cast %112 : vector<2x16x16x16xf32> to vector<512x16xf32>
    %c4_121 = arith.constant 4 : index
    %c0_122 = arith.constant 0 : index
    %c0_123 = arith.constant 0 : index
    %114 = vector.load %arg5[%c4_121, %c0_122, %c0_123] : memref<9x16x16xf32, #tpu.memory_space<vmem>>, vector<1x16x16xf32>
    %115 = vector.shape_cast %114 : vector<1x16x16xf32> to vector<16x16xf32>
    %cst_124 = arith.constant dense<0.000000e+00> : vector<512x16xf32>
    %116 = tpu.matmul %113, %115, %cst_124 {dimension_numbers = #tpu.dot_dimension_numbers<[1], [0], [0], [1], [0, 0, 1, 1], [], []>} : vector<512x16xf32>, vector<16x16xf32>, vector<512x16xf32> -> vector<512x16xf32>
    %117 = arith.addf %111, %116 : vector<512x16xf32>
    %c0_125 = arith.constant 0 : index
    %c1_126 = arith.constant 1 : index
    %c2_127 = arith.constant 2 : index
    %c0_128 = arith.constant 0 : index
    %118 = vector.load %arg10[%c0_125, %c1_126, %c2_127, %c0_128] : memref<2x18x18x16xf32, #tpu.memory_space<vmem>>, vector<2x16x16x16xf32>
    %119 = vector.shape_cast %118 : vector<2x16x16x16xf32> to vector<512x16xf32>
    %c5_129 = arith.constant 5 : index
    %c0_130 = arith.constant 0 : index
    %c0_131 = arith.constant 0 : index
    %120 = vector.load %arg5[%c5_129, %c0_130, %c0_131] : memref<9x16x16xf32, #tpu.memory_space<vmem>>, vector<1x16x16xf32>
    %121 = vector.shape_cast %120 : vector<1x16x16xf32> to vector<16x16xf32>
    %cst_132 = arith.constant dense<0.000000e+00> : vector<512x16xf32>
    %122 = tpu.matmul %119, %121, %cst_132 {dimension_numbers = #tpu.dot_dimension_numbers<[1], [0], [0], [1], [0, 0, 1, 1], [], []>} : vector<512x16xf32>, vector<16x16xf32>, vector<512x16xf32> -> vector<512x16xf32>
    %123 = arith.addf %117, %122 : vector<512x16xf32>
    %c0_133 = arith.constant 0 : index
    %c2_134 = arith.constant 2 : index
    %c0_135 = arith.constant 0 : index
    %c0_136 = arith.constant 0 : index
    %124 = vector.load %arg10[%c0_133, %c2_134, %c0_135, %c0_136] : memref<2x18x18x16xf32, #tpu.memory_space<vmem>>, vector<2x16x16x16xf32>
    %125 = vector.shape_cast %124 : vector<2x16x16x16xf32> to vector<512x16xf32>
    %c6_137 = arith.constant 6 : index
    %c0_138 = arith.constant 0 : index
    %c0_139 = arith.constant 0 : index
    %126 = vector.load %arg5[%c6_137, %c0_138, %c0_139] : memref<9x16x16xf32, #tpu.memory_space<vmem>>, vector<1x16x16xf32>
    %127 = vector.shape_cast %126 : vector<1x16x16xf32> to vector<16x16xf32>
    %cst_140 = arith.constant dense<0.000000e+00> : vector<512x16xf32>
    %128 = tpu.matmul %125, %127, %cst_140 {dimension_numbers = #tpu.dot_dimension_numbers<[1], [0], [0], [1], [0, 0, 1, 1], [], []>} : vector<512x16xf32>, vector<16x16xf32>, vector<512x16xf32> -> vector<512x16xf32>
    %129 = arith.addf %123, %128 : vector<512x16xf32>
    %c0_141 = arith.constant 0 : index
    %c2_142 = arith.constant 2 : index
    %c1_143 = arith.constant 1 : index
    %c0_144 = arith.constant 0 : index
    %130 = vector.load %arg10[%c0_141, %c2_142, %c1_143, %c0_144] : memref<2x18x18x16xf32, #tpu.memory_space<vmem>>, vector<2x16x16x16xf32>
    %131 = vector.shape_cast %130 : vector<2x16x16x16xf32> to vector<512x16xf32>
    %c7_145 = arith.constant 7 : index
    %c0_146 = arith.constant 0 : index
    %c0_147 = arith.constant 0 : index
    %132 = vector.load %arg5[%c7_145, %c0_146, %c0_147] : memref<9x16x16xf32, #tpu.memory_space<vmem>>, vector<1x16x16xf32>
    %133 = vector.shape_cast %132 : vector<1x16x16xf32> to vector<16x16xf32>
    %cst_148 = arith.constant dense<0.000000e+00> : vector<512x16xf32>
    %134 = tpu.matmul %131, %133, %cst_148 {dimension_numbers = #tpu.dot_dimension_numbers<[1], [0], [0], [1], [0, 0, 1, 1], [], []>} : vector<512x16xf32>, vector<16x16xf32>, vector<512x16xf32> -> vector<512x16xf32>
    %135 = arith.addf %129, %134 : vector<512x16xf32>
    %c0_149 = arith.constant 0 : index
    %c2_150 = arith.constant 2 : index
    %c2_151 = arith.constant 2 : index
    %c0_152 = arith.constant 0 : index
    %136 = vector.load %arg10[%c0_149, %c2_150, %c2_151, %c0_152] : memref<2x18x18x16xf32, #tpu.memory_space<vmem>>, vector<2x16x16x16xf32>
    %137 = vector.shape_cast %136 : vector<2x16x16x16xf32> to vector<512x16xf32>
    %c8_153 = arith.constant 8 : index
    %c0_154 = arith.constant 0 : index
    %c0_155 = arith.constant 0 : index
    %138 = vector.load %arg5[%c8_153, %c0_154, %c0_155] : memref<9x16x16xf32, #tpu.memory_space<vmem>>, vector<1x16x16xf32>
    %139 = vector.shape_cast %138 : vector<1x16x16xf32> to vector<16x16xf32>
    %cst_156 = arith.constant dense<0.000000e+00> : vector<512x16xf32>
    %140 = tpu.matmul %137, %139, %cst_156 {dimension_numbers = #tpu.dot_dimension_numbers<[1], [0], [0], [1], [0, 0, 1, 1], [], []>} : vector<512x16xf32>, vector<16x16xf32>, vector<512x16xf32> -> vector<512x16xf32>
    %141 = arith.addf %135, %140 : vector<512x16xf32>
    %c0_157 = arith.constant 0 : index
    %c0_158 = arith.constant 0 : index
    %142 = vector.load %arg6[%c0_157, %c0_158] : memref<1x16xf32, #tpu.memory_space<vmem>>, vector<1x16xf32>
    %143 = vector.broadcast %142 : vector<1x16xf32> to vector<512x16xf32>
    %144 = arith.addf %141, %143 : vector<512x16xf32>
    %cst_159 = arith.constant dense<0.000000e+00> : vector<16xf32>
    %145 = vector.multi_reduction <add>, %144, %cst_159 [0] : vector<512x16xf32> to vector<16xf32>
    %146 = vector.shape_cast %145 : vector<16xf32> to vector<1x16xf32>
    %147 = arith.mulf %144, %144 : vector<512x16xf32>
    %cst_160 = arith.constant dense<0.000000e+00> : vector<16xf32>
    %148 = vector.multi_reduction <add>, %147, %cst_160 [0] : vector<512x16xf32> to vector<16xf32>
    %149 = vector.shape_cast %148 : vector<16xf32> to vector<1x16xf32>
    %cst_161 = arith.constant 0.001953125 : f32
    %150 = vector.broadcast %cst_161 : f32 to vector<1x16xf32>
    %151 = arith.mulf %146, %150 : vector<1x16xf32>
    %cst_162 = arith.constant 0.001953125 : f32
    %152 = vector.broadcast %cst_162 : f32 to vector<1x16xf32>
    %153 = arith.mulf %149, %152 : vector<1x16xf32>
    %154 = arith.mulf %151, %151 : vector<1x16xf32>
    %155 = arith.subf %153, %154 : vector<1x16xf32>
    %c0_163 = arith.constant 0 : index
    %c0_164 = arith.constant 0 : index
    %156 = vector.load %arg7[%c0_163, %c0_164] : memref<1x16xf32, #tpu.memory_space<vmem>>, vector<1x16xf32>
    %cst_165 = arith.constant 9.99999974E-6 : f32
    %157 = vector.broadcast %cst_165 : f32 to vector<1x16xf32>
    %158 = arith.addf %155, %157 : vector<1x16xf32>
    %159 = math.rsqrt %158 : vector<1x16xf32>
    %160 = arith.mulf %156, %159 : vector<1x16xf32>
    %c0_166 = arith.constant 0 : index
    %c0_167 = arith.constant 0 : index
    %161 = vector.load %arg8[%c0_166, %c0_167] : memref<1x16xf32, #tpu.memory_space<vmem>>, vector<1x16xf32>
    %162 = arith.mulf %151, %160 : vector<1x16xf32>
    %163 = arith.subf %161, %162 : vector<1x16xf32>
    %164 = vector.broadcast %160 : vector<1x16xf32> to vector<512x16xf32>
    %165 = arith.mulf %144, %164 : vector<512x16xf32>
    %166 = vector.broadcast %163 : vector<1x16xf32> to vector<512x16xf32>
    %167 = arith.addf %165, %166 : vector<512x16xf32>
    %cst_168 = arith.constant 0.000000e+00 : f32
    %168 = vector.broadcast %cst_168 : f32 to vector<512x16xf32>
    %169 = arith.maximumf %167, %168 : vector<512x16xf32>
    %170 = vector.shape_cast %169 : vector<512x16xf32> to vector<16x2x16x16xf32>
    %171 = vector.extract_strided_slice %170 {offsets = [0, 0, 0, 0], sizes = [16, 1, 16, 16], strides = [1, 1, 1, 1]} : vector<16x2x16x16xf32> to vector<16x1x16x16xf32>
    %172 = vector.shape_cast %171 : vector<16x1x16x16xf32> to vector<16x16x16xf32>
    %173 = vector.extract_strided_slice %170 {offsets = [0, 1, 0, 0], sizes = [16, 1, 16, 16], strides = [1, 1, 1, 1]} : vector<16x2x16x16xf32> to vector<16x1x16x16xf32>
    %174 = vector.shape_cast %173 : vector<16x1x16x16xf32> to vector<16x16x16xf32>
    %175 = arith.maximumf %172, %174 : vector<16x16x16xf32>
    %c0_169 = arith.constant 0 : index
    %c0_170 = arith.constant 0 : index
    %c0_171 = arith.constant 0 : index
    %176 = vector.load %arg11[%c0_169, %c0_170, %c0_171] : memref<16x16x16xf32, #tpu.memory_space<vmem>>, vector<16x16x16xf32>
    tpu.vector_store %arg11[%c0_169, %c0_170, %c0_171], %175 {strides = array<i32>} : memref<16x16x16xf32, #tpu.memory_space<vmem>>, vector<16x16x16xf32>,
    %c0_172 = arith.constant 0 : index
    %c0_173 = arith.constant 0 : index
    %c0_174 = arith.constant 0 : index
    %177 = tpu.strided_load %arg11[%c0_172, %c0_173, %c0_174] {strides = array<i32: 1, 2, 1>} : memref<16x16x16xf32, #tpu.memory_space<vmem>>, vector<16x8x16xf32>
    %c0_175 = arith.constant 0 : index
    %c1_176 = arith.constant 1 : index
    %c0_177 = arith.constant 0 : index
    %178 = tpu.strided_load %arg11[%c0_175, %c1_176, %c0_177] {strides = array<i32: 1, 2, 1>} : memref<16x16x16xf32, #tpu.memory_space<vmem>>, vector<16x8x16xf32>
    %179 = arith.maximumf %177, %178 : vector<16x8x16xf32>
    %180 = vector.shape_cast %179 : vector<16x8x16xf32> to vector<2x8x8x16xf32>
    %c0_178 = arith.constant 0 : index
    %c0_179 = arith.constant 0 : index
    %c0_180 = arith.constant 0 : index
    %c0_181 = arith.constant 0 : index
    %181 = vector.load %arg9[%c0_178, %c0_179, %c0_180, %c0_181] : memref<2x8x8x16xf32, #tpu.memory_space<vmem>>, vector<2x8x8x16xf32>
    tpu.vector_store %arg9[%c0_178, %c0_179, %c0_180, %c0_181], %180 {strides = array<i32>} : memref<2x8x8x16xf32, #tpu.memory_space<vmem>>, vector<2x8x8x16xf32>,
    return
  }
}

</mosaic_0001>

<llo_original>
// kernel: down_sample_blk_forward.1
$region0: #{down_sample_blk_forward.1}
  #allocation0 [shape = 'u32[]', space=smem, size = 0x4, offset = 0x4, fixed_abs, tag = 'smem constant byte address 0x4 - core index']
  #allocation1 [shape = 'u32[72,128]{1,0:T(1,128)}', space=vmem, size = 0x9000, scoped, tag = 'internal scratch']
  #allocation2 [shape = 'f32[2,18,18,16]{3,2,1,0:T(8,128)}', space=vmem, size = 0x6c000, scoped, tag = 'scratch operand']
  #allocation3 [shape = 'f32[16,16,16]{2,1,0:T(8,128)}', space=vmem, size = 0x20000, scoped, tag = 'scratch operand']
  %s0 = inlined_call_operand.vmem [shape: f32[2,18,18,4], index: 0, kind: input, shape index: {}]
  %s1 = inlined_call_operand.vmem [shape: f32[9,4,16], index: 1, kind: input, shape index: {}]
  %s2 = inlined_call_operand.vmem [shape: f32[1,16], index: 2, kind: input, shape index: {}]
  %s3 = inlined_call_operand.vmem [shape: f32[1,16], index: 3, kind: input, shape index: {}]
  %s4 = inlined_call_operand.vmem [shape: f32[1,16], index: 4, kind: input, shape index: {}]
  %s5 = inlined_call_operand.vmem [shape: f32[9,16,16], index: 5, kind: input, shape index: {}]
  %s6 = inlined_call_operand.vmem [shape: f32[1,16], index: 6, kind: input, shape index: {}]
  %s7 = inlined_call_operand.vmem [shape: f32[1,16], index: 7, kind: input, shape index: {}]
  %s8 = inlined_call_operand.vmem [shape: f32[1,16], index: 8, kind: input, shape index: {}]
  %s9 = inlined_call_operand.hbm [shape: f32[2,8,8,16], index: 9, kind: output, shape index: {}]
  %s10 = sld [smem:[#allocation0]]
  $region46: #{down_sample_blk_forward.1} parent=0
    _
  %s12 = ssub.s32 1, %s10
  %s13 = scalar_select 0, %s12, %s10
  $region1: #{down_sample_blk_forward.1} parent=0
    #allocation4 [shape = 'u8[65536]{0}', space=vmem, size = 0x10000, scoped, tag = 'output window, operand 0, single buffered']
    #allocation5 [shape = 's32[1]{0}', space=sflag, size = 0x4, scoped, tag = 'scoped memory for down_sample_blk_forward.1']
    %14 = vsyncpa [#allocation5], 0
    // Predicated region
    $region2: #{down_sample_blk_forward.1} parent=1 // pred_check
      _
    $region3: #{down_sample_blk_forward.1} parent=1 // pred_check_branch
      %16 = sbr.rel (0) target = $region5
    $region4: #{down_sample_blk_forward.1} parent=1 // pred_region
      _
    $region5: #{down_sample_blk_forward.1} parent=1 // pred_fallthru
      _
    // Predicated region
    $region6: #{down_sample_blk_forward.1} parent=1 // pred_check
      _
    $region7: #{down_sample_blk_forward.1} parent=1 // pred_check_branch
      %18 = sbr.rel (0) target = $region9
    $region8: #{down_sample_blk_forward.1} parent=1 // pred_region
      _
    $region9: #{down_sample_blk_forward.1} parent=1 // pred_fallthru
      _
    // Predicated region
    $region10: #{down_sample_blk_forward.1} parent=1 // pred_check
      _
    $region11: #{down_sample_blk_forward.1} parent=1 // pred_check_branch
      %20 = sbr.rel (0) target = $region13
    $region12: #{down_sample_blk_forward.1} parent=1 // pred_region
      _
    $region13: #{down_sample_blk_forward.1} parent=1 // pred_fallthru
      _
    // Predicated region
    $region14: #{down_sample_blk_forward.1} parent=1 // pred_check
      _
    $region15: #{down_sample_blk_forward.1} parent=1 // pred_check_branch
      %22 = sbr.rel (0) target = $region17
    $region16: #{down_sample_blk_forward.1} parent=1 // pred_region
      _
    $region17: #{down_sample_blk_forward.1} parent=1 // pred_fallthru
      _
    // Predicated region
    $region18: #{down_sample_blk_forward.1} parent=1 // pred_check
      _
    $region19: #{down_sample_blk_forward.1} parent=1 // pred_check_branch
      %24 = sbr.rel (0) target = $region21
    $region20: #{down_sample_blk_forward.1} parent=1 // pred_region
      _
    $region21: #{down_sample_blk_forward.1} parent=1 // pred_fallthru
      _
    // Predicated region
    $region22: #{down_sample_blk_forward.1} parent=1 // pred_check
      _
    $region23: #{down_sample_blk_forward.1} parent=1 // pred_check_branch
      %26 = sbr.rel (0) target = $region25
    $region24: #{down_sample_blk_forward.1} parent=1 // pred_region
      _
    $region25: #{down_sample_blk_forward.1} parent=1 // pred_fallthru
      _
    // Predicated region
    $region26: #{down_sample_blk_forward.1} parent=1 // pred_check
      _
    $region27: #{down_sample_blk_forward.1} parent=1 // pred_check_branch
      %28 = sbr.rel (0) target = $region29
    $region28: #{down_sample_blk_forward.1} parent=1 // pred_region
      _
    $region29: #{down_sample_blk_forward.1} parent=1 // pred_fallthru
      _
    // Predicated region
    $region30: #{down_sample_blk_forward.1} parent=1 // pred_check
      _
    $region31: #{down_sample_blk_forward.1} parent=1 // pred_check_branch
      %30 = sbr.rel (0) target = $region33
    $region32: #{down_sample_blk_forward.1} parent=1 // pred_region
      _
    $region33: #{down_sample_blk_forward.1} parent=1 // pred_fallthru
      _
    // Predicated region
    $region34: #{down_sample_blk_forward.1} parent=1 // pred_check
      _
    $region35: #{down_sample_blk_forward.1} parent=1 // pred_check_branch
      %32 = sbr.rel (0) target = $region37
    $region36: #{down_sample_blk_forward.1} parent=1 // pred_region
      _
    $region37: #{down_sample_blk_forward.1} parent=1 // pred_fallthru
      _
    %v33 = vld [vmem:[%s0] sm:$0xff]
    %v34 = vld [vmem:[%s0 + $0x8] sm:$0xff]
    %v35 = vld [vmem:[%s0 + $0x18] sm:$0xff]
    %v36 = vld [vmem:[%s0 + $0x20] sm:$0xff]
    %v37 = vld [vmem:[%s0 + $0x30] sm:$0xff]
    %v38 = vld [vmem:[%s0 + $0x38] sm:$0xff]
    %v39 = vld [vmem:[%s0 + $0x48] sm:$0xff]
    %v40 = vld [vmem:[%s0 + $0x50] sm:$0xff]
    %v41 = vld [vmem:[%s0 + $0x60] sm:$0xff]
    %v42 = vld [vmem:[%s0 + $0x68] sm:$0xff]
    %v43 = vld [vmem:[%s0 + $0x78] sm:$0xff]
    %v44 = vld [vmem:[%s0 + $0x80] sm:$0xff]
    %v45 = vld [vmem:[%s0 + $0x90] sm:$0xff]
    %v46 = vld [vmem:[%s0 + $0x98] sm:$0xff]
    %v47 = vld [vmem:[%s0 + $0xa8] sm:$0xff]
    %v48 = vld [vmem:[%s0 + $0xb0] sm:$0xff]
    %v49 = vld [vmem:[%s0 + $0xc0] sm:$0xff]
    %v50 = vld [vmem:[%s0 + $0xc8] sm:$0xff]
    %v51 = vld [vmem:[%s0 + $0xd8] sm:$0xff]
    %v52 = vld [vmem:[%s0 + $0xe0] sm:$0xff]
    %v53 = vld [vmem:[%s0 + $0xf0] sm:$0xff]
    %v54 = vld [vmem:[%s0 + $0xf8] sm:$0xff]
    %v55 = vld [vmem:[%s0 + $0x108] sm:$0xff]
    %v56 = vld [vmem:[%s0 + $0x110] sm:$0xff]
    %v57 = vld [vmem:[%s0 + $0x120] sm:$0xff]
    %v58 = vld [vmem:[%s0 + $0x128] sm:$0xff]
    %v59 = vld [vmem:[%s0 + $0x138] sm:$0xff]
    %v60 = vld [vmem:[%s0 + $0x140] sm:$0xff]
    %v61 = vld [vmem:[%s0 + $0x150] sm:$0xff]
    %v62 = vld [vmem:[%s0 + $0x158] sm:$0xff]
    %v63 = vld [vmem:[%s0 + $0x168] sm:$0xff]
    %v64 = vld [vmem:[%s0 + $0x170] sm:$0xff]
    %v65 = vld [vmem:[%s0 + $0x1b0] sm:$0xff]
    %v66 = vld [vmem:[%s0 + $0x1b8] sm:$0xff]
    %v67 = vld [vmem:[%s0 + $0x1c8] sm:$0xff]
    %v68 = vld [vmem:[%s0 + $0x1d0] sm:$0xff]
    %v69 = vld [vmem:[%s0 + $0x1e0] sm:$0xff]
    %v70 = vld [vmem:[%s0 + $0x1e8] sm:$0xff]
    %v71 = vld [vmem:[%s0 + $0x1f8] sm:$0xff]
    %v72 = vld [vmem:[%s0 + $0x200] sm:$0xff]
    %v73 = vld [vmem:[%s0 + $0x210] sm:$0xff]
    %v74 = vld [vmem:[%s0 + $0x218] sm:$0xff]
    %v75 = vld [vmem:[%s0 + $0x228] sm:$0xff]
    %v76 = vld [vmem:[%s0 + $0x230] sm:$0xff]
    %v77 = vld [vmem:[%s0 + $0x240] sm:$0xff]
    %v78 = vld [vmem:[%s0 + $0x248] sm:$0xff]
    %v79 = vld [vmem:[%s0 + $0x258] sm:$0xff]
    %v80 = vld [vmem:[%s0 + $0x260] sm:$0xff]
    %v81 = vld [vmem:[%s0 + $0x270] sm:$0xff]
    %v82 = vld [vmem:[%s0 + $0x278] sm:$0xff]
    %v83 = vld [vmem:[%s0 + $0x288] sm:$0xff]
    %v84 = vld [vmem:[%s0 + $0x290] sm:$0xff]
    %v85 = vld [vmem:[%s0 + $0x2a0] sm:$0xff]
    %v86 = vld [vmem:[%s0 + $0x2a8] sm:$0xff]
    %v87 = vld [vmem:[%s0 + $0x2b8] sm:$0xff]
    %v88 = vld [vmem:[%s0 + $0x2c0] sm:$0xff]
    %v89 = vld [vmem:[%s0 + $0x2d0] sm:$0xff]
    %v90 = vld [vmem:[%s0 + $0x2d8] sm:$0xff]
    %v91 = vld [vmem:[%s0 + $0x2e8] sm:$0xff]
    %v92 = vld [vmem:[%s0 + $0x2f0] sm:$0xff]
    %v93 = vld [vmem:[%s0 + $0x300] sm:$0xff]
    %v94 = vld [vmem:[%s0 + $0x308] sm:$0xff]
    %v95 = vld [vmem:[%s0 + $0x318] sm:$0xff]
    %v96 = vld [vmem:[%s0 + $0x320] sm:$0xff]
    %v97 = vld [vmem:[%s1] sm:$0xf]
    %v98 = vld [vmem:[%s0 + $0x1] sm:$0xff]
    %v99 = vld [vmem:[%s0 + $0x9] sm:$0xff]
    %v100 = vld [vmem:[%s0 + $0x19] sm:$0xff]
    %v101 = vld [vmem:[%s0 + $0x21] sm:$0xff]
    %v102 = vld [vmem:[%s0 + $0x31] sm:$0xff]
    %v103 = vld [vmem:[%s0 + $0x39] sm:$0xff]
    %v104 = vld [vmem:[%s0 + $0x49] sm:$0xff]
    %v105 = vld [vmem:[%s0 + $0x51] sm:$0xff]
    %v106 = vld [vmem:[%s0 + $0x61] sm:$0xff]
    %v107 = vld [vmem:[%s0 + $0x69] sm:$0xff]
    %v108 = vld [vmem:[%s0 + $0x79] sm:$0xff]
    %v109 = vld [vmem:[%s0 + $0x81] sm:$0xff]
    %v110 = vld [vmem:[%s0 + $0x91] sm:$0xff]
    %v111 = vld [vmem:[%s0 + $0x99] sm:$0xff]
    %v112 = vld [vmem:[%s0 + $0xa9] sm:$0xff]
    %v113 = vld [vmem:[%s0 + $0xb1] sm:$0xff]
    %v114 = vld [vmem:[%s0 + $0xc1] sm:$0xff]
    %v115 = vld [vmem:[%s0 + $0xc9] sm:$0xff]
    %v116 = vld [vmem:[%s0 + $0xd9] sm:$0xff]
    %v117 = vld [vmem:[%s0 + $0xe1] sm:$0xff]
    %v118 = vld [vmem:[%s0 + $0xf1] sm:$0xff]
    %v119 = vld [vmem:[%s0 + $0xf9] sm:$0xff]
    %v120 = vld [vmem:[%s0 + $0x109] sm:$0xff]
    %v121 = vld [vmem:[%s0 + $0x111] sm:$0xff]
    %v122 = vld [vmem:[%s0 + $0x121] sm:$0xff]
    %v123 = vld [vmem:[%s0 + $0x129] sm:$0xff]
    %v124 = vld [vmem:[%s0 + $0x139] sm:$0xff]
    %v125 = vld [vmem:[%s0 + $0x141] sm:$0xff]
    %v126 = vld [vmem:[%s0 + $0x151] sm:$0xff]
    %v127 = vld [vmem:[%s0 + $0x159] sm:$0xff]
    %v128 = vld [vmem:[%s0 + $0x169] sm:$0xff]
    %v129 = vld [vmem:[%s0 + $0x171] sm:$0xff]
    %v130 = vld [vmem:[%s0 + $0x1b1] sm:$0xff]
    %v131 = vld [vmem:[%s0 + $0x1b9] sm:$0xff]
    %v132 = vld [vmem:[%s0 + $0x1c9] sm:$0xff]
    %v133 = vld [vmem:[%s0 + $0x1d1] sm:$0xff]
    %v134 = vld [vmem:[%s0 + $0x1e1] sm:$0xff]
    %v135 = vld [vmem:[%s0 + $0x1e9] sm:$0xff]
    %v136 = vld [vmem:[%s0 + $0x1f9] sm:$0xff]
    %v137 = vld [vmem:[%s0 + $0x201] sm:$0xff]
    %v138 = vld [vmem:[%s0 + $0x211] sm:$0xff]
    %v139 = vld [vmem:[%s0 + $0x219] sm:$0xff]
    %v140 = vld [vmem:[%s0 + $0x229] sm:$0xff]
    %v141 = vld [vmem:[%s0 + $0x231] sm:$0xff]
    %v142 = vld [vmem:[%s0 + $0x241] sm:$0xff]
    %v143 = vld [vmem:[%s0 + $0x249] sm:$0xff]
    %v144 = vld [vmem:[%s0 + $0x259] sm:$0xff]
    %v145 = vld [vmem:[%s0 + $0x261] sm:$0xff]
    %v146 = vld [vmem:[%s0 + $0x271] sm:$0xff]
    %v147 = vld [vmem:[%s0 + $0x279] sm:$0xff]
    %v148 = vld [vmem:[%s0 + $0x289] sm:$0xff]
    %v149 = vld [vmem:[%s0 + $0x291] sm:$0xff]
    %v150 = vld [vmem:[%s0 + $0x2a1] sm:$0xff]
    %v151 = vld [vmem:[%s0 + $0x2a9] sm:$0xff]
    %v152 = vld [vmem:[%s0 + $0x2b9] sm:$0xff]
    %v153 = vld [vmem:[%s0 + $0x2c1] sm:$0xff]
    %v154 = vld [vmem:[%s0 + $0x2d1] sm:$0xff]
    %v155 = vld [vmem:[%s0 + $0x2d9] sm:$0xff]
    %v156 = vld [vmem:[%s0 + $0x2e9] sm:$0xff]
    %v157 = vld [vmem:[%s0 + $0x2f1] sm:$0xff]
    %v158 = vld [vmem:[%s0 + $0x301] sm:$0xff]
    %v159 = vld [vmem:[%s0 + $0x309] sm:$0xff]
    %v160 = vld [vmem:[%s0 + $0x319] sm:$0xff]
    %v161 = vld [vmem:[%s0 + $0x321] sm:$0xff]
    %s162 = scalar_lea.vmem %s1, 4
    %v163 = vld [vmem:[%s162] sm:$0xf]
    %vm164 = vcmask 31744
    %v166 = vsel %vm164, %v98, 0
    %v169 = vsel %vm164, %v99, 0
    %v172 = vsel %vm164, %v100, 0
    %v175 = vsel %vm164, %v101, 0
    %v178 = vsel %vm164, %v102, 0
    %v181 = vsel %vm164, %v103, 0
    %v184 = vsel %vm164, %v104, 0
    %v187 = vsel %vm164, %v105, 0
    %v190 = vsel %vm164, %v106, 0
    %v193 = vsel %vm164, %v107, 0
    %v196 = vsel %vm164, %v108, 0
    %v199 = vsel %vm164, %v109, 0
    %v202 = vsel %vm164, %v110, 0
    %v205 = vsel %vm164, %v111, 0
    %v208 = vsel %vm164, %v112, 0
    %v211 = vsel %vm164, %v113, 0
    %v214 = vsel %vm164, %v114, 0
    %v217 = vsel %vm164, %v115, 0
    %v220 = vsel %vm164, %v116, 0
    %v223 = vsel %vm164, %v117, 0
    %v226 = vsel %vm164, %v118, 0
    %v229 = vsel %vm164, %v119, 0
    %v232 = vsel %vm164, %v120, 0
    %v235 = vsel %vm164, %v121, 0
    %v238 = vsel %vm164, %v122, 0
    %v241 = vsel %vm164, %v123, 0
    %v244 = vsel %vm164, %v124, 0
    %v247 = vsel %vm164, %v125, 0
    %v250 = vsel %vm164, %v126, 0
    %v253 = vsel %vm164, %v127, 0
    %v256 = vsel %vm164, %v128, 0
    %v259 = vsel %vm164, %v129, 0
    %v262 = vsel %vm164, %v130, 0
    %v265 = vsel %vm164, %v131, 0
    %v268 = vsel %vm164, %v132, 0
    %v271 = vsel %vm164, %v133, 0
    %v274 = vsel %vm164, %v134, 0
    %v277 = vsel %vm164, %v135, 0
    %v280 = vsel %vm164, %v136, 0
    %v283 = vsel %vm164, %v137, 0
    %v286 = vsel %vm164, %v138, 0
    %v289 = vsel %vm164, %v139, 0
    %v292 = vsel %vm164, %v140, 0
    %v295 = vsel %vm164, %v141, 0
    %v298 = vsel %vm164, %v142, 0
    %v301 = vsel %vm164, %v143, 0
    %v304 = vsel %vm164, %v144, 0
    %v307 = vsel %vm164, %v145, 0
    %v310 = vsel %vm164, %v146, 0
    %v313 = vsel %vm164, %v147, 0
    %v316 = vsel %vm164, %v148, 0
    %v319 = vsel %vm164, %v149, 0
    %v322 = vsel %vm164, %v150, 0
    %v325 = vsel %vm164, %v151, 0
    %v328 = vsel %vm164, %v152, 0
    %v331 = vsel %vm164, %v153, 0
    %v334 = vsel %vm164, %v154, 0
    %v337 = vsel %vm164, %v155, 0
    %v340 = vsel %vm164, %v156, 0
    %v343 = vsel %vm164, %v157, 0
    %v346 = vsel %vm164, %v158, 0
    %v349 = vsel %vm164, %v159, 0
    %v352 = vsel %vm164, %v160, 0
    %v355 = vsel %vm164, %v161, 0
    %vm357 = vcmask 1043456
    %v359 = vsel %vm357, %v163, 0
    %361 = vmatpush.msra.mxu0 0.0
    %362 = vmatpush.msra.mxu0 0.0
    %363 = vmatpush.msra.mxu0 0.0
    %364 = vmatpush.msra.mxu0 0.0
    %365 = vmatpush.msra.mxu0 0.0
    %366 = vmatpush.msra.mxu0 0.0
    %367 = vmatpush.msra.mxu0 0.0
    %368 = vmatpush.msra.mxu0 0.0
    %369 = vmatpush.msra.mxu0 0.0
    %370 = vmatpush.msra.mxu0 0.0
    %371 = vmatpush.msra.mxu0 0.0
    %372 = vmatpush.msra.mxu0 0.0
    %373 = vmatpush.msra.mxu0 0.0
    %374 = vmatpush.msra.mxu0 0.0
    %375 = vmatpush.msra.mxu0 0.0
    %376 = vmatpush.msra.mxu0 %v359
    %377 = vmatmul.f32.gmra.mxu0 %v166
    %v378 = vpop.f32.mrf.mxu0
    %v379 = vadd.f32 0.0, %v378
    %380 = vmatmul.f32.gmra.mxu0 %v169
    %v381 = vpop.f32.mrf.mxu0
    %v382 = vadd.f32 0.0, %v381
    %383 = vmatmul.f32.gmra.mxu0 %v172
    %v384 = vpop.f32.mrf.mxu0
    %v385 = vadd.f32 0.0, %v384
    %386 = vmatmul.f32.gmra.mxu0 %v175
    %v387 = vpop.f32.mrf.mxu0
    %v388 = vadd.f32 0.0, %v387
    %389 = vmatmul.f32.gmra.mxu0 %v178
    %v390 = vpop.f32.mrf.mxu0
    %v391 = vadd.f32 0.0, %v390
    %392 = vmatmul.f32.gmra.mxu0 %v181
    %v393 = vpop.f32.mrf.mxu0
    %v394 = vadd.f32 0.0, %v393
    %395 = vmatmul.f32.gmra.mxu0 %v184
    %v396 = vpop.f32.mrf.mxu0
    %v397 = vadd.f32 0.0, %v396
    %398 = vmatmul.f32.gmra.mxu0 %v187
    %v399 = vpop.f32.mrf.mxu0
    %v400 = vadd.f32 0.0, %v399
    %401 = vmatmul.f32.gmra.mxu0 %v190
    %v402 = vpop.f32.mrf.mxu0
    %v403 = vadd.f32 0.0, %v402
    %404 = vmatmul.f32.gmra.mxu0 %v193
    %v405 = vpop.f32.mrf.mxu0
    %v406 = vadd.f32 0.0, %v405
    %407 = vmatmul.f32.gmra.mxu0 %v196
    %v408 = vpop.f32.mrf.mxu0
    %v409 = vadd.f32 0.0, %v408
    %410 = vmatmul.f32.gmra.mxu0 %v199
    %v411 = vpop.f32.mrf.mxu0
    %v412 = vadd.f32 0.0, %v411
    %413 = vmatmul.f32.gmra.mxu0 %v202
    %v414 = vpop.f32.mrf.mxu0
    %v415 = vadd.f32 0.0, %v414
    %416 = vmatmul.f32.gmra.mxu0 %v205
    %v417 = vpop.f32.mrf.mxu0
    %v418 = vadd.f32 0.0, %v417
    %419 = vmatmul.f32.gmra.mxu0 %v208
    %v420 = vpop.f32.mrf.mxu0
    %v421 = vadd.f32 0.0, %v420
    %422 = vmatmul.f32.gmra.mxu0 %v211
    %v423 = vpop.f32.mrf.mxu0
    %v424 = vadd.f32 0.0, %v423
    %425 = vmatmul.f32.gmra.mxu0 %v214
    %v426 = vpop.f32.mrf.mxu0
    %v427 = vadd.f32 0.0, %v426
    %428 = vmatmul.f32.gmra.mxu0 %v217
    %v429 = vpop.f32.mrf.mxu0
    %v430 = vadd.f32 0.0, %v429
    %431 = vmatmul.f32.gmra.mxu0 %v220
    %v432 = vpop.f32.mrf.mxu0
    %v433 = vadd.f32 0.0, %v432
    %434 = vmatmul.f32.gmra.mxu0 %v223
    %v435 = vpop.f32.mrf.mxu0
    %v436 = vadd.f32 0.0, %v435
    %437 = vmatmul.f32.gmra.mxu0 %v226
    %v438 = vpop.f32.mrf.mxu0
    %v439 = vadd.f32 0.0, %v438
    %440 = vmatmul.f32.gmra.mxu0 %v229
    %v441 = vpop.f32.mrf.mxu0
    %v442 = vadd.f32 0.0, %v441
    %443 = vmatmul.f32.gmra.mxu0 %v232
    %v444 = vpop.f32.mrf.mxu0
    %v445 = vadd.f32 0.0, %v444
    %446 = vmatmul.f32.gmra.mxu0 %v235
    %v447 = vpop.f32.mrf.mxu0
    %v448 = vadd.f32 0.0, %v447
    %449 = vmatmul.f32.gmra.mxu0 %v238
    %v450 = vpop.f32.mrf.mxu0
    %v451 = vadd.f32 0.0, %v450
    %452 = vmatmul.f32.gmra.mxu0 %v241
    %v453 = vpop.f32.mrf.mxu0
    %v454 = vadd.f32 0.0, %v453
    %455 = vmatmul.f32.gmra.mxu0 %v244
    %v456 = vpop.f32.mrf.mxu0
    %v457 = vadd.f32 0.0, %v456
    %458 = vmatmul.f32.gmra.mxu0 %v247
    %v459 = vpop.f32.mrf.mxu0
    %v460 = vadd.f32 0.0, %v459
    %461 = vmatmul.f32.gmra.mxu0 %v250
    %v462 = vpop.f32.mrf.mxu0
    %v463 = vadd.f32 0.0, %v462
    %464 = vmatmul.f32.gmra.mxu0 %v253
    %v465 = vpop.f32.mrf.mxu0
    %v466 = vadd.f32 0.0, %v465
    %467 = vmatmul.f32.gmra.mxu0 %v256
    %v468 = vpop.f32.mrf.mxu0
    %v469 = vadd.f32 0.0, %v468
    %470 = vmatmul.f32.gmra.mxu0 %v259
    %v471 = vpop.f32.mrf.mxu0
    %v472 = vadd.f32 0.0, %v471
    %473 = vmatmul.f32.gmra.mxu0 %v262
    %v474 = vpop.f32.mrf.mxu0
    %v475 = vadd.f32 0.0, %v474
    %476 = vmatmul.f32.gmra.mxu0 %v265
    %v477 = vpop.f32.mrf.mxu0
    %v478 = vadd.f32 0.0, %v477
    %479 = vmatmul.f32.gmra.mxu0 %v268
    %v480 = vpop.f32.mrf.mxu0
    %v481 = vadd.f32 0.0, %v480
    %482 = vmatmul.f32.gmra.mxu0 %v271
    %v483 = vpop.f32.mrf.mxu0
    %v484 = vadd.f32 0.0, %v483
    %485 = vmatmul.f32.gmra.mxu0 %v274
    %v486 = vpop.f32.mrf.mxu0
    %v487 = vadd.f32 0.0, %v486
    %488 = vmatmul.f32.gmra.mxu0 %v277
    %v489 = vpop.f32.mrf.mxu0
    %v490 = vadd.f32 0.0, %v489
    %491 = vmatmul.f32.gmra.mxu0 %v280
    %v492 = vpop.f32.mrf.mxu0
    %v493 = vadd.f32 0.0, %v492
    %494 = vmatmul.f32.gmra.mxu0 %v283
    %v495 = vpop.f32.mrf.mxu0
    %v496 = vadd.f32 0.0, %v495
    %497 = vmatmul.f32.gmra.mxu0 %v286
    %v498 = vpop.f32.mrf.mxu0
    %v499 = vadd.f32 0.0, %v498
    %500 = vmatmul.f32.gmra.mxu0 %v289
    %v501 = vpop.f32.mrf.mxu0
    %v502 = vadd.f32 0.0, %v501
    %503 = vmatmul.f32.gmra.mxu0 %v292
    %v504 = vpop.f32.mrf.mxu0
    %v505 = vadd.f32 0.0, %v504
    %506 = vmatmul.f32.gmra.mxu0 %v295
    %v507 = vpop.f32.mrf.mxu0
    %v508 = vadd.f32 0.0, %v507
    %509 = vmatmul.f32.gmra.mxu0 %v298
    %v510 = vpop.f32.mrf.mxu0
    %v511 = vadd.f32 0.0, %v510
    %512 = vmatmul.f32.gmra.mxu0 %v301
    %v513 = vpop.f32.mrf.mxu0
    %v514 = vadd.f32 0.0, %v513
    %515 = vmatmul.f32.gmra.mxu0 %v304
    %v516 = vpop.f32.mrf.mxu0
    %v517 = vadd.f32 0.0, %v516
    %518 = vmatmul.f32.gmra.mxu0 %v307
    %v519 = vpop.f32.mrf.mxu0
    %v520 = vadd.f32 0.0, %v519
    %521 = vmatmul.f32.gmra.mxu0 %v310
    %v522 = vpop.f32.mrf.mxu0
    %v523 = vadd.f32 0.0, %v522
    %524 = vmatmul.f32.gmra.mxu0 %v313
    %v525 = vpop.f32.mrf.mxu0
    %v526 = vadd.f32 0.0, %v525
    %527 = vmatmul.f32.gmra.mxu0 %v316
    %v528 = vpop.f32.mrf.mxu0
    %v529 = vadd.f32 0.0, %v528
    %530 = vmatmul.f32.gmra.mxu0 %v319
    %v531 = vpop.f32.mrf.mxu0
    %v532 = vadd.f32 0.0, %v531
    %533 = vmatmul.f32.gmra.mxu0 %v322
    %v534 = vpop.f32.mrf.mxu0
    %v535 = vadd.f32 0.0, %v534
    %536 = vmatmul.f32.gmra.mxu0 %v325
    %v537 = vpop.f32.mrf.mxu0
    %v538 = vadd.f32 0.0, %v537
    %539 = vmatmul.f32.gmra.mxu0 %v328
    %v540 = vpop.f32.mrf.mxu0
    %v541 = vadd.f32 0.0, %v540
    %542 = vmatmul.f32.gmra.mxu0 %v331
    %v543 = vpop.f32.mrf.mxu0
    %v544 = vadd.f32 0.0, %v543
    %545 = vmatmul.f32.gmra.mxu0 %v334
    %v546 = vpop.f32.mrf.mxu0
    %v547 = vadd.f32 0.0, %v546
    %548 = vmatmul.f32.gmra.mxu0 %v337
    %v549 = vpop.f32.mrf.mxu0
    %v550 = vadd.f32 0.0, %v549
    %551 = vmatmul.f32.gmra.mxu0 %v340
    %v552 = vpop.f32.mrf.mxu0
    %v553 = vadd.f32 0.0, %v552
    %554 = vmatmul.f32.gmra.mxu0 %v343
    %v555 = vpop.f32.mrf.mxu0
    %v556 = vadd.f32 0.0, %v555
    %557 = vmatmul.f32.gmra.mxu0 %v346
    %v558 = vpop.f32.mrf.mxu0
    %v559 = vadd.f32 0.0, %v558
    %560 = vmatmul.f32.gmra.mxu0 %v349
    %v561 = vpop.f32.mrf.mxu0
    %v562 = vadd.f32 0.0, %v561
    %563 = vmatmul.f32.gmra.mxu0 %v352
    %v564 = vpop.f32.mrf.mxu0
    %v565 = vadd.f32 0.0, %v564
    %566 = vmatmul.f32.gmra.mxu0 %v355
    %v567 = vpop.f32.mrf.mxu0
    %v568 = vadd.f32 0.0, %v567
    %569 = vdwg.mxu0
    %v571 = vsel %vm164, %v33, 0
    %v574 = vsel %vm164, %v34, 0
    %v577 = vsel %vm164, %v35, 0
    %v580 = vsel %vm164, %v36, 0
    %v583 = vsel %vm164, %v37, 0
    %v586 = vsel %vm164, %v38, 0
    %v589 = vsel %vm164, %v39, 0
    %v592 = vsel %vm164, %v40, 0
    %v595 = vsel %vm164, %v41, 0
    %v598 = vsel %vm164, %v42, 0
    %v601 = vsel %vm164, %v43, 0
    %v604 = vsel %vm164, %v44, 0
    %v607 = vsel %vm164, %v45, 0
    %v610 = vsel %vm164, %v46, 0
    %v613 = vsel %vm164, %v47, 0
    %v616 = vsel %vm164, %v48, 0
    %v619 = vsel %vm164, %v49, 0
    %v622 = vsel %vm164, %v50, 0
    %v625 = vsel %vm164, %v51, 0
    %v628 = vsel %vm164, %v52, 0
    %v631 = vsel %vm164, %v53, 0
    %v634 = vsel %vm164, %v54, 0
    %v637 = vsel %vm164, %v55, 0
    %v640 = vsel %vm164, %v56, 0
    %v643 = vsel %vm164, %v57, 0
    %v646 = vsel %vm164, %v58, 0
    %v649 = vsel %vm164, %v59, 0
    %v652 = vsel %vm164, %v60, 0
    %v655 = vsel %vm164, %v61, 0
    %v658 = vsel %vm164, %v62, 0
    %v661 = vsel %vm164, %v63, 0
    %v664 = vsel %vm164, %v64, 0
    %v667 = vsel %vm164, %v65, 0
    %v670 = vsel %vm164, %v66, 0
    %v673 = vsel %vm164, %v67, 0
    %v676 = vsel %vm164, %v68, 0
    %v679 = vsel %vm164, %v69, 0
    %v682 = vsel %vm164, %v70, 0
    %v685 = vsel %vm164, %v71, 0
    %v688 = vsel %vm164, %v72, 0
    %v691 = vsel %vm164, %v73, 0
    %v694 = vsel %vm164, %v74, 0
    %v697 = vsel %vm164, %v75, 0
    %v700 = vsel %vm164, %v76, 0
    %v703 = vsel %vm164, %v77, 0
    %v706 = vsel %vm164, %v78, 0
    %v709 = vsel %vm164, %v79, 0
    %v712 = vsel %vm164, %v80, 0
    %v715 = vsel %vm164, %v81, 0
    %v718 = vsel %vm164, %v82, 0
    %v721 = vsel %vm164, %v83, 0
    %v724 = vsel %vm164, %v84, 0
    %v727 = vsel %vm164, %v85, 0
    %v730 = vsel %vm164, %v86, 0
    %v733 = vsel %vm164, %v87, 0
    %v736 = vsel %vm164, %v88, 0
    %v739 = vsel %vm164, %v89, 0
    %v742 = vsel %vm164, %v90, 0
    %v745 = vsel %vm164, %v91, 0
    %v748 = vsel %vm164, %v92, 0
    %v751 = vsel %vm164, %v93, 0
    %v754 = vsel %vm164, %v94, 0
    %v757 = vsel %vm164, %v95, 0
    %v760 = vsel %vm164, %v96, 0
    %v763 = vsel %vm357, %v97, 0
    %765 = vmatpush.msra.mxu0 0.0
    %766 = vmatpush.msra.mxu0 0.0
    %767 = vmatpush.msra.mxu0 0.0
    %768 = vmatpush.msra.mxu0 0.0
    %769 = vmatpush.msra.mxu0 0.0
    %770 = vmatpush.msra.mxu0 0.0
    %771 = vmatpush.msra.mxu0 0.0
    %772 = vmatpush.msra.mxu0 0.0
    %773 = vmatpush.msra.mxu0 0.0
    %774 = vmatpush.msra.mxu0 0.0
    %775 = vmatpush.msra.mxu0 0.0
    %776 = vmatpush.msra.mxu0 0.0
    %777 = vmatpush.msra.mxu0 0.0
    %778 = vmatpush.msra.mxu0 0.0
    %779 = vmatpush.msra.mxu0 0.0
    %780 = vmatpush.msra.mxu0 %v763
    %781 = vmatmul.f32.gmra.mxu0 %v571
    %v782 = vpop.f32.mrf.mxu0
    %v783 = vadd.f32 %v379, %v782
    %784 = vmatmul.f32.gmra.mxu0 %v574
    %v785 = vpop.f32.mrf.mxu0
    %v786 = vadd.f32 %v382, %v785
    %787 = vmatmul.f32.gmra.mxu0 %v577
    %v788 = vpop.f32.mrf.mxu0
    %v789 = vadd.f32 %v385, %v788
    %790 = vmatmul.f32.gmra.mxu0 %v580
    %v791 = vpop.f32.mrf.mxu0
    %v792 = vadd.f32 %v388, %v791
    %793 = vmatmul.f32.gmra.mxu0 %v583
    %v794 = vpop.f32.mrf.mxu0
    %v795 = vadd.f32 %v391, %v794
    %796 = vmatmul.f32.gmra.mxu0 %v586
    %v797 = vpop.f32.mrf.mxu0
    %v798 = vadd.f32 %v394, %v797
    %799 = vmatmul.f32.gmra.mxu0 %v589
    %v800 = vpop.f32.mrf.mxu0
    %v801 = vadd.f32 %v397, %v800
    %802 = vmatmul.f32.gmra.mxu0 %v592
    %v803 = vpop.f32.mrf.mxu0
    %v804 = vadd.f32 %v400, %v803
    %805 = vmatmul.f32.gmra.mxu0 %v595
    %v806 = vpop.f32.mrf.mxu0
    %v807 = vadd.f32 %v403, %v806
    %808 = vmatmul.f32.gmra.mxu0 %v598
    %v809 = vpop.f32.mrf.mxu0
    %v810 = vadd.f32 %v406, %v809
    %811 = vmatmul.f32.gmra.mxu0 %v601
    %v812 = vpop.f32.mrf.mxu0
    %v813 = vadd.f32 %v409, %v812
    %814 = vmatmul.f32.gmra.mxu0 %v604
    %v815 = vpop.f32.mrf.mxu0
    %v816 = vadd.f32 %v412, %v815
    %817 = vmatmul.f32.gmra.mxu0 %v607
    %v818 = vpop.f32.mrf.mxu0
    %v819 = vadd.f32 %v415, %v818
    %820 = vmatmul.f32.gmra.mxu0 %v610
    %v821 = vpop.f32.mrf.mxu0
    %v822 = vadd.f32 %v418, %v821
    %823 = vmatmul.f32.gmra.mxu0 %v613
    %v824 = vpop.f32.mrf.mxu0
    %v825 = vadd.f32 %v421, %v824
    %826 = vmatmul.f32.gmra.mxu0 %v616
    %v827 = vpop.f32.mrf.mxu0
    %v828 = vadd.f32 %v424, %v827
    %829 = vmatmul.f32.gmra.mxu0 %v619
    %v830 = vpop.f32.mrf.mxu0
    %v831 = vadd.f32 %v427, %v830
    %832 = vmatmul.f32.gmra.mxu0 %v622
    %v833 = vpop.f32.mrf.mxu0
    %v834 = vadd.f32 %v430, %v833
    %835 = vmatmul.f32.gmra.mxu0 %v625
    %v836 = vpop.f32.mrf.mxu0
    %v837 = vadd.f32 %v433, %v836
    %838 = vmatmul.f32.gmra.mxu0 %v628
    %v839 = vpop.f32.mrf.mxu0
    %v840 = vadd.f32 %v436, %v839
    %841 = vmatmul.f32.gmra.mxu0 %v631
    %v842 = vpop.f32.mrf.mxu0
    %v843 = vadd.f32 %v439, %v842
    %844 = vmatmul.f32.gmra.mxu0 %v634
    %v845 = vpop.f32.mrf.mxu0
    %v846 = vadd.f32 %v442, %v845
    %847 = vmatmul.f32.gmra.mxu0 %v637
    %v848 = vpop.f32.mrf.mxu0
    %v849 = vadd.f32 %v445, %v848
    %850 = vmatmul.f32.gmra.mxu0 %v640
    %v851 = vpop.f32.mrf.mxu0
    %v852 = vadd.f32 %v448, %v851
    %853 = vmatmul.f32.gmra.mxu0 %v643
    %v854 = vpop.f32.mrf.mxu0
    %v855 = vadd.f32 %v451, %v854
    %856 = vmatmul.f32.gmra.mxu0 %v646
    %v857 = vpop.f32.mrf.mxu0
    %v858 = vadd.f32 %v454, %v857
    %859 = vmatmul.f32.gmra.mxu0 %v649
    %v860 = vpop.f32.mrf.mxu0
    %v861 = vadd.f32 %v457, %v860
    %862 = vmatmul.f32.gmra.mxu0 %v652
    %v863 = vpop.f32.mrf.mxu0
    %v864 = vadd.f32 %v460, %v863
    %865 = vmatmul.f32.gmra.mxu0 %v655
    %v866 = vpop.f32.mrf.mxu0
    %v867 = vadd.f32 %v463, %v866
    %868 = vmatmul.f32.gmra.mxu0 %v658
    %v869 = vpop.f32.mrf.mxu0
    %v870 = vadd.f32 %v466, %v869
    %871 = vmatmul.f32.gmra.mxu0 %v661
    %v872 = vpop.f32.mrf.mxu0
    %v873 = vadd.f32 %v469, %v872
    %874 = vmatmul.f32.gmra.mxu0 %v664
    %v875 = vpop.f32.mrf.mxu0
    %v876 = vadd.f32 %v472, %v875
    %877 = vmatmul.f32.gmra.mxu0 %v667
    %v878 = vpop.f32.mrf.mxu0
    %v879 = vadd.f32 %v475, %v878
    %880 = vmatmul.f32.gmra.mxu0 %v670
    %v881 = vpop.f32.mrf.mxu0
    %v882 = vadd.f32 %v478, %v881
    %883 = vmatmul.f32.gmra.mxu0 %v673
    %v884 = vpop.f32.mrf.mxu0
    %v885 = vadd.f32 %v481, %v884
    %886 = vmatmul.f32.gmra.mxu0 %v676
    %v887 = vpop.f32.mrf.mxu0
    %v888 = vadd.f32 %v484, %v887
    %889 = vmatmul.f32.gmra.mxu0 %v679
    %v890 = vpop.f32.mrf.mxu0
    %v891 = vadd.f32 %v487, %v890
    %892 = vmatmul.f32.gmra.mxu0 %v682
    %v893 = vpop.f32.mrf.mxu0
    %v894 = vadd.f32 %v490, %v893
    %895 = vmatmul.f32.gmra.mxu0 %v685
    %v896 = vpop.f32.mrf.mxu0
    %v897 = vadd.f32 %v493, %v896
    %898 = vmatmul.f32.gmra.mxu0 %v688
    %v899 = vpop.f32.mrf.mxu0
    %v900 = vadd.f32 %v496, %v899
    %901 = vmatmul.f32.gmra.mxu0 %v691
    %v902 = vpop.f32.mrf.mxu0
    %v903 = vadd.f32 %v499, %v902
    %904 = vmatmul.f32.gmra.mxu0 %v694
    %v905 = vpop.f32.mrf.mxu0
    %v906 = vadd.f32 %v502, %v905
    %907 = vmatmul.f32.gmra.mxu0 %v697
    %v908 = vpop.f32.mrf.mxu0
    %v909 = vadd.f32 %v505, %v908
    %910 = vmatmul.f32.gmra.mxu0 %v700
    %v911 = vpop.f32.mrf.mxu0
    %v912 = vadd.f32 %v508, %v911
    %913 = vmatmul.f32.gmra.mxu0 %v703
    %v914 = vpop.f32.mrf.mxu0
    %v915 = vadd.f32 %v511, %v914
    %916 = vmatmul.f32.gmra.mxu0 %v706
    %v917 = vpop.f32.mrf.mxu0
    %v918 = vadd.f32 %v514, %v917
    %919 = vmatmul.f32.gmra.mxu0 %v709
    %v920 = vpop.f32.mrf.mxu0
    %v921 = vadd.f32 %v517, %v920
    %922 = vmatmul.f32.gmra.mxu0 %v712
    %v923 = vpop.f32.mrf.mxu0
    %v924 = vadd.f32 %v520, %v923
    %925 = vmatmul.f32.gmra.mxu0 %v715
    %v926 = vpop.f32.mrf.mxu0
    %v927 = vadd.f32 %v523, %v926
    %928 = vmatmul.f32.gmra.mxu0 %v718
    %v929 = vpop.f32.mrf.mxu0
    %v930 = vadd.f32 %v526, %v929
    %931 = vmatmul.f32.gmra.mxu0 %v721
    %v932 = vpop.f32.mrf.mxu0
    %v933 = vadd.f32 %v529, %v932
    %934 = vmatmul.f32.gmra.mxu0 %v724
    %v935 = vpop.f32.mrf.mxu0
    %v936 = vadd.f32 %v532, %v935
    %937 = vmatmul.f32.gmra.mxu0 %v727
    %v938 = vpop.f32.mrf.mxu0
    %v939 = vadd.f32 %v535, %v938
    %940 = vmatmul.f32.gmra.mxu0 %v730
    %v941 = vpop.f32.mrf.mxu0
    %v942 = vadd.f32 %v538, %v941
    %943 = vmatmul.f32.gmra.mxu0 %v733
    %v944 = vpop.f32.mrf.mxu0
    %v945 = vadd.f32 %v541, %v944
    %946 = vmatmul.f32.gmra.mxu0 %v736
    %v947 = vpop.f32.mrf.mxu0
    %v948 = vadd.f32 %v544, %v947
    %949 = vmatmul.f32.gmra.mxu0 %v739
    %v950 = vpop.f32.mrf.mxu0
    %v951 = vadd.f32 %v547, %v950
    %952 = vmatmul.f32.gmra.mxu0 %v742
    %v953 = vpop.f32.mrf.mxu0
    %v954 = vadd.f32 %v550, %v953
    %955 = vmatmul.f32.gmra.mxu0 %v745
    %v956 = vpop.f32.mrf.mxu0
    %v957 = vadd.f32 %v553, %v956
    %958 = vmatmul.f32.gmra.mxu0 %v748
    %v959 = vpop.f32.mrf.mxu0
    %v960 = vadd.f32 %v556, %v959
    %961 = vmatmul.f32.gmra.mxu0 %v751
    %v962 = vpop.f32.mrf.mxu0
    %v963 = vadd.f32 %v559, %v962
    %964 = vmatmul.f32.gmra.mxu0 %v754
    %v965 = vpop.f32.mrf.mxu0
    %v966 = vadd.f32 %v562, %v965
    %967 = vmatmul.f32.gmra.mxu0 %v757
    %v968 = vpop.f32.mrf.mxu0
    %v969 = vadd.f32 %v565, %v968
    %970 = vmatmul.f32.gmra.mxu0 %v760
    %v971 = vpop.f32.mrf.mxu0
    %v972 = vadd.f32 %v568, %v971
    %973 = vdwg.mxu0
    %v974 = vld [vmem:[%s0 + $0x2] sm:$0xff]
    %v975 = vld [vmem:[%s0 + $0xa] sm:$0xff]
    %v976 = vld [vmem:[%s0 + $0x1a] sm:$0xff]
    %v977 = vld [vmem:[%s0 + $0x22] sm:$0xff]
    %v978 = vld [vmem:[%s0 + $0x32] sm:$0xff]
    %v979 = vld [vmem:[%s0 + $0x3a] sm:$0xff]
    %v980 = vld [vmem:[%s0 + $0x4a] sm:$0xff]
    %v981 = vld [vmem:[%s0 + $0x52] sm:$0xff]
    %v982 = vld [vmem:[%s0 + $0x62] sm:$0xff]
    %v983 = vld [vmem:[%s0 + $0x6a] sm:$0xff]
    %v984 = vld [vmem:[%s0 + $0x7a] sm:$0xff]
    %v985 = vld [vmem:[%s0 + $0x82] sm:$0xff]
    %v986 = vld [vmem:[%s0 + $0x92] sm:$0xff]
    %v987 = vld [vmem:[%s0 + $0x9a] sm:$0xff]
    %v988 = vld [vmem:[%s0 + $0xaa] sm:$0xff]
    %v989 = vld [vmem:[%s0 + $0xb2] sm:$0xff]
    %v990 = vld [vmem:[%s0 + $0xc2] sm:$0xff]
    %v991 = vld [vmem:[%s0 + $0xca] sm:$0xff]
    %v992 = vld [vmem:[%s0 + $0xda] sm:$0xff]
    %v993 = vld [vmem:[%s0 + $0xe2] sm:$0xff]
    %v994 = vld [vmem:[%s0 + $0xf2] sm:$0xff]
    %v995 = vld [vmem:[%s0 + $0xfa] sm:$0xff]
    %v996 = vld [vmem:[%s0 + $0x10a] sm:$0xff]
    %v997 = vld [vmem:[%s0 + $0x112] sm:$0xff]
    %v998 = vld [vmem:[%s0 + $0x122] sm:$0xff]
    %v999 = vld [vmem:[%s0 + $0x12a] sm:$0xff]
    %v1000 = vld [vmem:[%s0 + $0x13a] sm:$0xff]
    %v1001 = vld [vmem:[%s0 + $0x142] sm:$0xff]
    %v1002 = vld [vmem:[%s0 + $0x152] sm:$0xff]
    %v1003 = vld [vmem:[%s0 + $0x15a] sm:$0xff]
    %v1004 = vld [vmem:[%s0 + $0x16a] sm:$0xff]
    %v1005 = vld [vmem:[%s0 + $0x172] sm:$0xff]
    %v1006 = vld [vmem:[%s0 + $0x1b2] sm:$0xff]
    %v1007 = vld [vmem:[%s0 + $0x1ba] sm:$0xff]
    %v1008 = vld [vmem:[%s0 + $0x1ca] sm:$0xff]
    %v1009 = vld [vmem:[%s0 + $0x1d2] sm:$0xff]
    %v1010 = vld [vmem:[%s0 + $0x1e2] sm:$0xff]
    %v1011 = vld [vmem:[%s0 + $0x1ea] sm:$0xff]
    %v1012 = vld [vmem:[%s0 + $0x1fa] sm:$0xff]
    %v1013 = vld [vmem:[%s0 + $0x202] sm:$0xff]
    %v1014 = vld [vmem:[%s0 + $0x212] sm:$0xff]
    %v1015 = vld [vmem:[%s0 + $0x21a] sm:$0xff]
    %v1016 = vld [vmem:[%s0 + $0x22a] sm:$0xff]
    %v1017 = vld [vmem:[%s0 + $0x232] sm:$0xff]
    %v1018 = vld [vmem:[%s0 + $0x242] sm:$0xff]
    %v1019 = vld [vmem:[%s0 + $0x24a] sm:$0xff]
    %v1020 = vld [vmem:[%s0 + $0x25a] sm:$0xff]
    %v1021 = vld [vmem:[%s0 + $0x262] sm:$0xff]
    %v1022 = vld [vmem:[%s0 + $0x272] sm:$0xff]
    %v1023 = vld [vmem:[%s0 + $0x27a] sm:$0xff]
    %v1024 = vld [vmem:[%s0 + $0x28a] sm:$0xff]
    %v1025 = vld [vmem:[%s0 + $0x292] sm:$0xff]
    %v1026 = vld [vmem:[%s0 + $0x2a2] sm:$0xff]
    %v1027 = vld [vmem:[%s0 + $0x2aa] sm:$0xff]
    %v1028 = vld [vmem:[%s0 + $0x2ba] sm:$0xff]
    %v1029 = vld [vmem:[%s0 + $0x2c2] sm:$0xff]
    %v1030 = vld [vmem:[%s0 + $0x2d2] sm:$0xff]
    %v1031 = vld [vmem:[%s0 + $0x2da] sm:$0xff]
    %v1032 = vld [vmem:[%s0 + $0x2ea] sm:$0xff]
    %v1033 = vld [vmem:[%s0 + $0x2f2] sm:$0xff]
    %v1034 = vld [vmem:[%s0 + $0x302] sm:$0xff]
    %v1035 = vld [vmem:[%s0 + $0x30a] sm:$0xff]
    %v1036 = vld [vmem:[%s0 + $0x31a] sm:$0xff]
    %v1037 = vld [vmem:[%s0 + $0x322] sm:$0xff]
    %s1038 = scalar_lea.vmem %s1, 8
    %v1039 = vld [vmem:[%s1038] sm:$0xf]
    %v1041 = vsel %vm164, %v974, 0
    %v1044 = vsel %vm164, %v975, 0
    %v1047 = vsel %vm164, %v976, 0
    %v1050 = vsel %vm164, %v977, 0
    %v1053 = vsel %vm164, %v978, 0
    %v1056 = vsel %vm164, %v979, 0
    %v1059 = vsel %vm164, %v980, 0
    %v1062 = vsel %vm164, %v981, 0
    %v1065 = vsel %vm164, %v982, 0
    %v1068 = vsel %vm164, %v983, 0
    %v1071 = vsel %vm164, %v984, 0
    %v1074 = vsel %vm164, %v985, 0
    %v1077 = vsel %vm164, %v986, 0
    %v1080 = vsel %vm164, %v987, 0
    %v1083 = vsel %vm164, %v988, 0
    %v1086 = vsel %vm164, %v989, 0
    %v1089 = vsel %vm164, %v990, 0
    %v1092 = vsel %vm164, %v991, 0
    %v1095 = vsel %vm164, %v992, 0
    %v1098 = vsel %vm164, %v993, 0
    %v1101 = vsel %vm164, %v994, 0
    %v1104 = vsel %vm164, %v995, 0
    %v1107 = vsel %vm164, %v996, 0
    %v1110 = vsel %vm164, %v997, 0
    %v1113 = vsel %vm164, %v998, 0
    %v1116 = vsel %vm164, %v999, 0
    %v1119 = vsel %vm164, %v1000, 0
    %v1122 = vsel %vm164, %v1001, 0
    %v1125 = vsel %vm164, %v1002, 0
    %v1128 = vsel %vm164, %v1003, 0
    %v1131 = vsel %vm164, %v1004, 0
    %v1134 = vsel %vm164, %v1005, 0
    %v1137 = vsel %vm164, %v1006, 0
    %v1140 = vsel %vm164, %v1007, 0
    %v1143 = vsel %vm164, %v1008, 0
    %v1146 = vsel %vm164, %v1009, 0
    %v1149 = vsel %vm164, %v1010, 0
    %v1152 = vsel %vm164, %v1011, 0
    %v1155 = vsel %vm164, %v1012, 0
    %v1158 = vsel %vm164, %v1013, 0
    %v1161 = vsel %vm164, %v1014, 0
    %v1164 = vsel %vm164, %v1015, 0
    %v1167 = vsel %vm164, %v1016, 0
    %v1170 = vsel %vm164, %v1017, 0
    %v1173 = vsel %vm164, %v1018, 0
    %v1176 = vsel %vm164, %v1019, 0
    %v1179 = vsel %vm164, %v1020, 0
    %v1182 = vsel %vm164, %v1021, 0
    %v1185 = vsel %vm164, %v1022, 0
    %v1188 = vsel %vm164, %v1023, 0
    %v1191 = vsel %vm164, %v1024, 0
    %v1194 = vsel %vm164, %v1025, 0
    %v1197 = vsel %vm164, %v1026, 0
    %v1200 = vsel %vm164, %v1027, 0
    %v1203 = vsel %vm164, %v1028, 0
    %v1206 = vsel %vm164, %v1029, 0
    %v1209 = vsel %vm164, %v1030, 0
    %v1212 = vsel %vm164, %v1031, 0
    %v1215 = vsel %vm164, %v1032, 0
    %v1218 = vsel %vm164, %v1033, 0
    %v1221 = vsel %vm164, %v1034, 0
    %v1224 = vsel %vm164, %v1035, 0
    %v1227 = vsel %vm164, %v1036, 0
    %v1230 = vsel %vm164, %v1037, 0
    %v1233 = vsel %vm357, %v1039, 0
    %1235 = vmatpush.msra.mxu0 0.0
    %1236 = vmatpush.msra.mxu0 0.0
    %1237 = vmatpush.msra.mxu0 0.0
    %1238 = vmatpush.msra.mxu0 0.0
    %1239 = vmatpush.msra.mxu0 0.0
    %1240 = vmatpush.msra.mxu0 0.0
    %1241 = vmatpush.msra.mxu0 0.0
    %1242 = vmatpush.msra.mxu0 0.0
    %1243 = vmatpush.msra.mxu0 0.0
    %1244 = vmatpush.msra.mxu0 0.0
    %1245 = vmatpush.msra.mxu0 0.0
    %1246 = vmatpush.msra.mxu0 0.0
    %1247 = vmatpush.msra.mxu0 0.0
    %1248 = vmatpush.msra.mxu0 0.0
    %1249 = vmatpush.msra.mxu0 0.0
    %1250 = vmatpush.msra.mxu0 %v1233
    %1251 = vmatmul.f32.gmra.mxu0 %v1041
    %v1252 = vpop.f32.mrf.mxu0
    %v1253 = vadd.f32 0.0, %v1252
    %1254 = vmatmul.f32.gmra.mxu0 %v1044
    %v1255 = vpop.f32.mrf.mxu0
    %v1256 = vadd.f32 0.0, %v1255
    %1257 = vmatmul.f32.gmra.mxu0 %v1047
    %v1258 = vpop.f32.mrf.mxu0
    %v1259 = vadd.f32 0.0, %v1258
    %1260 = vmatmul.f32.gmra.mxu0 %v1050
    %v1261 = vpop.f32.mrf.mxu0
    %v1262 = vadd.f32 0.0, %v1261
    %1263 = vmatmul.f32.gmra.mxu0 %v1053
    %v1264 = vpop.f32.mrf.mxu0
    %v1265 = vadd.f32 0.0, %v1264
    %1266 = vmatmul.f32.gmra.mxu0 %v1056
    %v1267 = vpop.f32.mrf.mxu0
    %v1268 = vadd.f32 0.0, %v1267
    %1269 = vmatmul.f32.gmra.mxu0 %v1059
    %v1270 = vpop.f32.mrf.mxu0
    %v1271 = vadd.f32 0.0, %v1270
    %1272 = vmatmul.f32.gmra.mxu0 %v1062
    %v1273 = vpop.f32.mrf.mxu0
    %v1274 = vadd.f32 0.0, %v1273
    %1275 = vmatmul.f32.gmra.mxu0 %v1065
    %v1276 = vpop.f32.mrf.mxu0
    %v1277 = vadd.f32 0.0, %v1276
    %1278 = vmatmul.f32.gmra.mxu0 %v1068
    %v1279 = vpop.f32.mrf.mxu0
    %v1280 = vadd.f32 0.0, %v1279
    %1281 = vmatmul.f32.gmra.mxu0 %v1071
    %v1282 = vpop.f32.mrf.mxu0
    %v1283 = vadd.f32 0.0, %v1282
    %1284 = vmatmul.f32.gmra.mxu0 %v1074
    %v1285 = vpop.f32.mrf.mxu0
    %v1286 = vadd.f32 0.0, %v1285
    %1287 = vmatmul.f32.gmra.mxu0 %v1077
    %v1288 = vpop.f32.mrf.mxu0
    %v1289 = vadd.f32 0.0, %v1288
    %1290 = vmatmul.f32.gmra.mxu0 %v1080
    %v1291 = vpop.f32.mrf.mxu0
    %v1292 = vadd.f32 0.0, %v1291
    %1293 = vmatmul.f32.gmra.mxu0 %v1083
    %v1294 = vpop.f32.mrf.mxu0
    %v1295 = vadd.f32 0.0, %v1294
    %1296 = vmatmul.f32.gmra.mxu0 %v1086
    %v1297 = vpop.f32.mrf.mxu0
    %v1298 = vadd.f32 0.0, %v1297
    %1299 = vmatmul.f32.gmra.mxu0 %v1089
    %v1300 = vpop.f32.mrf.mxu0
    %v1301 = vadd.f32 0.0, %v1300
    %1302 = vmatmul.f32.gmra.mxu0 %v1092
    %v1303 = vpop.f32.mrf.mxu0
    %v1304 = vadd.f32 0.0, %v1303
    %1305 = vmatmul.f32.gmra.mxu0 %v1095
    %v1306 = vpop.f32.mrf.mxu0
    %v1307 = vadd.f32 0.0, %v1306
    %1308 = vmatmul.f32.gmra.mxu0 %v1098
    %v1309 = vpop.f32.mrf.mxu0
    %v1310 = vadd.f32 0.0, %v1309
    %1311 = vmatmul.f32.gmra.mxu0 %v1101
    %v1312 = vpop.f32.mrf.mxu0
    %v1313 = vadd.f32 0.0, %v1312
    %1314 = vmatmul.f32.gmra.mxu0 %v1104
    %v1315 = vpop.f32.mrf.mxu0
    %v1316 = vadd.f32 0.0, %v1315
    %1317 = vmatmul.f32.gmra.mxu0 %v1107
    %v1318 = vpop.f32.mrf.mxu0
    %v1319 = vadd.f32 0.0, %v1318
    %1320 = vmatmul.f32.gmra.mxu0 %v1110
    %v1321 = vpop.f32.mrf.mxu0
    %v1322 = vadd.f32 0.0, %v1321
    %1323 = vmatmul.f32.gmra.mxu0 %v1113
    %v1324 = vpop.f32.mrf.mxu0
    %v1325 = vadd.f32 0.0, %v1324
    %1326 = vmatmul.f32.gmra.mxu0 %v1116
    %v1327 = vpop.f32.mrf.mxu0
    %v1328 = vadd.f32 0.0, %v1327
    %1329 = vmatmul.f32.gmra.mxu0 %v1119
    %v1330 = vpop.f32.mrf.mxu0
    %v1331 = vadd.f32 0.0, %v1330
    %1332 = vmatmul.f32.gmra.mxu0 %v1122
    %v1333 = vpop.f32.mrf.mxu0
    %v1334 = vadd.f32 0.0, %v1333
    %1335 = vmatmul.f32.gmra.mxu0 %v1125
    %v1336 = vpop.f32.mrf.mxu0
    %v1337 = vadd.f32 0.0, %v1336
    %1338 = vmatmul.f32.gmra.mxu0 %v1128
    %v1339 = vpop.f32.mrf.mxu0
    %v1340 = vadd.f32 0.0, %v1339
    %1341 = vmatmul.f32.gmra.mxu0 %v1131
    %v1342 = vpop.f32.mrf.mxu0
    %v1343 = vadd.f32 0.0, %v1342
    %1344 = vmatmul.f32.gmra.mxu0 %v1134
    %v1345 = vpop.f32.mrf.mxu0
    %v1346 = vadd.f32 0.0, %v1345
    %1347 = vmatmul.f32.gmra.mxu0 %v1137
    %v1348 = vpop.f32.mrf.mxu0
    %v1349 = vadd.f32 0.0, %v1348
    %1350 = vmatmul.f32.gmra.mxu0 %v1140
    %v1351 = vpop.f32.mrf.mxu0
    %v1352 = vadd.f32 0.0, %v1351
    %1353 = vmatmul.f32.gmra.mxu0 %v1143
    %v1354 = vpop.f32.mrf.mxu0
    %v1355 = vadd.f32 0.0, %v1354
    %1356 = vmatmul.f32.gmra.mxu0 %v1146
    %v1357 = vpop.f32.mrf.mxu0
    %v1358 = vadd.f32 0.0, %v1357
    %1359 = vmatmul.f32.gmra.mxu0 %v1149
    %v1360 = vpop.f32.mrf.mxu0
    %v1361 = vadd.f32 0.0, %v1360
    %1362 = vmatmul.f32.gmra.mxu0 %v1152
    %v1363 = vpop.f32.mrf.mxu0
    %v1364 = vadd.f32 0.0, %v1363
    %1365 = vmatmul.f32.gmra.mxu0 %v1155
    %v1366 = vpop.f32.mrf.mxu0
    %v1367 = vadd.f32 0.0, %v1366
    %1368 = vmatmul.f32.gmra.mxu0 %v1158
    %v1369 = vpop.f32.mrf.mxu0
    %v1370 = vadd.f32 0.0, %v1369
    %1371 = vmatmul.f32.gmra.mxu0 %v1161
    %v1372 = vpop.f32.mrf.mxu0
    %v1373 = vadd.f32 0.0, %v1372
    %1374 = vmatmul.f32.gmra.mxu0 %v1164
    %v1375 = vpop.f32.mrf.mxu0
    %v1376 = vadd.f32 0.0, %v1375
    %1377 = vmatmul.f32.gmra.mxu0 %v1167
    %v1378 = vpop.f32.mrf.mxu0
    %v1379 = vadd.f32 0.0, %v1378
    %1380 = vmatmul.f32.gmra.mxu0 %v1170
    %v1381 = vpop.f32.mrf.mxu0
    %v1382 = vadd.f32 0.0, %v1381
    %1383 = vmatmul.f32.gmra.mxu0 %v1173
    %v1384 = vpop.f32.mrf.mxu0
    %v1385 = vadd.f32 0.0, %v1384
    %1386 = vmatmul.f32.gmra.mxu0 %v1176
    %v1387 = vpop.f32.mrf.mxu0
    %v1388 = vadd.f32 0.0, %v1387
    %1389 = vmatmul.f32.gmra.mxu0 %v1179
    %v1390 = vpop.f32.mrf.mxu0
    %v1391 = vadd.f32 0.0, %v1390
    %1392 = vmatmul.f32.gmra.mxu0 %v1182
    %v1393 = vpop.f32.mrf.mxu0
    %v1394 = vadd.f32 0.0, %v1393
    %1395 = vmatmul.f32.gmra.mxu0 %v1185
    %v1396 = vpop.f32.mrf.mxu0
    %v1397 = vadd.f32 0.0, %v1396
    %1398 = vmatmul.f32.gmra.mxu0 %v1188
    %v1399 = vpop.f32.mrf.mxu0
    %v1400 = vadd.f32 0.0, %v1399
    %1401 = vmatmul.f32.gmra.mxu0 %v1191
    %v1402 = vpop.f32.mrf.mxu0
    %v1403 = vadd.f32 0.0, %v1402
    %1404 = vmatmul.f32.gmra.mxu0 %v1194
    %v1405 = vpop.f32.mrf.mxu0
    %v1406 = vadd.f32 0.0, %v1405
    %1407 = vmatmul.f32.gmra.mxu0 %v1197
    %v1408 = vpop.f32.mrf.mxu0
    %v1409 = vadd.f32 0.0, %v1408
    %1410 = vmatmul.f32.gmra.mxu0 %v1200
    %v1411 = vpop.f32.mrf.mxu0
    %v1412 = vadd.f32 0.0, %v1411
    %1413 = vmatmul.f32.gmra.mxu0 %v1203
    %v1414 = vpop.f32.mrf.mxu0
    %v1415 = vadd.f32 0.0, %v1414
    %1416 = vmatmul.f32.gmra.mxu0 %v1206
    %v1417 = vpop.f32.mrf.mxu0
    %v1418 = vadd.f32 0.0, %v1417
    %1419 = vmatmul.f32.gmra.mxu0 %v1209
    %v1420 = vpop.f32.mrf.mxu0
    %v1421 = vadd.f32 0.0, %v1420
    %1422 = vmatmul.f32.gmra.mxu0 %v1212
    %v1423 = vpop.f32.mrf.mxu0
    %v1424 = vadd.f32 0.0, %v1423
    %1425 = vmatmul.f32.gmra.mxu0 %v1215
    %v1426 = vpop.f32.mrf.mxu0
    %v1427 = vadd.f32 0.0, %v1426
    %1428 = vmatmul.f32.gmra.mxu0 %v1218
    %v1429 = vpop.f32.mrf.mxu0
    %v1430 = vadd.f32 0.0, %v1429
    %1431 = vmatmul.f32.gmra.mxu0 %v1221
    %v1432 = vpop.f32.mrf.mxu0
    %v1433 = vadd.f32 0.0, %v1432
    %1434 = vmatmul.f32.gmra.mxu0 %v1224
    %v1435 = vpop.f32.mrf.mxu0
    %v1436 = vadd.f32 0.0, %v1435
    %1437 = vmatmul.f32.gmra.mxu0 %v1227
    %v1438 = vpop.f32.mrf.mxu0
    %v1439 = vadd.f32 0.0, %v1438
    %1440 = vmatmul.f32.gmra.mxu0 %v1230
    %v1441 = vpop.f32.mrf.mxu0
    %v1442 = vadd.f32 0.0, %v1441
    %1443 = vdwg.mxu0
    %v1444 = vadd.f32 %v783, %v1253
    %v1445 = vadd.f32 %v786, %v1256
    %v1446 = vadd.f32 %v789, %v1259
    %v1447 = vadd.f32 %v792, %v1262
    %v1448 = vadd.f32 %v795, %v1265
    %v1449 = vadd.f32 %v798, %v1268
    %v1450 = vadd.f32 %v801, %v1271
    %v1451 = vadd.f32 %v804, %v1274
    %v1452 = vadd.f32 %v807, %v1277
    %v1453 = vadd.f32 %v810, %v1280
    %v1454 = vadd.f32 %v813, %v1283
    %v1455 = vadd.f32 %v816, %v1286
    %v1456 = vadd.f32 %v819, %v1289
    %v1457 = vadd.f32 %v822, %v1292
    %v1458 = vadd.f32 %v825, %v1295
    %v1459 = vadd.f32 %v828, %v1298
    %v1460 = vadd.f32 %v831, %v1301
    %v1461 = vadd.f32 %v834, %v1304
    %v1462 = vadd.f32 %v837, %v1307
    %v1463 = vadd.f32 %v840, %v1310
    %v1464 = vadd.f32 %v843, %v1313
    %v1465 = vadd.f32 %v846, %v1316
    %v1466 = vadd.f32 %v849, %v1319
    %v1467 = vadd.f32 %v852, %v1322
    %v1468 = vadd.f32 %v855, %v1325
    %v1469 = vadd.f32 %v858, %v1328
    %v1470 = vadd.f32 %v861, %v1331
    %v1471 = vadd.f32 %v864, %v1334
    %v1472 = vadd.f32 %v867, %v1337
    %v1473 = vadd.f32 %v870, %v1340
    %v1474 = vadd.f32 %v873, %v1343
    %v1475 = vadd.f32 %v876, %v1346
    %v1476 = vadd.f32 %v879, %v1349
    %v1477 = vadd.f32 %v882, %v1352
    %v1478 = vadd.f32 %v885, %v1355
    %v1479 = vadd.f32 %v888, %v1358
    %v1480 = vadd.f32 %v891, %v1361
    %v1481 = vadd.f32 %v894, %v1364
    %v1482 = vadd.f32 %v897, %v1367
    %v1483 = vadd.f32 %v900, %v1370
    %v1484 = vadd.f32 %v903, %v1373
    %v1485 = vadd.f32 %v906, %v1376
    %v1486 = vadd.f32 %v909, %v1379
    %v1487 = vadd.f32 %v912, %v1382
    %v1488 = vadd.f32 %v915, %v1385
    %v1489 = vadd.f32 %v918, %v1388
    %v1490 = vadd.f32 %v921, %v1391
    %v1491 = vadd.f32 %v924, %v1394
    %v1492 = vadd.f32 %v927, %v1397
    %v1493 = vadd.f32 %v930, %v1400
    %v1494 = vadd.f32 %v933, %v1403
    %v1495 = vadd.f32 %v936, %v1406
    %v1496 = vadd.f32 %v939, %v1409
    %v1497 = vadd.f32 %v942, %v1412
    %v1498 = vadd.f32 %v945, %v1415
    %v1499 = vadd.f32 %v948, %v1418
    %v1500 = vadd.f32 %v951, %v1421
    %v1501 = vadd.f32 %v954, %v1424
    %v1502 = vadd.f32 %v957, %v1427
    %v1503 = vadd.f32 %v960, %v1430
    %v1504 = vadd.f32 %v963, %v1433
    %v1505 = vadd.f32 %v966, %v1436
    %v1506 = vadd.f32 %v969, %v1439
    %v1507 = vadd.f32 %v972, %v1442
    %s1508 = scalar_lea.vmem %s0, 24
    %v1509 = vld [vmem:[%s1508] sm:$0xff]
    %v1510 = vld [vmem:[%s1508 + $0x8] sm:$0xff]
    %v1511 = vld [vmem:[%s1508 + $0x18] sm:$0xff]
    %v1512 = vld [vmem:[%s1508 + $0x20] sm:$0xff]
    %v1513 = vld [vmem:[%s1508 + $0x30] sm:$0xff]
    %v1514 = vld [vmem:[%s1508 + $0x38] sm:$0xff]
    %v1515 = vld [vmem:[%s1508 + $0x48] sm:$0xff]
    %v1516 = vld [vmem:[%s1508 + $0x50] sm:$0xff]
    %v1517 = vld [vmem:[%s1508 + $0x60] sm:$0xff]
    %v1518 = vld [vmem:[%s1508 + $0x68] sm:$0xff]
    %v1519 = vld [vmem:[%s1508 + $0x78] sm:$0xff]
    %v1520 = vld [vmem:[%s1508 + $0x80] sm:$0xff]
    %v1521 = vld [vmem:[%s1508 + $0x90] sm:$0xff]
    %v1522 = vld [vmem:[%s1508 + $0x98] sm:$0xff]
    %v1523 = vld [vmem:[%s1508 + $0xa8] sm:$0xff]
    %v1524 = vld [vmem:[%s1508 + $0xb0] sm:$0xff]
    %v1525 = vld [vmem:[%s1508 + $0xc0] sm:$0xff]
    %v1526 = vld [vmem:[%s1508 + $0xc8] sm:$0xff]
    %v1527 = vld [vmem:[%s1508 + $0xd8] sm:$0xff]
    %v1528 = vld [vmem:[%s1508 + $0xe0] sm:$0xff]
    %v1529 = vld [vmem:[%s1508 + $0xf0] sm:$0xff]
    %v1530 = vld [vmem:[%s1508 + $0xf8] sm:$0xff]
    %v1531 = vld [vmem:[%s1508 + $0x108] sm:$0xff]
    %v1532 = vld [vmem:[%s1508 + $0x110] sm:$0xff]
    %v1533 = vld [vmem:[%s1508 + $0x120] sm:$0xff]
    %v1534 = vld [vmem:[%s1508 + $0x128] sm:$0xff]
    %v1535 = vld [vmem:[%s1508 + $0x138] sm:$0xff]
    %v1536 = vld [vmem:[%s1508 + $0x140] sm:$0xff]
    %v1537 = vld [vmem:[%s1508 + $0x150] sm:$0xff]
    %v1538 = vld [vmem:[%s1508 + $0x158] sm:$0xff]
    %v1539 = vld [vmem:[%s1508 + $0x168] sm:$0xff]
    %v1540 = vld [vmem:[%s1508 + $0x170] sm:$0xff]
    %v1541 = vld [vmem:[%s1508 + $0x1b0] sm:$0xff]
    %v1542 = vld [vmem:[%s1508 + $0x1b8] sm:$0xff]
    %v1543 = vld [vmem:[%s1508 + $0x1c8] sm:$0xff]
    %v1544 = vld [vmem:[%s1508 + $0x1d0] sm:$0xff]
    %v1545 = vld [vmem:[%s1508 + $0x1e0] sm:$0xff]
    %v1546 = vld [vmem:[%s1508 + $0x1e8] sm:$0xff]
    %v1547 = vld [vmem:[%s1508 + $0x1f8] sm:$0xff]
    %v1548 = vld [vmem:[%s1508 + $0x200] sm:$0xff]
    %v1549 = vld [vmem:[%s1508 + $0x210] sm:$0xff]
    %v1550 = vld [vmem:[%s1508 + $0x218] sm:$0xff]
    %v1551 = vld [vmem:[%s1508 + $0x228] sm:$0xff]
    %v1552 = vld [vmem:[%s1508 + $0x230] sm:$0xff]
    %v1553 = vld [vmem:[%s1508 + $0x240] sm:$0xff]
    %v1554 = vld [vmem:[%s1508 + $0x248] sm:$0xff]
    %v1555 = vld [vmem:[%s1508 + $0x258] sm:$0xff]
    %v1556 = vld [vmem:[%s1508 + $0x260] sm:$0xff]
    %v1557 = vld [vmem:[%s1508 + $0x270] sm:$0xff]
    %v1558 = vld [vmem:[%s1508 + $0x278] sm:$0xff]
    %v1559 = vld [vmem:[%s1508 + $0x288] sm:$0xff]
    %v1560 = vld [vmem:[%s1508 + $0x290] sm:$0xff]
    %v1561 = vld [vmem:[%s1508 + $0x2a0] sm:$0xff]
    %v1562 = vld [vmem:[%s1508 + $0x2a8] sm:$0xff]
    %v1563 = vld [vmem:[%s1508 + $0x2b8] sm:$0xff]
    %v1564 = vld [vmem:[%s1508 + $0x2c0] sm:$0xff]
    %v1565 = vld [vmem:[%s1508 + $0x2d0] sm:$0xff]
    %v1566 = vld [vmem:[%s1508 + $0x2d8] sm:$0xff]
    %v1567 = vld [vmem:[%s1508 + $0x2e8] sm:$0xff]
    %v1568 = vld [vmem:[%s1508 + $0x2f0] sm:$0xff]
    %v1569 = vld [vmem:[%s1508 + $0x300] sm:$0xff]
    %v1570 = vld [vmem:[%s1508 + $0x308] sm:$0xff]
    %v1571 = vld [vmem:[%s1508 + $0x318] sm:$0xff]
    %v1572 = vld [vmem:[%s1508 + $0x320] sm:$0xff]
    %s1573 = scalar_lea.vmem %s1, 12
    %v1574 = vld [vmem:[%s1573] sm:$0xf]
    %v1576 = vsel %vm164, %v1509, 0
    %v1579 = vsel %vm164, %v1510, 0
    %v1582 = vsel %vm164, %v1511, 0
    %v1585 = vsel %vm164, %v1512, 0
    %v1588 = vsel %vm164, %v1513, 0
    %v1591 = vsel %vm164, %v1514, 0
    %v1594 = vsel %vm164, %v1515, 0
    %v1597 = vsel %vm164, %v1516, 0
    %v1600 = vsel %vm164, %v1517, 0
    %v1603 = vsel %vm164, %v1518, 0
    %v1606 = vsel %vm164, %v1519, 0
    %v1609 = vsel %vm164, %v1520, 0
    %v1612 = vsel %vm164, %v1521, 0
    %v1615 = vsel %vm164, %v1522, 0
    %v1618 = vsel %vm164, %v1523, 0
    %v1621 = vsel %vm164, %v1524, 0
    %v1624 = vsel %vm164, %v1525, 0
    %v1627 = vsel %vm164, %v1526, 0
    %v1630 = vsel %vm164, %v1527, 0
    %v1633 = vsel %vm164, %v1528, 0
    %v1636 = vsel %vm164, %v1529, 0
    %v1639 = vsel %vm164, %v1530, 0
    %v1642 = vsel %vm164, %v1531, 0
    %v1645 = vsel %vm164, %v1532, 0
    %v1648 = vsel %vm164, %v1533, 0
    %v1651 = vsel %vm164, %v1534, 0
    %v1654 = vsel %vm164, %v1535, 0
    %v1657 = vsel %vm164, %v1536, 0
    %v1660 = vsel %vm164, %v1537, 0
    %v1663 = vsel %vm164, %v1538, 0
    %v1666 = vsel %vm164, %v1539, 0
    %v1669 = vsel %vm164, %v1540, 0
    %v1672 = vsel %vm164, %v1541, 0
    %v1675 = vsel %vm164, %v1542, 0
    %v1678 = vsel %vm164, %v1543, 0
    %v1681 = vsel %vm164, %v1544, 0
    %v1684 = vsel %vm164, %v1545, 0
    %v1687 = vsel %vm164, %v1546, 0
    %v1690 = vsel %vm164, %v1547, 0
    %v1693 = vsel %vm164, %v1548, 0
    %v1696 = vsel %vm164, %v1549, 0
    %v1699 = vsel %vm164, %v1550, 0
    %v1702 = vsel %vm164, %v1551, 0
    %v1705 = vsel %vm164, %v1552, 0
    %v1708 = vsel %vm164, %v1553, 0
    %v1711 = vsel %vm164, %v1554, 0
    %v1714 = vsel %vm164, %v1555, 0
    %v1717 = vsel %vm164, %v1556, 0
    %v1720 = vsel %vm164, %v1557, 0
    %v1723 = vsel %vm164, %v1558, 0
    %v1726 = vsel %vm164, %v1559, 0
    %v1729 = vsel %vm164, %v1560, 0
    %v1732 = vsel %vm164, %v1561, 0
    %v1735 = vsel %vm164, %v1562, 0
    %v1738 = vsel %vm164, %v1563, 0
    %v1741 = vsel %vm164, %v1564, 0
    %v1744 = vsel %vm164, %v1565, 0
    %v1747 = vsel %vm164, %v1566, 0
    %v1750 = vsel %vm164, %v1567, 0
    %v1753 = vsel %vm164, %v1568, 0
    %v1756 = vsel %vm164, %v1569, 0
    %v1759 = vsel %vm164, %v1570, 0
    %v1762 = vsel %vm164, %v1571, 0
    %v1765 = vsel %vm164, %v1572, 0
    %v1768 = vsel %vm357, %v1574, 0
    %1770 = vmatpush.msra.mxu0 0.0
    %1771 = vmatpush.msra.mxu0 0.0
    %1772 = vmatpush.msra.mxu0 0.0
    %1773 = vmatpush.msra.mxu0 0.0
    %1774 = vmatpush.msra.mxu0 0.0
    %1775 = vmatpush.msra.mxu0 0.0
    %1776 = vmatpush.msra.mxu0 0.0
    %1777 = vmatpush.msra.mxu0 0.0
    %1778 = vmatpush.msra.mxu0 0.0
    %1779 = vmatpush.msra.mxu0 0.0
    %1780 = vmatpush.msra.mxu0 0.0
    %1781 = vmatpush.msra.mxu0 0.0
    %1782 = vmatpush.msra.mxu0 0.0
    %1783 = vmatpush.msra.mxu0 0.0
    %1784 = vmatpush.msra.mxu0 0.0
    %1785 = vmatpush.msra.mxu0 %v1768
    %1786 = vmatmul.f32.gmra.mxu0 %v1576
    %v1787 = vpop.f32.mrf.mxu0
    %v1788 = vadd.f32 0.0, %v1787
    %1789 = vmatmul.f32.gmra.mxu0 %v1579
    %v1790 = vpop.f32.mrf.mxu0
    %v1791 = vadd.f32 0.0, %v1790
    %1792 = vmatmul.f32.gmra.mxu0 %v1582
    %v1793 = vpop.f32.mrf.mxu0
    %v1794 = vadd.f32 0.0, %v1793
    %1795 = vmatmul.f32.gmra.mxu0 %v1585
    %v1796 = vpop.f32.mrf.mxu0
    %v1797 = vadd.f32 0.0, %v1796
    %1798 = vmatmul.f32.gmra.mxu0 %v1588
    %v1799 = vpop.f32.mrf.mxu0
    %v1800 = vadd.f32 0.0, %v1799
    %1801 = vmatmul.f32.gmra.mxu0 %v1591
    %v1802 = vpop.f32.mrf.mxu0
    %v1803 = vadd.f32 0.0, %v1802
    %1804 = vmatmul.f32.gmra.mxu0 %v1594
    %v1805 = vpop.f32.mrf.mxu0
    %v1806 = vadd.f32 0.0, %v1805
    %1807 = vmatmul.f32.gmra.mxu0 %v1597
    %v1808 = vpop.f32.mrf.mxu0
    %v1809 = vadd.f32 0.0, %v1808
    %1810 = vmatmul.f32.gmra.mxu0 %v1600
    %v1811 = vpop.f32.mrf.mxu0
    %v1812 = vadd.f32 0.0, %v1811
    %1813 = vmatmul.f32.gmra.mxu0 %v1603
    %v1814 = vpop.f32.mrf.mxu0
    %v1815 = vadd.f32 0.0, %v1814
    %1816 = vmatmul.f32.gmra.mxu0 %v1606
    %v1817 = vpop.f32.mrf.mxu0
    %v1818 = vadd.f32 0.0, %v1817
    %1819 = vmatmul.f32.gmra.mxu0 %v1609
    %v1820 = vpop.f32.mrf.mxu0
    %v1821 = vadd.f32 0.0, %v1820
    %1822 = vmatmul.f32.gmra.mxu0 %v1612
    %v1823 = vpop.f32.mrf.mxu0
    %v1824 = vadd.f32 0.0, %v1823
    %1825 = vmatmul.f32.gmra.mxu0 %v1615
    %v1826 = vpop.f32.mrf.mxu0
    %v1827 = vadd.f32 0.0, %v1826
    %1828 = vmatmul.f32.gmra.mxu0 %v1618
    %v1829 = vpop.f32.mrf.mxu0
    %v1830 = vadd.f32 0.0, %v1829
    %1831 = vmatmul.f32.gmra.mxu0 %v1621
    %v1832 = vpop.f32.mrf.mxu0
    %v1833 = vadd.f32 0.0, %v1832
    %1834 = vmatmul.f32.gmra.mxu0 %v1624
    %v1835 = vpop.f32.mrf.mxu0
    %v1836 = vadd.f32 0.0, %v1835
    %1837 = vmatmul.f32.gmra.mxu0 %v1627
    %v1838 = vpop.f32.mrf.mxu0
    %v1839 = vadd.f32 0.0, %v1838
    %1840 = vmatmul.f32.gmra.mxu0 %v1630
    %v1841 = vpop.f32.mrf.mxu0
    %v1842 = vadd.f32 0.0, %v1841
    %1843 = vmatmul.f32.gmra.mxu0 %v1633
    %v1844 = vpop.f32.mrf.mxu0
    %v1845 = vadd.f32 0.0, %v1844
    %1846 = vmatmul.f32.gmra.mxu0 %v1636
    %v1847 = vpop.f32.mrf.mxu0
    %v1848 = vadd.f32 0.0, %v1847
    %1849 = vmatmul.f32.gmra.mxu0 %v1639
    %v1850 = vpop.f32.mrf.mxu0
    %v1851 = vadd.f32 0.0, %v1850
    %1852 = vmatmul.f32.gmra.mxu0 %v1642
    %v1853 = vpop.f32.mrf.mxu0
    %v1854 = vadd.f32 0.0, %v1853
    %1855 = vmatmul.f32.gmra.mxu0 %v1645
    %v1856 = vpop.f32.mrf.mxu0
    %v1857 = vadd.f32 0.0, %v1856
    %1858 = vmatmul.f32.gmra.mxu0 %v1648
    %v1859 = vpop.f32.mrf.mxu0
    %v1860 = vadd.f32 0.0, %v1859
    %1861 = vmatmul.f32.gmra.mxu0 %v1651
    %v1862 = vpop.f32.mrf.mxu0
    %v1863 = vadd.f32 0.0, %v1862
    %1864 = vmatmul.f32.gmra.mxu0 %v1654
    %v1865 = vpop.f32.mrf.mxu0
    %v1866 = vadd.f32 0.0, %v1865
    %1867 = vmatmul.f32.gmra.mxu0 %v1657
    %v1868 = vpop.f32.mrf.mxu0
    %v1869 = vadd.f32 0.0, %v1868
    %1870 = vmatmul.f32.gmra.mxu0 %v1660
    %v1871 = vpop.f32.mrf.mxu0
    %v1872 = vadd.f32 0.0, %v1871
    %1873 = vmatmul.f32.gmra.mxu0 %v1663
    %v1874 = vpop.f32.mrf.mxu0
    %v1875 = vadd.f32 0.0, %v1874
    %1876 = vmatmul.f32.gmra.mxu0 %v1666
    %v1877 = vpop.f32.mrf.mxu0
    %v1878 = vadd.f32 0.0, %v1877
    %1879 = vmatmul.f32.gmra.mxu0 %v1669
    %v1880 = vpop.f32.mrf.mxu0
    %v1881 = vadd.f32 0.0, %v1880
    %1882 = vmatmul.f32.gmra.mxu0 %v1672
    %v1883 = vpop.f32.mrf.mxu0
    %v1884 = vadd.f32 0.0, %v1883
    %1885 = vmatmul.f32.gmra.mxu0 %v1675
    %v1886 = vpop.f32.mrf.mxu0
    %v1887 = vadd.f32 0.0, %v1886
    %1888 = vmatmul.f32.gmra.mxu0 %v1678
    %v1889 = vpop.f32.mrf.mxu0
    %v1890 = vadd.f32 0.0, %v1889
    %1891 = vmatmul.f32.gmra.mxu0 %v1681
    %v1892 = vpop.f32.mrf.mxu0
    %v1893 = vadd.f32 0.0, %v1892
    %1894 = vmatmul.f32.gmra.mxu0 %v1684
    %v1895 = vpop.f32.mrf.mxu0
    %v1896 = vadd.f32 0.0, %v1895
    %1897 = vmatmul.f32.gmra.mxu0 %v1687
    %v1898 = vpop.f32.mrf.mxu0
    %v1899 = vadd.f32 0.0, %v1898
    %1900 = vmatmul.f32.gmra.mxu0 %v1690
    %v1901 = vpop.f32.mrf.mxu0
    %v1902 = vadd.f32 0.0, %v1901
    %1903 = vmatmul.f32.gmra.mxu0 %v1693
    %v1904 = vpop.f32.mrf.mxu0
    %v1905 = vadd.f32 0.0, %v1904
    %1906 = vmatmul.f32.gmra.mxu0 %v1696
    %v1907 = vpop.f32.mrf.mxu0
    %v1908 = vadd.f32 0.0, %v1907
    %1909 = vmatmul.f32.gmra.mxu0 %v1699
    %v1910 = vpop.f32.mrf.mxu0
    %v1911 = vadd.f32 0.0, %v1910
    %1912 = vmatmul.f32.gmra.mxu0 %v1702
    %v1913 = vpop.f32.mrf.mxu0
    %v1914 = vadd.f32 0.0, %v1913
    %1915 = vmatmul.f32.gmra.mxu0 %v1705
    %v1916 = vpop.f32.mrf.mxu0
    %v1917 = vadd.f32 0.0, %v1916
    %1918 = vmatmul.f32.gmra.mxu0 %v1708
    %v1919 = vpop.f32.mrf.mxu0
    %v1920 = vadd.f32 0.0, %v1919
    %1921 = vmatmul.f32.gmra.mxu0 %v1711
    %v1922 = vpop.f32.mrf.mxu0
    %v1923 = vadd.f32 0.0, %v1922
    %1924 = vmatmul.f32.gmra.mxu0 %v1714
    %v1925 = vpop.f32.mrf.mxu0
    %v1926 = vadd.f32 0.0, %v1925
    %1927 = vmatmul.f32.gmra.mxu0 %v1717
    %v1928 = vpop.f32.mrf.mxu0
    %v1929 = vadd.f32 0.0, %v1928
    %1930 = vmatmul.f32.gmra.mxu0 %v1720
    %v1931 = vpop.f32.mrf.mxu0
    %v1932 = vadd.f32 0.0, %v1931
    %1933 = vmatmul.f32.gmra.mxu0 %v1723
    %v1934 = vpop.f32.mrf.mxu0
    %v1935 = vadd.f32 0.0, %v1934
    %1936 = vmatmul.f32.gmra.mxu0 %v1726
    %v1937 = vpop.f32.mrf.mxu0
    %v1938 = vadd.f32 0.0, %v1937
    %1939 = vmatmul.f32.gmra.mxu0 %v1729
    %v1940 = vpop.f32.mrf.mxu0
    %v1941 = vadd.f32 0.0, %v1940
    %1942 = vmatmul.f32.gmra.mxu0 %v1732
    %v1943 = vpop.f32.mrf.mxu0
    %v1944 = vadd.f32 0.0, %v1943
    %1945 = vmatmul.f32.gmra.mxu0 %v1735
    %v1946 = vpop.f32.mrf.mxu0
    %v1947 = vadd.f32 0.0, %v1946
    %1948 = vmatmul.f32.gmra.mxu0 %v1738
    %v1949 = vpop.f32.mrf.mxu0
    %v1950 = vadd.f32 0.0, %v1949
    %1951 = vmatmul.f32.gmra.mxu0 %v1741
    %v1952 = vpop.f32.mrf.mxu0
    %v1953 = vadd.f32 0.0, %v1952
    %1954 = vmatmul.f32.gmra.mxu0 %v1744
    %v1955 = vpop.f32.mrf.mxu0
    %v1956 = vadd.f32 0.0, %v1955
    %1957 = vmatmul.f32.gmra.mxu0 %v1747
    %v1958 = vpop.f32.mrf.mxu0
    %v1959 = vadd.f32 0.0, %v1958
    %1960 = vmatmul.f32.gmra.mxu0 %v1750
    %v1961 = vpop.f32.mrf.mxu0
    %v1962 = vadd.f32 0.0, %v1961
    %1963 = vmatmul.f32.gmra.mxu0 %v1753
    %v1964 = vpop.f32.mrf.mxu0
    %v1965 = vadd.f32 0.0, %v1964
    %1966 = vmatmul.f32.gmra.mxu0 %v1756
    %v1967 = vpop.f32.mrf.mxu0
    %v1968 = vadd.f32 0.0, %v1967
    %1969 = vmatmul.f32.gmra.mxu0 %v1759
    %v1970 = vpop.f32.mrf.mxu0
    %v1971 = vadd.f32 0.0, %v1970
    %1972 = vmatmul.f32.gmra.mxu0 %v1762
    %v1973 = vpop.f32.mrf.mxu0
    %v1974 = vadd.f32 0.0, %v1973
    %1975 = vmatmul.f32.gmra.mxu0 %v1765
    %v1976 = vpop.f32.mrf.mxu0
    %v1977 = vadd.f32 0.0, %v1976
    %1978 = vdwg.mxu0
    %v1979 = vadd.f32 %v1444, %v1788
    %v1980 = vadd.f32 %v1445, %v1791
    %v1981 = vadd.f32 %v1446, %v1794
    %v1982 = vadd.f32 %v1447, %v1797
    %v1983 = vadd.f32 %v1448, %v1800
    %v1984 = vadd.f32 %v1449, %v1803
    %v1985 = vadd.f32 %v1450, %v1806
    %v1986 = vadd.f32 %v1451, %v1809
    %v1987 = vadd.f32 %v1452, %v1812
    %v1988 = vadd.f32 %v1453, %v1815
    %v1989 = vadd.f32 %v1454, %v1818
    %v1990 = vadd.f32 %v1455, %v1821
    %v1991 = vadd.f32 %v1456, %v1824
    %v1992 = vadd.f32 %v1457, %v1827
    %v1993 = vadd.f32 %v1458, %v1830
    %v1994 = vadd.f32 %v1459, %v1833
    %v1995 = vadd.f32 %v1460, %v1836
    %v1996 = vadd.f32 %v1461, %v1839
    %v1997 = vadd.f32 %v1462, %v1842
    %v1998 = vadd.f32 %v1463, %v1845
    %v1999 = vadd.f32 %v1464, %v1848
    %v2000 = vadd.f32 %v1465, %v1851
    %v2001 = vadd.f32 %v1466, %v1854
    %v2002 = vadd.f32 %v1467, %v1857
    %v2003 = vadd.f32 %v1468, %v1860
    %v2004 = vadd.f32 %v1469, %v1863
    %v2005 = vadd.f32 %v1470, %v1866
    %v2006 = vadd.f32 %v1471, %v1869
    %v2007 = vadd.f32 %v1472, %v1872
    %v2008 = vadd.f32 %v1473, %v1875
    %v2009 = vadd.f32 %v1474, %v1878
    %v2010 = vadd.f32 %v1475, %v1881
    %v2011 = vadd.f32 %v1476, %v1884
    %v2012 = vadd.f32 %v1477, %v1887
    %v2013 = vadd.f32 %v1478, %v1890
    %v2014 = vadd.f32 %v1479, %v1893
    %v2015 = vadd.f32 %v1480, %v1896
    %v2016 = vadd.f32 %v1481, %v1899
    %v2017 = vadd.f32 %v1482, %v1902
    %v2018 = vadd.f32 %v1483, %v1905
    %v2019 = vadd.f32 %v1484, %v1908
    %v2020 = vadd.f32 %v1485, %v1911
    %v2021 = vadd.f32 %v1486, %v1914
    %v2022 = vadd.f32 %v1487, %v1917
    %v2023 = vadd.f32 %v1488, %v1920
    %v2024 = vadd.f32 %v1489, %v1923
    %v2025 = vadd.f32 %v1490, %v1926
    %v2026 = vadd.f32 %v1491, %v1929
    %v2027 = vadd.f32 %v1492, %v1932
    %v2028 = vadd.f32 %v1493, %v1935
    %v2029 = vadd.f32 %v1494, %v1938
    %v2030 = vadd.f32 %v1495, %v1941
    %v2031 = vadd.f32 %v1496, %v1944
    %v2032 = vadd.f32 %v1497, %v1947
    %v2033 = vadd.f32 %v1498, %v1950
    %v2034 = vadd.f32 %v1499, %v1953
    %v2035 = vadd.f32 %v1500, %v1956
    %v2036 = vadd.f32 %v1501, %v1959
    %v2037 = vadd.f32 %v1502, %v1962
    %v2038 = vadd.f32 %v1503, %v1965
    %v2039 = vadd.f32 %v1504, %v1968
    %v2040 = vadd.f32 %v1505, %v1971
    %v2041 = vadd.f32 %v1506, %v1974
    %v2042 = vadd.f32 %v1507, %v1977
    %v2043 = vld [vmem:[%s1508 + $0x1] sm:$0xff]
    %v2044 = vld [vmem:[%s1508 + $0x9] sm:$0xff]
    %v2045 = vld [vmem:[%s1508 + $0x19] sm:$0xff]
    %v2046 = vld [vmem:[%s1508 + $0x21] sm:$0xff]
    %v2047 = vld [vmem:[%s1508 + $0x31] sm:$0xff]
    %v2048 = vld [vmem:[%s1508 + $0x39] sm:$0xff]
    %v2049 = vld [vmem:[%s1508 + $0x49] sm:$0xff]
    %v2050 = vld [vmem:[%s1508 + $0x51] sm:$0xff]
    %v2051 = vld [vmem:[%s1508 + $0x61] sm:$0xff]
    %v2052 = vld [vmem:[%s1508 + $0x69] sm:$0xff]
    %v2053 = vld [vmem:[%s1508 + $0x79] sm:$0xff]
    %v2054 = vld [vmem:[%s1508 + $0x81] sm:$0xff]
    %v2055 = vld [vmem:[%s1508 + $0x91] sm:$0xff]
    %v2056 = vld [vmem:[%s1508 + $0x99] sm:$0xff]
    %v2057 = vld [vmem:[%s1508 + $0xa9] sm:$0xff]
    %v2058 = vld [vmem:[%s1508 + $0xb1] sm:$0xff]
    %v2059 = vld [vmem:[%s1508 + $0xc1] sm:$0xff]
    %v2060 = vld [vmem:[%s1508 + $0xc9] sm:$0xff]
    %v2061 = vld [vmem:[%s1508 + $0xd9] sm:$0xff]
    %v2062 = vld [vmem:[%s1508 + $0xe1] sm:$0xff]
    %v2063 = vld [vmem:[%s1508 + $0xf1] sm:$0xff]
    %v2064 = vld [vmem:[%s1508 + $0xf9] sm:$0xff]
    %v2065 = vld [vmem:[%s1508 + $0x109] sm:$0xff]
    %v2066 = vld [vmem:[%s1508 + $0x111] sm:$0xff]
    %v2067 = vld [vmem:[%s1508 + $0x121] sm:$0xff]
    %v2068 = vld [vmem:[%s1508 + $0x129] sm:$0xff]
    %v2069 = vld [vmem:[%s1508 + $0x139] sm:$0xff]
    %v2070 = vld [vmem:[%s1508 + $0x141] sm:$0xff]
    %v2071 = vld [vmem:[%s1508 + $0x151] sm:$0xff]
    %v2072 = vld [vmem:[%s1508 + $0x159] sm:$0xff]
    %v2073 = vld [vmem:[%s1508 + $0x169] sm:$0xff]
    %v2074 = vld [vmem:[%s1508 + $0x171] sm:$0xff]
    %v2075 = vld [vmem:[%s1508 + $0x1b1] sm:$0xff]
    %v2076 = vld [vmem:[%s1508 + $0x1b9] sm:$0xff]
    %v2077 = vld [vmem:[%s1508 + $0x1c9] sm:$0xff]
    %v2078 = vld [vmem:[%s1508 + $0x1d1] sm:$0xff]
    %v2079 = vld [vmem:[%s1508 + $0x1e1] sm:$0xff]
    %v2080 = vld [vmem:[%s1508 + $0x1e9] sm:$0xff]
    %v2081 = vld [vmem:[%s1508 + $0x1f9] sm:$0xff]
    %v2082 = vld [vmem:[%s1508 + $0x201] sm:$0xff]
    %v2083 = vld [vmem:[%s1508 + $0x211] sm:$0xff]
    %v2084 = vld [vmem:[%s1508 + $0x219] sm:$0xff]
    %v2085 = vld [vmem:[%s1508 + $0x229] sm:$0xff]
    %v2086 = vld [vmem:[%s1508 + $0x231] sm:$0xff]
    %v2087 = vld [vmem:[%s1508 + $0x241] sm:$0xff]
    %v2088 = vld [vmem:[%s1508 + $0x249] sm:$0xff]
    %v2089 = vld [vmem:[%s1508 + $0x259] sm:$0xff]
    %v2090 = vld [vmem:[%s1508 + $0x261] sm:$0xff]
    %v2091 = vld [vmem:[%s1508 + $0x271] sm:$0xff]
    %v2092 = vld [vmem:[%s1508 + $0x279] sm:$0xff]
    %v2093 = vld [vmem:[%s1508 + $0x289] sm:$0xff]
    %v2094 = vld [vmem:[%s1508 + $0x291] sm:$0xff]
    %v2095 = vld [vmem:[%s1508 + $0x2a1] sm:$0xff]
    %v2096 = vld [vmem:[%s1508 + $0x2a9] sm:$0xff]
    %v2097 = vld [vmem:[%s1508 + $0x2b9] sm:$0xff]
    %v2098 = vld [vmem:[%s1508 + $0x2c1] sm:$0xff]
    %v2099 = vld [vmem:[%s1508 + $0x2d1] sm:$0xff]
    %v2100 = vld [vmem:[%s1508 + $0x2d9] sm:$0xff]
    %v2101 = vld [vmem:[%s1508 + $0x2e9] sm:$0xff]
    %v2102 = vld [vmem:[%s1508 + $0x2f1] sm:$0xff]
    %v2103 = vld [vmem:[%s1508 + $0x301] sm:$0xff]
    %v2104 = vld [vmem:[%s1508 + $0x309] sm:$0xff]
    %v2105 = vld [vmem:[%s1508 + $0x319] sm:$0xff]
    %v2106 = vld [vmem:[%s1508 + $0x321] sm:$0xff]
    %s2107 = scalar_lea.vmem %s1, 16
    %v2108 = vld [vmem:[%s2107] sm:$0xf]
    %v2110 = vsel %vm164, %v2043, 0
    %v2113 = vsel %vm164, %v2044, 0
    %v2116 = vsel %vm164, %v2045, 0
    %v2119 = vsel %vm164, %v2046, 0
    %v2122 = vsel %vm164, %v2047, 0
    %v2125 = vsel %vm164, %v2048, 0
    %v2128 = vsel %vm164, %v2049, 0
    %v2131 = vsel %vm164, %v2050, 0
    %v2134 = vsel %vm164, %v2051, 0
    %v2137 = vsel %vm164, %v2052, 0
    %v2140 = vsel %vm164, %v2053, 0
    %v2143 = vsel %vm164, %v2054, 0
    %v2146 = vsel %vm164, %v2055, 0
    %v2149 = vsel %vm164, %v2056, 0
    %v2152 = vsel %vm164, %v2057, 0
    %v2155 = vsel %vm164, %v2058, 0
    %v2158 = vsel %vm164, %v2059, 0
    %v2161 = vsel %vm164, %v2060, 0
    %v2164 = vsel %vm164, %v2061, 0
    %v2167 = vsel %vm164, %v2062, 0
    %v2170 = vsel %vm164, %v2063, 0
    %v2173 = vsel %vm164, %v2064, 0
    %v2176 = vsel %vm164, %v2065, 0
    %v2179 = vsel %vm164, %v2066, 0
    %v2182 = vsel %vm164, %v2067, 0
    %v2185 = vsel %vm164, %v2068, 0
    %v2188 = vsel %vm164, %v2069, 0
    %v2191 = vsel %vm164, %v2070, 0
    %v2194 = vsel %vm164, %v2071, 0
    %v2197 = vsel %vm164, %v2072, 0
    %v2200 = vsel %vm164, %v2073, 0
    %v2203 = vsel %vm164, %v2074, 0
    %v2206 = vsel %vm164, %v2075, 0
    %v2209 = vsel %vm164, %v2076, 0
    %v2212 = vsel %vm164, %v2077, 0
    %v2215 = vsel %vm164, %v2078, 0
    %v2218 = vsel %vm164, %v2079, 0
    %v2221 = vsel %vm164, %v2080, 0
    %v2224 = vsel %vm164, %v2081, 0
    %v2227 = vsel %vm164, %v2082, 0
    %v2230 = vsel %vm164, %v2083, 0
    %v2233 = vsel %vm164, %v2084, 0
    %v2236 = vsel %vm164, %v2085, 0
    %v2239 = vsel %vm164, %v2086, 0
    %v2242 = vsel %vm164, %v2087, 0
    %v2245 = vsel %vm164, %v2088, 0
    %v2248 = vsel %vm164, %v2089, 0
    %v2251 = vsel %vm164, %v2090, 0
    %v2254 = vsel %vm164, %v2091, 0
    %v2257 = vsel %vm164, %v2092, 0
    %v2260 = vsel %vm164, %v2093, 0
    %v2263 = vsel %vm164, %v2094, 0
    %v2266 = vsel %vm164, %v2095, 0
    %v2269 = vsel %vm164, %v2096, 0
    %v2272 = vsel %vm164, %v2097, 0
    %v2275 = vsel %vm164, %v2098, 0
    %v2278 = vsel %vm164, %v2099, 0
    %v2281 = vsel %vm164, %v2100, 0
    %v2284 = vsel %vm164, %v2101, 0
    %v2287 = vsel %vm164, %v2102, 0
    %v2290 = vsel %vm164, %v2103, 0
    %v2293 = vsel %vm164, %v2104, 0
    %v2296 = vsel %vm164, %v2105, 0
    %v2299 = vsel %vm164, %v2106, 0
    %v2302 = vsel %vm357, %v2108, 0
    %2304 = vmatpush.msra.mxu0 0.0
    %2305 = vmatpush.msra.mxu0 0.0
    %2306 = vmatpush.msra.mxu0 0.0
    %2307 = vmatpush.msra.mxu0 0.0
    %2308 = vmatpush.msra.mxu0 0.0
    %2309 = vmatpush.msra.mxu0 0.0
    %2310 = vmatpush.msra.mxu0 0.0
    %2311 = vmatpush.msra.mxu0 0.0
    %2312 = vmatpush.msra.mxu0 0.0
    %2313 = vmatpush.msra.mxu0 0.0
    %2314 = vmatpush.msra.mxu0 0.0
    %2315 = vmatpush.msra.mxu0 0.0
    %2316 = vmatpush.msra.mxu0 0.0
    %2317 = vmatpush.msra.mxu0 0.0
    %2318 = vmatpush.msra.mxu0 0.0
    %2319 = vmatpush.msra.mxu0 %v2302
    %2320 = vmatmul.f32.gmra.mxu0 %v2110
    %v2321 = vpop.f32.mrf.mxu0
    %v2322 = vadd.f32 0.0, %v2321
    %2323 = vmatmul.f32.gmra.mxu0 %v2113
    %v2324 = vpop.f32.mrf.mxu0
    %v2325 = vadd.f32 0.0, %v2324
    %2326 = vmatmul.f32.gmra.mxu0 %v2116
    %v2327 = vpop.f32.mrf.mxu0
    %v2328 = vadd.f32 0.0, %v2327
    %2329 = vmatmul.f32.gmra.mxu0 %v2119
    %v2330 = vpop.f32.mrf.mxu0
    %v2331 = vadd.f32 0.0, %v2330
    %2332 = vmatmul.f32.gmra.mxu0 %v2122
    %v2333 = vpop.f32.mrf.mxu0
    %v2334 = vadd.f32 0.0, %v2333
    %2335 = vmatmul.f32.gmra.mxu0 %v2125
    %v2336 = vpop.f32.mrf.mxu0
    %v2337 = vadd.f32 0.0, %v2336
    %2338 = vmatmul.f32.gmra.mxu0 %v2128
    %v2339 = vpop.f32.mrf.mxu0
    %v2340 = vadd.f32 0.0, %v2339
    %2341 = vmatmul.f32.gmra.mxu0 %v2131
    %v2342 = vpop.f32.mrf.mxu0
    %v2343 = vadd.f32 0.0, %v2342
    %2344 = vmatmul.f32.gmra.mxu0 %v2134
    %v2345 = vpop.f32.mrf.mxu0
    %v2346 = vadd.f32 0.0, %v2345
    %2347 = vmatmul.f32.gmra.mxu0 %v2137
    %v2348 = vpop.f32.mrf.mxu0
    %v2349 = vadd.f32 0.0, %v2348
    %2350 = vmatmul.f32.gmra.mxu0 %v2140
    %v2351 = vpop.f32.mrf.mxu0
    %v2352 = vadd.f32 0.0, %v2351
    %2353 = vmatmul.f32.gmra.mxu0 %v2143
    %v2354 = vpop.f32.mrf.mxu0
    %v2355 = vadd.f32 0.0, %v2354
    %2356 = vmatmul.f32.gmra.mxu0 %v2146
    %v2357 = vpop.f32.mrf.mxu0
    %v2358 = vadd.f32 0.0, %v2357
    %2359 = vmatmul.f32.gmra.mxu0 %v2149
    %v2360 = vpop.f32.mrf.mxu0
    %v2361 = vadd.f32 0.0, %v2360
    %2362 = vmatmul.f32.gmra.mxu0 %v2152
    %v2363 = vpop.f32.mrf.mxu0
    %v2364 = vadd.f32 0.0, %v2363
    %2365 = vmatmul.f32.gmra.mxu0 %v2155
    %v2366 = vpop.f32.mrf.mxu0
    %v2367 = vadd.f32 0.0, %v2366
    %2368 = vmatmul.f32.gmra.mxu0 %v2158
    %v2369 = vpop.f32.mrf.mxu0
    %v2370 = vadd.f32 0.0, %v2369
    %2371 = vmatmul.f32.gmra.mxu0 %v2161
    %v2372 = vpop.f32.mrf.mxu0
    %v2373 = vadd.f32 0.0, %v2372
    %2374 = vmatmul.f32.gmra.mxu0 %v2164
    %v2375 = vpop.f32.mrf.mxu0
    %v2376 = vadd.f32 0.0, %v2375
    %2377 = vmatmul.f32.gmra.mxu0 %v2167
    %v2378 = vpop.f32.mrf.mxu0
    %v2379 = vadd.f32 0.0, %v2378
    %2380 = vmatmul.f32.gmra.mxu0 %v2170
    %v2381 = vpop.f32.mrf.mxu0
    %v2382 = vadd.f32 0.0, %v2381
    %2383 = vmatmul.f32.gmra.mxu0 %v2173
    %v2384 = vpop.f32.mrf.mxu0
    %v2385 = vadd.f32 0.0, %v2384
    %2386 = vmatmul.f32.gmra.mxu0 %v2176
    %v2387 = vpop.f32.mrf.mxu0
    %v2388 = vadd.f32 0.0, %v2387
    %2389 = vmatmul.f32.gmra.mxu0 %v2179
    %v2390 = vpop.f32.mrf.mxu0
    %v2391 = vadd.f32 0.0, %v2390
    %2392 = vmatmul.f32.gmra.mxu0 %v2182
    %v2393 = vpop.f32.mrf.mxu0
    %v2394 = vadd.f32 0.0, %v2393
    %2395 = vmatmul.f32.gmra.mxu0 %v2185
    %v2396 = vpop.f32.mrf.mxu0
    %v2397 = vadd.f32 0.0, %v2396
    %2398 = vmatmul.f32.gmra.mxu0 %v2188
    %v2399 = vpop.f32.mrf.mxu0
    %v2400 = vadd.f32 0.0, %v2399
    %2401 = vmatmul.f32.gmra.mxu0 %v2191
    %v2402 = vpop.f32.mrf.mxu0
    %v2403 = vadd.f32 0.0, %v2402
    %2404 = vmatmul.f32.gmra.mxu0 %v2194
    %v2405 = vpop.f32.mrf.mxu0
    %v2406 = vadd.f32 0.0, %v2405
    %2407 = vmatmul.f32.gmra.mxu0 %v2197
    %v2408 = vpop.f32.mrf.mxu0
    %v2409 = vadd.f32 0.0, %v2408
    %2410 = vmatmul.f32.gmra.mxu0 %v2200
    %v2411 = vpop.f32.mrf.mxu0
    %v2412 = vadd.f32 0.0, %v2411
    %2413 = vmatmul.f32.gmra.mxu0 %v2203
    %v2414 = vpop.f32.mrf.mxu0
    %v2415 = vadd.f32 0.0, %v2414
    %2416 = vmatmul.f32.gmra.mxu0 %v2206
    %v2417 = vpop.f32.mrf.mxu0
    %v2418 = vadd.f32 0.0, %v2417
    %2419 = vmatmul.f32.gmra.mxu0 %v2209
    %v2420 = vpop.f32.mrf.mxu0
    %v2421 = vadd.f32 0.0, %v2420
    %2422 = vmatmul.f32.gmra.mxu0 %v2212
    %v2423 = vpop.f32.mrf.mxu0
    %v2424 = vadd.f32 0.0, %v2423
    %2425 = vmatmul.f32.gmra.mxu0 %v2215
    %v2426 = vpop.f32.mrf.mxu0
    %v2427 = vadd.f32 0.0, %v2426
    %2428 = vmatmul.f32.gmra.mxu0 %v2218
    %v2429 = vpop.f32.mrf.mxu0
    %v2430 = vadd.f32 0.0, %v2429
    %2431 = vmatmul.f32.gmra.mxu0 %v2221
    %v2432 = vpop.f32.mrf.mxu0
    %v2433 = vadd.f32 0.0, %v2432
    %2434 = vmatmul.f32.gmra.mxu0 %v2224
    %v2435 = vpop.f32.mrf.mxu0
    %v2436 = vadd.f32 0.0, %v2435
    %2437 = vmatmul.f32.gmra.mxu0 %v2227
    %v2438 = vpop.f32.mrf.mxu0
    %v2439 = vadd.f32 0.0, %v2438
    %2440 = vmatmul.f32.gmra.mxu0 %v2230
    %v2441 = vpop.f32.mrf.mxu0
    %v2442 = vadd.f32 0.0, %v2441
    %2443 = vmatmul.f32.gmra.mxu0 %v2233
    %v2444 = vpop.f32.mrf.mxu0
    %v2445 = vadd.f32 0.0, %v2444
    %2446 = vmatmul.f32.gmra.mxu0 %v2236
    %v2447 = vpop.f32.mrf.mxu0
    %v2448 = vadd.f32 0.0, %v2447
    %2449 = vmatmul.f32.gmra.mxu0 %v2239
    %v2450 = vpop.f32.mrf.mxu0
    %v2451 = vadd.f32 0.0, %v2450
    %2452 = vmatmul.f32.gmra.mxu0 %v2242
    %v2453 = vpop.f32.mrf.mxu0
    %v2454 = vadd.f32 0.0, %v2453
    %2455 = vmatmul.f32.gmra.mxu0 %v2245
    %v2456 = vpop.f32.mrf.mxu0
    %v2457 = vadd.f32 0.0, %v2456
    %2458 = vmatmul.f32.gmra.mxu0 %v2248
    %v2459 = vpop.f32.mrf.mxu0
    %v2460 = vadd.f32 0.0, %v2459
    %2461 = vmatmul.f32.gmra.mxu0 %v2251
    %v2462 = vpop.f32.mrf.mxu0
    %v2463 = vadd.f32 0.0, %v2462
    %2464 = vmatmul.f32.gmra.mxu0 %v2254
    %v2465 = vpop.f32.mrf.mxu0
    %v2466 = vadd.f32 0.0, %v2465
    %2467 = vmatmul.f32.gmra.mxu0 %v2257
    %v2468 = vpop.f32.mrf.mxu0
    %v2469 = vadd.f32 0.0, %v2468
    %2470 = vmatmul.f32.gmra.mxu0 %v2260
    %v2471 = vpop.f32.mrf.mxu0
    %v2472 = vadd.f32 0.0, %v2471
    %2473 = vmatmul.f32.gmra.mxu0 %v2263
    %v2474 = vpop.f32.mrf.mxu0
    %v2475 = vadd.f32 0.0, %v2474
    %2476 = vmatmul.f32.gmra.mxu0 %v2266
    %v2477 = vpop.f32.mrf.mxu0
    %v2478 = vadd.f32 0.0, %v2477
    %2479 = vmatmul.f32.gmra.mxu0 %v2269
    %v2480 = vpop.f32.mrf.mxu0
    %v2481 = vadd.f32 0.0, %v2480
    %2482 = vmatmul.f32.gmra.mxu0 %v2272
    %v2483 = vpop.f32.mrf.mxu0
    %v2484 = vadd.f32 0.0, %v2483
    %2485 = vmatmul.f32.gmra.mxu0 %v2275
    %v2486 = vpop.f32.mrf.mxu0
    %v2487 = vadd.f32 0.0, %v2486
    %2488 = vmatmul.f32.gmra.mxu0 %v2278
    %v2489 = vpop.f32.mrf.mxu0
    %v2490 = vadd.f32 0.0, %v2489
    %2491 = vmatmul.f32.gmra.mxu0 %v2281
    %v2492 = vpop.f32.mrf.mxu0
    %v2493 = vadd.f32 0.0, %v2492
    %2494 = vmatmul.f32.gmra.mxu0 %v2284
    %v2495 = vpop.f32.mrf.mxu0
    %v2496 = vadd.f32 0.0, %v2495
    %2497 = vmatmul.f32.gmra.mxu0 %v2287
    %v2498 = vpop.f32.mrf.mxu0
    %v2499 = vadd.f32 0.0, %v2498
    %2500 = vmatmul.f32.gmra.mxu0 %v2290
    %v2501 = vpop.f32.mrf.mxu0
    %v2502 = vadd.f32 0.0, %v2501
    %2503 = vmatmul.f32.gmra.mxu0 %v2293
    %v2504 = vpop.f32.mrf.mxu0
    %v2505 = vadd.f32 0.0, %v2504
    %2506 = vmatmul.f32.gmra.mxu0 %v2296
    %v2507 = vpop.f32.mrf.mxu0
    %v2508 = vadd.f32 0.0, %v2507
    %2509 = vmatmul.f32.gmra.mxu0 %v2299
    %v2510 = vpop.f32.mrf.mxu0
    %v2511 = vadd.f32 0.0, %v2510
    %2512 = vdwg.mxu0
    %v2513 = vadd.f32 %v1979, %v2322
    %v2514 = vadd.f32 %v1980, %v2325
    %v2515 = vadd.f32 %v1981, %v2328
    %v2516 = vadd.f32 %v1982, %v2331
    %v2517 = vadd.f32 %v1983, %v2334
    %v2518 = vadd.f32 %v1984, %v2337
    %v2519 = vadd.f32 %v1985, %v2340
    %v2520 = vadd.f32 %v1986, %v2343
    %v2521 = vadd.f32 %v1987, %v2346
    %v2522 = vadd.f32 %v1988, %v2349
    %v2523 = vadd.f32 %v1989, %v2352
    %v2524 = vadd.f32 %v1990, %v2355
    %v2525 = vadd.f32 %v1991, %v2358
    %v2526 = vadd.f32 %v1992, %v2361
    %v2527 = vadd.f32 %v1993, %v2364
    %v2528 = vadd.f32 %v1994, %v2367
    %v2529 = vadd.f32 %v1995, %v2370
    %v2530 = vadd.f32 %v1996, %v2373
    %v2531 = vadd.f32 %v1997, %v2376
    %v2532 = vadd.f32 %v1998, %v2379
    %v2533 = vadd.f32 %v1999, %v2382
    %v2534 = vadd.f32 %v2000, %v2385
    %v2535 = vadd.f32 %v2001, %v2388
    %v2536 = vadd.f32 %v2002, %v2391
    %v2537 = vadd.f32 %v2003, %v2394
    %v2538 = vadd.f32 %v2004, %v2397
    %v2539 = vadd.f32 %v2005, %v2400
    %v2540 = vadd.f32 %v2006, %v2403
    %v2541 = vadd.f32 %v2007, %v2406
    %v2542 = vadd.f32 %v2008, %v2409
    %v2543 = vadd.f32 %v2009, %v2412
    %v2544 = vadd.f32 %v2010, %v2415
    %v2545 = vadd.f32 %v2011, %v2418
    %v2546 = vadd.f32 %v2012, %v2421
    %v2547 = vadd.f32 %v2013, %v2424
    %v2548 = vadd.f32 %v2014, %v2427
    %v2549 = vadd.f32 %v2015, %v2430
    %v2550 = vadd.f32 %v2016, %v2433
    %v2551 = vadd.f32 %v2017, %v2436
    %v2552 = vadd.f32 %v2018, %v2439
    %v2553 = vadd.f32 %v2019, %v2442
    %v2554 = vadd.f32 %v2020, %v2445
    %v2555 = vadd.f32 %v2021, %v2448
    %v2556 = vadd.f32 %v2022, %v2451
    %v2557 = vadd.f32 %v2023, %v2454
    %v2558 = vadd.f32 %v2024, %v2457
    %v2559 = vadd.f32 %v2025, %v2460
    %v2560 = vadd.f32 %v2026, %v2463
    %v2561 = vadd.f32 %v2027, %v2466
    %v2562 = vadd.f32 %v2028, %v2469
    %v2563 = vadd.f32 %v2029, %v2472
    %v2564 = vadd.f32 %v2030, %v2475
    %v2565 = vadd.f32 %v2031, %v2478
    %v2566 = vadd.f32 %v2032, %v2481
    %v2567 = vadd.f32 %v2033, %v2484
    %v2568 = vadd.f32 %v2034, %v2487
    %v2569 = vadd.f32 %v2035, %v2490
    %v2570 = vadd.f32 %v2036, %v2493
    %v2571 = vadd.f32 %v2037, %v2496
    %v2572 = vadd.f32 %v2038, %v2499
    %v2573 = vadd.f32 %v2039, %v2502
    %v2574 = vadd.f32 %v2040, %v2505
    %v2575 = vadd.f32 %v2041, %v2508
    %v2576 = vadd.f32 %v2042, %v2511
    %v2577 = vld [vmem:[%s1508 + $0x2] sm:$0xff]
    %v2578 = vld [vmem:[%s1508 + $0xa] sm:$0xff]
    %v2579 = vld [vmem:[%s1508 + $0x1a] sm:$0xff]
    %v2580 = vld [vmem:[%s1508 + $0x22] sm:$0xff]
    %v2581 = vld [vmem:[%s1508 + $0x32] sm:$0xff]
    %v2582 = vld [vmem:[%s1508 + $0x3a] sm:$0xff]
    %v2583 = vld [vmem:[%s1508 + $0x4a] sm:$0xff]
    %v2584 = vld [vmem:[%s1508 + $0x52] sm:$0xff]
    %v2585 = vld [vmem:[%s1508 + $0x62] sm:$0xff]
    %v2586 = vld [vmem:[%s1508 + $0x6a] sm:$0xff]
    %v2587 = vld [vmem:[%s1508 + $0x7a] sm:$0xff]
    %v2588 = vld [vmem:[%s1508 + $0x82] sm:$0xff]
    %v2589 = vld [vmem:[%s1508 + $0x92] sm:$0xff]
    %v2590 = vld [vmem:[%s1508 + $0x9a] sm:$0xff]
    %v2591 = vld [vmem:[%s1508 + $0xaa] sm:$0xff]
    %v2592 = vld [vmem:[%s1508 + $0xb2] sm:$0xff]
    %v2593 = vld [vmem:[%s1508 + $0xc2] sm:$0xff]
    %v2594 = vld [vmem:[%s1508 + $0xca] sm:$0xff]
    %v2595 = vld [vmem:[%s1508 + $0xda] sm:$0xff]
    %v2596 = vld [vmem:[%s1508 + $0xe2] sm:$0xff]
    %v2597 = vld [vmem:[%s1508 + $0xf2] sm:$0xff]
    %v2598 = vld [vmem:[%s1508 + $0xfa] sm:$0xff]
    %v2599 = vld [vmem:[%s1508 + $0x10a] sm:$0xff]
    %v2600 = vld [vmem:[%s1508 + $0x112] sm:$0xff]
    %v2601 = vld [vmem:[%s1508 + $0x122] sm:$0xff]
    %v2602 = vld [vmem:[%s1508 + $0x12a] sm:$0xff]
    %v2603 = vld [vmem:[%s1508 + $0x13a] sm:$0xff]
    %v2604 = vld [vmem:[%s1508 + $0x142] sm:$0xff]
    %v2605 = vld [vmem:[%s1508 + $0x152] sm:$0xff]
    %v2606 = vld [vmem:[%s1508 + $0x15a] sm:$0xff]
    %v2607 = vld [vmem:[%s1508 + $0x16a] sm:$0xff]
    %v2608 = vld [vmem:[%s1508 + $0x172] sm:$0xff]
    %v2609 = vld [vmem:[%s1508 + $0x1b2] sm:$0xff]
    %v2610 = vld [vmem:[%s1508 + $0x1ba] sm:$0xff]
    %v2611 = vld [vmem:[%s1508 + $0x1ca] sm:$0xff]
    %v2612 = vld [vmem:[%s1508 + $0x1d2] sm:$0xff]
    %v2613 = vld [vmem:[%s1508 + $0x1e2] sm:$0xff]
    %v2614 = vld [vmem:[%s1508 + $0x1ea] sm:$0xff]
    %v2615 = vld [vmem:[%s1508 + $0x1fa] sm:$0xff]
    %v2616 = vld [vmem:[%s1508 + $0x202] sm:$0xff]
    %v2617 = vld [vmem:[%s1508 + $0x212] sm:$0xff]
    %v2618 = vld [vmem:[%s1508 + $0x21a] sm:$0xff]
    %v2619 = vld [vmem:[%s1508 + $0x22a] sm:$0xff]
    %v2620 = vld [vmem:[%s1508 + $0x232] sm:$0xff]
    %v2621 = vld [vmem:[%s1508 + $0x242] sm:$0xff]
    %v2622 = vld [vmem:[%s1508 + $0x24a] sm:$0xff]
    %v2623 = vld [vmem:[%s1508 + $0x25a] sm:$0xff]
    %v2624 = vld [vmem:[%s1508 + $0x262] sm:$0xff]
    %v2625 = vld [vmem:[%s1508 + $0x272] sm:$0xff]
    %v2626 = vld [vmem:[%s1508 + $0x27a] sm:$0xff]
    %v2627 = vld [vmem:[%s1508 + $0x28a] sm:$0xff]
    %v2628 = vld [vmem:[%s1508 + $0x292] sm:$0xff]
    %v2629 = vld [vmem:[%s1508 + $0x2a2] sm:$0xff]
    %v2630 = vld [vmem:[%s1508 + $0x2aa] sm:$0xff]
    %v2631 = vld [vmem:[%s1508 + $0x2ba] sm:$0xff]
    %v2632 = vld [vmem:[%s1508 + $0x2c2] sm:$0xff]
    %v2633 = vld [vmem:[%s1508 + $0x2d2] sm:$0xff]
    %v2634 = vld [vmem:[%s1508 + $0x2da] sm:$0xff]
    %v2635 = vld [vmem:[%s1508 + $0x2ea] sm:$0xff]
    %v2636 = vld [vmem:[%s1508 + $0x2f2] sm:$0xff]
    %v2637 = vld [vmem:[%s1508 + $0x302] sm:$0xff]
    %v2638 = vld [vmem:[%s1508 + $0x30a] sm:$0xff]
    %v2639 = vld [vmem:[%s1508 + $0x31a] sm:$0xff]
    %v2640 = vld [vmem:[%s1508 + $0x322] sm:$0xff]
    %s2641 = scalar_lea.vmem %s1, 20
    %v2642 = vld [vmem:[%s2641] sm:$0xf]
    %v2644 = vsel %vm164, %v2577, 0
    %v2647 = vsel %vm164, %v2578, 0
    %v2650 = vsel %vm164, %v2579, 0
    %v2653 = vsel %vm164, %v2580, 0
    %v2656 = vsel %vm164, %v2581, 0
    %v2659 = vsel %vm164, %v2582, 0
    %v2662 = vsel %vm164, %v2583, 0
    %v2665 = vsel %vm164, %v2584, 0
    %v2668 = vsel %vm164, %v2585, 0
    %v2671 = vsel %vm164, %v2586, 0
    %v2674 = vsel %vm164, %v2587, 0
    %v2677 = vsel %vm164, %v2588, 0
    %v2680 = vsel %vm164, %v2589, 0
    %v2683 = vsel %vm164, %v2590, 0
    %v2686 = vsel %vm164, %v2591, 0
    %v2689 = vsel %vm164, %v2592, 0
    %v2692 = vsel %vm164, %v2593, 0
    %v2695 = vsel %vm164, %v2594, 0
    %v2698 = vsel %vm164, %v2595, 0
    %v2701 = vsel %vm164, %v2596, 0
    %v2704 = vsel %vm164, %v2597, 0
    %v2707 = vsel %vm164, %v2598, 0
    %v2710 = vsel %vm164, %v2599, 0
    %v2713 = vsel %vm164, %v2600, 0
    %v2716 = vsel %vm164, %v2601, 0
    %v2719 = vsel %vm164, %v2602, 0
    %v2722 = vsel %vm164, %v2603, 0
    %v2725 = vsel %vm164, %v2604, 0
    %v2728 = vsel %vm164, %v2605, 0
    %v2731 = vsel %vm164, %v2606, 0
    %v2734 = vsel %vm164, %v2607, 0
    %v2737 = vsel %vm164, %v2608, 0
    %v2740 = vsel %vm164, %v2609, 0
    %v2743 = vsel %vm164, %v2610, 0
    %v2746 = vsel %vm164, %v2611, 0
    %v2749 = vsel %vm164, %v2612, 0
    %v2752 = vsel %vm164, %v2613, 0
    %v2755 = vsel %vm164, %v2614, 0
    %v2758 = vsel %vm164, %v2615, 0
    %v2761 = vsel %vm164, %v2616, 0
    %v2764 = vsel %vm164, %v2617, 0
    %v2767 = vsel %vm164, %v2618, 0
    %v2770 = vsel %vm164, %v2619, 0
    %v2773 = vsel %vm164, %v2620, 0
    %v2776 = vsel %vm164, %v2621, 0
    %v2779 = vsel %vm164, %v2622, 0
    %v2782 = vsel %vm164, %v2623, 0
    %v2785 = vsel %vm164, %v2624, 0
    %v2788 = vsel %vm164, %v2625, 0
    %v2791 = vsel %vm164, %v2626, 0
    %v2794 = vsel %vm164, %v2627, 0
    %v2797 = vsel %vm164, %v2628, 0
    %v2800 = vsel %vm164, %v2629, 0
    %v2803 = vsel %vm164, %v2630, 0
    %v2806 = vsel %vm164, %v2631, 0
    %v2809 = vsel %vm164, %v2632, 0
    %v2812 = vsel %vm164, %v2633, 0
    %v2815 = vsel %vm164, %v2634, 0
    %v2818 = vsel %vm164, %v2635, 0
    %v2821 = vsel %vm164, %v2636, 0
    %v2824 = vsel %vm164, %v2637, 0
    %v2827 = vsel %vm164, %v2638, 0
    %v2830 = vsel %vm164, %v2639, 0
    %v2833 = vsel %vm164, %v2640, 0
    %v2836 = vsel %vm357, %v2642, 0
    %2838 = vmatpush.msra.mxu0 0.0
    %2839 = vmatpush.msra.mxu0 0.0
    %2840 = vmatpush.msra.mxu0 0.0
    %2841 = vmatpush.msra.mxu0 0.0
    %2842 = vmatpush.msra.mxu0 0.0
    %2843 = vmatpush.msra.mxu0 0.0
    %2844 = vmatpush.msra.mxu0 0.0
    %2845 = vmatpush.msra.mxu0 0.0
    %2846 = vmatpush.msra.mxu0 0.0
    %2847 = vmatpush.msra.mxu0 0.0
    %2848 = vmatpush.msra.mxu0 0.0
    %2849 = vmatpush.msra.mxu0 0.0
    %2850 = vmatpush.msra.mxu0 0.0
    %2851 = vmatpush.msra.mxu0 0.0
    %2852 = vmatpush.msra.mxu0 0.0
    %2853 = vmatpush.msra.mxu0 %v2836
    %2854 = vmatmul.f32.gmra.mxu0 %v2644
    %v2855 = vpop.f32.mrf.mxu0
    %v2856 = vadd.f32 0.0, %v2855
    %2857 = vmatmul.f32.gmra.mxu0 %v2647
    %v2858 = vpop.f32.mrf.mxu0
    %v2859 = vadd.f32 0.0, %v2858
    %2860 = vmatmul.f32.gmra.mxu0 %v2650
    %v2861 = vpop.f32.mrf.mxu0
    %v2862 = vadd.f32 0.0, %v2861
    %2863 = vmatmul.f32.gmra.mxu0 %v2653
    %v2864 = vpop.f32.mrf.mxu0
    %v2865 = vadd.f32 0.0, %v2864
    %2866 = vmatmul.f32.gmra.mxu0 %v2656
    %v2867 = vpop.f32.mrf.mxu0
    %v2868 = vadd.f32 0.0, %v2867
    %2869 = vmatmul.f32.gmra.mxu0 %v2659
    %v2870 = vpop.f32.mrf.mxu0
    %v2871 = vadd.f32 0.0, %v2870
    %2872 = vmatmul.f32.gmra.mxu0 %v2662
    %v2873 = vpop.f32.mrf.mxu0
    %v2874 = vadd.f32 0.0, %v2873
    %2875 = vmatmul.f32.gmra.mxu0 %v2665
    %v2876 = vpop.f32.mrf.mxu0
    %v2877 = vadd.f32 0.0, %v2876
    %2878 = vmatmul.f32.gmra.mxu0 %v2668
    %v2879 = vpop.f32.mrf.mxu0
    %v2880 = vadd.f32 0.0, %v2879
    %2881 = vmatmul.f32.gmra.mxu0 %v2671
    %v2882 = vpop.f32.mrf.mxu0
    %v2883 = vadd.f32 0.0, %v2882
    %2884 = vmatmul.f32.gmra.mxu0 %v2674
    %v2885 = vpop.f32.mrf.mxu0
    %v2886 = vadd.f32 0.0, %v2885
    %2887 = vmatmul.f32.gmra.mxu0 %v2677
    %v2888 = vpop.f32.mrf.mxu0
    %v2889 = vadd.f32 0.0, %v2888
    %2890 = vmatmul.f32.gmra.mxu0 %v2680
    %v2891 = vpop.f32.mrf.mxu0
    %v2892 = vadd.f32 0.0, %v2891
    %2893 = vmatmul.f32.gmra.mxu0 %v2683
    %v2894 = vpop.f32.mrf.mxu0
    %v2895 = vadd.f32 0.0, %v2894
    %2896 = vmatmul.f32.gmra.mxu0 %v2686
    %v2897 = vpop.f32.mrf.mxu0
    %v2898 = vadd.f32 0.0, %v2897
    %2899 = vmatmul.f32.gmra.mxu0 %v2689
    %v2900 = vpop.f32.mrf.mxu0
    %v2901 = vadd.f32 0.0, %v2900
    %2902 = vmatmul.f32.gmra.mxu0 %v2692
    %v2903 = vpop.f32.mrf.mxu0
    %v2904 = vadd.f32 0.0, %v2903
    %2905 = vmatmul.f32.gmra.mxu0 %v2695
    %v2906 = vpop.f32.mrf.mxu0
    %v2907 = vadd.f32 0.0, %v2906
    %2908 = vmatmul.f32.gmra.mxu0 %v2698
    %v2909 = vpop.f32.mrf.mxu0
    %v2910 = vadd.f32 0.0, %v2909
    %2911 = vmatmul.f32.gmra.mxu0 %v2701
    %v2912 = vpop.f32.mrf.mxu0
    %v2913 = vadd.f32 0.0, %v2912
    %2914 = vmatmul.f32.gmra.mxu0 %v2704
    %v2915 = vpop.f32.mrf.mxu0
    %v2916 = vadd.f32 0.0, %v2915
    %2917 = vmatmul.f32.gmra.mxu0 %v2707
    %v2918 = vpop.f32.mrf.mxu0
    %v2919 = vadd.f32 0.0, %v2918
    %2920 = vmatmul.f32.gmra.mxu0 %v2710
    %v2921 = vpop.f32.mrf.mxu0
    %v2922 = vadd.f32 0.0, %v2921
    %2923 = vmatmul.f32.gmra.mxu0 %v2713
    %v2924 = vpop.f32.mrf.mxu0
    %v2925 = vadd.f32 0.0, %v2924
    %2926 = vmatmul.f32.gmra.mxu0 %v2716
    %v2927 = vpop.f32.mrf.mxu0
    %v2928 = vadd.f32 0.0, %v2927
    %2929 = vmatmul.f32.gmra.mxu0 %v2719
    %v2930 = vpop.f32.mrf.mxu0
    %v2931 = vadd.f32 0.0, %v2930
    %2932 = vmatmul.f32.gmra.mxu0 %v2722
    %v2933 = vpop.f32.mrf.mxu0
    %v2934 = vadd.f32 0.0, %v2933
    %2935 = vmatmul.f32.gmra.mxu0 %v2725
    %v2936 = vpop.f32.mrf.mxu0
    %v2937 = vadd.f32 0.0, %v2936
    %2938 = vmatmul.f32.gmra.mxu0 %v2728
    %v2939 = vpop.f32.mrf.mxu0
    %v2940 = vadd.f32 0.0, %v2939
    %2941 = vmatmul.f32.gmra.mxu0 %v2731
    %v2942 = vpop.f32.mrf.mxu0
    %v2943 = vadd.f32 0.0, %v2942
    %2944 = vmatmul.f32.gmra.mxu0 %v2734
    %v2945 = vpop.f32.mrf.mxu0
    %v2946 = vadd.f32 0.0, %v2945
    %2947 = vmatmul.f32.gmra.mxu0 %v2737
    %v2948 = vpop.f32.mrf.mxu0
    %v2949 = vadd.f32 0.0, %v2948
    %2950 = vmatmul.f32.gmra.mxu0 %v2740
    %v2951 = vpop.f32.mrf.mxu0
    %v2952 = vadd.f32 0.0, %v2951
    %2953 = vmatmul.f32.gmra.mxu0 %v2743
    %v2954 = vpop.f32.mrf.mxu0
    %v2955 = vadd.f32 0.0, %v2954
    %2956 = vmatmul.f32.gmra.mxu0 %v2746
    %v2957 = vpop.f32.mrf.mxu0
    %v2958 = vadd.f32 0.0, %v2957
    %2959 = vmatmul.f32.gmra.mxu0 %v2749
    %v2960 = vpop.f32.mrf.mxu0
    %v2961 = vadd.f32 0.0, %v2960
    %2962 = vmatmul.f32.gmra.mxu0 %v2752
    %v2963 = vpop.f32.mrf.mxu0
    %v2964 = vadd.f32 0.0, %v2963
    %2965 = vmatmul.f32.gmra.mxu0 %v2755
    %v2966 = vpop.f32.mrf.mxu0
    %v2967 = vadd.f32 0.0, %v2966
    %2968 = vmatmul.f32.gmra.mxu0 %v2758
    %v2969 = vpop.f32.mrf.mxu0
    %v2970 = vadd.f32 0.0, %v2969
    %2971 = vmatmul.f32.gmra.mxu0 %v2761
    %v2972 = vpop.f32.mrf.mxu0
    %v2973 = vadd.f32 0.0, %v2972
    %2974 = vmatmul.f32.gmra.mxu0 %v2764
    %v2975 = vpop.f32.mrf.mxu0
    %v2976 = vadd.f32 0.0, %v2975
    %2977 = vmatmul.f32.gmra.mxu0 %v2767
    %v2978 = vpop.f32.mrf.mxu0
    %v2979 = vadd.f32 0.0, %v2978
    %2980 = vmatmul.f32.gmra.mxu0 %v2770
    %v2981 = vpop.f32.mrf.mxu0
    %v2982 = vadd.f32 0.0, %v2981
    %2983 = vmatmul.f32.gmra.mxu0 %v2773
    %v2984 = vpop.f32.mrf.mxu0
    %v2985 = vadd.f32 0.0, %v2984
    %2986 = vmatmul.f32.gmra.mxu0 %v2776
    %v2987 = vpop.f32.mrf.mxu0
    %v2988 = vadd.f32 0.0, %v2987
    %2989 = vmatmul.f32.gmra.mxu0 %v2779
    %v2990 = vpop.f32.mrf.mxu0
    %v2991 = vadd.f32 0.0, %v2990
    %2992 = vmatmul.f32.gmra.mxu0 %v2782
    %v2993 = vpop.f32.mrf.mxu0
    %v2994 = vadd.f32 0.0, %v2993
    %2995 = vmatmul.f32.gmra.mxu0 %v2785
    %v2996 = vpop.f32.mrf.mxu0
    %v2997 = vadd.f32 0.0, %v2996
    %2998 = vmatmul.f32.gmra.mxu0 %v2788
    %v2999 = vpop.f32.mrf.mxu0
    %v3000 = vadd.f32 0.0, %v2999
    %3001 = vmatmul.f32.gmra.mxu0 %v2791
    %v3002 = vpop.f32.mrf.mxu0
    %v3003 = vadd.f32 0.0, %v3002
    %3004 = vmatmul.f32.gmra.mxu0 %v2794
    %v3005 = vpop.f32.mrf.mxu0
    %v3006 = vadd.f32 0.0, %v3005
    %3007 = vmatmul.f32.gmra.mxu0 %v2797
    %v3008 = vpop.f32.mrf.mxu0
    %v3009 = vadd.f32 0.0, %v3008
    %3010 = vmatmul.f32.gmra.mxu0 %v2800
    %v3011 = vpop.f32.mrf.mxu0
    %v3012 = vadd.f32 0.0, %v3011
    %3013 = vmatmul.f32.gmra.mxu0 %v2803
    %v3014 = vpop.f32.mrf.mxu0
    %v3015 = vadd.f32 0.0, %v3014
    %3016 = vmatmul.f32.gmra.mxu0 %v2806
    %v3017 = vpop.f32.mrf.mxu0
    %v3018 = vadd.f32 0.0, %v3017
    %3019 = vmatmul.f32.gmra.mxu0 %v2809
    %v3020 = vpop.f32.mrf.mxu0
    %v3021 = vadd.f32 0.0, %v3020
    %3022 = vmatmul.f32.gmra.mxu0 %v2812
    %v3023 = vpop.f32.mrf.mxu0
    %v3024 = vadd.f32 0.0, %v3023
    %3025 = vmatmul.f32.gmra.mxu0 %v2815
    %v3026 = vpop.f32.mrf.mxu0
    %v3027 = vadd.f32 0.0, %v3026
    %3028 = vmatmul.f32.gmra.mxu0 %v2818
    %v3029 = vpop.f32.mrf.mxu0
    %v3030 = vadd.f32 0.0, %v3029
    %3031 = vmatmul.f32.gmra.mxu0 %v2821
    %v3032 = vpop.f32.mrf.mxu0
    %v3033 = vadd.f32 0.0, %v3032
    %3034 = vmatmul.f32.gmra.mxu0 %v2824
    %v3035 = vpop.f32.mrf.mxu0
    %v3036 = vadd.f32 0.0, %v3035
    %3037 = vmatmul.f32.gmra.mxu0 %v2827
    %v3038 = vpop.f32.mrf.mxu0
    %v3039 = vadd.f32 0.0, %v3038
    %3040 = vmatmul.f32.gmra.mxu0 %v2830
    %v3041 = vpop.f32.mrf.mxu0
    %v3042 = vadd.f32 0.0, %v3041
    %3043 = vmatmul.f32.gmra.mxu0 %v2833
    %v3044 = vpop.f32.mrf.mxu0
    %v3045 = vadd.f32 0.0, %v3044
    %3046 = vdwg.mxu0
    %v3047 = vadd.f32 %v2513, %v2856
    %v3048 = vadd.f32 %v2514, %v2859
    %v3049 = vadd.f32 %v2515, %v2862
    %v3050 = vadd.f32 %v2516, %v2865
    %v3051 = vadd.f32 %v2517, %v2868
    %v3052 = vadd.f32 %v2518, %v2871
    %v3053 = vadd.f32 %v2519, %v2874
    %v3054 = vadd.f32 %v2520, %v2877
    %v3055 = vadd.f32 %v2521, %v2880
    %v3056 = vadd.f32 %v2522, %v2883
    %v3057 = vadd.f32 %v2523, %v2886
    %v3058 = vadd.f32 %v2524, %v2889
    %v3059 = vadd.f32 %v2525, %v2892
    %v3060 = vadd.f32 %v2526, %v2895
    %v3061 = vadd.f32 %v2527, %v2898
    %v3062 = vadd.f32 %v2528, %v2901
    %v3063 = vadd.f32 %v2529, %v2904
    %v3064 = vadd.f32 %v2530, %v2907
    %v3065 = vadd.f32 %v2531, %v2910
    %v3066 = vadd.f32 %v2532, %v2913
    %v3067 = vadd.f32 %v2533, %v2916
    %v3068 = vadd.f32 %v2534, %v2919
    %v3069 = vadd.f32 %v2535, %v2922
    %v3070 = vadd.f32 %v2536, %v2925
    %v3071 = vadd.f32 %v2537, %v2928
    %v3072 = vadd.f32 %v2538, %v2931
    %v3073 = vadd.f32 %v2539, %v2934
    %v3074 = vadd.f32 %v2540, %v2937
    %v3075 = vadd.f32 %v2541, %v2940
    %v3076 = vadd.f32 %v2542, %v2943
    %v3077 = vadd.f32 %v2543, %v2946
    %v3078 = vadd.f32 %v2544, %v2949
    %v3079 = vadd.f32 %v2545, %v2952
    %v3080 = vadd.f32 %v2546, %v2955
    %v3081 = vadd.f32 %v2547, %v2958
    %v3082 = vadd.f32 %v2548, %v2961
    %v3083 = vadd.f32 %v2549, %v2964
    %v3084 = vadd.f32 %v2550, %v2967
    %v3085 = vadd.f32 %v2551, %v2970
    %v3086 = vadd.f32 %v2552, %v2973
    %v3087 = vadd.f32 %v2553, %v2976
    %v3088 = vadd.f32 %v2554, %v2979
    %v3089 = vadd.f32 %v2555, %v2982
    %v3090 = vadd.f32 %v2556, %v2985
    %v3091 = vadd.f32 %v2557, %v2988
    %v3092 = vadd.f32 %v2558, %v2991
    %v3093 = vadd.f32 %v2559, %v2994
    %v3094 = vadd.f32 %v2560, %v2997
    %v3095 = vadd.f32 %v2561, %v3000
    %v3096 = vadd.f32 %v2562, %v3003
    %v3097 = vadd.f32 %v2563, %v3006
    %v3098 = vadd.f32 %v2564, %v3009
    %v3099 = vadd.f32 %v2565, %v3012
    %v3100 = vadd.f32 %v2566, %v3015
    %v3101 = vadd.f32 %v2567, %v3018
    %v3102 = vadd.f32 %v2568, %v3021
    %v3103 = vadd.f32 %v2569, %v3024
    %v3104 = vadd.f32 %v2570, %v3027
    %v3105 = vadd.f32 %v2571, %v3030
    %v3106 = vadd.f32 %v2572, %v3033
    %v3107 = vadd.f32 %v2573, %v3036
    %v3108 = vadd.f32 %v2574, %v3039
    %v3109 = vadd.f32 %v2575, %v3042
    %v3110 = vadd.f32 %v2576, %v3045
    %s3111 = scalar_lea.vmem %s0, 48
    %v3112 = vld [vmem:[%s3111] sm:$0xff]
    %v3113 = vld [vmem:[%s3111 + $0x8] sm:$0xff]
    %v3114 = vld [vmem:[%s3111 + $0x18] sm:$0xff]
    %v3115 = vld [vmem:[%s3111 + $0x20] sm:$0xff]
    %v3116 = vld [vmem:[%s3111 + $0x30] sm:$0xff]
    %v3117 = vld [vmem:[%s3111 + $0x38] sm:$0xff]
    %v3118 = vld [vmem:[%s3111 + $0x48] sm:$0xff]
    %v3119 = vld [vmem:[%s3111 + $0x50] sm:$0xff]
    %v3120 = vld [vmem:[%s3111 + $0x60] sm:$0xff]
    %v3121 = vld [vmem:[%s3111 + $0x68] sm:$0xff]
    %v3122 = vld [vmem:[%s3111 + $0x78] sm:$0xff]
    %v3123 = vld [vmem:[%s3111 + $0x80] sm:$0xff]
    %v3124 = vld [vmem:[%s3111 + $0x90] sm:$0xff]
    %v3125 = vld [vmem:[%s3111 + $0x98] sm:$0xff]
    %v3126 = vld [vmem:[%s3111 + $0xa8] sm:$0xff]
    %v3127 = vld [vmem:[%s3111 + $0xb0] sm:$0xff]
    %v3128 = vld [vmem:[%s3111 + $0xc0] sm:$0xff]
    %v3129 = vld [vmem:[%s3111 + $0xc8] sm:$0xff]
    %v3130 = vld [vmem:[%s3111 + $0xd8] sm:$0xff]
    %v3131 = vld [vmem:[%s3111 + $0xe0] sm:$0xff]
    %v3132 = vld [vmem:[%s3111 + $0xf0] sm:$0xff]
    %v3133 = vld [vmem:[%s3111 + $0xf8] sm:$0xff]
    %v3134 = vld [vmem:[%s3111 + $0x108] sm:$0xff]
    %v3135 = vld [vmem:[%s3111 + $0x110] sm:$0xff]
    %v3136 = vld [vmem:[%s3111 + $0x120] sm:$0xff]
    %v3137 = vld [vmem:[%s3111 + $0x128] sm:$0xff]
    %v3138 = vld [vmem:[%s3111 + $0x138] sm:$0xff]
    %v3139 = vld [vmem:[%s3111 + $0x140] sm:$0xff]
    %v3140 = vld [vmem:[%s3111 + $0x150] sm:$0xff]
    %v3141 = vld [vmem:[%s3111 + $0x158] sm:$0xff]
    %v3142 = vld [vmem:[%s3111 + $0x168] sm:$0xff]
    %v3143 = vld [vmem:[%s3111 + $0x170] sm:$0xff]
    %v3144 = vld [vmem:[%s3111 + $0x1b0] sm:$0xff]
    %v3145 = vld [vmem:[%s3111 + $0x1b8] sm:$0xff]
    %v3146 = vld [vmem:[%s3111 + $0x1c8] sm:$0xff]
    %v3147 = vld [vmem:[%s3111 + $0x1d0] sm:$0xff]
    %v3148 = vld [vmem:[%s3111 + $0x1e0] sm:$0xff]
    %v3149 = vld [vmem:[%s3111 + $0x1e8] sm:$0xff]
    %v3150 = vld [vmem:[%s3111 + $0x1f8] sm:$0xff]
    %v3151 = vld [vmem:[%s3111 + $0x200] sm:$0xff]
    %v3152 = vld [vmem:[%s3111 + $0x210] sm:$0xff]
    %v3153 = vld [vmem:[%s3111 + $0x218] sm:$0xff]
    %v3154 = vld [vmem:[%s3111 + $0x228] sm:$0xff]
    %v3155 = vld [vmem:[%s3111 + $0x230] sm:$0xff]
    %v3156 = vld [vmem:[%s3111 + $0x240] sm:$0xff]
    %v3157 = vld [vmem:[%s3111 + $0x248] sm:$0xff]
    %v3158 = vld [vmem:[%s3111 + $0x258] sm:$0xff]
    %v3159 = vld [vmem:[%s3111 + $0x260] sm:$0xff]
    %v3160 = vld [vmem:[%s3111 + $0x270] sm:$0xff]
    %v3161 = vld [vmem:[%s3111 + $0x278] sm:$0xff]
    %v3162 = vld [vmem:[%s3111 + $0x288] sm:$0xff]
    %v3163 = vld [vmem:[%s3111 + $0x290] sm:$0xff]
    %v3164 = vld [vmem:[%s3111 + $0x2a0] sm:$0xff]
    %v3165 = vld [vmem:[%s3111 + $0x2a8] sm:$0xff]
    %v3166 = vld [vmem:[%s3111 + $0x2b8] sm:$0xff]
    %v3167 = vld [vmem:[%s3111 + $0x2c0] sm:$0xff]
    %v3168 = vld [vmem:[%s3111 + $0x2d0] sm:$0xff]
    %v3169 = vld [vmem:[%s3111 + $0x2d8] sm:$0xff]
    %v3170 = vld [vmem:[%s3111 + $0x2e8] sm:$0xff]
    %v3171 = vld [vmem:[%s3111 + $0x2f0] sm:$0xff]
    %v3172 = vld [vmem:[%s3111 + $0x300] sm:$0xff]
    %v3173 = vld [vmem:[%s3111 + $0x308] sm:$0xff]
    %v3174 = vld [vmem:[%s3111 + $0x318] sm:$0xff]
    %v3175 = vld [vmem:[%s3111 + $0x320] sm:$0xff]
    %s3176 = scalar_lea.vmem %s1, 24
    %v3177 = vld [vmem:[%s3176] sm:$0xf]
    %v3179 = vsel %vm164, %v3112, 0
    %v3182 = vsel %vm164, %v3113, 0
    %v3185 = vsel %vm164, %v3114, 0
    %v3188 = vsel %vm164, %v3115, 0
    %v3191 = vsel %vm164, %v3116, 0
    %v3194 = vsel %vm164, %v3117, 0
    %v3197 = vsel %vm164, %v3118, 0
    %v3200 = vsel %vm164, %v3119, 0
    %v3203 = vsel %vm164, %v3120, 0
    %v3206 = vsel %vm164, %v3121, 0
    %v3209 = vsel %vm164, %v3122, 0
    %v3212 = vsel %vm164, %v3123, 0
    %v3215 = vsel %vm164, %v3124, 0
    %v3218 = vsel %vm164, %v3125, 0
    %v3221 = vsel %vm164, %v3126, 0
    %v3224 = vsel %vm164, %v3127, 0
    %v3227 = vsel %vm164, %v3128, 0
    %v3230 = vsel %vm164, %v3129, 0
    %v3233 = vsel %vm164, %v3130, 0
    %v3236 = vsel %vm164, %v3131, 0
    %v3239 = vsel %vm164, %v3132, 0
    %v3242 = vsel %vm164, %v3133, 0
    %v3245 = vsel %vm164, %v3134, 0
    %v3248 = vsel %vm164, %v3135, 0
    %v3251 = vsel %vm164, %v3136, 0
    %v3254 = vsel %vm164, %v3137, 0
    %v3257 = vsel %vm164, %v3138, 0
    %v3260 = vsel %vm164, %v3139, 0
    %v3263 = vsel %vm164, %v3140, 0
    %v3266 = vsel %vm164, %v3141, 0
    %v3269 = vsel %vm164, %v3142, 0
    %v3272 = vsel %vm164, %v3143, 0
    %v3275 = vsel %vm164, %v3144, 0
    %v3278 = vsel %vm164, %v3145, 0
    %v3281 = vsel %vm164, %v3146, 0
    %v3284 = vsel %vm164, %v3147, 0
    %v3287 = vsel %vm164, %v3148, 0
    %v3290 = vsel %vm164, %v3149, 0
    %v3293 = vsel %vm164, %v3150, 0
    %v3296 = vsel %vm164, %v3151, 0
    %v3299 = vsel %vm164, %v3152, 0
    %v3302 = vsel %vm164, %v3153, 0
    %v3305 = vsel %vm164, %v3154, 0
    %v3308 = vsel %vm164, %v3155, 0
    %v3311 = vsel %vm164, %v3156, 0
    %v3314 = vsel %vm164, %v3157, 0
    %v3317 = vsel %vm164, %v3158, 0
    %v3320 = vsel %vm164, %v3159, 0
    %v3323 = vsel %vm164, %v3160, 0
    %v3326 = vsel %vm164, %v3161, 0
    %v3329 = vsel %vm164, %v3162, 0
    %v3332 = vsel %vm164, %v3163, 0
    %v3335 = vsel %vm164, %v3164, 0
    %v3338 = vsel %vm164, %v3165, 0
    %v3341 = vsel %vm164, %v3166, 0
    %v3344 = vsel %vm164, %v3167, 0
    %v3347 = vsel %vm164, %v3168, 0
    %v3350 = vsel %vm164, %v3169, 0
    %v3353 = vsel %vm164, %v3170, 0
    %v3356 = vsel %vm164, %v3171, 0
    %v3359 = vsel %vm164, %v3172, 0
    %v3362 = vsel %vm164, %v3173, 0
    %v3365 = vsel %vm164, %v3174, 0
    %v3368 = vsel %vm164, %v3175, 0
    %v3371 = vsel %vm357, %v3177, 0
    %3373 = vmatpush.msra.mxu0 0.0
    %3374 = vmatpush.msra.mxu0 0.0
    %3375 = vmatpush.msra.mxu0 0.0
    %3376 = vmatpush.msra.mxu0 0.0
    %3377 = vmatpush.msra.mxu0 0.0
    %3378 = vmatpush.msra.mxu0 0.0
    %3379 = vmatpush.msra.mxu0 0.0
    %3380 = vmatpush.msra.mxu0 0.0
    %3381 = vmatpush.msra.mxu0 0.0
    %3382 = vmatpush.msra.mxu0 0.0
    %3383 = vmatpush.msra.mxu0 0.0
    %3384 = vmatpush.msra.mxu0 0.0
    %3385 = vmatpush.msra.mxu0 0.0
    %3386 = vmatpush.msra.mxu0 0.0
    %3387 = vmatpush.msra.mxu0 0.0
    %3388 = vmatpush.msra.mxu0 %v3371
    %3389 = vmatmul.f32.gmra.mxu0 %v3179
    %v3390 = vpop.f32.mrf.mxu0
    %v3391 = vadd.f32 0.0, %v3390
    %3392 = vmatmul.f32.gmra.mxu0 %v3182
    %v3393 = vpop.f32.mrf.mxu0
    %v3394 = vadd.f32 0.0, %v3393
    %3395 = vmatmul.f32.gmra.mxu0 %v3185
    %v3396 = vpop.f32.mrf.mxu0
    %v3397 = vadd.f32 0.0, %v3396
    %3398 = vmatmul.f32.gmra.mxu0 %v3188
    %v3399 = vpop.f32.mrf.mxu0
    %v3400 = vadd.f32 0.0, %v3399
    %3401 = vmatmul.f32.gmra.mxu0 %v3191
    %v3402 = vpop.f32.mrf.mxu0
    %v3403 = vadd.f32 0.0, %v3402
    %3404 = vmatmul.f32.gmra.mxu0 %v3194
    %v3405 = vpop.f32.mrf.mxu0
    %v3406 = vadd.f32 0.0, %v3405
    %3407 = vmatmul.f32.gmra.mxu0 %v3197
    %v3408 = vpop.f32.mrf.mxu0
    %v3409 = vadd.f32 0.0, %v3408
    %3410 = vmatmul.f32.gmra.mxu0 %v3200
    %v3411 = vpop.f32.mrf.mxu0
    %v3412 = vadd.f32 0.0, %v3411
    %3413 = vmatmul.f32.gmra.mxu0 %v3203
    %v3414 = vpop.f32.mrf.mxu0
    %v3415 = vadd.f32 0.0, %v3414
    %3416 = vmatmul.f32.gmra.mxu0 %v3206
    %v3417 = vpop.f32.mrf.mxu0
    %v3418 = vadd.f32 0.0, %v3417
    %3419 = vmatmul.f32.gmra.mxu0 %v3209
    %v3420 = vpop.f32.mrf.mxu0
    %v3421 = vadd.f32 0.0, %v3420
    %3422 = vmatmul.f32.gmra.mxu0 %v3212
    %v3423 = vpop.f32.mrf.mxu0
    %v3424 = vadd.f32 0.0, %v3423
    %3425 = vmatmul.f32.gmra.mxu0 %v3215
    %v3426 = vpop.f32.mrf.mxu0
    %v3427 = vadd.f32 0.0, %v3426
    %3428 = vmatmul.f32.gmra.mxu0 %v3218
    %v3429 = vpop.f32.mrf.mxu0
    %v3430 = vadd.f32 0.0, %v3429
    %3431 = vmatmul.f32.gmra.mxu0 %v3221
    %v3432 = vpop.f32.mrf.mxu0
    %v3433 = vadd.f32 0.0, %v3432
    %3434 = vmatmul.f32.gmra.mxu0 %v3224
    %v3435 = vpop.f32.mrf.mxu0
    %v3436 = vadd.f32 0.0, %v3435
    %3437 = vmatmul.f32.gmra.mxu0 %v3227
    %v3438 = vpop.f32.mrf.mxu0
    %v3439 = vadd.f32 0.0, %v3438
    %3440 = vmatmul.f32.gmra.mxu0 %v3230
    %v3441 = vpop.f32.mrf.mxu0
    %v3442 = vadd.f32 0.0, %v3441
    %3443 = vmatmul.f32.gmra.mxu0 %v3233
    %v3444 = vpop.f32.mrf.mxu0
    %v3445 = vadd.f32 0.0, %v3444
    %3446 = vmatmul.f32.gmra.mxu0 %v3236
    %v3447 = vpop.f32.mrf.mxu0
    %v3448 = vadd.f32 0.0, %v3447
    %3449 = vmatmul.f32.gmra.mxu0 %v3239
    %v3450 = vpop.f32.mrf.mxu0
    %v3451 = vadd.f32 0.0, %v3450
    %3452 = vmatmul.f32.gmra.mxu0 %v3242
    %v3453 = vpop.f32.mrf.mxu0
    %v3454 = vadd.f32 0.0, %v3453
    %3455 = vmatmul.f32.gmra.mxu0 %v3245
    %v3456 = vpop.f32.mrf.mxu0
    %v3457 = vadd.f32 0.0, %v3456
    %3458 = vmatmul.f32.gmra.mxu0 %v3248
    %v3459 = vpop.f32.mrf.mxu0
    %v3460 = vadd.f32 0.0, %v3459
    %3461 = vmatmul.f32.gmra.mxu0 %v3251
    %v3462 = vpop.f32.mrf.mxu0
    %v3463 = vadd.f32 0.0, %v3462
    %3464 = vmatmul.f32.gmra.mxu0 %v3254
    %v3465 = vpop.f32.mrf.mxu0
    %v3466 = vadd.f32 0.0, %v3465
    %3467 = vmatmul.f32.gmra.mxu0 %v3257
    %v3468 = vpop.f32.mrf.mxu0
    %v3469 = vadd.f32 0.0, %v3468
    %3470 = vmatmul.f32.gmra.mxu0 %v3260
    %v3471 = vpop.f32.mrf.mxu0
    %v3472 = vadd.f32 0.0, %v3471
    %3473 = vmatmul.f32.gmra.mxu0 %v3263
    %v3474 = vpop.f32.mrf.mxu0
    %v3475 = vadd.f32 0.0, %v3474
    %3476 = vmatmul.f32.gmra.mxu0 %v3266
    %v3477 = vpop.f32.mrf.mxu0
    %v3478 = vadd.f32 0.0, %v3477
    %3479 = vmatmul.f32.gmra.mxu0 %v3269
    %v3480 = vpop.f32.mrf.mxu0
    %v3481 = vadd.f32 0.0, %v3480
    %3482 = vmatmul.f32.gmra.mxu0 %v3272
    %v3483 = vpop.f32.mrf.mxu0
    %v3484 = vadd.f32 0.0, %v3483
    %3485 = vmatmul.f32.gmra.mxu0 %v3275
    %v3486 = vpop.f32.mrf.mxu0
    %v3487 = vadd.f32 0.0, %v3486
    %3488 = vmatmul.f32.gmra.mxu0 %v3278
    %v3489 = vpop.f32.mrf.mxu0
    %v3490 = vadd.f32 0.0, %v3489
    %3491 = vmatmul.f32.gmra.mxu0 %v3281
    %v3492 = vpop.f32.mrf.mxu0
    %v3493 = vadd.f32 0.0, %v3492
    %3494 = vmatmul.f32.gmra.mxu0 %v3284
    %v3495 = vpop.f32.mrf.mxu0
    %v3496 = vadd.f32 0.0, %v3495
    %3497 = vmatmul.f32.gmra.mxu0 %v3287
    %v3498 = vpop.f32.mrf.mxu0
    %v3499 = vadd.f32 0.0, %v3498
    %3500 = vmatmul.f32.gmra.mxu0 %v3290
    %v3501 = vpop.f32.mrf.mxu0
    %v3502 = vadd.f32 0.0, %v3501
    %3503 = vmatmul.f32.gmra.mxu0 %v3293
    %v3504 = vpop.f32.mrf.mxu0
    %v3505 = vadd.f32 0.0, %v3504
    %3506 = vmatmul.f32.gmra.mxu0 %v3296
    %v3507 = vpop.f32.mrf.mxu0
    %v3508 = vadd.f32 0.0, %v3507
    %3509 = vmatmul.f32.gmra.mxu0 %v3299
    %v3510 = vpop.f32.mrf.mxu0
    %v3511 = vadd.f32 0.0, %v3510
    %3512 = vmatmul.f32.gmra.mxu0 %v3302
    %v3513 = vpop.f32.mrf.mxu0
    %v3514 = vadd.f32 0.0, %v3513
    %3515 = vmatmul.f32.gmra.mxu0 %v3305
    %v3516 = vpop.f32.mrf.mxu0
    %v3517 = vadd.f32 0.0, %v3516
    %3518 = vmatmul.f32.gmra.mxu0 %v3308
    %v3519 = vpop.f32.mrf.mxu0
    %v3520 = vadd.f32 0.0, %v3519
    %3521 = vmatmul.f32.gmra.mxu0 %v3311
    %v3522 = vpop.f32.mrf.mxu0
    %v3523 = vadd.f32 0.0, %v3522
    %3524 = vmatmul.f32.gmra.mxu0 %v3314
    %v3525 = vpop.f32.mrf.mxu0
    %v3526 = vadd.f32 0.0, %v3525
    %3527 = vmatmul.f32.gmra.mxu0 %v3317
    %v3528 = vpop.f32.mrf.mxu0
    %v3529 = vadd.f32 0.0, %v3528
    %3530 = vmatmul.f32.gmra.mxu0 %v3320
    %v3531 = vpop.f32.mrf.mxu0
    %v3532 = vadd.f32 0.0, %v3531
    %3533 = vmatmul.f32.gmra.mxu0 %v3323
    %v3534 = vpop.f32.mrf.mxu0
    %v3535 = vadd.f32 0.0, %v3534
    %3536 = vmatmul.f32.gmra.mxu0 %v3326
    %v3537 = vpop.f32.mrf.mxu0
    %v3538 = vadd.f32 0.0, %v3537
    %3539 = vmatmul.f32.gmra.mxu0 %v3329
    %v3540 = vpop.f32.mrf.mxu0
    %v3541 = vadd.f32 0.0, %v3540
    %3542 = vmatmul.f32.gmra.mxu0 %v3332
    %v3543 = vpop.f32.mrf.mxu0
    %v3544 = vadd.f32 0.0, %v3543
    %3545 = vmatmul.f32.gmra.mxu0 %v3335
    %v3546 = vpop.f32.mrf.mxu0
    %v3547 = vadd.f32 0.0, %v3546
    %3548 = vmatmul.f32.gmra.mxu0 %v3338
    %v3549 = vpop.f32.mrf.mxu0
    %v3550 = vadd.f32 0.0, %v3549
    %3551 = vmatmul.f32.gmra.mxu0 %v3341
    %v3552 = vpop.f32.mrf.mxu0
    %v3553 = vadd.f32 0.0, %v3552
    %3554 = vmatmul.f32.gmra.mxu0 %v3344
    %v3555 = vpop.f32.mrf.mxu0
    %v3556 = vadd.f32 0.0, %v3555
    %3557 = vmatmul.f32.gmra.mxu0 %v3347
    %v3558 = vpop.f32.mrf.mxu0
    %v3559 = vadd.f32 0.0, %v3558
    %3560 = vmatmul.f32.gmra.mxu0 %v3350
    %v3561 = vpop.f32.mrf.mxu0
    %v3562 = vadd.f32 0.0, %v3561
    %3563 = vmatmul.f32.gmra.mxu0 %v3353
    %v3564 = vpop.f32.mrf.mxu0
    %v3565 = vadd.f32 0.0, %v3564
    %3566 = vmatmul.f32.gmra.mxu0 %v3356
    %v3567 = vpop.f32.mrf.mxu0
    %v3568 = vadd.f32 0.0, %v3567
    %3569 = vmatmul.f32.gmra.mxu0 %v3359
    %v3570 = vpop.f32.mrf.mxu0
    %v3571 = vadd.f32 0.0, %v3570
    %3572 = vmatmul.f32.gmra.mxu0 %v3362
    %v3573 = vpop.f32.mrf.mxu0
    %v3574 = vadd.f32 0.0, %v3573
    %3575 = vmatmul.f32.gmra.mxu0 %v3365
    %v3576 = vpop.f32.mrf.mxu0
    %v3577 = vadd.f32 0.0, %v3576
    %3578 = vmatmul.f32.gmra.mxu0 %v3368
    %v3579 = vpop.f32.mrf.mxu0
    %v3580 = vadd.f32 0.0, %v3579
    %3581 = vdwg.mxu0
    %v3582 = vadd.f32 %v3047, %v3391
    %v3583 = vadd.f32 %v3048, %v3394
    %v3584 = vadd.f32 %v3049, %v3397
    %v3585 = vadd.f32 %v3050, %v3400
    %v3586 = vadd.f32 %v3051, %v3403
    %v3587 = vadd.f32 %v3052, %v3406
    %v3588 = vadd.f32 %v3053, %v3409
    %v3589 = vadd.f32 %v3054, %v3412
    %v3590 = vadd.f32 %v3055, %v3415
    %v3591 = vadd.f32 %v3056, %v3418
    %v3592 = vadd.f32 %v3057, %v3421
    %v3593 = vadd.f32 %v3058, %v3424
    %v3594 = vadd.f32 %v3059, %v3427
    %v3595 = vadd.f32 %v3060, %v3430
    %v3596 = vadd.f32 %v3061, %v3433
    %v3597 = vadd.f32 %v3062, %v3436
    %v3598 = vadd.f32 %v3063, %v3439
    %v3599 = vadd.f32 %v3064, %v3442
    %v3600 = vadd.f32 %v3065, %v3445
    %v3601 = vadd.f32 %v3066, %v3448
    %v3602 = vadd.f32 %v3067, %v3451
    %v3603 = vadd.f32 %v3068, %v3454
    %v3604 = vadd.f32 %v3069, %v3457
    %v3605 = vadd.f32 %v3070, %v3460
    %v3606 = vadd.f32 %v3071, %v3463
    %v3607 = vadd.f32 %v3072, %v3466
    %v3608 = vadd.f32 %v3073, %v3469
    %v3609 = vadd.f32 %v3074, %v3472
    %v3610 = vadd.f32 %v3075, %v3475
    %v3611 = vadd.f32 %v3076, %v3478
    %v3612 = vadd.f32 %v3077, %v3481
    %v3613 = vadd.f32 %v3078, %v3484
    %v3614 = vadd.f32 %v3079, %v3487
    %v3615 = vadd.f32 %v3080, %v3490
    %v3616 = vadd.f32 %v3081, %v3493
    %v3617 = vadd.f32 %v3082, %v3496
    %v3618 = vadd.f32 %v3083, %v3499
    %v3619 = vadd.f32 %v3084, %v3502
    %v3620 = vadd.f32 %v3085, %v3505
    %v3621 = vadd.f32 %v3086, %v3508
    %v3622 = vadd.f32 %v3087, %v3511
    %v3623 = vadd.f32 %v3088, %v3514
    %v3624 = vadd.f32 %v3089, %v3517
    %v3625 = vadd.f32 %v3090, %v3520
    %v3626 = vadd.f32 %v3091, %v3523
    %v3627 = vadd.f32 %v3092, %v3526
    %v3628 = vadd.f32 %v3093, %v3529
    %v3629 = vadd.f32 %v3094, %v3532
    %v3630 = vadd.f32 %v3095, %v3535
    %v3631 = vadd.f32 %v3096, %v3538
    %v3632 = vadd.f32 %v3097, %v3541
    %v3633 = vadd.f32 %v3098, %v3544
    %v3634 = vadd.f32 %v3099, %v3547
    %v3635 = vadd.f32 %v3100, %v3550
    %v3636 = vadd.f32 %v3101, %v3553
    %v3637 = vadd.f32 %v3102, %v3556
    %v3638 = vadd.f32 %v3103, %v3559
    %v3639 = vadd.f32 %v3104, %v3562
    %v3640 = vadd.f32 %v3105, %v3565
    %v3641 = vadd.f32 %v3106, %v3568
    %v3642 = vadd.f32 %v3107, %v3571
    %v3643 = vadd.f32 %v3108, %v3574
    %v3644 = vadd.f32 %v3109, %v3577
    %v3645 = vadd.f32 %v3110, %v3580
    %v3646 = vld [vmem:[%s3111 + $0x1] sm:$0xff]
    %v3647 = vld [vmem:[%s3111 + $0x9] sm:$0xff]
    %v3648 = vld [vmem:[%s3111 + $0x19] sm:$0xff]
    %v3649 = vld [vmem:[%s3111 + $0x21] sm:$0xff]
    %v3650 = vld [vmem:[%s3111 + $0x31] sm:$0xff]
    %v3651 = vld [vmem:[%s3111 + $0x39] sm:$0xff]
    %v3652 = vld [vmem:[%s3111 + $0x49] sm:$0xff]
    %v3653 = vld [vmem:[%s3111 + $0x51] sm:$0xff]
    %v3654 = vld [vmem:[%s3111 + $0x61] sm:$0xff]
    %v3655 = vld [vmem:[%s3111 + $0x69] sm:$0xff]
    %v3656 = vld [vmem:[%s3111 + $0x79] sm:$0xff]
    %v3657 = vld [vmem:[%s3111 + $0x81] sm:$0xff]
    %v3658 = vld [vmem:[%s3111 + $0x91] sm:$0xff]
    %v3659 = vld [vmem:[%s3111 + $0x99] sm:$0xff]
    %v3660 = vld [vmem:[%s3111 + $0xa9] sm:$0xff]
    %v3661 = vld [vmem:[%s3111 + $0xb1] sm:$0xff]
    %v3662 = vld [vmem:[%s3111 + $0xc1] sm:$0xff]
    %v3663 = vld [vmem:[%s3111 + $0xc9] sm:$0xff]
    %v3664 = vld [vmem:[%s3111 + $0xd9] sm:$0xff]
    %v3665 = vld [vmem:[%s3111 + $0xe1] sm:$0xff]
    %v3666 = vld [vmem:[%s3111 + $0xf1] sm:$0xff]
    %v3667 = vld [vmem:[%s3111 + $0xf9] sm:$0xff]
    %v3668 = vld [vmem:[%s3111 + $0x109] sm:$0xff]
    %v3669 = vld [vmem:[%s3111 + $0x111] sm:$0xff]
    %v3670 = vld [vmem:[%s3111 + $0x121] sm:$0xff]
    %v3671 = vld [vmem:[%s3111 + $0x129] sm:$0xff]
    %v3672 = vld [vmem:[%s3111 + $0x139] sm:$0xff]
    %v3673 = vld [vmem:[%s3111 + $0x141] sm:$0xff]
    %v3674 = vld [vmem:[%s3111 + $0x151] sm:$0xff]
    %v3675 = vld [vmem:[%s3111 + $0x159] sm:$0xff]
    %v3676 = vld [vmem:[%s3111 + $0x169] sm:$0xff]
    %v3677 = vld [vmem:[%s3111 + $0x171] sm:$0xff]
    %v3678 = vld [vmem:[%s3111 + $0x1b1] sm:$0xff]
    %v3679 = vld [vmem:[%s3111 + $0x1b9] sm:$0xff]
    %v3680 = vld [vmem:[%s3111 + $0x1c9] sm:$0xff]
    %v3681 = vld [vmem:[%s3111 + $0x1d1] sm:$0xff]
    %v3682 = vld [vmem:[%s3111 + $0x1e1] sm:$0xff]
    %v3683 = vld [vmem:[%s3111 + $0x1e9] sm:$0xff]
    %v3684 = vld [vmem:[%s3111 + $0x1f9] sm:$0xff]
    %v3685 = vld [vmem:[%s3111 + $0x201] sm:$0xff]
    %v3686 = vld [vmem:[%s3111 + $0x211] sm:$0xff]
    %v3687 = vld [vmem:[%s3111 + $0x219] sm:$0xff]
    %v3688 = vld [vmem:[%s3111 + $0x229] sm:$0xff]
    %v3689 = vld [vmem:[%s3111 + $0x231] sm:$0xff]
    %v3690 = vld [vmem:[%s3111 + $0x241] sm:$0xff]
    %v3691 = vld [vmem:[%s3111 + $0x249] sm:$0xff]
    %v3692 = vld [vmem:[%s3111 + $0x259] sm:$0xff]
    %v3693 = vld [vmem:[%s3111 + $0x261] sm:$0xff]
    %v3694 = vld [vmem:[%s3111 + $0x271] sm:$0xff]
    %v3695 = vld [vmem:[%s3111 + $0x279] sm:$0xff]
    %v3696 = vld [vmem:[%s3111 + $0x289] sm:$0xff]
    %v3697 = vld [vmem:[%s3111 + $0x291] sm:$0xff]
    %v3698 = vld [vmem:[%s3111 + $0x2a1] sm:$0xff]
    %v3699 = vld [vmem:[%s3111 + $0x2a9] sm:$0xff]
    %v3700 = vld [vmem:[%s3111 + $0x2b9] sm:$0xff]
    %v3701 = vld [vmem:[%s3111 + $0x2c1] sm:$0xff]
    %v3702 = vld [vmem:[%s3111 + $0x2d1] sm:$0xff]
    %v3703 = vld [vmem:[%s3111 + $0x2d9] sm:$0xff]
    %v3704 = vld [vmem:[%s3111 + $0x2e9] sm:$0xff]
    %v3705 = vld [vmem:[%s3111 + $0x2f1] sm:$0xff]
    %v3706 = vld [vmem:[%s3111 + $0x301] sm:$0xff]
    %v3707 = vld [vmem:[%s3111 + $0x309] sm:$0xff]
    %v3708 = vld [vmem:[%s3111 + $0x319] sm:$0xff]
    %v3709 = vld [vmem:[%s3111 + $0x321] sm:$0xff]
    %s3710 = scalar_lea.vmem %s1, 28
    %v3711 = vld [vmem:[%s3710] sm:$0xf]
    %v3713 = vsel %vm164, %v3646, 0
    %v3716 = vsel %vm164, %v3647, 0
    %v3719 = vsel %vm164, %v3648, 0
    %v3722 = vsel %vm164, %v3649, 0
    %v3725 = vsel %vm164, %v3650, 0
    %v3728 = vsel %vm164, %v3651, 0
    %v3731 = vsel %vm164, %v3652, 0
    %v3734 = vsel %vm164, %v3653, 0
    %v3737 = vsel %vm164, %v3654, 0
    %v3740 = vsel %vm164, %v3655, 0
    %v3743 = vsel %vm164, %v3656, 0
    %v3746 = vsel %vm164, %v3657, 0
    %v3749 = vsel %vm164, %v3658, 0
    %v3752 = vsel %vm164, %v3659, 0
    %v3755 = vsel %vm164, %v3660, 0
    %v3758 = vsel %vm164, %v3661, 0
    %v3761 = vsel %vm164, %v3662, 0
    %v3764 = vsel %vm164, %v3663, 0
    %v3767 = vsel %vm164, %v3664, 0
    %v3770 = vsel %vm164, %v3665, 0
    %v3773 = vsel %vm164, %v3666, 0
    %v3776 = vsel %vm164, %v3667, 0
    %v3779 = vsel %vm164, %v3668, 0
    %v3782 = vsel %vm164, %v3669, 0
    %v3785 = vsel %vm164, %v3670, 0
    %v3788 = vsel %vm164, %v3671, 0
    %v3791 = vsel %vm164, %v3672, 0
    %v3794 = vsel %vm164, %v3673, 0
    %v3797 = vsel %vm164, %v3674, 0
    %v3800 = vsel %vm164, %v3675, 0
    %v3803 = vsel %vm164, %v3676, 0
    %v3806 = vsel %vm164, %v3677, 0
    %v3809 = vsel %vm164, %v3678, 0
    %v3812 = vsel %vm164, %v3679, 0
    %v3815 = vsel %vm164, %v3680, 0
    %v3818 = vsel %vm164, %v3681, 0
    %v3821 = vsel %vm164, %v3682, 0
    %v3824 = vsel %vm164, %v3683, 0
    %v3827 = vsel %vm164, %v3684, 0
    %v3830 = vsel %vm164, %v3685, 0
    %v3833 = vsel %vm164, %v3686, 0
    %v3836 = vsel %vm164, %v3687, 0
    %v3839 = vsel %vm164, %v3688, 0
    %v3842 = vsel %vm164, %v3689, 0
    %v3845 = vsel %vm164, %v3690, 0
    %v3848 = vsel %vm164, %v3691, 0
    %v3851 = vsel %vm164, %v3692, 0
    %v3854 = vsel %vm164, %v3693, 0
    %v3857 = vsel %vm164, %v3694, 0
    %v3860 = vsel %vm164, %v3695, 0
    %v3863 = vsel %vm164, %v3696, 0
    %v3866 = vsel %vm164, %v3697, 0
    %v3869 = vsel %vm164, %v3698, 0
    %v3872 = vsel %vm164, %v3699, 0
    %v3875 = vsel %vm164, %v3700, 0
    %v3878 = vsel %vm164, %v3701, 0
    %v3881 = vsel %vm164, %v3702, 0
    %v3884 = vsel %vm164, %v3703, 0
    %v3887 = vsel %vm164, %v3704, 0
    %v3890 = vsel %vm164, %v3705, 0
    %v3893 = vsel %vm164, %v3706, 0
    %v3896 = vsel %vm164, %v3707, 0
    %v3899 = vsel %vm164, %v3708, 0
    %v3902 = vsel %vm164, %v3709, 0
    %v3905 = vsel %vm357, %v3711, 0
    %3907 = vmatpush.msra.mxu0 0.0
    %3908 = vmatpush.msra.mxu0 0.0
    %3909 = vmatpush.msra.mxu0 0.0
    %3910 = vmatpush.msra.mxu0 0.0
    %3911 = vmatpush.msra.mxu0 0.0
    %3912 = vmatpush.msra.mxu0 0.0
    %3913 = vmatpush.msra.mxu0 0.0
    %3914 = vmatpush.msra.mxu0 0.0
    %3915 = vmatpush.msra.mxu0 0.0
    %3916 = vmatpush.msra.mxu0 0.0
    %3917 = vmatpush.msra.mxu0 0.0
    %3918 = vmatpush.msra.mxu0 0.0
    %3919 = vmatpush.msra.mxu0 0.0
    %3920 = vmatpush.msra.mxu0 0.0
    %3921 = vmatpush.msra.mxu0 0.0
    %3922 = vmatpush.msra.mxu0 %v3905
    %3923 = vmatmul.f32.gmra.mxu0 %v3713
    %v3924 = vpop.f32.mrf.mxu0
    %v3925 = vadd.f32 0.0, %v3924
    %3926 = vmatmul.f32.gmra.mxu0 %v3716
    %v3927 = vpop.f32.mrf.mxu0
    %v3928 = vadd.f32 0.0, %v3927
    %3929 = vmatmul.f32.gmra.mxu0 %v3719
    %v3930 = vpop.f32.mrf.mxu0
    %v3931 = vadd.f32 0.0, %v3930
    %3932 = vmatmul.f32.gmra.mxu0 %v3722
    %v3933 = vpop.f32.mrf.mxu0
    %v3934 = vadd.f32 0.0, %v3933
    %3935 = vmatmul.f32.gmra.mxu0 %v3725
    %v3936 = vpop.f32.mrf.mxu0
    %v3937 = vadd.f32 0.0, %v3936
    %3938 = vmatmul.f32.gmra.mxu0 %v3728
    %v3939 = vpop.f32.mrf.mxu0
    %v3940 = vadd.f32 0.0, %v3939
    %3941 = vmatmul.f32.gmra.mxu0 %v3731
    %v3942 = vpop.f32.mrf.mxu0
    %v3943 = vadd.f32 0.0, %v3942
    %3944 = vmatmul.f32.gmra.mxu0 %v3734
    %v3945 = vpop.f32.mrf.mxu0
    %v3946 = vadd.f32 0.0, %v3945
    %3947 = vmatmul.f32.gmra.mxu0 %v3737
    %v3948 = vpop.f32.mrf.mxu0
    %v3949 = vadd.f32 0.0, %v3948
    %3950 = vmatmul.f32.gmra.mxu0 %v3740
    %v3951 = vpop.f32.mrf.mxu0
    %v3952 = vadd.f32 0.0, %v3951
    %3953 = vmatmul.f32.gmra.mxu0 %v3743
    %v3954 = vpop.f32.mrf.mxu0
    %v3955 = vadd.f32 0.0, %v3954
    %3956 = vmatmul.f32.gmra.mxu0 %v3746
    %v3957 = vpop.f32.mrf.mxu0
    %v3958 = vadd.f32 0.0, %v3957
    %3959 = vmatmul.f32.gmra.mxu0 %v3749
    %v3960 = vpop.f32.mrf.mxu0
    %v3961 = vadd.f32 0.0, %v3960
    %3962 = vmatmul.f32.gmra.mxu0 %v3752
    %v3963 = vpop.f32.mrf.mxu0
    %v3964 = vadd.f32 0.0, %v3963
    %3965 = vmatmul.f32.gmra.mxu0 %v3755
    %v3966 = vpop.f32.mrf.mxu0
    %v3967 = vadd.f32 0.0, %v3966
    %3968 = vmatmul.f32.gmra.mxu0 %v3758
    %v3969 = vpop.f32.mrf.mxu0
    %v3970 = vadd.f32 0.0, %v3969
    %3971 = vmatmul.f32.gmra.mxu0 %v3761
    %v3972 = vpop.f32.mrf.mxu0
    %v3973 = vadd.f32 0.0, %v3972
    %3974 = vmatmul.f32.gmra.mxu0 %v3764
    %v3975 = vpop.f32.mrf.mxu0
    %v3976 = vadd.f32 0.0, %v3975
    %3977 = vmatmul.f32.gmra.mxu0 %v3767
    %v3978 = vpop.f32.mrf.mxu0
    %v3979 = vadd.f32 0.0, %v3978
    %3980 = vmatmul.f32.gmra.mxu0 %v3770
    %v3981 = vpop.f32.mrf.mxu0
    %v3982 = vadd.f32 0.0, %v3981
    %3983 = vmatmul.f32.gmra.mxu0 %v3773
    %v3984 = vpop.f32.mrf.mxu0
    %v3985 = vadd.f32 0.0, %v3984
    %3986 = vmatmul.f32.gmra.mxu0 %v3776
    %v3987 = vpop.f32.mrf.mxu0
    %v3988 = vadd.f32 0.0, %v3987
    %3989 = vmatmul.f32.gmra.mxu0 %v3779
    %v3990 = vpop.f32.mrf.mxu0
    %v3991 = vadd.f32 0.0, %v3990
    %3992 = vmatmul.f32.gmra.mxu0 %v3782
    %v3993 = vpop.f32.mrf.mxu0
    %v3994 = vadd.f32 0.0, %v3993
    %3995 = vmatmul.f32.gmra.mxu0 %v3785
    %v3996 = vpop.f32.mrf.mxu0
    %v3997 = vadd.f32 0.0, %v3996
    %3998 = vmatmul.f32.gmra.mxu0 %v3788
    %v3999 = vpop.f32.mrf.mxu0
    %v4000 = vadd.f32 0.0, %v3999
    %4001 = vmatmul.f32.gmra.mxu0 %v3791
    %v4002 = vpop.f32.mrf.mxu0
    %v4003 = vadd.f32 0.0, %v4002
    %4004 = vmatmul.f32.gmra.mxu0 %v3794
    %v4005 = vpop.f32.mrf.mxu0
    %v4006 = vadd.f32 0.0, %v4005
    %4007 = vmatmul.f32.gmra.mxu0 %v3797
    %v4008 = vpop.f32.mrf.mxu0
    %v4009 = vadd.f32 0.0, %v4008
    %4010 = vmatmul.f32.gmra.mxu0 %v3800
    %v4011 = vpop.f32.mrf.mxu0
    %v4012 = vadd.f32 0.0, %v4011
    %4013 = vmatmul.f32.gmra.mxu0 %v3803
    %v4014 = vpop.f32.mrf.mxu0
    %v4015 = vadd.f32 0.0, %v4014
    %4016 = vmatmul.f32.gmra.mxu0 %v3806
    %v4017 = vpop.f32.mrf.mxu0
    %v4018 = vadd.f32 0.0, %v4017
    %4019 = vmatmul.f32.gmra.mxu0 %v3809
    %v4020 = vpop.f32.mrf.mxu0
    %v4021 = vadd.f32 0.0, %v4020
    %4022 = vmatmul.f32.gmra.mxu0 %v3812
    %v4023 = vpop.f32.mrf.mxu0
    %v4024 = vadd.f32 0.0, %v4023
    %4025 = vmatmul.f32.gmra.mxu0 %v3815
    %v4026 = vpop.f32.mrf.mxu0
    %v4027 = vadd.f32 0.0, %v4026
    %4028 = vmatmul.f32.gmra.mxu0 %v3818
    %v4029 = vpop.f32.mrf.mxu0
    %v4030 = vadd.f32 0.0, %v4029
    %4031 = vmatmul.f32.gmra.mxu0 %v3821
    %v4032 = vpop.f32.mrf.mxu0
    %v4033 = vadd.f32 0.0, %v4032
    %4034 = vmatmul.f32.gmra.mxu0 %v3824
    %v4035 = vpop.f32.mrf.mxu0
    %v4036 = vadd.f32 0.0, %v4035
    %4037 = vmatmul.f32.gmra.mxu0 %v3827
    %v4038 = vpop.f32.mrf.mxu0
    %v4039 = vadd.f32 0.0, %v4038
    %4040 = vmatmul.f32.gmra.mxu0 %v3830
    %v4041 = vpop.f32.mrf.mxu0
    %v4042 = vadd.f32 0.0, %v4041
    %4043 = vmatmul.f32.gmra.mxu0 %v3833
    %v4044 = vpop.f32.mrf.mxu0
    %v4045 = vadd.f32 0.0, %v4044
    %4046 = vmatmul.f32.gmra.mxu0 %v3836
    %v4047 = vpop.f32.mrf.mxu0
    %v4048 = vadd.f32 0.0, %v4047
    %4049 = vmatmul.f32.gmra.mxu0 %v3839
    %v4050 = vpop.f32.mrf.mxu0
    %v4051 = vadd.f32 0.0, %v4050
    %4052 = vmatmul.f32.gmra.mxu0 %v3842
    %v4053 = vpop.f32.mrf.mxu0
    %v4054 = vadd.f32 0.0, %v4053
    %4055 = vmatmul.f32.gmra.mxu0 %v3845
    %v4056 = vpop.f32.mrf.mxu0
    %v4057 = vadd.f32 0.0, %v4056
    %4058 = vmatmul.f32.gmra.mxu0 %v3848
    %v4059 = vpop.f32.mrf.mxu0
    %v4060 = vadd.f32 0.0, %v4059
    %4061 = vmatmul.f32.gmra.mxu0 %v3851
    %v4062 = vpop.f32.mrf.mxu0
    %v4063 = vadd.f32 0.0, %v4062
    %4064 = vmatmul.f32.gmra.mxu0 %v3854
    %v4065 = vpop.f32.mrf.mxu0
    %v4066 = vadd.f32 0.0, %v4065
    %4067 = vmatmul.f32.gmra.mxu0 %v3857
    %v4068 = vpop.f32.mrf.mxu0
    %v4069 = vadd.f32 0.0, %v4068
    %4070 = vmatmul.f32.gmra.mxu0 %v3860
    %v4071 = vpop.f32.mrf.mxu0
    %v4072 = vadd.f32 0.0, %v4071
    %4073 = vmatmul.f32.gmra.mxu0 %v3863
    %v4074 = vpop.f32.mrf.mxu0
    %v4075 = vadd.f32 0.0, %v4074
    %4076 = vmatmul.f32.gmra.mxu0 %v3866
    %v4077 = vpop.f32.mrf.mxu0
    %v4078 = vadd.f32 0.0, %v4077
    %4079 = vmatmul.f32.gmra.mxu0 %v3869
    %v4080 = vpop.f32.mrf.mxu0
    %v4081 = vadd.f32 0.0, %v4080
    %4082 = vmatmul.f32.gmra.mxu0 %v3872
    %v4083 = vpop.f32.mrf.mxu0
    %v4084 = vadd.f32 0.0, %v4083
    %4085 = vmatmul.f32.gmra.mxu0 %v3875
    %v4086 = vpop.f32.mrf.mxu0
    %v4087 = vadd.f32 0.0, %v4086
    %4088 = vmatmul.f32.gmra.mxu0 %v3878
    %v4089 = vpop.f32.mrf.mxu0
    %v4090 = vadd.f32 0.0, %v4089
    %4091 = vmatmul.f32.gmra.mxu0 %v3881
    %v4092 = vpop.f32.mrf.mxu0
    %v4093 = vadd.f32 0.0, %v4092
    %4094 = vmatmul.f32.gmra.mxu0 %v3884
    %v4095 = vpop.f32.mrf.mxu0
    %v4096 = vadd.f32 0.0, %v4095
    %4097 = vmatmul.f32.gmra.mxu0 %v3887
    %v4098 = vpop.f32.mrf.mxu0
    %v4099 = vadd.f32 0.0, %v4098
    %4100 = vmatmul.f32.gmra.mxu0 %v3890
    %v4101 = vpop.f32.mrf.mxu0
    %v4102 = vadd.f32 0.0, %v4101
    %4103 = vmatmul.f32.gmra.mxu0 %v3893
    %v4104 = vpop.f32.mrf.mxu0
    %v4105 = vadd.f32 0.0, %v4104
    %4106 = vmatmul.f32.gmra.mxu0 %v3896
    %v4107 = vpop.f32.mrf.mxu0
    %v4108 = vadd.f32 0.0, %v4107
    %4109 = vmatmul.f32.gmra.mxu0 %v3899
    %v4110 = vpop.f32.mrf.mxu0
    %v4111 = vadd.f32 0.0, %v4110
    %4112 = vmatmul.f32.gmra.mxu0 %v3902
    %v4113 = vpop.f32.mrf.mxu0
    %v4114 = vadd.f32 0.0, %v4113
    %4115 = vdwg.mxu0
    %v4116 = vadd.f32 %v3582, %v3925
    %v4117 = vadd.f32 %v3583, %v3928
    %v4118 = vadd.f32 %v3584, %v3931
    %v4119 = vadd.f32 %v3585, %v3934
    %v4120 = vadd.f32 %v3586, %v3937
    %v4121 = vadd.f32 %v3587, %v3940
    %v4122 = vadd.f32 %v3588, %v3943
    %v4123 = vadd.f32 %v3589, %v3946
    %v4124 = vadd.f32 %v3590, %v3949
    %v4125 = vadd.f32 %v3591, %v3952
    %v4126 = vadd.f32 %v3592, %v3955
    %v4127 = vadd.f32 %v3593, %v3958
    %v4128 = vadd.f32 %v3594, %v3961
    %v4129 = vadd.f32 %v3595, %v3964
    %v4130 = vadd.f32 %v3596, %v3967
    %v4131 = vadd.f32 %v3597, %v3970
    %v4132 = vadd.f32 %v3598, %v3973
    %v4133 = vadd.f32 %v3599, %v3976
    %v4134 = vadd.f32 %v3600, %v3979
    %v4135 = vadd.f32 %v3601, %v3982
    %v4136 = vadd.f32 %v3602, %v3985
    %v4137 = vadd.f32 %v3603, %v3988
    %v4138 = vadd.f32 %v3604, %v3991
    %v4139 = vadd.f32 %v3605, %v3994
    %v4140 = vadd.f32 %v3606, %v3997
    %v4141 = vadd.f32 %v3607, %v4000
    %v4142 = vadd.f32 %v3608, %v4003
    %v4143 = vadd.f32 %v3609, %v4006
    %v4144 = vadd.f32 %v3610, %v4009
    %v4145 = vadd.f32 %v3611, %v4012
    %v4146 = vadd.f32 %v3612, %v4015
    %v4147 = vadd.f32 %v3613, %v4018
    %v4148 = vadd.f32 %v3614, %v4021
    %v4149 = vadd.f32 %v3615, %v4024
    %v4150 = vadd.f32 %v3616, %v4027
    %v4151 = vadd.f32 %v3617, %v4030
    %v4152 = vadd.f32 %v3618, %v4033
    %v4153 = vadd.f32 %v3619, %v4036
    %v4154 = vadd.f32 %v3620, %v4039
    %v4155 = vadd.f32 %v3621, %v4042
    %v4156 = vadd.f32 %v3622, %v4045
    %v4157 = vadd.f32 %v3623, %v4048
    %v4158 = vadd.f32 %v3624, %v4051
    %v4159 = vadd.f32 %v3625, %v4054
    %v4160 = vadd.f32 %v3626, %v4057
    %v4161 = vadd.f32 %v3627, %v4060
    %v4162 = vadd.f32 %v3628, %v4063
    %v4163 = vadd.f32 %v3629, %v4066
    %v4164 = vadd.f32 %v3630, %v4069
    %v4165 = vadd.f32 %v3631, %v4072
    %v4166 = vadd.f32 %v3632, %v4075
    %v4167 = vadd.f32 %v3633, %v4078
    %v4168 = vadd.f32 %v3634, %v4081
    %v4169 = vadd.f32 %v3635, %v4084
    %v4170 = vadd.f32 %v3636, %v4087
    %v4171 = vadd.f32 %v3637, %v4090
    %v4172 = vadd.f32 %v3638, %v4093
    %v4173 = vadd.f32 %v3639, %v4096
    %v4174 = vadd.f32 %v3640, %v4099
    %v4175 = vadd.f32 %v3641, %v4102
    %v4176 = vadd.f32 %v3642, %v4105
    %v4177 = vadd.f32 %v3643, %v4108
    %v4178 = vadd.f32 %v3644, %v4111
    %v4179 = vadd.f32 %v3645, %v4114
    %v4180 = vld [vmem:[%s3111 + $0x2] sm:$0xff]
    %v4181 = vld [vmem:[%s3111 + $0xa] sm:$0xff]
    %v4182 = vld [vmem:[%s3111 + $0x1a] sm:$0xff]
    %v4183 = vld [vmem:[%s3111 + $0x22] sm:$0xff]
    %v4184 = vld [vmem:[%s3111 + $0x32] sm:$0xff]
    %v4185 = vld [vmem:[%s3111 + $0x3a] sm:$0xff]
    %v4186 = vld [vmem:[%s3111 + $0x4a] sm:$0xff]
    %v4187 = vld [vmem:[%s3111 + $0x52] sm:$0xff]
    %v4188 = vld [vmem:[%s3111 + $0x62] sm:$0xff]
    %v4189 = vld [vmem:[%s3111 + $0x6a] sm:$0xff]
    %v4190 = vld [vmem:[%s3111 + $0x7a] sm:$0xff]
    %v4191 = vld [vmem:[%s3111 + $0x82] sm:$0xff]
    %v4192 = vld [vmem:[%s3111 + $0x92] sm:$0xff]
    %v4193 = vld [vmem:[%s3111 + $0x9a] sm:$0xff]
    %v4194 = vld [vmem:[%s3111 + $0xaa] sm:$0xff]
    %v4195 = vld [vmem:[%s3111 + $0xb2] sm:$0xff]
    %v4196 = vld [vmem:[%s3111 + $0xc2] sm:$0xff]
    %v4197 = vld [vmem:[%s3111 + $0xca] sm:$0xff]
    %v4198 = vld [vmem:[%s3111 + $0xda] sm:$0xff]
    %v4199 = vld [vmem:[%s3111 + $0xe2] sm:$0xff]
    %v4200 = vld [vmem:[%s3111 + $0xf2] sm:$0xff]
    %v4201 = vld [vmem:[%s3111 + $0xfa] sm:$0xff]
    %v4202 = vld [vmem:[%s3111 + $0x10a] sm:$0xff]
    %v4203 = vld [vmem:[%s3111 + $0x112] sm:$0xff]
    %v4204 = vld [vmem:[%s3111 + $0x122] sm:$0xff]
    %v4205 = vld [vmem:[%s3111 + $0x12a] sm:$0xff]
    %v4206 = vld [vmem:[%s3111 + $0x13a] sm:$0xff]
    %v4207 = vld [vmem:[%s3111 + $0x142] sm:$0xff]
    %v4208 = vld [vmem:[%s3111 + $0x152] sm:$0xff]
    %v4209 = vld [vmem:[%s3111 + $0x15a] sm:$0xff]
    %v4210 = vld [vmem:[%s3111 + $0x16a] sm:$0xff]
    %v4211 = vld [vmem:[%s3111 + $0x172] sm:$0xff]
    %v4212 = vld [vmem:[%s3111 + $0x1b2] sm:$0xff]
    %v4213 = vld [vmem:[%s3111 + $0x1ba] sm:$0xff]
    %v4214 = vld [vmem:[%s3111 + $0x1ca] sm:$0xff]
    %v4215 = vld [vmem:[%s3111 + $0x1d2] sm:$0xff]
    %v4216 = vld [vmem:[%s3111 + $0x1e2] sm:$0xff]
    %v4217 = vld [vmem:[%s3111 + $0x1ea] sm:$0xff]
    %v4218 = vld [vmem:[%s3111 + $0x1fa] sm:$0xff]
    %v4219 = vld [vmem:[%s3111 + $0x202] sm:$0xff]
    %v4220 = vld [vmem:[%s3111 + $0x212] sm:$0xff]
    %v4221 = vld [vmem:[%s3111 + $0x21a] sm:$0xff]
    %v4222 = vld [vmem:[%s3111 + $0x22a] sm:$0xff]
    %v4223 = vld [vmem:[%s3111 + $0x232] sm:$0xff]
    %v4224 = vld [vmem:[%s3111 + $0x242] sm:$0xff]
    %v4225 = vld [vmem:[%s3111 + $0x24a] sm:$0xff]
    %v4226 = vld [vmem:[%s3111 + $0x25a] sm:$0xff]
    %v4227 = vld [vmem:[%s3111 + $0x262] sm:$0xff]
    %v4228 = vld [vmem:[%s3111 + $0x272] sm:$0xff]
    %v4229 = vld [vmem:[%s3111 + $0x27a] sm:$0xff]
    %v4230 = vld [vmem:[%s3111 + $0x28a] sm:$0xff]
    %v4231 = vld [vmem:[%s3111 + $0x292] sm:$0xff]
    %v4232 = vld [vmem:[%s3111 + $0x2a2] sm:$0xff]
    %v4233 = vld [vmem:[%s3111 + $0x2aa] sm:$0xff]
    %v4234 = vld [vmem:[%s3111 + $0x2ba] sm:$0xff]
    %v4235 = vld [vmem:[%s3111 + $0x2c2] sm:$0xff]
    %v4236 = vld [vmem:[%s3111 + $0x2d2] sm:$0xff]
    %v4237 = vld [vmem:[%s3111 + $0x2da] sm:$0xff]
    %v4238 = vld [vmem:[%s3111 + $0x2ea] sm:$0xff]
    %v4239 = vld [vmem:[%s3111 + $0x2f2] sm:$0xff]
    %v4240 = vld [vmem:[%s3111 + $0x302] sm:$0xff]
    %v4241 = vld [vmem:[%s3111 + $0x30a] sm:$0xff]
    %v4242 = vld [vmem:[%s3111 + $0x31a] sm:$0xff]
    %v4243 = vld [vmem:[%s3111 + $0x322] sm:$0xff]
    %s4244 = scalar_lea.vmem %s1, 32
    %v4245 = vld [vmem:[%s4244] sm:$0xf]
    %v4247 = vsel %vm164, %v4180, 0
    %v4250 = vsel %vm164, %v4181, 0
    %v4253 = vsel %vm164, %v4182, 0
    %v4256 = vsel %vm164, %v4183, 0
    %v4259 = vsel %vm164, %v4184, 0
    %v4262 = vsel %vm164, %v4185, 0
    %v4265 = vsel %vm164, %v4186, 0
    %v4268 = vsel %vm164, %v4187, 0
    %v4271 = vsel %vm164, %v4188, 0
    %v4274 = vsel %vm164, %v4189, 0
    %v4277 = vsel %vm164, %v4190, 0
    %v4280 = vsel %vm164, %v4191, 0
    %v4283 = vsel %vm164, %v4192, 0
    %v4286 = vsel %vm164, %v4193, 0
    %v4289 = vsel %vm164, %v4194, 0
    %v4292 = vsel %vm164, %v4195, 0
    %v4295 = vsel %vm164, %v4196, 0
    %v4298 = vsel %vm164, %v4197, 0
    %v4301 = vsel %vm164, %v4198, 0
    %v4304 = vsel %vm164, %v4199, 0
    %v4307 = vsel %vm164, %v4200, 0
    %v4310 = vsel %vm164, %v4201, 0
    %v4313 = vsel %vm164, %v4202, 0
    %v4316 = vsel %vm164, %v4203, 0
    %v4319 = vsel %vm164, %v4204, 0
    %v4322 = vsel %vm164, %v4205, 0
    %v4325 = vsel %vm164, %v4206, 0
    %v4328 = vsel %vm164, %v4207, 0
    %v4331 = vsel %vm164, %v4208, 0
    %v4334 = vsel %vm164, %v4209, 0
    %v4337 = vsel %vm164, %v4210, 0
    %v4340 = vsel %vm164, %v4211, 0
    %v4343 = vsel %vm164, %v4212, 0
    %v4346 = vsel %vm164, %v4213, 0
    %v4349 = vsel %vm164, %v4214, 0
    %v4352 = vsel %vm164, %v4215, 0
    %v4355 = vsel %vm164, %v4216, 0
    %v4358 = vsel %vm164, %v4217, 0
    %v4361 = vsel %vm164, %v4218, 0
    %v4364 = vsel %vm164, %v4219, 0
    %v4367 = vsel %vm164, %v4220, 0
    %v4370 = vsel %vm164, %v4221, 0
    %v4373 = vsel %vm164, %v4222, 0
    %v4376 = vsel %vm164, %v4223, 0
    %v4379 = vsel %vm164, %v4224, 0
    %v4382 = vsel %vm164, %v4225, 0
    %v4385 = vsel %vm164, %v4226, 0
    %v4388 = vsel %vm164, %v4227, 0
    %v4391 = vsel %vm164, %v4228, 0
    %v4394 = vsel %vm164, %v4229, 0
    %v4397 = vsel %vm164, %v4230, 0
    %v4400 = vsel %vm164, %v4231, 0
    %v4403 = vsel %vm164, %v4232, 0
    %v4406 = vsel %vm164, %v4233, 0
    %v4409 = vsel %vm164, %v4234, 0
    %v4412 = vsel %vm164, %v4235, 0
    %v4415 = vsel %vm164, %v4236, 0
    %v4418 = vsel %vm164, %v4237, 0
    %v4421 = vsel %vm164, %v4238, 0
    %v4424 = vsel %vm164, %v4239, 0
    %v4427 = vsel %vm164, %v4240, 0
    %v4430 = vsel %vm164, %v4241, 0
    %v4433 = vsel %vm164, %v4242, 0
    %v4436 = vsel %vm164, %v4243, 0
    %v4439 = vsel %vm357, %v4245, 0
    %4441 = vmatpush.msra.mxu0 0.0
    %4442 = vmatpush.msra.mxu0 0.0
    %4443 = vmatpush.msra.mxu0 0.0
    %4444 = vmatpush.msra.mxu0 0.0
    %4445 = vmatpush.msra.mxu0 0.0
    %4446 = vmatpush.msra.mxu0 0.0
    %4447 = vmatpush.msra.mxu0 0.0
    %4448 = vmatpush.msra.mxu0 0.0
    %4449 = vmatpush.msra.mxu0 0.0
    %4450 = vmatpush.msra.mxu0 0.0
    %4451 = vmatpush.msra.mxu0 0.0
    %4452 = vmatpush.msra.mxu0 0.0
    %4453 = vmatpush.msra.mxu0 0.0
    %4454 = vmatpush.msra.mxu0 0.0
    %4455 = vmatpush.msra.mxu0 0.0
    %4456 = vmatpush.msra.mxu0 %v4439
    %4457 = vmatmul.f32.gmra.mxu0 %v4247
    %v4458 = vpop.f32.mrf.mxu0
    %v4459 = vadd.f32 0.0, %v4458
    %4460 = vmatmul.f32.gmra.mxu0 %v4250
    %v4461 = vpop.f32.mrf.mxu0
    %v4462 = vadd.f32 0.0, %v4461
    %4463 = vmatmul.f32.gmra.mxu0 %v4253
    %v4464 = vpop.f32.mrf.mxu0
    %v4465 = vadd.f32 0.0, %v4464
    %4466 = vmatmul.f32.gmra.mxu0 %v4256
    %v4467 = vpop.f32.mrf.mxu0
    %v4468 = vadd.f32 0.0, %v4467
    %4469 = vmatmul.f32.gmra.mxu0 %v4259
    %v4470 = vpop.f32.mrf.mxu0
    %v4471 = vadd.f32 0.0, %v4470
    %4472 = vmatmul.f32.gmra.mxu0 %v4262
    %v4473 = vpop.f32.mrf.mxu0
    %v4474 = vadd.f32 0.0, %v4473
    %4475 = vmatmul.f32.gmra.mxu0 %v4265
    %v4476 = vpop.f32.mrf.mxu0
    %v4477 = vadd.f32 0.0, %v4476
    %4478 = vmatmul.f32.gmra.mxu0 %v4268
    %v4479 = vpop.f32.mrf.mxu0
    %v4480 = vadd.f32 0.0, %v4479
    %4481 = vmatmul.f32.gmra.mxu0 %v4271
    %v4482 = vpop.f32.mrf.mxu0
    %v4483 = vadd.f32 0.0, %v4482
    %4484 = vmatmul.f32.gmra.mxu0 %v4274
    %v4485 = vpop.f32.mrf.mxu0
    %v4486 = vadd.f32 0.0, %v4485
    %4487 = vmatmul.f32.gmra.mxu0 %v4277
    %v4488 = vpop.f32.mrf.mxu0
    %v4489 = vadd.f32 0.0, %v4488
    %4490 = vmatmul.f32.gmra.mxu0 %v4280
    %v4491 = vpop.f32.mrf.mxu0
    %v4492 = vadd.f32 0.0, %v4491
    %4493 = vmatmul.f32.gmra.mxu0 %v4283
    %v4494 = vpop.f32.mrf.mxu0
    %v4495 = vadd.f32 0.0, %v4494
    %4496 = vmatmul.f32.gmra.mxu0 %v4286
    %v4497 = vpop.f32.mrf.mxu0
    %v4498 = vadd.f32 0.0, %v4497
    %4499 = vmatmul.f32.gmra.mxu0 %v4289
    %v4500 = vpop.f32.mrf.mxu0
    %v4501 = vadd.f32 0.0, %v4500
    %4502 = vmatmul.f32.gmra.mxu0 %v4292
    %v4503 = vpop.f32.mrf.mxu0
    %v4504 = vadd.f32 0.0, %v4503
    %4505 = vmatmul.f32.gmra.mxu0 %v4295
    %v4506 = vpop.f32.mrf.mxu0
    %v4507 = vadd.f32 0.0, %v4506
    %4508 = vmatmul.f32.gmra.mxu0 %v4298
    %v4509 = vpop.f32.mrf.mxu0
    %v4510 = vadd.f32 0.0, %v4509
    %4511 = vmatmul.f32.gmra.mxu0 %v4301
    %v4512 = vpop.f32.mrf.mxu0
    %v4513 = vadd.f32 0.0, %v4512
    %4514 = vmatmul.f32.gmra.mxu0 %v4304
    %v4515 = vpop.f32.mrf.mxu0
    %v4516 = vadd.f32 0.0, %v4515
    %4517 = vmatmul.f32.gmra.mxu0 %v4307
    %v4518 = vpop.f32.mrf.mxu0
    %v4519 = vadd.f32 0.0, %v4518
    %4520 = vmatmul.f32.gmra.mxu0 %v4310
    %v4521 = vpop.f32.mrf.mxu0
    %v4522 = vadd.f32 0.0, %v4521
    %4523 = vmatmul.f32.gmra.mxu0 %v4313
    %v4524 = vpop.f32.mrf.mxu0
    %v4525 = vadd.f32 0.0, %v4524
    %4526 = vmatmul.f32.gmra.mxu0 %v4316
    %v4527 = vpop.f32.mrf.mxu0
    %v4528 = vadd.f32 0.0, %v4527
    %4529 = vmatmul.f32.gmra.mxu0 %v4319
    %v4530 = vpop.f32.mrf.mxu0
    %v4531 = vadd.f32 0.0, %v4530
    %4532 = vmatmul.f32.gmra.mxu0 %v4322
    %v4533 = vpop.f32.mrf.mxu0
    %v4534 = vadd.f32 0.0, %v4533
    %4535 = vmatmul.f32.gmra.mxu0 %v4325
    %v4536 = vpop.f32.mrf.mxu0
    %v4537 = vadd.f32 0.0, %v4536
    %4538 = vmatmul.f32.gmra.mxu0 %v4328
    %v4539 = vpop.f32.mrf.mxu0
    %v4540 = vadd.f32 0.0, %v4539
    %4541 = vmatmul.f32.gmra.mxu0 %v4331
    %v4542 = vpop.f32.mrf.mxu0
    %v4543 = vadd.f32 0.0, %v4542
    %4544 = vmatmul.f32.gmra.mxu0 %v4334
    %v4545 = vpop.f32.mrf.mxu0
    %v4546 = vadd.f32 0.0, %v4545
    %4547 = vmatmul.f32.gmra.mxu0 %v4337
    %v4548 = vpop.f32.mrf.mxu0
    %v4549 = vadd.f32 0.0, %v4548
    %4550 = vmatmul.f32.gmra.mxu0 %v4340
    %v4551 = vpop.f32.mrf.mxu0
    %v4552 = vadd.f32 0.0, %v4551
    %4553 = vmatmul.f32.gmra.mxu0 %v4343
    %v4554 = vpop.f32.mrf.mxu0
    %v4555 = vadd.f32 0.0, %v4554
    %4556 = vmatmul.f32.gmra.mxu0 %v4346
    %v4557 = vpop.f32.mrf.mxu0
    %v4558 = vadd.f32 0.0, %v4557
    %4559 = vmatmul.f32.gmra.mxu0 %v4349
    %v4560 = vpop.f32.mrf.mxu0
    %v4561 = vadd.f32 0.0, %v4560
    %4562 = vmatmul.f32.gmra.mxu0 %v4352
    %v4563 = vpop.f32.mrf.mxu0
    %v4564 = vadd.f32 0.0, %v4563
    %4565 = vmatmul.f32.gmra.mxu0 %v4355
    %v4566 = vpop.f32.mrf.mxu0
    %v4567 = vadd.f32 0.0, %v4566
    %4568 = vmatmul.f32.gmra.mxu0 %v4358
    %v4569 = vpop.f32.mrf.mxu0
    %v4570 = vadd.f32 0.0, %v4569
    %4571 = vmatmul.f32.gmra.mxu0 %v4361
    %v4572 = vpop.f32.mrf.mxu0
    %v4573 = vadd.f32 0.0, %v4572
    %4574 = vmatmul.f32.gmra.mxu0 %v4364
    %v4575 = vpop.f32.mrf.mxu0
    %v4576 = vadd.f32 0.0, %v4575
    %4577 = vmatmul.f32.gmra.mxu0 %v4367
    %v4578 = vpop.f32.mrf.mxu0
    %v4579 = vadd.f32 0.0, %v4578
    %4580 = vmatmul.f32.gmra.mxu0 %v4370
    %v4581 = vpop.f32.mrf.mxu0
    %v4582 = vadd.f32 0.0, %v4581
    %4583 = vmatmul.f32.gmra.mxu0 %v4373
    %v4584 = vpop.f32.mrf.mxu0
    %v4585 = vadd.f32 0.0, %v4584
    %4586 = vmatmul.f32.gmra.mxu0 %v4376
    %v4587 = vpop.f32.mrf.mxu0
    %v4588 = vadd.f32 0.0, %v4587
    %4589 = vmatmul.f32.gmra.mxu0 %v4379
    %v4590 = vpop.f32.mrf.mxu0
    %v4591 = vadd.f32 0.0, %v4590
    %4592 = vmatmul.f32.gmra.mxu0 %v4382
    %v4593 = vpop.f32.mrf.mxu0
    %v4594 = vadd.f32 0.0, %v4593
    %4595 = vmatmul.f32.gmra.mxu0 %v4385
    %v4596 = vpop.f32.mrf.mxu0
    %v4597 = vadd.f32 0.0, %v4596
    %4598 = vmatmul.f32.gmra.mxu0 %v4388
    %v4599 = vpop.f32.mrf.mxu0
    %v4600 = vadd.f32 0.0, %v4599
    %4601 = vmatmul.f32.gmra.mxu0 %v4391
    %v4602 = vpop.f32.mrf.mxu0
    %v4603 = vadd.f32 0.0, %v4602
    %4604 = vmatmul.f32.gmra.mxu0 %v4394
    %v4605 = vpop.f32.mrf.mxu0
    %v4606 = vadd.f32 0.0, %v4605
    %4607 = vmatmul.f32.gmra.mxu0 %v4397
    %v4608 = vpop.f32.mrf.mxu0
    %v4609 = vadd.f32 0.0, %v4608
    %4610 = vmatmul.f32.gmra.mxu0 %v4400
    %v4611 = vpop.f32.mrf.mxu0
    %v4612 = vadd.f32 0.0, %v4611
    %4613 = vmatmul.f32.gmra.mxu0 %v4403
    %v4614 = vpop.f32.mrf.mxu0
    %v4615 = vadd.f32 0.0, %v4614
    %4616 = vmatmul.f32.gmra.mxu0 %v4406
    %v4617 = vpop.f32.mrf.mxu0
    %v4618 = vadd.f32 0.0, %v4617
    %4619 = vmatmul.f32.gmra.mxu0 %v4409
    %v4620 = vpop.f32.mrf.mxu0
    %v4621 = vadd.f32 0.0, %v4620
    %4622 = vmatmul.f32.gmra.mxu0 %v4412
    %v4623 = vpop.f32.mrf.mxu0
    %v4624 = vadd.f32 0.0, %v4623
    %4625 = vmatmul.f32.gmra.mxu0 %v4415
    %v4626 = vpop.f32.mrf.mxu0
    %v4627 = vadd.f32 0.0, %v4626
    %4628 = vmatmul.f32.gmra.mxu0 %v4418
    %v4629 = vpop.f32.mrf.mxu0
    %v4630 = vadd.f32 0.0, %v4629
    %4631 = vmatmul.f32.gmra.mxu0 %v4421
    %v4632 = vpop.f32.mrf.mxu0
    %v4633 = vadd.f32 0.0, %v4632
    %4634 = vmatmul.f32.gmra.mxu0 %v4424
    %v4635 = vpop.f32.mrf.mxu0
    %v4636 = vadd.f32 0.0, %v4635
    %4637 = vmatmul.f32.gmra.mxu0 %v4427
    %v4638 = vpop.f32.mrf.mxu0
    %v4639 = vadd.f32 0.0, %v4638
    %4640 = vmatmul.f32.gmra.mxu0 %v4430
    %v4641 = vpop.f32.mrf.mxu0
    %v4642 = vadd.f32 0.0, %v4641
    %4643 = vmatmul.f32.gmra.mxu0 %v4433
    %v4644 = vpop.f32.mrf.mxu0
    %v4645 = vadd.f32 0.0, %v4644
    %4646 = vmatmul.f32.gmra.mxu0 %v4436
    %v4647 = vpop.f32.mrf.mxu0
    %v4648 = vadd.f32 0.0, %v4647
    %4649 = vdwg.mxu0
    %v4650 = vadd.f32 %v4116, %v4459
    %v4651 = vadd.f32 %v4117, %v4462
    %v4652 = vadd.f32 %v4118, %v4465
    %v4653 = vadd.f32 %v4119, %v4468
    %v4654 = vadd.f32 %v4120, %v4471
    %v4655 = vadd.f32 %v4121, %v4474
    %v4656 = vadd.f32 %v4122, %v4477
    %v4657 = vadd.f32 %v4123, %v4480
    %v4658 = vadd.f32 %v4124, %v4483
    %v4659 = vadd.f32 %v4125, %v4486
    %v4660 = vadd.f32 %v4126, %v4489
    %v4661 = vadd.f32 %v4127, %v4492
    %v4662 = vadd.f32 %v4128, %v4495
    %v4663 = vadd.f32 %v4129, %v4498
    %v4664 = vadd.f32 %v4130, %v4501
    %v4665 = vadd.f32 %v4131, %v4504
    %v4666 = vadd.f32 %v4132, %v4507
    %v4667 = vadd.f32 %v4133, %v4510
    %v4668 = vadd.f32 %v4134, %v4513
    %v4669 = vadd.f32 %v4135, %v4516
    %v4670 = vadd.f32 %v4136, %v4519
    %v4671 = vadd.f32 %v4137, %v4522
    %v4672 = vadd.f32 %v4138, %v4525
    %v4673 = vadd.f32 %v4139, %v4528
    %v4674 = vadd.f32 %v4140, %v4531
    %v4675 = vadd.f32 %v4141, %v4534
    %v4676 = vadd.f32 %v4142, %v4537
    %v4677 = vadd.f32 %v4143, %v4540
    %v4678 = vadd.f32 %v4144, %v4543
    %v4679 = vadd.f32 %v4145, %v4546
    %v4680 = vadd.f32 %v4146, %v4549
    %v4681 = vadd.f32 %v4147, %v4552
    %v4682 = vadd.f32 %v4148, %v4555
    %v4683 = vadd.f32 %v4149, %v4558
    %v4684 = vadd.f32 %v4150, %v4561
    %v4685 = vadd.f32 %v4151, %v4564
    %v4686 = vadd.f32 %v4152, %v4567
    %v4687 = vadd.f32 %v4153, %v4570
    %v4688 = vadd.f32 %v4154, %v4573
    %v4689 = vadd.f32 %v4155, %v4576
    %v4690 = vadd.f32 %v4156, %v4579
    %v4691 = vadd.f32 %v4157, %v4582
    %v4692 = vadd.f32 %v4158, %v4585
    %v4693 = vadd.f32 %v4159, %v4588
    %v4694 = vadd.f32 %v4160, %v4591
    %v4695 = vadd.f32 %v4161, %v4594
    %v4696 = vadd.f32 %v4162, %v4597
    %v4697 = vadd.f32 %v4163, %v4600
    %v4698 = vadd.f32 %v4164, %v4603
    %v4699 = vadd.f32 %v4165, %v4606
    %v4700 = vadd.f32 %v4166, %v4609
    %v4701 = vadd.f32 %v4167, %v4612
    %v4702 = vadd.f32 %v4168, %v4615
    %v4703 = vadd.f32 %v4169, %v4618
    %v4704 = vadd.f32 %v4170, %v4621
    %v4705 = vadd.f32 %v4171, %v4624
    %v4706 = vadd.f32 %v4172, %v4627
    %v4707 = vadd.f32 %v4173, %v4630
    %v4708 = vadd.f32 %v4174, %v4633
    %v4709 = vadd.f32 %v4175, %v4636
    %v4710 = vadd.f32 %v4176, %v4639
    %v4711 = vadd.f32 %v4177, %v4642
    %v4712 = vadd.f32 %v4178, %v4645
    %v4713 = vadd.f32 %v4179, %v4648
    %v4714 = vld [vmem:[%s2] sm:$0x1]
    %v4716 = vperm.slane %v4714, 0
    %v4718 = vadd.f32 %v4650, %v4716
    %v4719 = vadd.f32 %v4651, %v4716
    %v4720 = vadd.f32 %v4652, %v4716
    %v4721 = vadd.f32 %v4653, %v4716
    %v4722 = vadd.f32 %v4654, %v4716
    %v4723 = vadd.f32 %v4655, %v4716
    %v4724 = vadd.f32 %v4656, %v4716
    %v4725 = vadd.f32 %v4657, %v4716
    %v4726 = vadd.f32 %v4658, %v4716
    %v4727 = vadd.f32 %v4659, %v4716
    %v4728 = vadd.f32 %v4660, %v4716
    %v4729 = vadd.f32 %v4661, %v4716
    %v4730 = vadd.f32 %v4662, %v4716
    %v4731 = vadd.f32 %v4663, %v4716
    %v4732 = vadd.f32 %v4664, %v4716
    %v4733 = vadd.f32 %v4665, %v4716
    %v4734 = vadd.f32 %v4666, %v4716
    %v4735 = vadd.f32 %v4667, %v4716
    %v4736 = vadd.f32 %v4668, %v4716
    %v4737 = vadd.f32 %v4669, %v4716
    %v4738 = vadd.f32 %v4670, %v4716
    %v4739 = vadd.f32 %v4671, %v4716
    %v4740 = vadd.f32 %v4672, %v4716
    %v4741 = vadd.f32 %v4673, %v4716
    %v4742 = vadd.f32 %v4674, %v4716
    %v4743 = vadd.f32 %v4675, %v4716
    %v4744 = vadd.f32 %v4676, %v4716
    %v4745 = vadd.f32 %v4677, %v4716
    %v4746 = vadd.f32 %v4678, %v4716
    %v4747 = vadd.f32 %v4679, %v4716
    %v4748 = vadd.f32 %v4680, %v4716
    %v4749 = vadd.f32 %v4681, %v4716
    %v4750 = vadd.f32 %v4682, %v4716
    %v4751 = vadd.f32 %v4683, %v4716
    %v4752 = vadd.f32 %v4684, %v4716
    %v4753 = vadd.f32 %v4685, %v4716
    %v4754 = vadd.f32 %v4686, %v4716
    %v4755 = vadd.f32 %v4687, %v4716
    %v4756 = vadd.f32 %v4688, %v4716
    %v4757 = vadd.f32 %v4689, %v4716
    %v4758 = vadd.f32 %v4690, %v4716
    %v4759 = vadd.f32 %v4691, %v4716
    %v4760 = vadd.f32 %v4692, %v4716
    %v4761 = vadd.f32 %v4693, %v4716
    %v4762 = vadd.f32 %v4694, %v4716
    %v4763 = vadd.f32 %v4695, %v4716
    %v4764 = vadd.f32 %v4696, %v4716
    %v4765 = vadd.f32 %v4697, %v4716
    %v4766 = vadd.f32 %v4698, %v4716
    %v4767 = vadd.f32 %v4699, %v4716
    %v4768 = vadd.f32 %v4700, %v4716
    %v4769 = vadd.f32 %v4701, %v4716
    %v4770 = vadd.f32 %v4702, %v4716
    %v4771 = vadd.f32 %v4703, %v4716
    %v4772 = vadd.f32 %v4704, %v4716
    %v4773 = vadd.f32 %v4705, %v4716
    %v4774 = vadd.f32 %v4706, %v4716
    %v4775 = vadd.f32 %v4707, %v4716
    %v4776 = vadd.f32 %v4708, %v4716
    %v4777 = vadd.f32 %v4709, %v4716
    %v4778 = vadd.f32 %v4710, %v4716
    %v4779 = vadd.f32 %v4711, %v4716
    %v4780 = vadd.f32 %v4712, %v4716
    %v4781 = vadd.f32 %v4713, %v4716
    %vm4782 = vcmask 130048
    %v4783 = vsel %vm4782, %v4718, 0.0
    %v4784 = vsel %vm4782, %v4719, 0.0
    %v4785 = vadd.f32 %v4783, %v4784
    %v4786 = vsel %vm4782, %v4720, 0.0
    %v4787 = vadd.f32 %v4785, %v4786
    %v4788 = vsel %vm4782, %v4721, 0.0
    %v4789 = vadd.f32 %v4787, %v4788
    %v4790 = vsel %vm4782, %v4722, 0.0
    %v4791 = vadd.f32 %v4789, %v4790
    %v4792 = vsel %vm4782, %v4723, 0.0
    %v4793 = vadd.f32 %v4791, %v4792
    %v4794 = vsel %vm4782, %v4724, 0.0
    %v4795 = vadd.f32 %v4793, %v4794
    %v4796 = vsel %vm4782, %v4725, 0.0
    %v4797 = vadd.f32 %v4795, %v4796
    %v4798 = vsel %vm4782, %v4726, 0.0
    %v4799 = vadd.f32 %v4797, %v4798
    %v4800 = vsel %vm4782, %v4727, 0.0
    %v4801 = vadd.f32 %v4799, %v4800
    %v4802 = vsel %vm4782, %v4728, 0.0
    %v4803 = vadd.f32 %v4801, %v4802
    %v4804 = vsel %vm4782, %v4729, 0.0
    %v4805 = vadd.f32 %v4803, %v4804
    %v4806 = vsel %vm4782, %v4730, 0.0
    %v4807 = vadd.f32 %v4805, %v4806
    %v4808 = vsel %vm4782, %v4731, 0.0
    %v4809 = vadd.f32 %v4807, %v4808
    %v4810 = vsel %vm4782, %v4732, 0.0
    %v4811 = vadd.f32 %v4809, %v4810
    %v4812 = vsel %vm4782, %v4733, 0.0
    %v4813 = vadd.f32 %v4811, %v4812
    %v4814 = vsel %vm4782, %v4734, 0.0
    %v4815 = vadd.f32 %v4813, %v4814
    %v4816 = vsel %vm4782, %v4735, 0.0
    %v4817 = vadd.f32 %v4815, %v4816
    %v4818 = vsel %vm4782, %v4736, 0.0
    %v4819 = vadd.f32 %v4817, %v4818
    %v4820 = vsel %vm4782, %v4737, 0.0
    %v4821 = vadd.f32 %v4819, %v4820
    %v4822 = vsel %vm4782, %v4738, 0.0
    %v4823 = vadd.f32 %v4821, %v4822
    %v4824 = vsel %vm4782, %v4739, 0.0
    %v4825 = vadd.f32 %v4823, %v4824
    %v4826 = vsel %vm4782, %v4740, 0.0
    %v4827 = vadd.f32 %v4825, %v4826
    %v4828 = vsel %vm4782, %v4741, 0.0
    %v4829 = vadd.f32 %v4827, %v4828
    %v4830 = vsel %vm4782, %v4742, 0.0
    %v4831 = vadd.f32 %v4829, %v4830
    %v4832 = vsel %vm4782, %v4743, 0.0
    %v4833 = vadd.f32 %v4831, %v4832
    %v4834 = vsel %vm4782, %v4744, 0.0
    %v4835 = vadd.f32 %v4833, %v4834
    %v4836 = vsel %vm4782, %v4745, 0.0
    %v4837 = vadd.f32 %v4835, %v4836
    %v4838 = vsel %vm4782, %v4746, 0.0
    %v4839 = vadd.f32 %v4837, %v4838
    %v4840 = vsel %vm4782, %v4747, 0.0
    %v4841 = vadd.f32 %v4839, %v4840
    %v4842 = vsel %vm4782, %v4748, 0.0
    %v4843 = vadd.f32 %v4841, %v4842
    %v4844 = vsel %vm4782, %v4749, 0.0
    %v4845 = vadd.f32 %v4843, %v4844
    %v4846 = vsel %vm4782, %v4750, 0.0
    %v4847 = vadd.f32 %v4845, %v4846
    %v4848 = vsel %vm4782, %v4751, 0.0
    %v4849 = vadd.f32 %v4847, %v4848
    %v4850 = vsel %vm4782, %v4752, 0.0
    %v4851 = vadd.f32 %v4849, %v4850
    %v4852 = vsel %vm4782, %v4753, 0.0
    %v4853 = vadd.f32 %v4851, %v4852
    %v4854 = vsel %vm4782, %v4754, 0.0
    %v4855 = vadd.f32 %v4853, %v4854
    %v4856 = vsel %vm4782, %v4755, 0.0
    %v4857 = vadd.f32 %v4855, %v4856
    %v4858 = vsel %vm4782, %v4756, 0.0
    %v4859 = vadd.f32 %v4857, %v4858
    %v4860 = vsel %vm4782, %v4757, 0.0
    %v4861 = vadd.f32 %v4859, %v4860
    %v4862 = vsel %vm4782, %v4758, 0.0
    %v4863 = vadd.f32 %v4861, %v4862
    %v4864 = vsel %vm4782, %v4759, 0.0
    %v4865 = vadd.f32 %v4863, %v4864
    %v4866 = vsel %vm4782, %v4760, 0.0
    %v4867 = vadd.f32 %v4865, %v4866
    %v4868 = vsel %vm4782, %v4761, 0.0
    %v4869 = vadd.f32 %v4867, %v4868
    %v4870 = vsel %vm4782, %v4762, 0.0
    %v4871 = vadd.f32 %v4869, %v4870
    %v4872 = vsel %vm4782, %v4763, 0.0
    %v4873 = vadd.f32 %v4871, %v4872
    %v4874 = vsel %vm4782, %v4764, 0.0
    %v4875 = vadd.f32 %v4873, %v4874
    %v4876 = vsel %vm4782, %v4765, 0.0
    %v4877 = vadd.f32 %v4875, %v4876
    %v4878 = vsel %vm4782, %v4766, 0.0
    %v4879 = vadd.f32 %v4877, %v4878
    %v4880 = vsel %vm4782, %v4767, 0.0
    %v4881 = vadd.f32 %v4879, %v4880
    %v4882 = vsel %vm4782, %v4768, 0.0
    %v4883 = vadd.f32 %v4881, %v4882
    %v4884 = vsel %vm4782, %v4769, 0.0
    %v4885 = vadd.f32 %v4883, %v4884
    %v4886 = vsel %vm4782, %v4770, 0.0
    %v4887 = vadd.f32 %v4885, %v4886
    %v4888 = vsel %vm4782, %v4771, 0.0
    %v4889 = vadd.f32 %v4887, %v4888
    %v4890 = vsel %vm4782, %v4772, 0.0
    %v4891 = vadd.f32 %v4889, %v4890
    %v4892 = vsel %vm4782, %v4773, 0.0
    %v4893 = vadd.f32 %v4891, %v4892
    %v4894 = vsel %vm4782, %v4774, 0.0
    %v4895 = vadd.f32 %v4893, %v4894
    %v4896 = vsel %vm4782, %v4775, 0.0
    %v4897 = vadd.f32 %v4895, %v4896
    %v4898 = vsel %vm4782, %v4776, 0.0
    %v4899 = vadd.f32 %v4897, %v4898
    %v4900 = vsel %vm4782, %v4777, 0.0
    %v4901 = vadd.f32 %v4899, %v4900
    %v4902 = vsel %vm4782, %v4778, 0.0
    %v4903 = vadd.f32 %v4901, %v4902
    %v4904 = vsel %vm4782, %v4779, 0.0
    %v4905 = vadd.f32 %v4903, %v4904
    %v4906 = vsel %vm4782, %v4780, 0.0
    %v4907 = vadd.f32 %v4905, %v4906
    %v4908 = vsel %vm4782, %v4781, 0.0
    %v4909 = vadd.f32 %v4907, %v4908
    %v4910 = vrot.slane %v4909, 4
    %v4911 = vadd.f32 %v4909, %v4910
    %v4912 = vrot.slane %v4911, 2
    %v4913 = vadd.f32 %v4911, %v4912
    %v4914 = vrot.slane %v4913, 1
    %v4915 = vadd.f32 %v4913, %v4914
    %v4916 = vmul.f32 %v4718, %v4718
    %v4917 = vmul.f32 %v4719, %v4719
    %v4918 = vmul.f32 %v4720, %v4720
    %v4919 = vmul.f32 %v4721, %v4721
    %v4920 = vmul.f32 %v4722, %v4722
    %v4921 = vmul.f32 %v4723, %v4723
    %v4922 = vmul.f32 %v4724, %v4724
    %v4923 = vmul.f32 %v4725, %v4725
    %v4924 = vmul.f32 %v4726, %v4726
    %v4925 = vmul.f32 %v4727, %v4727
    %v4926 = vmul.f32 %v4728, %v4728
    %v4927 = vmul.f32 %v4729, %v4729
    %v4928 = vmul.f32 %v4730, %v4730
    %v4929 = vmul.f32 %v4731, %v4731
    %v4930 = vmul.f32 %v4732, %v4732
    %v4931 = vmul.f32 %v4733, %v4733
    %v4932 = vmul.f32 %v4734, %v4734
    %v4933 = vmul.f32 %v4735, %v4735
    %v4934 = vmul.f32 %v4736, %v4736
    %v4935 = vmul.f32 %v4737, %v4737
    %v4936 = vmul.f32 %v4738, %v4738
    %v4937 = vmul.f32 %v4739, %v4739
    %v4938 = vmul.f32 %v4740, %v4740
    %v4939 = vmul.f32 %v4741, %v4741
    %v4940 = vmul.f32 %v4742, %v4742
    %v4941 = vmul.f32 %v4743, %v4743
    %v4942 = vmul.f32 %v4744, %v4744
    %v4943 = vmul.f32 %v4745, %v4745
    %v4944 = vmul.f32 %v4746, %v4746
    %v4945 = vmul.f32 %v4747, %v4747
    %v4946 = vmul.f32 %v4748, %v4748
    %v4947 = vmul.f32 %v4749, %v4749
    %v4948 = vmul.f32 %v4750, %v4750
    %v4949 = vmul.f32 %v4751, %v4751
    %v4950 = vmul.f32 %v4752, %v4752
    %v4951 = vmul.f32 %v4753, %v4753
    %v4952 = vmul.f32 %v4754, %v4754
    %v4953 = vmul.f32 %v4755, %v4755
    %v4954 = vmul.f32 %v4756, %v4756
    %v4955 = vmul.f32 %v4757, %v4757
    %v4956 = vmul.f32 %v4758, %v4758
    %v4957 = vmul.f32 %v4759, %v4759
    %v4958 = vmul.f32 %v4760, %v4760
    %v4959 = vmul.f32 %v4761, %v4761
    %v4960 = vmul.f32 %v4762, %v4762
    %v4961 = vmul.f32 %v4763, %v4763
    %v4962 = vmul.f32 %v4764, %v4764
    %v4963 = vmul.f32 %v4765, %v4765
    %v4964 = vmul.f32 %v4766, %v4766
    %v4965 = vmul.f32 %v4767, %v4767
    %v4966 = vmul.f32 %v4768, %v4768
    %v4967 = vmul.f32 %v4769, %v4769
    %v4968 = vmul.f32 %v4770, %v4770
    %v4969 = vmul.f32 %v4771, %v4771
    %v4970 = vmul.f32 %v4772, %v4772
    %v4971 = vmul.f32 %v4773, %v4773
    %v4972 = vmul.f32 %v4774, %v4774
    %v4973 = vmul.f32 %v4775, %v4775
    %v4974 = vmul.f32 %v4776, %v4776
    %v4975 = vmul.f32 %v4777, %v4777
    %v4976 = vmul.f32 %v4778, %v4778
    %v4977 = vmul.f32 %v4779, %v4779
    %v4978 = vmul.f32 %v4780, %v4780
    %v4979 = vmul.f32 %v4781, %v4781
    %v4980 = vsel %vm4782, %v4916, 0.0
    %v4981 = vsel %vm4782, %v4917, 0.0
    %v4982 = vadd.f32 %v4980, %v4981
    %v4983 = vsel %vm4782, %v4918, 0.0
    %v4984 = vadd.f32 %v4982, %v4983
    %v4985 = vsel %vm4782, %v4919, 0.0
    %v4986 = vadd.f32 %v4984, %v4985
    %v4987 = vsel %vm4782, %v4920, 0.0
    %v4988 = vadd.f32 %v4986, %v4987
    %v4989 = vsel %vm4782, %v4921, 0.0
    %v4990 = vadd.f32 %v4988, %v4989
    %v4991 = vsel %vm4782, %v4922, 0.0
    %v4992 = vadd.f32 %v4990, %v4991
    %v4993 = vsel %vm4782, %v4923, 0.0
    %v4994 = vadd.f32 %v4992, %v4993
    %v4995 = vsel %vm4782, %v4924, 0.0
    %v4996 = vadd.f32 %v4994, %v4995
    %v4997 = vsel %vm4782, %v4925, 0.0
    %v4998 = vadd.f32 %v4996, %v4997
    %v4999 = vsel %vm4782, %v4926, 0.0
    %v5000 = vadd.f32 %v4998, %v4999
    %v5001 = vsel %vm4782, %v4927, 0.0
    %v5002 = vadd.f32 %v5000, %v5001
    %v5003 = vsel %vm4782, %v4928, 0.0
    %v5004 = vadd.f32 %v5002, %v5003
    %v5005 = vsel %vm4782, %v4929, 0.0
    %v5006 = vadd.f32 %v5004, %v5005
    %v5007 = vsel %vm4782, %v4930, 0.0
    %v5008 = vadd.f32 %v5006, %v5007
    %v5009 = vsel %vm4782, %v4931, 0.0
    %v5010 = vadd.f32 %v5008, %v5009
    %v5011 = vsel %vm4782, %v4932, 0.0
    %v5012 = vadd.f32 %v5010, %v5011
    %v5013 = vsel %vm4782, %v4933, 0.0
    %v5014 = vadd.f32 %v5012, %v5013
    %v5015 = vsel %vm4782, %v4934, 0.0
    %v5016 = vadd.f32 %v5014, %v5015
    %v5017 = vsel %vm4782, %v4935, 0.0
    %v5018 = vadd.f32 %v5016, %v5017
    %v5019 = vsel %vm4782, %v4936, 0.0
    %v5020 = vadd.f32 %v5018, %v5019
    %v5021 = vsel %vm4782, %v4937, 0.0
    %v5022 = vadd.f32 %v5020, %v5021
    %v5023 = vsel %vm4782, %v4938, 0.0
    %v5024 = vadd.f32 %v5022, %v5023
    %v5025 = vsel %vm4782, %v4939, 0.0
    %v5026 = vadd.f32 %v5024, %v5025
    %v5027 = vsel %vm4782, %v4940, 0.0
    %v5028 = vadd.f32 %v5026, %v5027
    %v5029 = vsel %vm4782, %v4941, 0.0
    %v5030 = vadd.f32 %v5028, %v5029
    %v5031 = vsel %vm4782, %v4942, 0.0
    %v5032 = vadd.f32 %v5030, %v5031
    %v5033 = vsel %vm4782, %v4943, 0.0
    %v5034 = vadd.f32 %v5032, %v5033
    %v5035 = vsel %vm4782, %v4944, 0.0
    %v5036 = vadd.f32 %v5034, %v5035
    %v5037 = vsel %vm4782, %v4945, 0.0
    %v5038 = vadd.f32 %v5036, %v5037
    %v5039 = vsel %vm4782, %v4946, 0.0
    %v5040 = vadd.f32 %v5038, %v5039
    %v5041 = vsel %vm4782, %v4947, 0.0
    %v5042 = vadd.f32 %v5040, %v5041
    %v5043 = vsel %vm4782, %v4948, 0.0
    %v5044 = vadd.f32 %v5042, %v5043
    %v5045 = vsel %vm4782, %v4949, 0.0
    %v5046 = vadd.f32 %v5044, %v5045
    %v5047 = vsel %vm4782, %v4950, 0.0
    %v5048 = vadd.f32 %v5046, %v5047
    %v5049 = vsel %vm4782, %v4951, 0.0
    %v5050 = vadd.f32 %v5048, %v5049
    %v5051 = vsel %vm4782, %v4952, 0.0
    %v5052 = vadd.f32 %v5050, %v5051
    %v5053 = vsel %vm4782, %v4953, 0.0
    %v5054 = vadd.f32 %v5052, %v5053
    %v5055 = vsel %vm4782, %v4954, 0.0
    %v5056 = vadd.f32 %v5054, %v5055
    %v5057 = vsel %vm4782, %v4955, 0.0
    %v5058 = vadd.f32 %v5056, %v5057
    %v5059 = vsel %vm4782, %v4956, 0.0
    %v5060 = vadd.f32 %v5058, %v5059
    %v5061 = vsel %vm4782, %v4957, 0.0
    %v5062 = vadd.f32 %v5060, %v5061
    %v5063 = vsel %vm4782, %v4958, 0.0
    %v5064 = vadd.f32 %v5062, %v5063
    %v5065 = vsel %vm4782, %v4959, 0.0
    %v5066 = vadd.f32 %v5064, %v5065
    %v5067 = vsel %vm4782, %v4960, 0.0
    %v5068 = vadd.f32 %v5066, %v5067
    %v5069 = vsel %vm4782, %v4961, 0.0
    %v5070 = vadd.f32 %v5068, %v5069
    %v5071 = vsel %vm4782, %v4962, 0.0
    %v5072 = vadd.f32 %v5070, %v5071
    %v5073 = vsel %vm4782, %v4963, 0.0
    %v5074 = vadd.f32 %v5072, %v5073
    %v5075 = vsel %vm4782, %v4964, 0.0
    %v5076 = vadd.f32 %v5074, %v5075
    %v5077 = vsel %vm4782, %v4965, 0.0
    %v5078 = vadd.f32 %v5076, %v5077
    %v5079 = vsel %vm4782, %v4966, 0.0
    %v5080 = vadd.f32 %v5078, %v5079
    %v5081 = vsel %vm4782, %v4967, 0.0
    %v5082 = vadd.f32 %v5080, %v5081
    %v5083 = vsel %vm4782, %v4968, 0.0
    %v5084 = vadd.f32 %v5082, %v5083
    %v5085 = vsel %vm4782, %v4969, 0.0
    %v5086 = vadd.f32 %v5084, %v5085
    %v5087 = vsel %vm4782, %v4970, 0.0
    %v5088 = vadd.f32 %v5086, %v5087
    %v5089 = vsel %vm4782, %v4971, 0.0
    %v5090 = vadd.f32 %v5088, %v5089
    %v5091 = vsel %vm4782, %v4972, 0.0
    %v5092 = vadd.f32 %v5090, %v5091
    %v5093 = vsel %vm4782, %v4973, 0.0
    %v5094 = vadd.f32 %v5092, %v5093
    %v5095 = vsel %vm4782, %v4974, 0.0
    %v5096 = vadd.f32 %v5094, %v5095
    %v5097 = vsel %vm4782, %v4975, 0.0
    %v5098 = vadd.f32 %v5096, %v5097
    %v5099 = vsel %vm4782, %v4976, 0.0
    %v5100 = vadd.f32 %v5098, %v5099
    %v5101 = vsel %vm4782, %v4977, 0.0
    %v5102 = vadd.f32 %v5100, %v5101
    %v5103 = vsel %vm4782, %v4978, 0.0
    %v5104 = vadd.f32 %v5102, %v5103
    %v5105 = vsel %vm4782, %v4979, 0.0
    %v5106 = vadd.f32 %v5104, %v5105
    %v5107 = vrot.slane %v5106, 4
    %v5108 = vadd.f32 %v5106, %v5107
    %v5109 = vrot.slane %v5108, 2
    %v5110 = vadd.f32 %v5108, %v5109
    %v5111 = vrot.slane %v5110, 1
    %v5112 = vadd.f32 %v5110, %v5111
    %v5113 = vmul.f32 %v4915, 0.001953125
    %v5114 = vmul.f32 %v5112, 0.001953125
    %v5115 = vmul.f32 %v5113, %v5113
    %v5116 = vsub.f32 %v5114, %v5115
    %v5117 = vld [vmem:[%s3] sm:$0x1]
    %v5118 = vadd.f32 %v5116, 1e-05
    %v5119 = vrsqrt.pop %v5118
    %v5120 = vmul.f32 %v5119, %v5118
    %v5121 = vmul.f32 %v5120, %v5119
    %v5122 = vmul.f32 0.5, %v5121
    %v5123 = vsub.f32 1.5, %v5122
    %v5124 = vmul.f32 %v5119, %v5123
    %vm5125 = vweird.f32 %v5118
    %vm5126 = vweird.f32 %v5119
    %vm5127 = vmor %vm5125, %vm5126
    %v5128 = vsel %vm5127, %v5119, %v5124
    %v5129 = vmul.f32 %v5117, %v5128
    %v5130 = vld [vmem:[%s4] sm:$0x1]
    %v5131 = vmul.f32 %v5113, %v5129
    %v5132 = vsub.f32 %v5130, %v5131
    %v5134 = vperm.slane %v5129, 0
    %v5136 = vmul.f32 %v4718, %v5134
    %v5137 = vmul.f32 %v4719, %v5134
    %v5138 = vmul.f32 %v4720, %v5134
    %v5139 = vmul.f32 %v4721, %v5134
    %v5140 = vmul.f32 %v4722, %v5134
    %v5141 = vmul.f32 %v4723, %v5134
    %v5142 = vmul.f32 %v4724, %v5134
    %v5143 = vmul.f32 %v4725, %v5134
    %v5144 = vmul.f32 %v4726, %v5134
    %v5145 = vmul.f32 %v4727, %v5134
    %v5146 = vmul.f32 %v4728, %v5134
    %v5147 = vmul.f32 %v4729, %v5134
    %v5148 = vmul.f32 %v4730, %v5134
    %v5149 = vmul.f32 %v4731, %v5134
    %v5150 = vmul.f32 %v4732, %v5134
    %v5151 = vmul.f32 %v4733, %v5134
    %v5152 = vmul.f32 %v4734, %v5134
    %v5153 = vmul.f32 %v4735, %v5134
    %v5154 = vmul.f32 %v4736, %v5134
    %v5155 = vmul.f32 %v4737, %v5134
    %v5156 = vmul.f32 %v4738, %v5134
    %v5157 = vmul.f32 %v4739, %v5134
    %v5158 = vmul.f32 %v4740, %v5134
    %v5159 = vmul.f32 %v4741, %v5134
    %v5160 = vmul.f32 %v4742, %v5134
    %v5161 = vmul.f32 %v4743, %v5134
    %v5162 = vmul.f32 %v4744, %v5134
    %v5163 = vmul.f32 %v4745, %v5134
    %v5164 = vmul.f32 %v4746, %v5134
    %v5165 = vmul.f32 %v4747, %v5134
    %v5166 = vmul.f32 %v4748, %v5134
    %v5167 = vmul.f32 %v4749, %v5134
    %v5168 = vmul.f32 %v4750, %v5134
    %v5169 = vmul.f32 %v4751, %v5134
    %v5170 = vmul.f32 %v4752, %v5134
    %v5171 = vmul.f32 %v4753, %v5134
    %v5172 = vmul.f32 %v4754, %v5134
    %v5173 = vmul.f32 %v4755, %v5134
    %v5174 = vmul.f32 %v4756, %v5134
    %v5175 = vmul.f32 %v4757, %v5134
    %v5176 = vmul.f32 %v4758, %v5134
    %v5177 = vmul.f32 %v4759, %v5134
    %v5178 = vmul.f32 %v4760, %v5134
    %v5179 = vmul.f32 %v4761, %v5134
    %v5180 = vmul.f32 %v4762, %v5134
    %v5181 = vmul.f32 %v4763, %v5134
    %v5182 = vmul.f32 %v4764, %v5134
    %v5183 = vmul.f32 %v4765, %v5134
    %v5184 = vmul.f32 %v4766, %v5134
    %v5185 = vmul.f32 %v4767, %v5134
    %v5186 = vmul.f32 %v4768, %v5134
    %v5187 = vmul.f32 %v4769, %v5134
    %v5188 = vmul.f32 %v4770, %v5134
    %v5189 = vmul.f32 %v4771, %v5134
    %v5190 = vmul.f32 %v4772, %v5134
    %v5191 = vmul.f32 %v4773, %v5134
    %v5192 = vmul.f32 %v4774, %v5134
    %v5193 = vmul.f32 %v4775, %v5134
    %v5194 = vmul.f32 %v4776, %v5134
    %v5195 = vmul.f32 %v4777, %v5134
    %v5196 = vmul.f32 %v4778, %v5134
    %v5197 = vmul.f32 %v4779, %v5134
    %v5198 = vmul.f32 %v4780, %v5134
    %v5199 = vmul.f32 %v4781, %v5134
    %v5201 = vperm.slane %v5132, 0
    %v5203 = vadd.f32 %v5136, %v5201
    %v5204 = vadd.f32 %v5137, %v5201
    %v5205 = vadd.f32 %v5138, %v5201
    %v5206 = vadd.f32 %v5139, %v5201
    %v5207 = vadd.f32 %v5140, %v5201
    %v5208 = vadd.f32 %v5141, %v5201
    %v5209 = vadd.f32 %v5142, %v5201
    %v5210 = vadd.f32 %v5143, %v5201
    %v5211 = vadd.f32 %v5144, %v5201
    %v5212 = vadd.f32 %v5145, %v5201
    %v5213 = vadd.f32 %v5146, %v5201
    %v5214 = vadd.f32 %v5147, %v5201
    %v5215 = vadd.f32 %v5148, %v5201
    %v5216 = vadd.f32 %v5149, %v5201
    %v5217 = vadd.f32 %v5150, %v5201
    %v5218 = vadd.f32 %v5151, %v5201
    %v5219 = vadd.f32 %v5152, %v5201
    %v5220 = vadd.f32 %v5153, %v5201
    %v5221 = vadd.f32 %v5154, %v5201
    %v5222 = vadd.f32 %v5155, %v5201
    %v5223 = vadd.f32 %v5156, %v5201
    %v5224 = vadd.f32 %v5157, %v5201
    %v5225 = vadd.f32 %v5158, %v5201
    %v5226 = vadd.f32 %v5159, %v5201
    %v5227 = vadd.f32 %v5160, %v5201
    %v5228 = vadd.f32 %v5161, %v5201
    %v5229 = vadd.f32 %v5162, %v5201
    %v5230 = vadd.f32 %v5163, %v5201
    %v5231 = vadd.f32 %v5164, %v5201
    %v5232 = vadd.f32 %v5165, %v5201
    %v5233 = vadd.f32 %v5166, %v5201
    %v5234 = vadd.f32 %v5167, %v5201
    %v5235 = vadd.f32 %v5168, %v5201
    %v5236 = vadd.f32 %v5169, %v5201
    %v5237 = vadd.f32 %v5170, %v5201
    %v5238 = vadd.f32 %v5171, %v5201
    %v5239 = vadd.f32 %v5172, %v5201
    %v5240 = vadd.f32 %v5173, %v5201
    %v5241 = vadd.f32 %v5174, %v5201
    %v5242 = vadd.f32 %v5175, %v5201
    %v5243 = vadd.f32 %v5176, %v5201
    %v5244 = vadd.f32 %v5177, %v5201
    %v5245 = vadd.f32 %v5178, %v5201
    %v5246 = vadd.f32 %v5179, %v5201
    %v5247 = vadd.f32 %v5180, %v5201
    %v5248 = vadd.f32 %v5181, %v5201
    %v5249 = vadd.f32 %v5182, %v5201
    %v5250 = vadd.f32 %v5183, %v5201
    %v5251 = vadd.f32 %v5184, %v5201
    %v5252 = vadd.f32 %v5185, %v5201
    %v5253 = vadd.f32 %v5186, %v5201
    %v5254 = vadd.f32 %v5187, %v5201
    %v5255 = vadd.f32 %v5188, %v5201
    %v5256 = vadd.f32 %v5189, %v5201
    %v5257 = vadd.f32 %v5190, %v5201
    %v5258 = vadd.f32 %v5191, %v5201
    %v5259 = vadd.f32 %v5192, %v5201
    %v5260 = vadd.f32 %v5193, %v5201
    %v5261 = vadd.f32 %v5194, %v5201
    %v5262 = vadd.f32 %v5195, %v5201
    %v5263 = vadd.f32 %v5196, %v5201
    %v5264 = vadd.f32 %v5197, %v5201
    %v5265 = vadd.f32 %v5198, %v5201
    %v5266 = vadd.f32 %v5199, %v5201
    %v5267 = vmax.f32 %v5203, 0.0
    %v5268 = vmax.f32 %v5204, 0.0
    %v5269 = vmax.f32 %v5205, 0.0
    %v5270 = vmax.f32 %v5206, 0.0
    %v5271 = vmax.f32 %v5207, 0.0
    %v5272 = vmax.f32 %v5208, 0.0
    %v5273 = vmax.f32 %v5209, 0.0
    %v5274 = vmax.f32 %v5210, 0.0
    %v5275 = vmax.f32 %v5211, 0.0
    %v5276 = vmax.f32 %v5212, 0.0
    %v5277 = vmax.f32 %v5213, 0.0
    %v5278 = vmax.f32 %v5214, 0.0
    %v5279 = vmax.f32 %v5215, 0.0
    %v5280 = vmax.f32 %v5216, 0.0
    %v5281 = vmax.f32 %v5217, 0.0
    %v5282 = vmax.f32 %v5218, 0.0
    %v5283 = vmax.f32 %v5219, 0.0
    %v5284 = vmax.f32 %v5220, 0.0
    %v5285 = vmax.f32 %v5221, 0.0
    %v5286 = vmax.f32 %v5222, 0.0
    %v5287 = vmax.f32 %v5223, 0.0
    %v5288 = vmax.f32 %v5224, 0.0
    %v5289 = vmax.f32 %v5225, 0.0
    %v5290 = vmax.f32 %v5226, 0.0
    %v5291 = vmax.f32 %v5227, 0.0
    %v5292 = vmax.f32 %v5228, 0.0
    %v5293 = vmax.f32 %v5229, 0.0
    %v5294 = vmax.f32 %v5230, 0.0
    %v5295 = vmax.f32 %v5231, 0.0
    %v5296 = vmax.f32 %v5232, 0.0
    %v5297 = vmax.f32 %v5233, 0.0
    %v5298 = vmax.f32 %v5234, 0.0
    %v5299 = vmax.f32 %v5235, 0.0
    %v5300 = vmax.f32 %v5236, 0.0
    %v5301 = vmax.f32 %v5237, 0.0
    %v5302 = vmax.f32 %v5238, 0.0
    %v5303 = vmax.f32 %v5239, 0.0
    %v5304 = vmax.f32 %v5240, 0.0
    %v5305 = vmax.f32 %v5241, 0.0
    %v5306 = vmax.f32 %v5242, 0.0
    %v5307 = vmax.f32 %v5243, 0.0
    %v5308 = vmax.f32 %v5244, 0.0
    %v5309 = vmax.f32 %v5245, 0.0
    %v5310 = vmax.f32 %v5246, 0.0
    %v5311 = vmax.f32 %v5247, 0.0
    %v5312 = vmax.f32 %v5248, 0.0
    %v5313 = vmax.f32 %v5249, 0.0
    %v5314 = vmax.f32 %v5250, 0.0
    %v5315 = vmax.f32 %v5251, 0.0
    %v5316 = vmax.f32 %v5252, 0.0
    %v5317 = vmax.f32 %v5253, 0.0
    %v5318 = vmax.f32 %v5254, 0.0
    %v5319 = vmax.f32 %v5255, 0.0
    %v5320 = vmax.f32 %v5256, 0.0
    %v5321 = vmax.f32 %v5257, 0.0
    %v5322 = vmax.f32 %v5258, 0.0
    %v5323 = vmax.f32 %v5259, 0.0
    %v5324 = vmax.f32 %v5260, 0.0
    %v5325 = vmax.f32 %v5261, 0.0
    %v5326 = vmax.f32 %v5262, 0.0
    %v5327 = vmax.f32 %v5263, 0.0
    %v5328 = vmax.f32 %v5264, 0.0
    %v5329 = vmax.f32 %v5265, 0.0
    %v5330 = vmax.f32 %v5266, 0.0
    %5331 = vst.msk [vmem:[#allocation2] sm:$0xff] %vm4782, 0.0
    %5332 = vst.msk [vmem:[#allocation2 + $0x8] sm:$0xff] %vm4782, 0.0
    %vm5333 = vcmask 123904
    %5334 = vst.msk [vmem:[#allocation2 + $0x10] sm:$0x3] %vm5333, 0.0
    %5335 = vst.msk [vmem:[#allocation2 + $0x18] sm:$0xff] %vm4782, 0.0
    %5336 = vst.msk [vmem:[#allocation2 + $0x20] sm:$0xff] %vm4782, 0.0
    %5337 = vst.msk [vmem:[#allocation2 + $0x28] sm:$0x3] %vm5333, 0.0
    %5338 = vst.msk [vmem:[#allocation2 + $0x30] sm:$0xff] %vm4782, 0.0
    %5339 = vst.msk [vmem:[#allocation2 + $0x38] sm:$0xff] %vm4782, 0.0
    %5340 = vst.msk [vmem:[#allocation2 + $0x40] sm:$0x3] %vm5333, 0.0
    %5341 = vst.msk [vmem:[#allocation2 + $0x48] sm:$0xff] %vm4782, 0.0
    %5342 = vst.msk [vmem:[#allocation2 + $0x50] sm:$0xff] %vm4782, 0.0
    %5343 = vst.msk [vmem:[#allocation2 + $0x58] sm:$0x3] %vm5333, 0.0
    %5344 = vst.msk [vmem:[#allocation2 + $0x60] sm:$0xff] %vm4782, 0.0
    %5345 = vst.msk [vmem:[#allocation2 + $0x68] sm:$0xff] %vm4782, 0.0
    %5346 = vst.msk [vmem:[#allocation2 + $0x70] sm:$0x3] %vm5333, 0.0
    %5347 = vst.msk [vmem:[#allocation2 + $0x78] sm:$0xff] %vm4782, 0.0
    %5348 = vst.msk [vmem:[#allocation2 + $0x80] sm:$0xff] %vm4782, 0.0
    %5349 = vst.msk [vmem:[#allocation2 + $0x88] sm:$0x3] %vm5333, 0.0
    %5350 = vst.msk [vmem:[#allocation2 + $0x90] sm:$0xff] %vm4782, 0.0
    %5351 = vst.msk [vmem:[#allocation2 + $0x98] sm:$0xff] %vm4782, 0.0
    %5352 = vst.msk [vmem:[#allocation2 + $0xa0] sm:$0x3] %vm5333, 0.0
    %5353 = vst.msk [vmem:[#allocation2 + $0xa8] sm:$0xff] %vm4782, 0.0
    %5354 = vst.msk [vmem:[#allocation2 + $0xb0] sm:$0xff] %vm4782, 0.0
    %5355 = vst.msk [vmem:[#allocation2 + $0xb8] sm:$0x3] %vm5333, 0.0
    %5356 = vst.msk [vmem:[#allocation2 + $0xc0] sm:$0xff] %vm4782, 0.0
    %5357 = vst.msk [vmem:[#allocation2 + $0xc8] sm:$0xff] %vm4782, 0.0
    %5358 = vst.msk [vmem:[#allocation2 + $0xd0] sm:$0x3] %vm5333, 0.0
    %5359 = vst.msk [vmem:[#allocation2 + $0xd8] sm:$0xff] %vm4782, 0.0
    %5360 = vst.msk [vmem:[#allocation2 + $0xe0] sm:$0xff] %vm4782, 0.0
    %5361 = vst.msk [vmem:[#allocation2 + $0xe8] sm:$0x3] %vm5333, 0.0
    %5362 = vst.msk [vmem:[#allocation2 + $0xf0] sm:$0xff] %vm4782, 0.0
    %5363 = vst.msk [vmem:[#allocation2 + $0xf8] sm:$0xff] %vm4782, 0.0
    %5364 = vst.msk [vmem:[#allocation2 + $0x100] sm:$0x3] %vm5333, 0.0
    %5365 = vst.msk [vmem:[#allocation2 + $0x108] sm:$0xff] %vm4782, 0.0
    %5366 = vst.msk [vmem:[#allocation2 + $0x110] sm:$0xff] %vm4782, 0.0
    %5367 = vst.msk [vmem:[#allocation2 + $0x118] sm:$0x3] %vm5333, 0.0
    %5368 = vst.msk [vmem:[#allocation2 + $0x120] sm:$0xff] %vm4782, 0.0
    %5369 = vst.msk [vmem:[#allocation2 + $0x128] sm:$0xff] %vm4782, 0.0
    %5370 = vst.msk [vmem:[#allocation2 + $0x130] sm:$0x3] %vm5333, 0.0
    %5371 = vst.msk [vmem:[#allocation2 + $0x138] sm:$0xff] %vm4782, 0.0
    %5372 = vst.msk [vmem:[#allocation2 + $0x140] sm:$0xff] %vm4782, 0.0
    %5373 = vst.msk [vmem:[#allocation2 + $0x148] sm:$0x3] %vm5333, 0.0
    %5374 = vst.msk [vmem:[#allocation2 + $0x150] sm:$0xff] %vm4782, 0.0
    %5375 = vst.msk [vmem:[#allocation2 + $0x158] sm:$0xff] %vm4782, 0.0
    %5376 = vst.msk [vmem:[#allocation2 + $0x160] sm:$0x3] %vm5333, 0.0
    %5377 = vst.msk [vmem:[#allocation2 + $0x168] sm:$0xff] %vm4782, 0.0
    %5378 = vst.msk [vmem:[#allocation2 + $0x170] sm:$0xff] %vm4782, 0.0
    %5379 = vst.msk [vmem:[#allocation2 + $0x178] sm:$0x3] %vm5333, 0.0
    %5380 = vst.msk [vmem:[#allocation2 + $0x180] sm:$0xff] %vm4782, 0.0
    %5381 = vst.msk [vmem:[#allocation2 + $0x188] sm:$0xff] %vm4782, 0.0
    %5382 = vst.msk [vmem:[#allocation2 + $0x190] sm:$0x3] %vm5333, 0.0
    %5383 = vst.msk [vmem:[#allocation2 + $0x198] sm:$0xff] %vm4782, 0.0
    %5384 = vst.msk [vmem:[#allocation2 + $0x1a0] sm:$0xff] %vm4782, 0.0
    %5385 = vst.msk [vmem:[#allocation2 + $0x1a8] sm:$0x3] %vm5333, 0.0
    %5386 = vst.msk [vmem:[#allocation2 + $0x1b0] sm:$0xff] %vm4782, 0.0
    %5387 = vst.msk [vmem:[#allocation2 + $0x1b8] sm:$0xff] %vm4782, 0.0
    %5388 = vst.msk [vmem:[#allocation2 + $0x1c0] sm:$0x3] %vm5333, 0.0
    %5389 = vst.msk [vmem:[#allocation2 + $0x1c8] sm:$0xff] %vm4782, 0.0
    %5390 = vst.msk [vmem:[#allocation2 + $0x1d0] sm:$0xff] %vm4782, 0.0
    %5391 = vst.msk [vmem:[#allocation2 + $0x1d8] sm:$0x3] %vm5333, 0.0
    %5392 = vst.msk [vmem:[#allocation2 + $0x1e0] sm:$0xff] %vm4782, 0.0
    %5393 = vst.msk [vmem:[#allocation2 + $0x1e8] sm:$0xff] %vm4782, 0.0
    %5394 = vst.msk [vmem:[#allocation2 + $0x1f0] sm:$0x3] %vm5333, 0.0
    %5395 = vst.msk [vmem:[#allocation2 + $0x1f8] sm:$0xff] %vm4782, 0.0
    %5396 = vst.msk [vmem:[#allocation2 + $0x200] sm:$0xff] %vm4782, 0.0
    %5397 = vst.msk [vmem:[#allocation2 + $0x208] sm:$0x3] %vm5333, 0.0
    %5398 = vst.msk [vmem:[#allocation2 + $0x210] sm:$0xff] %vm4782, 0.0
    %5399 = vst.msk [vmem:[#allocation2 + $0x218] sm:$0xff] %vm4782, 0.0
    %5400 = vst.msk [vmem:[#allocation2 + $0x220] sm:$0x3] %vm5333, 0.0
    %5401 = vst.msk [vmem:[#allocation2 + $0x228] sm:$0xff] %vm4782, 0.0
    %5402 = vst.msk [vmem:[#allocation2 + $0x230] sm:$0xff] %vm4782, 0.0
    %5403 = vst.msk [vmem:[#allocation2 + $0x238] sm:$0x3] %vm5333, 0.0
    %5404 = vst.msk [vmem:[#allocation2 + $0x240] sm:$0xff] %vm4782, 0.0
    %5405 = vst.msk [vmem:[#allocation2 + $0x248] sm:$0xff] %vm4782, 0.0
    %5406 = vst.msk [vmem:[#allocation2 + $0x250] sm:$0x3] %vm5333, 0.0
    %5407 = vst.msk [vmem:[#allocation2 + $0x258] sm:$0xff] %vm4782, 0.0
    %5408 = vst.msk [vmem:[#allocation2 + $0x260] sm:$0xff] %vm4782, 0.0
    %5409 = vst.msk [vmem:[#allocation2 + $0x268] sm:$0x3] %vm5333, 0.0
    %5410 = vst.msk [vmem:[#allocation2 + $0x270] sm:$0xff] %vm4782, 0.0
    %5411 = vst.msk [vmem:[#allocation2 + $0x278] sm:$0xff] %vm4782, 0.0
    %5412 = vst.msk [vmem:[#allocation2 + $0x280] sm:$0x3] %vm5333, 0.0
    %5413 = vst.msk [vmem:[#allocation2 + $0x288] sm:$0xff] %vm4782, 0.0
    %5414 = vst.msk [vmem:[#allocation2 + $0x290] sm:$0xff] %vm4782, 0.0
    %5415 = vst.msk [vmem:[#allocation2 + $0x298] sm:$0x3] %vm5333, 0.0
    %5416 = vst.msk [vmem:[#allocation2 + $0x2a0] sm:$0xff] %vm4782, 0.0
    %5417 = vst.msk [vmem:[#allocation2 + $0x2a8] sm:$0xff] %vm4782, 0.0
    %5418 = vst.msk [vmem:[#allocation2 + $0x2b0] sm:$0x3] %vm5333, 0.0
    %5419 = vst.msk [vmem:[#allocation2 + $0x2b8] sm:$0xff] %vm4782, 0.0
    %5420 = vst.msk [vmem:[#allocation2 + $0x2c0] sm:$0xff] %vm4782, 0.0
    %5421 = vst.msk [vmem:[#allocation2 + $0x2c8] sm:$0x3] %vm5333, 0.0
    %5422 = vst.msk [vmem:[#allocation2 + $0x2d0] sm:$0xff] %vm4782, 0.0
    %5423 = vst.msk [vmem:[#allocation2 + $0x2d8] sm:$0xff] %vm4782, 0.0
    %5424 = vst.msk [vmem:[#allocation2 + $0x2e0] sm:$0x3] %vm5333, 0.0
    %5425 = vst.msk [vmem:[#allocation2 + $0x2e8] sm:$0xff] %vm4782, 0.0
    %5426 = vst.msk [vmem:[#allocation2 + $0x2f0] sm:$0xff] %vm4782, 0.0
    %5427 = vst.msk [vmem:[#allocation2 + $0x2f8] sm:$0x3] %vm5333, 0.0
    %5428 = vst.msk [vmem:[#allocation2 + $0x300] sm:$0xff] %vm4782, 0.0
    %5429 = vst.msk [vmem:[#allocation2 + $0x308] sm:$0xff] %vm4782, 0.0
    %5430 = vst.msk [vmem:[#allocation2 + $0x310] sm:$0x3] %vm5333, 0.0
    %5431 = vst.msk [vmem:[#allocation2 + $0x318] sm:$0xff] %vm4782, 0.0
    %5432 = vst.msk [vmem:[#allocation2 + $0x320] sm:$0xff] %vm4782, 0.0
    %5433 = vst.msk [vmem:[#allocation2 + $0x328] sm:$0x3] %vm5333, 0.0
    %5434 = vst.msk [vmem:[#allocation2 + $0x330] sm:$0xff] %vm4782, 0.0
    %5435 = vst.msk [vmem:[#allocation2 + $0x338] sm:$0xff] %vm4782, 0.0
    %5436 = vst.msk [vmem:[#allocation2 + $0x340] sm:$0x3] %vm5333, 0.0
    %5437 = vst.msk [vmem:[#allocation2 + $0x348] sm:$0xff] %vm4782, 0.0
    %5438 = vst.msk [vmem:[#allocation2 + $0x350] sm:$0xff] %vm4782, 0.0
    %5439 = vst.msk [vmem:[#allocation2 + $0x358] sm:$0x3] %vm5333, 0.0
    %s5440 = scalar_lea.vmem [#allocation2], 24
    %5441 = vst.msk [vmem:[%s5440 + $0x1] sm:$0xff] %vm4782, %v5267
    %5442 = vst.msk [vmem:[%s5440 + $0x9] sm:$0xff] %vm4782, %v5268
    %5443 = vst.msk [vmem:[%s5440 + $0x19] sm:$0xff] %vm4782, %v5269
    %5444 = vst.msk [vmem:[%s5440 + $0x21] sm:$0xff] %vm4782, %v5270
    %5445 = vst.msk [vmem:[%s5440 + $0x31] sm:$0xff] %vm4782, %v5271
    %5446 = vst.msk [vmem:[%s5440 + $0x39] sm:$0xff] %vm4782, %v5272
    %5447 = vst.msk [vmem:[%s5440 + $0x49] sm:$0xff] %vm4782, %v5273
    %5448 = vst.msk [vmem:[%s5440 + $0x51] sm:$0xff] %vm4782, %v5274
    %5449 = vst.msk [vmem:[%s5440 + $0x61] sm:$0xff] %vm4782, %v5275
    %5450 = vst.msk [vmem:[%s5440 + $0x69] sm:$0xff] %vm4782, %v5276
    %5451 = vst.msk [vmem:[%s5440 + $0x79] sm:$0xff] %vm4782, %v5277
    %5452 = vst.msk [vmem:[%s5440 + $0x81] sm:$0xff] %vm4782, %v5278
    %5453 = vst.msk [vmem:[%s5440 + $0x91] sm:$0xff] %vm4782, %v5279
    %5454 = vst.msk [vmem:[%s5440 + $0x99] sm:$0xff] %vm4782, %v5280
    %5455 = vst.msk [vmem:[%s5440 + $0xa9] sm:$0xff] %vm4782, %v5281
    %5456 = vst.msk [vmem:[%s5440 + $0xb1] sm:$0xff] %vm4782, %v5282
    %5457 = vst.msk [vmem:[%s5440 + $0xc1] sm:$0xff] %vm4782, %v5283
    %5458 = vst.msk [vmem:[%s5440 + $0xc9] sm:$0xff] %vm4782, %v5284
    %5459 = vst.msk [vmem:[%s5440 + $0xd9] sm:$0xff] %vm4782, %v5285
    %5460 = vst.msk [vmem:[%s5440 + $0xe1] sm:$0xff] %vm4782, %v5286
    %5461 = vst.msk [vmem:[%s5440 + $0xf1] sm:$0xff] %vm4782, %v5287
    %5462 = vst.msk [vmem:[%s5440 + $0xf9] sm:$0xff] %vm4782, %v5288
    %5463 = vst.msk [vmem:[%s5440 + $0x109] sm:$0xff] %vm4782, %v5289
    %5464 = vst.msk [vmem:[%s5440 + $0x111] sm:$0xff] %vm4782, %v5290
    %5465 = vst.msk [vmem:[%s5440 + $0x121] sm:$0xff] %vm4782, %v5291
    %5466 = vst.msk [vmem:[%s5440 + $0x129] sm:$0xff] %vm4782, %v5292
    %5467 = vst.msk [vmem:[%s5440 + $0x139] sm:$0xff] %vm4782, %v5293
    %5468 = vst.msk [vmem:[%s5440 + $0x141] sm:$0xff] %vm4782, %v5294
    %5469 = vst.msk [vmem:[%s5440 + $0x151] sm:$0xff] %vm4782, %v5295
    %5470 = vst.msk [vmem:[%s5440 + $0x159] sm:$0xff] %vm4782, %v5296
    %5471 = vst.msk [vmem:[%s5440 + $0x169] sm:$0xff] %vm4782, %v5297
    %5472 = vst.msk [vmem:[%s5440 + $0x171] sm:$0xff] %vm4782, %v5298
    %5473 = vst.msk [vmem:[%s5440 + $0x1b1] sm:$0xff] %vm4782, %v5299
    %5474 = vst.msk [vmem:[%s5440 + $0x1b9] sm:$0xff] %vm4782, %v5300
    %5475 = vst.msk [vmem:[%s5440 + $0x1c9] sm:$0xff] %vm4782, %v5301
    %5476 = vst.msk [vmem:[%s5440 + $0x1d1] sm:$0xff] %vm4782, %v5302
    %5477 = vst.msk [vmem:[%s5440 + $0x1e1] sm:$0xff] %vm4782, %v5303
    %5478 = vst.msk [vmem:[%s5440 + $0x1e9] sm:$0xff] %vm4782, %v5304
    %5479 = vst.msk [vmem:[%s5440 + $0x1f9] sm:$0xff] %vm4782, %v5305
    %5480 = vst.msk [vmem:[%s5440 + $0x201] sm:$0xff] %vm4782, %v5306
    %5481 = vst.msk [vmem:[%s5440 + $0x211] sm:$0xff] %vm4782, %v5307
    %5482 = vst.msk [vmem:[%s5440 + $0x219] sm:$0xff] %vm4782, %v5308
    %5483 = vst.msk [vmem:[%s5440 + $0x229] sm:$0xff] %vm4782, %v5309
    %5484 = vst.msk [vmem:[%s5440 + $0x231] sm:$0xff] %vm4782, %v5310
    %5485 = vst.msk [vmem:[%s5440 + $0x241] sm:$0xff] %vm4782, %v5311
    %5486 = vst.msk [vmem:[%s5440 + $0x249] sm:$0xff] %vm4782, %v5312
    %5487 = vst.msk [vmem:[%s5440 + $0x259] sm:$0xff] %vm4782, %v5313
    %5488 = vst.msk [vmem:[%s5440 + $0x261] sm:$0xff] %vm4782, %v5314
    %5489 = vst.msk [vmem:[%s5440 + $0x271] sm:$0xff] %vm4782, %v5315
    %5490 = vst.msk [vmem:[%s5440 + $0x279] sm:$0xff] %vm4782, %v5316
    %5491 = vst.msk [vmem:[%s5440 + $0x289] sm:$0xff] %vm4782, %v5317
    %5492 = vst.msk [vmem:[%s5440 + $0x291] sm:$0xff] %vm4782, %v5318
    %5493 = vst.msk [vmem:[%s5440 + $0x2a1] sm:$0xff] %vm4782, %v5319
    %5494 = vst.msk [vmem:[%s5440 + $0x2a9] sm:$0xff] %vm4782, %v5320
    %5495 = vst.msk [vmem:[%s5440 + $0x2b9] sm:$0xff] %vm4782, %v5321
    %5496 = vst.msk [vmem:[%s5440 + $0x2c1] sm:$0xff] %vm4782, %v5322
    %5497 = vst.msk [vmem:[%s5440 + $0x2d1] sm:$0xff] %vm4782, %v5323
    %5498 = vst.msk [vmem:[%s5440 + $0x2d9] sm:$0xff] %vm4782, %v5324
    %5499 = vst.msk [vmem:[%s5440 + $0x2e9] sm:$0xff] %vm4782, %v5325
    %5500 = vst.msk [vmem:[%s5440 + $0x2f1] sm:$0xff] %vm4782, %v5326
    %5501 = vst.msk [vmem:[%s5440 + $0x301] sm:$0xff] %vm4782, %v5327
    %5502 = vst.msk [vmem:[%s5440 + $0x309] sm:$0xff] %vm4782, %v5328
    %5503 = vst.msk [vmem:[%s5440 + $0x319] sm:$0xff] %vm4782, %v5329
    %5504 = vst.msk [vmem:[%s5440 + $0x321] sm:$0xff] %vm4782, %v5330
    %v5505 = vld [vmem:[#allocation2] sm:$0xff]
    %v5506 = vld [vmem:[#allocation2 + $0x8] sm:$0xff]
    %v5507 = vld [vmem:[#allocation2 + $0x18] sm:$0xff]
    %v5508 = vld [vmem:[#allocation2 + $0x20] sm:$0xff]
    %v5509 = vld [vmem:[#allocation2 + $0x30] sm:$0xff]
    %v5510 = vld [vmem:[#allocation2 + $0x38] sm:$0xff]
    %v5511 = vld [vmem:[#allocation2 + $0x48] sm:$0xff]
    %v5512 = vld [vmem:[#allocation2 + $0x50] sm:$0xff]
    %v5513 = vld [vmem:[#allocation2 + $0x60] sm:$0xff]
    %v5514 = vld [vmem:[#allocation2 + $0x68] sm:$0xff]
    %v5515 = vld [vmem:[#allocation2 + $0x78] sm:$0xff]
    %v5516 = vld [vmem:[#allocation2 + $0x80] sm:$0xff]
    %v5517 = vld [vmem:[#allocation2 + $0x90] sm:$0xff]
    %v5518 = vld [vmem:[#allocation2 + $0x98] sm:$0xff]
    %v5519 = vld [vmem:[#allocation2 + $0xa8] sm:$0xff]
    %v5520 = vld [vmem:[#allocation2 + $0xb0] sm:$0xff]
    %v5521 = vld [vmem:[#allocation2 + $0xc0] sm:$0xff]
    %v5522 = vld [vmem:[#allocation2 + $0xc8] sm:$0xff]
    %v5523 = vld [vmem:[#allocation2 + $0xd8] sm:$0xff]
    %v5524 = vld [vmem:[#allocation2 + $0xe0] sm:$0xff]
    %v5525 = vld [vmem:[#allocation2 + $0xf0] sm:$0xff]
    %v5526 = vld [vmem:[#allocation2 + $0xf8] sm:$0xff]
    %v5527 = vld [vmem:[#allocation2 + $0x108] sm:$0xff]
    %v5528 = vld [vmem:[#allocation2 + $0x110] sm:$0xff]
    %v5529 = vld [vmem:[#allocation2 + $0x120] sm:$0xff]
    %v5530 = vld [vmem:[#allocation2 + $0x128] sm:$0xff]
    %v5531 = vld [vmem:[#allocation2 + $0x138] sm:$0xff]
    %v5532 = vld [vmem:[#allocation2 + $0x140] sm:$0xff]
    %v5533 = vld [vmem:[#allocation2 + $0x150] sm:$0xff]
    %v5534 = vld [vmem:[#allocation2 + $0x158] sm:$0xff]
    %v5535 = vld [vmem:[#allocation2 + $0x168] sm:$0xff]
    %v5536 = vld [vmem:[#allocation2 + $0x170] sm:$0xff]
    %v5537 = vld [vmem:[#allocation2 + $0x1b0] sm:$0xff]
    %v5538 = vld [vmem:[#allocation2 + $0x1b8] sm:$0xff]
    %v5539 = vld [vmem:[#allocation2 + $0x1c8] sm:$0xff]
    %v5540 = vld [vmem:[#allocation2 + $0x1d0] sm:$0xff]
    %v5541 = vld [vmem:[#allocation2 + $0x1e0] sm:$0xff]
    %v5542 = vld [vmem:[#allocation2 + $0x1e8] sm:$0xff]
    %v5543 = vld [vmem:[#allocation2 + $0x1f8] sm:$0xff]
    %v5544 = vld [vmem:[#allocation2 + $0x200] sm:$0xff]
    %v5545 = vld [vmem:[#allocation2 + $0x210] sm:$0xff]
    %v5546 = vld [vmem:[#allocation2 + $0x218] sm:$0xff]
    %v5547 = vld [vmem:[#allocation2 + $0x228] sm:$0xff]
    %v5548 = vld [vmem:[#allocation2 + $0x230] sm:$0xff]
    %v5549 = vld [vmem:[#allocation2 + $0x240] sm:$0xff]
    %v5550 = vld [vmem:[#allocation2 + $0x248] sm:$0xff]
    %v5551 = vld [vmem:[#allocation2 + $0x258] sm:$0xff]
    %v5552 = vld [vmem:[#allocation2 + $0x260] sm:$0xff]
    %v5553 = vld [vmem:[#allocation2 + $0x270] sm:$0xff]
    %v5554 = vld [vmem:[#allocation2 + $0x278] sm:$0xff]
    %v5555 = vld [vmem:[#allocation2 + $0x288] sm:$0xff]
    %v5556 = vld [vmem:[#allocation2 + $0x290] sm:$0xff]
    %v5557 = vld [vmem:[#allocation2 + $0x2a0] sm:$0xff]
    %v5558 = vld [vmem:[#allocation2 + $0x2a8] sm:$0xff]
    %v5559 = vld [vmem:[#allocation2 + $0x2b8] sm:$0xff]
    %v5560 = vld [vmem:[#allocation2 + $0x2c0] sm:$0xff]
    %v5561 = vld [vmem:[#allocation2 + $0x2d0] sm:$0xff]
    %v5562 = vld [vmem:[#allocation2 + $0x2d8] sm:$0xff]
    %v5563 = vld [vmem:[#allocation2 + $0x2e8] sm:$0xff]
    %v5564 = vld [vmem:[#allocation2 + $0x2f0] sm:$0xff]
    %v5565 = vld [vmem:[#allocation2 + $0x300] sm:$0xff]
    %v5566 = vld [vmem:[#allocation2 + $0x308] sm:$0xff]
    %v5567 = vld [vmem:[#allocation2 + $0x318] sm:$0xff]
    %v5568 = vld [vmem:[#allocation2 + $0x320] sm:$0xff]
    %v5569 = vld [vmem:[%s5] sm:$0xff]
    %v5570 = vld [vmem:[%s5 + $0x8] sm:$0xff]
    %v5571 = vld [vmem:[#allocation2 + $0x1] sm:$0xff]
    %v5572 = vld [vmem:[#allocation2 + $0x9] sm:$0xff]
    %v5573 = vld [vmem:[#allocation2 + $0x19] sm:$0xff]
    %v5574 = vld [vmem:[#allocation2 + $0x21] sm:$0xff]
    %v5575 = vld [vmem:[#allocation2 + $0x31] sm:$0xff]
    %v5576 = vld [vmem:[#allocation2 + $0x39] sm:$0xff]
    %v5577 = vld [vmem:[#allocation2 + $0x49] sm:$0xff]
    %v5578 = vld [vmem:[#allocation2 + $0x51] sm:$0xff]
    %v5579 = vld [vmem:[#allocation2 + $0x61] sm:$0xff]
    %v5580 = vld [vmem:[#allocation2 + $0x69] sm:$0xff]
    %v5581 = vld [vmem:[#allocation2 + $0x79] sm:$0xff]
    %v5582 = vld [vmem:[#allocation2 + $0x81] sm:$0xff]
    %v5583 = vld [vmem:[#allocation2 + $0x91] sm:$0xff]
    %v5584 = vld [vmem:[#allocation2 + $0x99] sm:$0xff]
    %v5585 = vld [vmem:[#allocation2 + $0xa9] sm:$0xff]
    %v5586 = vld [vmem:[#allocation2 + $0xb1] sm:$0xff]
    %v5587 = vld [vmem:[#allocation2 + $0xc1] sm:$0xff]
    %v5588 = vld [vmem:[#allocation2 + $0xc9] sm:$0xff]
    %v5589 = vld [vmem:[#allocation2 + $0xd9] sm:$0xff]
    %v5590 = vld [vmem:[#allocation2 + $0xe1] sm:$0xff]
    %v5591 = vld [vmem:[#allocation2 + $0xf1] sm:$0xff]
    %v5592 = vld [vmem:[#allocation2 + $0xf9] sm:$0xff]
    %v5593 = vld [vmem:[#allocation2 + $0x109] sm:$0xff]
    %v5594 = vld [vmem:[#allocation2 + $0x111] sm:$0xff]
    %v5595 = vld [vmem:[#allocation2 + $0x121] sm:$0xff]
    %v5596 = vld [vmem:[#allocation2 + $0x129] sm:$0xff]
    %v5597 = vld [vmem:[#allocation2 + $0x139] sm:$0xff]
    %v5598 = vld [vmem:[#allocation2 + $0x141] sm:$0xff]
    %v5599 = vld [vmem:[#allocation2 + $0x151] sm:$0xff]
    %v5600 = vld [vmem:[#allocation2 + $0x159] sm:$0xff]
    %v5601 = vld [vmem:[#allocation2 + $0x169] sm:$0xff]
    %v5602 = vld [vmem:[#allocation2 + $0x171] sm:$0xff]
    %v5603 = vld [vmem:[#allocation2 + $0x1b1] sm:$0xff]
    %v5604 = vld [vmem:[#allocation2 + $0x1b9] sm:$0xff]
    %v5605 = vld [vmem:[#allocation2 + $0x1c9] sm:$0xff]
    %v5606 = vld [vmem:[#allocation2 + $0x1d1] sm:$0xff]
    %v5607 = vld [vmem:[#allocation2 + $0x1e1] sm:$0xff]
    %v5608 = vld [vmem:[#allocation2 + $0x1e9] sm:$0xff]
    %v5609 = vld [vmem:[#allocation2 + $0x1f9] sm:$0xff]
    %v5610 = vld [vmem:[#allocation2 + $0x201] sm:$0xff]
    %v5611 = vld [vmem:[#allocation2 + $0x211] sm:$0xff]
    %v5612 = vld [vmem:[#allocation2 + $0x219] sm:$0xff]
    %v5613 = vld [vmem:[#allocation2 + $0x229] sm:$0xff]
    %v5614 = vld [vmem:[#allocation2 + $0x231] sm:$0xff]
    %v5615 = vld [vmem:[#allocation2 + $0x241] sm:$0xff]
    %v5616 = vld [vmem:[#allocation2 + $0x249] sm:$0xff]
    %v5617 = vld [vmem:[#allocation2 + $0x259] sm:$0xff]
    %v5618 = vld [vmem:[#allocation2 + $0x261] sm:$0xff]
    %v5619 = vld [vmem:[#allocation2 + $0x271] sm:$0xff]
    %v5620 = vld [vmem:[#allocation2 + $0x279] sm:$0xff]
    %v5621 = vld [vmem:[#allocation2 + $0x289] sm:$0xff]
    %v5622 = vld [vmem:[#allocation2 + $0x291] sm:$0xff]
    %v5623 = vld [vmem:[#allocation2 + $0x2a1] sm:$0xff]
    %v5624 = vld [vmem:[#allocation2 + $0x2a9] sm:$0xff]
    %v5625 = vld [vmem:[#allocation2 + $0x2b9] sm:$0xff]
    %v5626 = vld [vmem:[#allocation2 + $0x2c1] sm:$0xff]
    %v5627 = vld [vmem:[#allocation2 + $0x2d1] sm:$0xff]
    %v5628 = vld [vmem:[#allocation2 + $0x2d9] sm:$0xff]
    %v5629 = vld [vmem:[#allocation2 + $0x2e9] sm:$0xff]
    %v5630 = vld [vmem:[#allocation2 + $0x2f1] sm:$0xff]
    %v5631 = vld [vmem:[#allocation2 + $0x301] sm:$0xff]
    %v5632 = vld [vmem:[#allocation2 + $0x309] sm:$0xff]
    %v5633 = vld [vmem:[#allocation2 + $0x319] sm:$0xff]
    %v5634 = vld [vmem:[#allocation2 + $0x321] sm:$0xff]
    %s5635 = scalar_lea.vmem %s5, 16
    %v5636 = vld [vmem:[%s5635] sm:$0xff]
    %v5637 = vld [vmem:[%s5635 + $0x8] sm:$0xff]
    %v5639 = vsel %vm4782, %v5571, 0
    %v5642 = vsel %vm4782, %v5572, 0
    %v5645 = vsel %vm4782, %v5573, 0
    %v5648 = vsel %vm4782, %v5574, 0
    %v5651 = vsel %vm4782, %v5575, 0
    %v5654 = vsel %vm4782, %v5576, 0
    %v5657 = vsel %vm4782, %v5577, 0
    %v5660 = vsel %vm4782, %v5578, 0
    %v5663 = vsel %vm4782, %v5579, 0
    %v5666 = vsel %vm4782, %v5580, 0
    %v5669 = vsel %vm4782, %v5581, 0
    %v5672 = vsel %vm4782, %v5582, 0
    %v5675 = vsel %vm4782, %v5583, 0
    %v5678 = vsel %vm4782, %v5584, 0
    %v5681 = vsel %vm4782, %v5585, 0
    %v5684 = vsel %vm4782, %v5586, 0
    %v5687 = vsel %vm4782, %v5587, 0
    %v5690 = vsel %vm4782, %v5588, 0
    %v5693 = vsel %vm4782, %v5589, 0
    %v5696 = vsel %vm4782, %v5590, 0
    %v5699 = vsel %vm4782, %v5591, 0
    %v5702 = vsel %vm4782, %v5592, 0
    %v5705 = vsel %vm4782, %v5593, 0
    %v5708 = vsel %vm4782, %v5594, 0
    %v5711 = vsel %vm4782, %v5595, 0
    %v5714 = vsel %vm4782, %v5596, 0
    %v5717 = vsel %vm4782, %v5597, 0
    %v5720 = vsel %vm4782, %v5598, 0
    %v5723 = vsel %vm4782, %v5599, 0
    %v5726 = vsel %vm4782, %v5600, 0
    %v5729 = vsel %vm4782, %v5601, 0
    %v5732 = vsel %vm4782, %v5602, 0
    %v5735 = vsel %vm4782, %v5603, 0
    %v5738 = vsel %vm4782, %v5604, 0
    %v5741 = vsel %vm4782, %v5605, 0
    %v5744 = vsel %vm4782, %v5606, 0
    %v5747 = vsel %vm4782, %v5607, 0
    %v5750 = vsel %vm4782, %v5608, 0
    %v5753 = vsel %vm4782, %v5609, 0
    %v5756 = vsel %vm4782, %v5610, 0
    %v5759 = vsel %vm4782, %v5611, 0
    %v5762 = vsel %vm4782, %v5612, 0
    %v5765 = vsel %vm4782, %v5613, 0
    %v5768 = vsel %vm4782, %v5614, 0
    %v5771 = vsel %vm4782, %v5615, 0
    %v5774 = vsel %vm4782, %v5616, 0
    %v5777 = vsel %vm4782, %v5617, 0
    %v5780 = vsel %vm4782, %v5618, 0
    %v5783 = vsel %vm4782, %v5619, 0
    %v5786 = vsel %vm4782, %v5620, 0
    %v5789 = vsel %vm4782, %v5621, 0
    %v5792 = vsel %vm4782, %v5622, 0
    %v5795 = vsel %vm4782, %v5623, 0
    %v5798 = vsel %vm4782, %v5624, 0
    %v5801 = vsel %vm4782, %v5625, 0
    %v5804 = vsel %vm4782, %v5626, 0
    %v5807 = vsel %vm4782, %v5627, 0
    %v5810 = vsel %vm4782, %v5628, 0
    %v5813 = vsel %vm4782, %v5629, 0
    %v5816 = vsel %vm4782, %v5630, 0
    %v5819 = vsel %vm4782, %v5631, 0
    %v5822 = vsel %vm4782, %v5632, 0
    %v5825 = vsel %vm4782, %v5633, 0
    %v5828 = vsel %vm4782, %v5634, 0
    %5830 = vmatpush.msra.mxu0 0.0
    %5831 = vmatpush.msra.mxu0 0.0
    %5832 = vmatpush.msra.mxu0 0.0
    %5833 = vmatpush.msra.mxu0 0.0
    %5834 = vmatpush.msra.mxu0 0.0
    %5835 = vmatpush.msra.mxu0 0.0
    %5836 = vmatpush.msra.mxu0 0.0
    %5837 = vmatpush.msra.mxu0 0.0
    %5838 = vmatpush.msra.mxu0 0.0
    %5839 = vmatpush.msra.mxu0 0.0
    %5840 = vmatpush.msra.mxu0 0.0
    %5841 = vmatpush.msra.mxu0 0.0
    %5842 = vmatpush.msra.mxu0 0.0
    %5843 = vmatpush.msra.mxu0 0.0
    %5844 = vmatpush.msra.mxu0 %v5637
    %5845 = vmatpush.msra.mxu0 %v5636
    %5846 = vmatmul.f32.gmra.mxu0 %v5639
    %v5847 = vpop.f32.mrf.mxu0
    %v5848 = vadd.f32 0.0, %v5847
    %5849 = vmatmul.f32.gmra.mxu0 %v5642
    %v5850 = vpop.f32.mrf.mxu0
    %v5851 = vadd.f32 0.0, %v5850
    %5852 = vmatmul.f32.gmra.mxu0 %v5645
    %v5853 = vpop.f32.mrf.mxu0
    %v5854 = vadd.f32 0.0, %v5853
    %5855 = vmatmul.f32.gmra.mxu0 %v5648
    %v5856 = vpop.f32.mrf.mxu0
    %v5857 = vadd.f32 0.0, %v5856
    %5858 = vmatmul.f32.gmra.mxu0 %v5651
    %v5859 = vpop.f32.mrf.mxu0
    %v5860 = vadd.f32 0.0, %v5859
    %5861 = vmatmul.f32.gmra.mxu0 %v5654
    %v5862 = vpop.f32.mrf.mxu0
    %v5863 = vadd.f32 0.0, %v5862
    %5864 = vmatmul.f32.gmra.mxu0 %v5657
    %v5865 = vpop.f32.mrf.mxu0
    %v5866 = vadd.f32 0.0, %v5865
    %5867 = vmatmul.f32.gmra.mxu0 %v5660
    %v5868 = vpop.f32.mrf.mxu0
    %v5869 = vadd.f32 0.0, %v5868
    %5870 = vmatmul.f32.gmra.mxu0 %v5663
    %v5871 = vpop.f32.mrf.mxu0
    %v5872 = vadd.f32 0.0, %v5871
    %5873 = vmatmul.f32.gmra.mxu0 %v5666
    %v5874 = vpop.f32.mrf.mxu0
    %v5875 = vadd.f32 0.0, %v5874
    %5876 = vmatmul.f32.gmra.mxu0 %v5669
    %v5877 = vpop.f32.mrf.mxu0
    %v5878 = vadd.f32 0.0, %v5877
    %5879 = vmatmul.f32.gmra.mxu0 %v5672
    %v5880 = vpop.f32.mrf.mxu0
    %v5881 = vadd.f32 0.0, %v5880
    %5882 = vmatmul.f32.gmra.mxu0 %v5675
    %v5883 = vpop.f32.mrf.mxu0
    %v5884 = vadd.f32 0.0, %v5883
    %5885 = vmatmul.f32.gmra.mxu0 %v5678
    %v5886 = vpop.f32.mrf.mxu0
    %v5887 = vadd.f32 0.0, %v5886
    %5888 = vmatmul.f32.gmra.mxu0 %v5681
    %v5889 = vpop.f32.mrf.mxu0
    %v5890 = vadd.f32 0.0, %v5889
    %5891 = vmatmul.f32.gmra.mxu0 %v5684
    %v5892 = vpop.f32.mrf.mxu0
    %v5893 = vadd.f32 0.0, %v5892
    %5894 = vmatmul.f32.gmra.mxu0 %v5687
    %v5895 = vpop.f32.mrf.mxu0
    %v5896 = vadd.f32 0.0, %v5895
    %5897 = vmatmul.f32.gmra.mxu0 %v5690
    %v5898 = vpop.f32.mrf.mxu0
    %v5899 = vadd.f32 0.0, %v5898
    %5900 = vmatmul.f32.gmra.mxu0 %v5693
    %v5901 = vpop.f32.mrf.mxu0
    %v5902 = vadd.f32 0.0, %v5901
    %5903 = vmatmul.f32.gmra.mxu0 %v5696
    %v5904 = vpop.f32.mrf.mxu0
    %v5905 = vadd.f32 0.0, %v5904
    %5906 = vmatmul.f32.gmra.mxu0 %v5699
    %v5907 = vpop.f32.mrf.mxu0
    %v5908 = vadd.f32 0.0, %v5907
    %5909 = vmatmul.f32.gmra.mxu0 %v5702
    %v5910 = vpop.f32.mrf.mxu0
    %v5911 = vadd.f32 0.0, %v5910
    %5912 = vmatmul.f32.gmra.mxu0 %v5705
    %v5913 = vpop.f32.mrf.mxu0
    %v5914 = vadd.f32 0.0, %v5913
    %5915 = vmatmul.f32.gmra.mxu0 %v5708
    %v5916 = vpop.f32.mrf.mxu0
    %v5917 = vadd.f32 0.0, %v5916
    %5918 = vmatmul.f32.gmra.mxu0 %v5711
    %v5919 = vpop.f32.mrf.mxu0
    %v5920 = vadd.f32 0.0, %v5919
    %5921 = vmatmul.f32.gmra.mxu0 %v5714
    %v5922 = vpop.f32.mrf.mxu0
    %v5923 = vadd.f32 0.0, %v5922
    %5924 = vmatmul.f32.gmra.mxu0 %v5717
    %v5925 = vpop.f32.mrf.mxu0
    %v5926 = vadd.f32 0.0, %v5925
    %5927 = vmatmul.f32.gmra.mxu0 %v5720
    %v5928 = vpop.f32.mrf.mxu0
    %v5929 = vadd.f32 0.0, %v5928
    %5930 = vmatmul.f32.gmra.mxu0 %v5723
    %v5931 = vpop.f32.mrf.mxu0
    %v5932 = vadd.f32 0.0, %v5931
    %5933 = vmatmul.f32.gmra.mxu0 %v5726
    %v5934 = vpop.f32.mrf.mxu0
    %v5935 = vadd.f32 0.0, %v5934
    %5936 = vmatmul.f32.gmra.mxu0 %v5729
    %v5937 = vpop.f32.mrf.mxu0
    %v5938 = vadd.f32 0.0, %v5937
    %5939 = vmatmul.f32.gmra.mxu0 %v5732
    %v5940 = vpop.f32.mrf.mxu0
    %v5941 = vadd.f32 0.0, %v5940
    %5942 = vmatmul.f32.gmra.mxu0 %v5735
    %v5943 = vpop.f32.mrf.mxu0
    %v5944 = vadd.f32 0.0, %v5943
    %5945 = vmatmul.f32.gmra.mxu0 %v5738
    %v5946 = vpop.f32.mrf.mxu0
    %v5947 = vadd.f32 0.0, %v5946
    %5948 = vmatmul.f32.gmra.mxu0 %v5741
    %v5949 = vpop.f32.mrf.mxu0
    %v5950 = vadd.f32 0.0, %v5949
    %5951 = vmatmul.f32.gmra.mxu0 %v5744
    %v5952 = vpop.f32.mrf.mxu0
    %v5953 = vadd.f32 0.0, %v5952
    %5954 = vmatmul.f32.gmra.mxu0 %v5747
    %v5955 = vpop.f32.mrf.mxu0
    %v5956 = vadd.f32 0.0, %v5955
    %5957 = vmatmul.f32.gmra.mxu0 %v5750
    %v5958 = vpop.f32.mrf.mxu0
    %v5959 = vadd.f32 0.0, %v5958
    %5960 = vmatmul.f32.gmra.mxu0 %v5753
    %v5961 = vpop.f32.mrf.mxu0
    %v5962 = vadd.f32 0.0, %v5961
    %5963 = vmatmul.f32.gmra.mxu0 %v5756
    %v5964 = vpop.f32.mrf.mxu0
    %v5965 = vadd.f32 0.0, %v5964
    %5966 = vmatmul.f32.gmra.mxu0 %v5759
    %v5967 = vpop.f32.mrf.mxu0
    %v5968 = vadd.f32 0.0, %v5967
    %5969 = vmatmul.f32.gmra.mxu0 %v5762
    %v5970 = vpop.f32.mrf.mxu0
    %v5971 = vadd.f32 0.0, %v5970
    %5972 = vmatmul.f32.gmra.mxu0 %v5765
    %v5973 = vpop.f32.mrf.mxu0
    %v5974 = vadd.f32 0.0, %v5973
    %5975 = vmatmul.f32.gmra.mxu0 %v5768
    %v5976 = vpop.f32.mrf.mxu0
    %v5977 = vadd.f32 0.0, %v5976
    %5978 = vmatmul.f32.gmra.mxu0 %v5771
    %v5979 = vpop.f32.mrf.mxu0
    %v5980 = vadd.f32 0.0, %v5979
    %5981 = vmatmul.f32.gmra.mxu0 %v5774
    %v5982 = vpop.f32.mrf.mxu0
    %v5983 = vadd.f32 0.0, %v5982
    %5984 = vmatmul.f32.gmra.mxu0 %v5777
    %v5985 = vpop.f32.mrf.mxu0
    %v5986 = vadd.f32 0.0, %v5985
    %5987 = vmatmul.f32.gmra.mxu0 %v5780
    %v5988 = vpop.f32.mrf.mxu0
    %v5989 = vadd.f32 0.0, %v5988
    %5990 = vmatmul.f32.gmra.mxu0 %v5783
    %v5991 = vpop.f32.mrf.mxu0
    %v5992 = vadd.f32 0.0, %v5991
    %5993 = vmatmul.f32.gmra.mxu0 %v5786
    %v5994 = vpop.f32.mrf.mxu0
    %v5995 = vadd.f32 0.0, %v5994
    %5996 = vmatmul.f32.gmra.mxu0 %v5789
    %v5997 = vpop.f32.mrf.mxu0
    %v5998 = vadd.f32 0.0, %v5997
    %5999 = vmatmul.f32.gmra.mxu0 %v5792
    %v6000 = vpop.f32.mrf.mxu0
    %v6001 = vadd.f32 0.0, %v6000
    %6002 = vmatmul.f32.gmra.mxu0 %v5795
    %v6003 = vpop.f32.mrf.mxu0
    %v6004 = vadd.f32 0.0, %v6003
    %6005 = vmatmul.f32.gmra.mxu0 %v5798
    %v6006 = vpop.f32.mrf.mxu0
    %v6007 = vadd.f32 0.0, %v6006
    %6008 = vmatmul.f32.gmra.mxu0 %v5801
    %v6009 = vpop.f32.mrf.mxu0
    %v6010 = vadd.f32 0.0, %v6009
    %6011 = vmatmul.f32.gmra.mxu0 %v5804
    %v6012 = vpop.f32.mrf.mxu0
    %v6013 = vadd.f32 0.0, %v6012
    %6014 = vmatmul.f32.gmra.mxu0 %v5807
    %v6015 = vpop.f32.mrf.mxu0
    %v6016 = vadd.f32 0.0, %v6015
    %6017 = vmatmul.f32.gmra.mxu0 %v5810
    %v6018 = vpop.f32.mrf.mxu0
    %v6019 = vadd.f32 0.0, %v6018
    %6020 = vmatmul.f32.gmra.mxu0 %v5813
    %v6021 = vpop.f32.mrf.mxu0
    %v6022 = vadd.f32 0.0, %v6021
    %6023 = vmatmul.f32.gmra.mxu0 %v5816
    %v6024 = vpop.f32.mrf.mxu0
    %v6025 = vadd.f32 0.0, %v6024
    %6026 = vmatmul.f32.gmra.mxu0 %v5819
    %v6027 = vpop.f32.mrf.mxu0
    %v6028 = vadd.f32 0.0, %v6027
    %6029 = vmatmul.f32.gmra.mxu0 %v5822
    %v6030 = vpop.f32.mrf.mxu0
    %v6031 = vadd.f32 0.0, %v6030
    %6032 = vmatmul.f32.gmra.mxu0 %v5825
    %v6033 = vpop.f32.mrf.mxu0
    %v6034 = vadd.f32 0.0, %v6033
    %6035 = vmatmul.f32.gmra.mxu0 %v5828
    %v6036 = vpop.f32.mrf.mxu0
    %v6037 = vadd.f32 0.0, %v6036
    %6038 = vdwg.mxu0
    %v6040 = vsel %vm4782, %v5505, 0
    %v6043 = vsel %vm4782, %v5506, 0
    %v6046 = vsel %vm4782, %v5507, 0
    %v6049 = vsel %vm4782, %v5508, 0
    %v6052 = vsel %vm4782, %v5509, 0
    %v6055 = vsel %vm4782, %v5510, 0
    %v6058 = vsel %vm4782, %v5511, 0
    %v6061 = vsel %vm4782, %v5512, 0
    %v6064 = vsel %vm4782, %v5513, 0
    %v6067 = vsel %vm4782, %v5514, 0
    %v6070 = vsel %vm4782, %v5515, 0
    %v6073 = vsel %vm4782, %v5516, 0
    %v6076 = vsel %vm4782, %v5517, 0
    %v6079 = vsel %vm4782, %v5518, 0
    %v6082 = vsel %vm4782, %v5519, 0
    %v6085 = vsel %vm4782, %v5520, 0
    %v6088 = vsel %vm4782, %v5521, 0
    %v6091 = vsel %vm4782, %v5522, 0
    %v6094 = vsel %vm4782, %v5523, 0
    %v6097 = vsel %vm4782, %v5524, 0
    %v6100 = vsel %vm4782, %v5525, 0
    %v6103 = vsel %vm4782, %v5526, 0
    %v6106 = vsel %vm4782, %v5527, 0
    %v6109 = vsel %vm4782, %v5528, 0
    %v6112 = vsel %vm4782, %v5529, 0
    %v6115 = vsel %vm4782, %v5530, 0
    %v6118 = vsel %vm4782, %v5531, 0
    %v6121 = vsel %vm4782, %v5532, 0
    %v6124 = vsel %vm4782, %v5533, 0
    %v6127 = vsel %vm4782, %v5534, 0
    %v6130 = vsel %vm4782, %v5535, 0
    %v6133 = vsel %vm4782, %v5536, 0
    %v6136 = vsel %vm4782, %v5537, 0
    %v6139 = vsel %vm4782, %v5538, 0
    %v6142 = vsel %vm4782, %v5539, 0
    %v6145 = vsel %vm4782, %v5540, 0
    %v6148 = vsel %vm4782, %v5541, 0
    %v6151 = vsel %vm4782, %v5542, 0
    %v6154 = vsel %vm4782, %v5543, 0
    %v6157 = vsel %vm4782, %v5544, 0
    %v6160 = vsel %vm4782, %v5545, 0
    %v6163 = vsel %vm4782, %v5546, 0
    %v6166 = vsel %vm4782, %v5547, 0
    %v6169 = vsel %vm4782, %v5548, 0
    %v6172 = vsel %vm4782, %v5549, 0
    %v6175 = vsel %vm4782, %v5550, 0
    %v6178 = vsel %vm4782, %v5551, 0
    %v6181 = vsel %vm4782, %v5552, 0
    %v6184 = vsel %vm4782, %v5553, 0
    %v6187 = vsel %vm4782, %v5554, 0
    %v6190 = vsel %vm4782, %v5555, 0
    %v6193 = vsel %vm4782, %v5556, 0
    %v6196 = vsel %vm4782, %v5557, 0
    %v6199 = vsel %vm4782, %v5558, 0
    %v6202 = vsel %vm4782, %v5559, 0
    %v6205 = vsel %vm4782, %v5560, 0
    %v6208 = vsel %vm4782, %v5561, 0
    %v6211 = vsel %vm4782, %v5562, 0
    %v6214 = vsel %vm4782, %v5563, 0
    %v6217 = vsel %vm4782, %v5564, 0
    %v6220 = vsel %vm4782, %v5565, 0
    %v6223 = vsel %vm4782, %v5566, 0
    %v6226 = vsel %vm4782, %v5567, 0
    %v6229 = vsel %vm4782, %v5568, 0
    %6231 = vmatpush.msra.mxu0 0.0
    %6232 = vmatpush.msra.mxu0 0.0
    %6233 = vmatpush.msra.mxu0 0.0
    %6234 = vmatpush.msra.mxu0 0.0
    %6235 = vmatpush.msra.mxu0 0.0
    %6236 = vmatpush.msra.mxu0 0.0
    %6237 = vmatpush.msra.mxu0 0.0
    %6238 = vmatpush.msra.mxu0 0.0
    %6239 = vmatpush.msra.mxu0 0.0
    %6240 = vmatpush.msra.mxu0 0.0
    %6241 = vmatpush.msra.mxu0 0.0
    %6242 = vmatpush.msra.mxu0 0.0
    %6243 = vmatpush.msra.mxu0 0.0
    %6244 = vmatpush.msra.mxu0 0.0
    %6245 = vmatpush.msra.mxu0 %v5570
    %6246 = vmatpush.msra.mxu0 %v5569
    %6247 = vmatmul.f32.gmra.mxu0 %v6040
    %v6248 = vpop.f32.mrf.mxu0
    %v6249 = vadd.f32 %v5848, %v6248
    %6250 = vmatmul.f32.gmra.mxu0 %v6043
    %v6251 = vpop.f32.mrf.mxu0
    %v6252 = vadd.f32 %v5851, %v6251
    %6253 = vmatmul.f32.gmra.mxu0 %v6046
    %v6254 = vpop.f32.mrf.mxu0
    %v6255 = vadd.f32 %v5854, %v6254
    %6256 = vmatmul.f32.gmra.mxu0 %v6049
    %v6257 = vpop.f32.mrf.mxu0
    %v6258 = vadd.f32 %v5857, %v6257
    %6259 = vmatmul.f32.gmra.mxu0 %v6052
    %v6260 = vpop.f32.mrf.mxu0
    %v6261 = vadd.f32 %v5860, %v6260
    %6262 = vmatmul.f32.gmra.mxu0 %v6055
    %v6263 = vpop.f32.mrf.mxu0
    %v6264 = vadd.f32 %v5863, %v6263
    %6265 = vmatmul.f32.gmra.mxu0 %v6058
    %v6266 = vpop.f32.mrf.mxu0
    %v6267 = vadd.f32 %v5866, %v6266
    %6268 = vmatmul.f32.gmra.mxu0 %v6061
    %v6269 = vpop.f32.mrf.mxu0
    %v6270 = vadd.f32 %v5869, %v6269
    %6271 = vmatmul.f32.gmra.mxu0 %v6064
    %v6272 = vpop.f32.mrf.mxu0
    %v6273 = vadd.f32 %v5872, %v6272
    %6274 = vmatmul.f32.gmra.mxu0 %v6067
    %v6275 = vpop.f32.mrf.mxu0
    %v6276 = vadd.f32 %v5875, %v6275
    %6277 = vmatmul.f32.gmra.mxu0 %v6070
    %v6278 = vpop.f32.mrf.mxu0
    %v6279 = vadd.f32 %v5878, %v6278
    %6280 = vmatmul.f32.gmra.mxu0 %v6073
    %v6281 = vpop.f32.mrf.mxu0
    %v6282 = vadd.f32 %v5881, %v6281
    %6283 = vmatmul.f32.gmra.mxu0 %v6076
    %v6284 = vpop.f32.mrf.mxu0
    %v6285 = vadd.f32 %v5884, %v6284
    %6286 = vmatmul.f32.gmra.mxu0 %v6079
    %v6287 = vpop.f32.mrf.mxu0
    %v6288 = vadd.f32 %v5887, %v6287
    %6289 = vmatmul.f32.gmra.mxu0 %v6082
    %v6290 = vpop.f32.mrf.mxu0
    %v6291 = vadd.f32 %v5890, %v6290
    %6292 = vmatmul.f32.gmra.mxu0 %v6085
    %v6293 = vpop.f32.mrf.mxu0
    %v6294 = vadd.f32 %v5893, %v6293
    %6295 = vmatmul.f32.gmra.mxu0 %v6088
    %v6296 = vpop.f32.mrf.mxu0
    %v6297 = vadd.f32 %v5896, %v6296
    %6298 = vmatmul.f32.gmra.mxu0 %v6091
    %v6299 = vpop.f32.mrf.mxu0
    %v6300 = vadd.f32 %v5899, %v6299
    %6301 = vmatmul.f32.gmra.mxu0 %v6094
    %v6302 = vpop.f32.mrf.mxu0
    %v6303 = vadd.f32 %v5902, %v6302
    %6304 = vmatmul.f32.gmra.mxu0 %v6097
    %v6305 = vpop.f32.mrf.mxu0
    %v6306 = vadd.f32 %v5905, %v6305
    %6307 = vmatmul.f32.gmra.mxu0 %v6100
    %v6308 = vpop.f32.mrf.mxu0
    %v6309 = vadd.f32 %v5908, %v6308
    %6310 = vmatmul.f32.gmra.mxu0 %v6103
    %v6311 = vpop.f32.mrf.mxu0
    %v6312 = vadd.f32 %v5911, %v6311
    %6313 = vmatmul.f32.gmra.mxu0 %v6106
    %v6314 = vpop.f32.mrf.mxu0
    %v6315 = vadd.f32 %v5914, %v6314
    %6316 = vmatmul.f32.gmra.mxu0 %v6109
    %v6317 = vpop.f32.mrf.mxu0
    %v6318 = vadd.f32 %v5917, %v6317
    %6319 = vmatmul.f32.gmra.mxu0 %v6112
    %v6320 = vpop.f32.mrf.mxu0
    %v6321 = vadd.f32 %v5920, %v6320
    %6322 = vmatmul.f32.gmra.mxu0 %v6115
    %v6323 = vpop.f32.mrf.mxu0
    %v6324 = vadd.f32 %v5923, %v6323
    %6325 = vmatmul.f32.gmra.mxu0 %v6118
    %v6326 = vpop.f32.mrf.mxu0
    %v6327 = vadd.f32 %v5926, %v6326
    %6328 = vmatmul.f32.gmra.mxu0 %v6121
    %v6329 = vpop.f32.mrf.mxu0
    %v6330 = vadd.f32 %v5929, %v6329
    %6331 = vmatmul.f32.gmra.mxu0 %v6124
    %v6332 = vpop.f32.mrf.mxu0
    %v6333 = vadd.f32 %v5932, %v6332
    %6334 = vmatmul.f32.gmra.mxu0 %v6127
    %v6335 = vpop.f32.mrf.mxu0
    %v6336 = vadd.f32 %v5935, %v6335
    %6337 = vmatmul.f32.gmra.mxu0 %v6130
    %v6338 = vpop.f32.mrf.mxu0
    %v6339 = vadd.f32 %v5938, %v6338
    %6340 = vmatmul.f32.gmra.mxu0 %v6133
    %v6341 = vpop.f32.mrf.mxu0
    %v6342 = vadd.f32 %v5941, %v6341
    %6343 = vmatmul.f32.gmra.mxu0 %v6136
    %v6344 = vpop.f32.mrf.mxu0
    %v6345 = vadd.f32 %v5944, %v6344
    %6346 = vmatmul.f32.gmra.mxu0 %v6139
    %v6347 = vpop.f32.mrf.mxu0
    %v6348 = vadd.f32 %v5947, %v6347
    %6349 = vmatmul.f32.gmra.mxu0 %v6142
    %v6350 = vpop.f32.mrf.mxu0
    %v6351 = vadd.f32 %v5950, %v6350
    %6352 = vmatmul.f32.gmra.mxu0 %v6145
    %v6353 = vpop.f32.mrf.mxu0
    %v6354 = vadd.f32 %v5953, %v6353
    %6355 = vmatmul.f32.gmra.mxu0 %v6148
    %v6356 = vpop.f32.mrf.mxu0
    %v6357 = vadd.f32 %v5956, %v6356
    %6358 = vmatmul.f32.gmra.mxu0 %v6151
    %v6359 = vpop.f32.mrf.mxu0
    %v6360 = vadd.f32 %v5959, %v6359
    %6361 = vmatmul.f32.gmra.mxu0 %v6154
    %v6362 = vpop.f32.mrf.mxu0
    %v6363 = vadd.f32 %v5962, %v6362
    %6364 = vmatmul.f32.gmra.mxu0 %v6157
    %v6365 = vpop.f32.mrf.mxu0
    %v6366 = vadd.f32 %v5965, %v6365
    %6367 = vmatmul.f32.gmra.mxu0 %v6160
    %v6368 = vpop.f32.mrf.mxu0
    %v6369 = vadd.f32 %v5968, %v6368
    %6370 = vmatmul.f32.gmra.mxu0 %v6163
    %v6371 = vpop.f32.mrf.mxu0
    %v6372 = vadd.f32 %v5971, %v6371
    %6373 = vmatmul.f32.gmra.mxu0 %v6166
    %v6374 = vpop.f32.mrf.mxu0
    %v6375 = vadd.f32 %v5974, %v6374
    %6376 = vmatmul.f32.gmra.mxu0 %v6169
    %v6377 = vpop.f32.mrf.mxu0
    %v6378 = vadd.f32 %v5977, %v6377
    %6379 = vmatmul.f32.gmra.mxu0 %v6172
    %v6380 = vpop.f32.mrf.mxu0
    %v6381 = vadd.f32 %v5980, %v6380
    %6382 = vmatmul.f32.gmra.mxu0 %v6175
    %v6383 = vpop.f32.mrf.mxu0
    %v6384 = vadd.f32 %v5983, %v6383
    %6385 = vmatmul.f32.gmra.mxu0 %v6178
    %v6386 = vpop.f32.mrf.mxu0
    %v6387 = vadd.f32 %v5986, %v6386
    %6388 = vmatmul.f32.gmra.mxu0 %v6181
    %v6389 = vpop.f32.mrf.mxu0
    %v6390 = vadd.f32 %v5989, %v6389
    %6391 = vmatmul.f32.gmra.mxu0 %v6184
    %v6392 = vpop.f32.mrf.mxu0
    %v6393 = vadd.f32 %v5992, %v6392
    %6394 = vmatmul.f32.gmra.mxu0 %v6187
    %v6395 = vpop.f32.mrf.mxu0
    %v6396 = vadd.f32 %v5995, %v6395
    %6397 = vmatmul.f32.gmra.mxu0 %v6190
    %v6398 = vpop.f32.mrf.mxu0
    %v6399 = vadd.f32 %v5998, %v6398
    %6400 = vmatmul.f32.gmra.mxu0 %v6193
    %v6401 = vpop.f32.mrf.mxu0
    %v6402 = vadd.f32 %v6001, %v6401
    %6403 = vmatmul.f32.gmra.mxu0 %v6196
    %v6404 = vpop.f32.mrf.mxu0
    %v6405 = vadd.f32 %v6004, %v6404
    %6406 = vmatmul.f32.gmra.mxu0 %v6199
    %v6407 = vpop.f32.mrf.mxu0
    %v6408 = vadd.f32 %v6007, %v6407
    %6409 = vmatmul.f32.gmra.mxu0 %v6202
    %v6410 = vpop.f32.mrf.mxu0
    %v6411 = vadd.f32 %v6010, %v6410
    %6412 = vmatmul.f32.gmra.mxu0 %v6205
    %v6413 = vpop.f32.mrf.mxu0
    %v6414 = vadd.f32 %v6013, %v6413
    %6415 = vmatmul.f32.gmra.mxu0 %v6208
    %v6416 = vpop.f32.mrf.mxu0
    %v6417 = vadd.f32 %v6016, %v6416
    %6418 = vmatmul.f32.gmra.mxu0 %v6211
    %v6419 = vpop.f32.mrf.mxu0
    %v6420 = vadd.f32 %v6019, %v6419
    %6421 = vmatmul.f32.gmra.mxu0 %v6214
    %v6422 = vpop.f32.mrf.mxu0
    %v6423 = vadd.f32 %v6022, %v6422
    %6424 = vmatmul.f32.gmra.mxu0 %v6217
    %v6425 = vpop.f32.mrf.mxu0
    %v6426 = vadd.f32 %v6025, %v6425
    %6427 = vmatmul.f32.gmra.mxu0 %v6220
    %v6428 = vpop.f32.mrf.mxu0
    %v6429 = vadd.f32 %v6028, %v6428
    %6430 = vmatmul.f32.gmra.mxu0 %v6223
    %v6431 = vpop.f32.mrf.mxu0
    %v6432 = vadd.f32 %v6031, %v6431
    %6433 = vmatmul.f32.gmra.mxu0 %v6226
    %v6434 = vpop.f32.mrf.mxu0
    %v6435 = vadd.f32 %v6034, %v6434
    %6436 = vmatmul.f32.gmra.mxu0 %v6229
    %v6437 = vpop.f32.mrf.mxu0
    %v6438 = vadd.f32 %v6037, %v6437
    %6439 = vdwg.mxu0
    %v6440 = vld [vmem:[#allocation2 + $0x2] sm:$0xff]
    %v6441 = vld [vmem:[#allocation2 + $0xa] sm:$0xff]
    %v6442 = vld [vmem:[#allocation2 + $0x1a] sm:$0xff]
    %v6443 = vld [vmem:[#allocation2 + $0x22] sm:$0xff]
    %v6444 = vld [vmem:[#allocation2 + $0x32] sm:$0xff]
    %v6445 = vld [vmem:[#allocation2 + $0x3a] sm:$0xff]
    %v6446 = vld [vmem:[#allocation2 + $0x4a] sm:$0xff]
    %v6447 = vld [vmem:[#allocation2 + $0x52] sm:$0xff]
    %v6448 = vld [vmem:[#allocation2 + $0x62] sm:$0xff]
    %v6449 = vld [vmem:[#allocation2 + $0x6a] sm:$0xff]
    %v6450 = vld [vmem:[#allocation2 + $0x7a] sm:$0xff]
    %v6451 = vld [vmem:[#allocation2 + $0x82] sm:$0xff]
    %v6452 = vld [vmem:[#allocation2 + $0x92] sm:$0xff]
    %v6453 = vld [vmem:[#allocation2 + $0x9a] sm:$0xff]
    %v6454 = vld [vmem:[#allocation2 + $0xaa] sm:$0xff]
    %v6455 = vld [vmem:[#allocation2 + $0xb2] sm:$0xff]
    %v6456 = vld [vmem:[#allocation2 + $0xc2] sm:$0xff]
    %v6457 = vld [vmem:[#allocation2 + $0xca] sm:$0xff]
    %v6458 = vld [vmem:[#allocation2 + $0xda] sm:$0xff]
    %v6459 = vld [vmem:[#allocation2 + $0xe2] sm:$0xff]
    %v6460 = vld [vmem:[#allocation2 + $0xf2] sm:$0xff]
    %v6461 = vld [vmem:[#allocation2 + $0xfa] sm:$0xff]
    %v6462 = vld [vmem:[#allocation2 + $0x10a] sm:$0xff]
    %v6463 = vld [vmem:[#allocation2 + $0x112] sm:$0xff]
    %v6464 = vld [vmem:[#allocation2 + $0x122] sm:$0xff]
    %v6465 = vld [vmem:[#allocation2 + $0x12a] sm:$0xff]
    %v6466 = vld [vmem:[#allocation2 + $0x13a] sm:$0xff]
    %v6467 = vld [vmem:[#allocation2 + $0x142] sm:$0xff]
    %v6468 = vld [vmem:[#allocation2 + $0x152] sm:$0xff]
    %v6469 = vld [vmem:[#allocation2 + $0x15a] sm:$0xff]
    %v6470 = vld [vmem:[#allocation2 + $0x16a] sm:$0xff]
    %v6471 = vld [vmem:[#allocation2 + $0x172] sm:$0xff]
    %v6472 = vld [vmem:[#allocation2 + $0x1b2] sm:$0xff]
    %v6473 = vld [vmem:[#allocation2 + $0x1ba] sm:$0xff]
    %v6474 = vld [vmem:[#allocation2 + $0x1ca] sm:$0xff]
    %v6475 = vld [vmem:[#allocation2 + $0x1d2] sm:$0xff]
    %v6476 = vld [vmem:[#allocation2 + $0x1e2] sm:$0xff]
    %v6477 = vld [vmem:[#allocation2 + $0x1ea] sm:$0xff]
    %v6478 = vld [vmem:[#allocation2 + $0x1fa] sm:$0xff]
    %v6479 = vld [vmem:[#allocation2 + $0x202] sm:$0xff]
    %v6480 = vld [vmem:[#allocation2 + $0x212] sm:$0xff]
    %v6481 = vld [vmem:[#allocation2 + $0x21a] sm:$0xff]
    %v6482 = vld [vmem:[#allocation2 + $0x22a] sm:$0xff]
    %v6483 = vld [vmem:[#allocation2 + $0x232] sm:$0xff]
    %v6484 = vld [vmem:[#allocation2 + $0x242] sm:$0xff]
    %v6485 = vld [vmem:[#allocation2 + $0x24a] sm:$0xff]
    %v6486 = vld [vmem:[#allocation2 + $0x25a] sm:$0xff]
    %v6487 = vld [vmem:[#allocation2 + $0x262] sm:$0xff]
    %v6488 = vld [vmem:[#allocation2 + $0x272] sm:$0xff]
    %v6489 = vld [vmem:[#allocation2 + $0x27a] sm:$0xff]
    %v6490 = vld [vmem:[#allocation2 + $0x28a] sm:$0xff]
    %v6491 = vld [vmem:[#allocation2 + $0x292] sm:$0xff]
    %v6492 = vld [vmem:[#allocation2 + $0x2a2] sm:$0xff]
    %v6493 = vld [vmem:[#allocation2 + $0x2aa] sm:$0xff]
    %v6494 = vld [vmem:[#allocation2 + $0x2ba] sm:$0xff]
    %v6495 = vld [vmem:[#allocation2 + $0x2c2] sm:$0xff]
    %v6496 = vld [vmem:[#allocation2 + $0x2d2] sm:$0xff]
    %v6497 = vld [vmem:[#allocation2 + $0x2da] sm:$0xff]
    %v6498 = vld [vmem:[#allocation2 + $0x2ea] sm:$0xff]
    %v6499 = vld [vmem:[#allocation2 + $0x2f2] sm:$0xff]
    %v6500 = vld [vmem:[#allocation2 + $0x302] sm:$0xff]
    %v6501 = vld [vmem:[#allocation2 + $0x30a] sm:$0xff]
    %v6502 = vld [vmem:[#allocation2 + $0x31a] sm:$0xff]
    %v6503 = vld [vmem:[#allocation2 + $0x322] sm:$0xff]
    %s6504 = scalar_lea.vmem %s5, 32
    %v6505 = vld [vmem:[%s6504] sm:$0xff]
    %v6506 = vld [vmem:[%s6504 + $0x8] sm:$0xff]
    %v6508 = vsel %vm4782, %v6440, 0
    %v6511 = vsel %vm4782, %v6441, 0
    %v6514 = vsel %vm4782, %v6442, 0
    %v6517 = vsel %vm4782, %v6443, 0
    %v6520 = vsel %vm4782, %v6444, 0
    %v6523 = vsel %vm4782, %v6445, 0
    %v6526 = vsel %vm4782, %v6446, 0
    %v6529 = vsel %vm4782, %v6447, 0
    %v6532 = vsel %vm4782, %v6448, 0
    %v6535 = vsel %vm4782, %v6449, 0
    %v6538 = vsel %vm4782, %v6450, 0
    %v6541 = vsel %vm4782, %v6451, 0
    %v6544 = vsel %vm4782, %v6452, 0
    %v6547 = vsel %vm4782, %v6453, 0
    %v6550 = vsel %vm4782, %v6454, 0
    %v6553 = vsel %vm4782, %v6455, 0
    %v6556 = vsel %vm4782, %v6456, 0
    %v6559 = vsel %vm4782, %v6457, 0
    %v6562 = vsel %vm4782, %v6458, 0
    %v6565 = vsel %vm4782, %v6459, 0
    %v6568 = vsel %vm4782, %v6460, 0
    %v6571 = vsel %vm4782, %v6461, 0
    %v6574 = vsel %vm4782, %v6462, 0
    %v6577 = vsel %vm4782, %v6463, 0
    %v6580 = vsel %vm4782, %v6464, 0
    %v6583 = vsel %vm4782, %v6465, 0
    %v6586 = vsel %vm4782, %v6466, 0
    %v6589 = vsel %vm4782, %v6467, 0
    %v6592 = vsel %vm4782, %v6468, 0
    %v6595 = vsel %vm4782, %v6469, 0
    %v6598 = vsel %vm4782, %v6470, 0
    %v6601 = vsel %vm4782, %v6471, 0
    %v6604 = vsel %vm4782, %v6472, 0
    %v6607 = vsel %vm4782, %v6473, 0
    %v6610 = vsel %vm4782, %v6474, 0
    %v6613 = vsel %vm4782, %v6475, 0
    %v6616 = vsel %vm4782, %v6476, 0
    %v6619 = vsel %vm4782, %v6477, 0
    %v6622 = vsel %vm4782, %v6478, 0
    %v6625 = vsel %vm4782, %v6479, 0
    %v6628 = vsel %vm4782, %v6480, 0
    %v6631 = vsel %vm4782, %v6481, 0
    %v6634 = vsel %vm4782, %v6482, 0
    %v6637 = vsel %vm4782, %v6483, 0
    %v6640 = vsel %vm4782, %v6484, 0
    %v6643 = vsel %vm4782, %v6485, 0
    %v6646 = vsel %vm4782, %v6486, 0
    %v6649 = vsel %vm4782, %v6487, 0
    %v6652 = vsel %vm4782, %v6488, 0
    %v6655 = vsel %vm4782, %v6489, 0
    %v6658 = vsel %vm4782, %v6490, 0
    %v6661 = vsel %vm4782, %v6491, 0
    %v6664 = vsel %vm4782, %v6492, 0
    %v6667 = vsel %vm4782, %v6493, 0
    %v6670 = vsel %vm4782, %v6494, 0
    %v6673 = vsel %vm4782, %v6495, 0
    %v6676 = vsel %vm4782, %v6496, 0
    %v6679 = vsel %vm4782, %v6497, 0
    %v6682 = vsel %vm4782, %v6498, 0
    %v6685 = vsel %vm4782, %v6499, 0
    %v6688 = vsel %vm4782, %v6500, 0
    %v6691 = vsel %vm4782, %v6501, 0
    %v6694 = vsel %vm4782, %v6502, 0
    %v6697 = vsel %vm4782, %v6503, 0
    %6699 = vmatpush.msra.mxu0 0.0
    %6700 = vmatpush.msra.mxu0 0.0
    %6701 = vmatpush.msra.mxu0 0.0
    %6702 = vmatpush.msra.mxu0 0.0
    %6703 = vmatpush.msra.mxu0 0.0
    %6704 = vmatpush.msra.mxu0 0.0
    %6705 = vmatpush.msra.mxu0 0.0
    %6706 = vmatpush.msra.mxu0 0.0
    %6707 = vmatpush.msra.mxu0 0.0
    %6708 = vmatpush.msra.mxu0 0.0
    %6709 = vmatpush.msra.mxu0 0.0
    %6710 = vmatpush.msra.mxu0 0.0
    %6711 = vmatpush.msra.mxu0 0.0
    %6712 = vmatpush.msra.mxu0 0.0
    %6713 = vmatpush.msra.mxu0 %v6506
    %6714 = vmatpush.msra.mxu0 %v6505
    %6715 = vmatmul.f32.gmra.mxu0 %v6508
    %v6716 = vpop.f32.mrf.mxu0
    %v6717 = vadd.f32 0.0, %v6716
    %6718 = vmatmul.f32.gmra.mxu0 %v6511
    %v6719 = vpop.f32.mrf.mxu0
    %v6720 = vadd.f32 0.0, %v6719
    %6721 = vmatmul.f32.gmra.mxu0 %v6514
    %v6722 = vpop.f32.mrf.mxu0
    %v6723 = vadd.f32 0.0, %v6722
    %6724 = vmatmul.f32.gmra.mxu0 %v6517
    %v6725 = vpop.f32.mrf.mxu0
    %v6726 = vadd.f32 0.0, %v6725
    %6727 = vmatmul.f32.gmra.mxu0 %v6520
    %v6728 = vpop.f32.mrf.mxu0
    %v6729 = vadd.f32 0.0, %v6728
    %6730 = vmatmul.f32.gmra.mxu0 %v6523
    %v6731 = vpop.f32.mrf.mxu0
    %v6732 = vadd.f32 0.0, %v6731
    %6733 = vmatmul.f32.gmra.mxu0 %v6526
    %v6734 = vpop.f32.mrf.mxu0
    %v6735 = vadd.f32 0.0, %v6734
    %6736 = vmatmul.f32.gmra.mxu0 %v6529
    %v6737 = vpop.f32.mrf.mxu0
    %v6738 = vadd.f32 0.0, %v6737
    %6739 = vmatmul.f32.gmra.mxu0 %v6532
    %v6740 = vpop.f32.mrf.mxu0
    %v6741 = vadd.f32 0.0, %v6740
    %6742 = vmatmul.f32.gmra.mxu0 %v6535
    %v6743 = vpop.f32.mrf.mxu0
    %v6744 = vadd.f32 0.0, %v6743
    %6745 = vmatmul.f32.gmra.mxu0 %v6538
    %v6746 = vpop.f32.mrf.mxu0
    %v6747 = vadd.f32 0.0, %v6746
    %6748 = vmatmul.f32.gmra.mxu0 %v6541
    %v6749 = vpop.f32.mrf.mxu0
    %v6750 = vadd.f32 0.0, %v6749
    %6751 = vmatmul.f32.gmra.mxu0 %v6544
    %v6752 = vpop.f32.mrf.mxu0
    %v6753 = vadd.f32 0.0, %v6752
    %6754 = vmatmul.f32.gmra.mxu0 %v6547
    %v6755 = vpop.f32.mrf.mxu0
    %v6756 = vadd.f32 0.0, %v6755
    %6757 = vmatmul.f32.gmra.mxu0 %v6550
    %v6758 = vpop.f32.mrf.mxu0
    %v6759 = vadd.f32 0.0, %v6758
    %6760 = vmatmul.f32.gmra.mxu0 %v6553
    %v6761 = vpop.f32.mrf.mxu0
    %v6762 = vadd.f32 0.0, %v6761
    %6763 = vmatmul.f32.gmra.mxu0 %v6556
    %v6764 = vpop.f32.mrf.mxu0
    %v6765 = vadd.f32 0.0, %v6764
    %6766 = vmatmul.f32.gmra.mxu0 %v6559
    %v6767 = vpop.f32.mrf.mxu0
    %v6768 = vadd.f32 0.0, %v6767
    %6769 = vmatmul.f32.gmra.mxu0 %v6562
    %v6770 = vpop.f32.mrf.mxu0
    %v6771 = vadd.f32 0.0, %v6770
    %6772 = vmatmul.f32.gmra.mxu0 %v6565
    %v6773 = vpop.f32.mrf.mxu0
    %v6774 = vadd.f32 0.0, %v6773
    %6775 = vmatmul.f32.gmra.mxu0 %v6568
    %v6776 = vpop.f32.mrf.mxu0
    %v6777 = vadd.f32 0.0, %v6776
    %6778 = vmatmul.f32.gmra.mxu0 %v6571
    %v6779 = vpop.f32.mrf.mxu0
    %v6780 = vadd.f32 0.0, %v6779
    %6781 = vmatmul.f32.gmra.mxu0 %v6574
    %v6782 = vpop.f32.mrf.mxu0
    %v6783 = vadd.f32 0.0, %v6782
    %6784 = vmatmul.f32.gmra.mxu0 %v6577
    %v6785 = vpop.f32.mrf.mxu0
    %v6786 = vadd.f32 0.0, %v6785
    %6787 = vmatmul.f32.gmra.mxu0 %v6580
    %v6788 = vpop.f32.mrf.mxu0
    %v6789 = vadd.f32 0.0, %v6788
    %6790 = vmatmul.f32.gmra.mxu0 %v6583
    %v6791 = vpop.f32.mrf.mxu0
    %v6792 = vadd.f32 0.0, %v6791
    %6793 = vmatmul.f32.gmra.mxu0 %v6586
    %v6794 = vpop.f32.mrf.mxu0
    %v6795 = vadd.f32 0.0, %v6794
    %6796 = vmatmul.f32.gmra.mxu0 %v6589
    %v6797 = vpop.f32.mrf.mxu0
    %v6798 = vadd.f32 0.0, %v6797
    %6799 = vmatmul.f32.gmra.mxu0 %v6592
    %v6800 = vpop.f32.mrf.mxu0
    %v6801 = vadd.f32 0.0, %v6800
    %6802 = vmatmul.f32.gmra.mxu0 %v6595
    %v6803 = vpop.f32.mrf.mxu0
    %v6804 = vadd.f32 0.0, %v6803
    %6805 = vmatmul.f32.gmra.mxu0 %v6598
    %v6806 = vpop.f32.mrf.mxu0
    %v6807 = vadd.f32 0.0, %v6806
    %6808 = vmatmul.f32.gmra.mxu0 %v6601
    %v6809 = vpop.f32.mrf.mxu0
    %v6810 = vadd.f32 0.0, %v6809
    %6811 = vmatmul.f32.gmra.mxu0 %v6604
    %v6812 = vpop.f32.mrf.mxu0
    %v6813 = vadd.f32 0.0, %v6812
    %6814 = vmatmul.f32.gmra.mxu0 %v6607
    %v6815 = vpop.f32.mrf.mxu0
    %v6816 = vadd.f32 0.0, %v6815
    %6817 = vmatmul.f32.gmra.mxu0 %v6610
    %v6818 = vpop.f32.mrf.mxu0
    %v6819 = vadd.f32 0.0, %v6818
    %6820 = vmatmul.f32.gmra.mxu0 %v6613
    %v6821 = vpop.f32.mrf.mxu0
    %v6822 = vadd.f32 0.0, %v6821
    %6823 = vmatmul.f32.gmra.mxu0 %v6616
    %v6824 = vpop.f32.mrf.mxu0
    %v6825 = vadd.f32 0.0, %v6824
    %6826 = vmatmul.f32.gmra.mxu0 %v6619
    %v6827 = vpop.f32.mrf.mxu0
    %v6828 = vadd.f32 0.0, %v6827
    %6829 = vmatmul.f32.gmra.mxu0 %v6622
    %v6830 = vpop.f32.mrf.mxu0
    %v6831 = vadd.f32 0.0, %v6830
    %6832 = vmatmul.f32.gmra.mxu0 %v6625
    %v6833 = vpop.f32.mrf.mxu0
    %v6834 = vadd.f32 0.0, %v6833
    %6835 = vmatmul.f32.gmra.mxu0 %v6628
    %v6836 = vpop.f32.mrf.mxu0
    %v6837 = vadd.f32 0.0, %v6836
    %6838 = vmatmul.f32.gmra.mxu0 %v6631
    %v6839 = vpop.f32.mrf.mxu0
    %v6840 = vadd.f32 0.0, %v6839
    %6841 = vmatmul.f32.gmra.mxu0 %v6634
    %v6842 = vpop.f32.mrf.mxu0
    %v6843 = vadd.f32 0.0, %v6842
    %6844 = vmatmul.f32.gmra.mxu0 %v6637
    %v6845 = vpop.f32.mrf.mxu0
    %v6846 = vadd.f32 0.0, %v6845
    %6847 = vmatmul.f32.gmra.mxu0 %v6640
    %v6848 = vpop.f32.mrf.mxu0
    %v6849 = vadd.f32 0.0, %v6848
    %6850 = vmatmul.f32.gmra.mxu0 %v6643
    %v6851 = vpop.f32.mrf.mxu0
    %v6852 = vadd.f32 0.0, %v6851
    %6853 = vmatmul.f32.gmra.mxu0 %v6646
    %v6854 = vpop.f32.mrf.mxu0
    %v6855 = vadd.f32 0.0, %v6854
    %6856 = vmatmul.f32.gmra.mxu0 %v6649
    %v6857 = vpop.f32.mrf.mxu0
    %v6858 = vadd.f32 0.0, %v6857
    %6859 = vmatmul.f32.gmra.mxu0 %v6652
    %v6860 = vpop.f32.mrf.mxu0
    %v6861 = vadd.f32 0.0, %v6860
    %6862 = vmatmul.f32.gmra.mxu0 %v6655
    %v6863 = vpop.f32.mrf.mxu0
    %v6864 = vadd.f32 0.0, %v6863
    %6865 = vmatmul.f32.gmra.mxu0 %v6658
    %v6866 = vpop.f32.mrf.mxu0
    %v6867 = vadd.f32 0.0, %v6866
    %6868 = vmatmul.f32.gmra.mxu0 %v6661
    %v6869 = vpop.f32.mrf.mxu0
    %v6870 = vadd.f32 0.0, %v6869
    %6871 = vmatmul.f32.gmra.mxu0 %v6664
    %v6872 = vpop.f32.mrf.mxu0
    %v6873 = vadd.f32 0.0, %v6872
    %6874 = vmatmul.f32.gmra.mxu0 %v6667
    %v6875 = vpop.f32.mrf.mxu0
    %v6876 = vadd.f32 0.0, %v6875
    %6877 = vmatmul.f32.gmra.mxu0 %v6670
    %v6878 = vpop.f32.mrf.mxu0
    %v6879 = vadd.f32 0.0, %v6878
    %6880 = vmatmul.f32.gmra.mxu0 %v6673
    %v6881 = vpop.f32.mrf.mxu0
    %v6882 = vadd.f32 0.0, %v6881
    %6883 = vmatmul.f32.gmra.mxu0 %v6676
    %v6884 = vpop.f32.mrf.mxu0
    %v6885 = vadd.f32 0.0, %v6884
    %6886 = vmatmul.f32.gmra.mxu0 %v6679
    %v6887 = vpop.f32.mrf.mxu0
    %v6888 = vadd.f32 0.0, %v6887
    %6889 = vmatmul.f32.gmra.mxu0 %v6682
    %v6890 = vpop.f32.mrf.mxu0
    %v6891 = vadd.f32 0.0, %v6890
    %6892 = vmatmul.f32.gmra.mxu0 %v6685
    %v6893 = vpop.f32.mrf.mxu0
    %v6894 = vadd.f32 0.0, %v6893
    %6895 = vmatmul.f32.gmra.mxu0 %v6688
    %v6896 = vpop.f32.mrf.mxu0
    %v6897 = vadd.f32 0.0, %v6896
    %6898 = vmatmul.f32.gmra.mxu0 %v6691
    %v6899 = vpop.f32.mrf.mxu0
    %v6900 = vadd.f32 0.0, %v6899
    %6901 = vmatmul.f32.gmra.mxu0 %v6694
    %v6902 = vpop.f32.mrf.mxu0
    %v6903 = vadd.f32 0.0, %v6902
    %6904 = vmatmul.f32.gmra.mxu0 %v6697
    %v6905 = vpop.f32.mrf.mxu0
    %v6906 = vadd.f32 0.0, %v6905
    %6907 = vdwg.mxu0
    %v6908 = vadd.f32 %v6249, %v6717
    %v6909 = vadd.f32 %v6252, %v6720
    %v6910 = vadd.f32 %v6255, %v6723
    %v6911 = vadd.f32 %v6258, %v6726
    %v6912 = vadd.f32 %v6261, %v6729
    %v6913 = vadd.f32 %v6264, %v6732
    %v6914 = vadd.f32 %v6267, %v6735
    %v6915 = vadd.f32 %v6270, %v6738
    %v6916 = vadd.f32 %v6273, %v6741
    %v6917 = vadd.f32 %v6276, %v6744
    %v6918 = vadd.f32 %v6279, %v6747
    %v6919 = vadd.f32 %v6282, %v6750
    %v6920 = vadd.f32 %v6285, %v6753
    %v6921 = vadd.f32 %v6288, %v6756
    %v6922 = vadd.f32 %v6291, %v6759
    %v6923 = vadd.f32 %v6294, %v6762
    %v6924 = vadd.f32 %v6297, %v6765
    %v6925 = vadd.f32 %v6300, %v6768
    %v6926 = vadd.f32 %v6303, %v6771
    %v6927 = vadd.f32 %v6306, %v6774
    %v6928 = vadd.f32 %v6309, %v6777
    %v6929 = vadd.f32 %v6312, %v6780
    %v6930 = vadd.f32 %v6315, %v6783
    %v6931 = vadd.f32 %v6318, %v6786
    %v6932 = vadd.f32 %v6321, %v6789
    %v6933 = vadd.f32 %v6324, %v6792
    %v6934 = vadd.f32 %v6327, %v6795
    %v6935 = vadd.f32 %v6330, %v6798
    %v6936 = vadd.f32 %v6333, %v6801
    %v6937 = vadd.f32 %v6336, %v6804
    %v6938 = vadd.f32 %v6339, %v6807
    %v6939 = vadd.f32 %v6342, %v6810
    %v6940 = vadd.f32 %v6345, %v6813
    %v6941 = vadd.f32 %v6348, %v6816
    %v6942 = vadd.f32 %v6351, %v6819
    %v6943 = vadd.f32 %v6354, %v6822
    %v6944 = vadd.f32 %v6357, %v6825
    %v6945 = vadd.f32 %v6360, %v6828
    %v6946 = vadd.f32 %v6363, %v6831
    %v6947 = vadd.f32 %v6366, %v6834
    %v6948 = vadd.f32 %v6369, %v6837
    %v6949 = vadd.f32 %v6372, %v6840
    %v6950 = vadd.f32 %v6375, %v6843
    %v6951 = vadd.f32 %v6378, %v6846
    %v6952 = vadd.f32 %v6381, %v6849
    %v6953 = vadd.f32 %v6384, %v6852
    %v6954 = vadd.f32 %v6387, %v6855
    %v6955 = vadd.f32 %v6390, %v6858
    %v6956 = vadd.f32 %v6393, %v6861
    %v6957 = vadd.f32 %v6396, %v6864
    %v6958 = vadd.f32 %v6399, %v6867
    %v6959 = vadd.f32 %v6402, %v6870
    %v6960 = vadd.f32 %v6405, %v6873
    %v6961 = vadd.f32 %v6408, %v6876
    %v6962 = vadd.f32 %v6411, %v6879
    %v6963 = vadd.f32 %v6414, %v6882
    %v6964 = vadd.f32 %v6417, %v6885
    %v6965 = vadd.f32 %v6420, %v6888
    %v6966 = vadd.f32 %v6423, %v6891
    %v6967 = vadd.f32 %v6426, %v6894
    %v6968 = vadd.f32 %v6429, %v6897
    %v6969 = vadd.f32 %v6432, %v6900
    %v6970 = vadd.f32 %v6435, %v6903
    %v6971 = vadd.f32 %v6438, %v6906
    %v6972 = vld [vmem:[%s5440] sm:$0xff]
    %v6973 = vld [vmem:[%s5440 + $0x8] sm:$0xff]
    %v6974 = vld [vmem:[%s5440 + $0x18] sm:$0xff]
    %v6975 = vld [vmem:[%s5440 + $0x20] sm:$0xff]
    %v6976 = vld [vmem:[%s5440 + $0x30] sm:$0xff]
    %v6977 = vld [vmem:[%s5440 + $0x38] sm:$0xff]
    %v6978 = vld [vmem:[%s5440 + $0x48] sm:$0xff]
    %v6979 = vld [vmem:[%s5440 + $0x50] sm:$0xff]
    %v6980 = vld [vmem:[%s5440 + $0x60] sm:$0xff]
    %v6981 = vld [vmem:[%s5440 + $0x68] sm:$0xff]
    %v6982 = vld [vmem:[%s5440 + $0x78] sm:$0xff]
    %v6983 = vld [vmem:[%s5440 + $0x80] sm:$0xff]
    %v6984 = vld [vmem:[%s5440 + $0x90] sm:$0xff]
    %v6985 = vld [vmem:[%s5440 + $0x98] sm:$0xff]
    %v6986 = vld [vmem:[%s5440 + $0xa8] sm:$0xff]
    %v6987 = vld [vmem:[%s5440 + $0xb0] sm:$0xff]
    %v6988 = vld [vmem:[%s5440 + $0xc0] sm:$0xff]
    %v6989 = vld [vmem:[%s5440 + $0xc8] sm:$0xff]
    %v6990 = vld [vmem:[%s5440 + $0xd8] sm:$0xff]
    %v6991 = vld [vmem:[%s5440 + $0xe0] sm:$0xff]
    %v6992 = vld [vmem:[%s5440 + $0xf0] sm:$0xff]
    %v6993 = vld [vmem:[%s5440 + $0xf8] sm:$0xff]
    %v6994 = vld [vmem:[%s5440 + $0x108] sm:$0xff]
    %v6995 = vld [vmem:[%s5440 + $0x110] sm:$0xff]
    %v6996 = vld [vmem:[%s5440 + $0x120] sm:$0xff]
    %v6997 = vld [vmem:[%s5440 + $0x128] sm:$0xff]
    %v6998 = vld [vmem:[%s5440 + $0x138] sm:$0xff]
    %v6999 = vld [vmem:[%s5440 + $0x140] sm:$0xff]
    %v7000 = vld [vmem:[%s5440 + $0x150] sm:$0xff]
    %v7001 = vld [vmem:[%s5440 + $0x158] sm:$0xff]
    %v7002 = vld [vmem:[%s5440 + $0x168] sm:$0xff]
    %v7003 = vld [vmem:[%s5440 + $0x170] sm:$0xff]
    %v7004 = vld [vmem:[%s5440 + $0x1b0] sm:$0xff]
    %v7005 = vld [vmem:[%s5440 + $0x1b8] sm:$0xff]
    %v7006 = vld [vmem:[%s5440 + $0x1c8] sm:$0xff]
    %v7007 = vld [vmem:[%s5440 + $0x1d0] sm:$0xff]
    %v7008 = vld [vmem:[%s5440 + $0x1e0] sm:$0xff]
    %v7009 = vld [vmem:[%s5440 + $0x1e8] sm:$0xff]
    %v7010 = vld [vmem:[%s5440 + $0x1f8] sm:$0xff]
    %v7011 = vld [vmem:[%s5440 + $0x200] sm:$0xff]
    %v7012 = vld [vmem:[%s5440 + $0x210] sm:$0xff]
    %v7013 = vld [vmem:[%s5440 + $0x218] sm:$0xff]
    %v7014 = vld [vmem:[%s5440 + $0x228] sm:$0xff]
    %v7015 = vld [vmem:[%s5440 + $0x230] sm:$0xff]
    %v7016 = vld [vmem:[%s5440 + $0x240] sm:$0xff]
    %v7017 = vld [vmem:[%s5440 + $0x248] sm:$0xff]
    %v7018 = vld [vmem:[%s5440 + $0x258] sm:$0xff]
    %v7019 = vld [vmem:[%s5440 + $0x260] sm:$0xff]
    %v7020 = vld [vmem:[%s5440 + $0x270] sm:$0xff]
    %v7021 = vld [vmem:[%s5440 + $0x278] sm:$0xff]
    %v7022 = vld [vmem:[%s5440 + $0x288] sm:$0xff]
    %v7023 = vld [vmem:[%s5440 + $0x290] sm:$0xff]
    %v7024 = vld [vmem:[%s5440 + $0x2a0] sm:$0xff]
    %v7025 = vld [vmem:[%s5440 + $0x2a8] sm:$0xff]
    %v7026 = vld [vmem:[%s5440 + $0x2b8] sm:$0xff]
    %v7027 = vld [vmem:[%s5440 + $0x2c0] sm:$0xff]
    %v7028 = vld [vmem:[%s5440 + $0x2d0] sm:$0xff]
    %v7029 = vld [vmem:[%s5440 + $0x2d8] sm:$0xff]
    %v7030 = vld [vmem:[%s5440 + $0x2e8] sm:$0xff]
    %v7031 = vld [vmem:[%s5440 + $0x2f0] sm:$0xff]
    %v7032 = vld [vmem:[%s5440 + $0x300] sm:$0xff]
    %v7033 = vld [vmem:[%s5440 + $0x308] sm:$0xff]
    %v7034 = vld [vmem:[%s5440 + $0x318] sm:$0xff]
    %v7035 = vld [vmem:[%s5440 + $0x320] sm:$0xff]
    %s7036 = scalar_lea.vmem %s5, 48
    %v7037 = vld [vmem:[%s7036] sm:$0xff]
    %v7038 = vld [vmem:[%s7036 + $0x8] sm:$0xff]
    %v7040 = vsel %vm4782, %v6972, 0
    %v7043 = vsel %vm4782, %v6973, 0
    %v7046 = vsel %vm4782, %v6974, 0
    %v7049 = vsel %vm4782, %v6975, 0
    %v7052 = vsel %vm4782, %v6976, 0
    %v7055 = vsel %vm4782, %v6977, 0
    %v7058 = vsel %vm4782, %v6978, 0
    %v7061 = vsel %vm4782, %v6979, 0
    %v7064 = vsel %vm4782, %v6980, 0
    %v7067 = vsel %vm4782, %v6981, 0
    %v7070 = vsel %vm4782, %v6982, 0
    %v7073 = vsel %vm4782, %v6983, 0
    %v7076 = vsel %vm4782, %v6984, 0
    %v7079 = vsel %vm4782, %v6985, 0
    %v7082 = vsel %vm4782, %v6986, 0
    %v7085 = vsel %vm4782, %v6987, 0
    %v7088 = vsel %vm4782, %v6988, 0
    %v7091 = vsel %vm4782, %v6989, 0
    %v7094 = vsel %vm4782, %v6990, 0
    %v7097 = vsel %vm4782, %v6991, 0
    %v7100 = vsel %vm4782, %v6992, 0
    %v7103 = vsel %vm4782, %v6993, 0
    %v7106 = vsel %vm4782, %v6994, 0
    %v7109 = vsel %vm4782, %v6995, 0
    %v7112 = vsel %vm4782, %v6996, 0
    %v7115 = vsel %vm4782, %v6997, 0
    %v7118 = vsel %vm4782, %v6998, 0
    %v7121 = vsel %vm4782, %v6999, 0
    %v7124 = vsel %vm4782, %v7000, 0
    %v7127 = vsel %vm4782, %v7001, 0
    %v7130 = vsel %vm4782, %v7002, 0
    %v7133 = vsel %vm4782, %v7003, 0
    %v7136 = vsel %vm4782, %v7004, 0
    %v7139 = vsel %vm4782, %v7005, 0
    %v7142 = vsel %vm4782, %v7006, 0
    %v7145 = vsel %vm4782, %v7007, 0
    %v7148 = vsel %vm4782, %v7008, 0
    %v7151 = vsel %vm4782, %v7009, 0
    %v7154 = vsel %vm4782, %v7010, 0
    %v7157 = vsel %vm4782, %v7011, 0
    %v7160 = vsel %vm4782, %v7012, 0
    %v7163 = vsel %vm4782, %v7013, 0
    %v7166 = vsel %vm4782, %v7014, 0
    %v7169 = vsel %vm4782, %v7015, 0
    %v7172 = vsel %vm4782, %v7016, 0
    %v7175 = vsel %vm4782, %v7017, 0
    %v7178 = vsel %vm4782, %v7018, 0
    %v7181 = vsel %vm4782, %v7019, 0
    %v7184 = vsel %vm4782, %v7020, 0
    %v7187 = vsel %vm4782, %v7021, 0
    %v7190 = vsel %vm4782, %v7022, 0
    %v7193 = vsel %vm4782, %v7023, 0
    %v7196 = vsel %vm4782, %v7024, 0
    %v7199 = vsel %vm4782, %v7025, 0
    %v7202 = vsel %vm4782, %v7026, 0
    %v7205 = vsel %vm4782, %v7027, 0
    %v7208 = vsel %vm4782, %v7028, 0
    %v7211 = vsel %vm4782, %v7029, 0
    %v7214 = vsel %vm4782, %v7030, 0
    %v7217 = vsel %vm4782, %v7031, 0
    %v7220 = vsel %vm4782, %v7032, 0
    %v7223 = vsel %vm4782, %v7033, 0
    %v7226 = vsel %vm4782, %v7034, 0
    %v7229 = vsel %vm4782, %v7035, 0
    %7231 = vmatpush.msra.mxu0 0.0
    %7232 = vmatpush.msra.mxu0 0.0
    %7233 = vmatpush.msra.mxu0 0.0
    %7234 = vmatpush.msra.mxu0 0.0
    %7235 = vmatpush.msra.mxu0 0.0
    %7236 = vmatpush.msra.mxu0 0.0
    %7237 = vmatpush.msra.mxu0 0.0
    %7238 = vmatpush.msra.mxu0 0.0
    %7239 = vmatpush.msra.mxu0 0.0
    %7240 = vmatpush.msra.mxu0 0.0
    %7241 = vmatpush.msra.mxu0 0.0
    %7242 = vmatpush.msra.mxu0 0.0
    %7243 = vmatpush.msra.mxu0 0.0
    %7244 = vmatpush.msra.mxu0 0.0
    %7245 = vmatpush.msra.mxu0 %v7038
    %7246 = vmatpush.msra.mxu0 %v7037
    %7247 = vmatmul.f32.gmra.mxu0 %v7040
    %v7248 = vpop.f32.mrf.mxu0
    %v7249 = vadd.f32 0.0, %v7248
    %7250 = vmatmul.f32.gmra.mxu0 %v7043
    %v7251 = vpop.f32.mrf.mxu0
    %v7252 = vadd.f32 0.0, %v7251
    %7253 = vmatmul.f32.gmra.mxu0 %v7046
    %v7254 = vpop.f32.mrf.mxu0
    %v7255 = vadd.f32 0.0, %v7254
    %7256 = vmatmul.f32.gmra.mxu0 %v7049
    %v7257 = vpop.f32.mrf.mxu0
    %v7258 = vadd.f32 0.0, %v7257
    %7259 = vmatmul.f32.gmra.mxu0 %v7052
    %v7260 = vpop.f32.mrf.mxu0
    %v7261 = vadd.f32 0.0, %v7260
    %7262 = vmatmul.f32.gmra.mxu0 %v7055
    %v7263 = vpop.f32.mrf.mxu0
    %v7264 = vadd.f32 0.0, %v7263
    %7265 = vmatmul.f32.gmra.mxu0 %v7058
    %v7266 = vpop.f32.mrf.mxu0
    %v7267 = vadd.f32 0.0, %v7266
    %7268 = vmatmul.f32.gmra.mxu0 %v7061
    %v7269 = vpop.f32.mrf.mxu0
    %v7270 = vadd.f32 0.0, %v7269
    %7271 = vmatmul.f32.gmra.mxu0 %v7064
    %v7272 = vpop.f32.mrf.mxu0
    %v7273 = vadd.f32 0.0, %v7272
    %7274 = vmatmul.f32.gmra.mxu0 %v7067
    %v7275 = vpop.f32.mrf.mxu0
    %v7276 = vadd.f32 0.0, %v7275
    %7277 = vmatmul.f32.gmra.mxu0 %v7070
    %v7278 = vpop.f32.mrf.mxu0
    %v7279 = vadd.f32 0.0, %v7278
    %7280 = vmatmul.f32.gmra.mxu0 %v7073
    %v7281 = vpop.f32.mrf.mxu0
    %v7282 = vadd.f32 0.0, %v7281
    %7283 = vmatmul.f32.gmra.mxu0 %v7076
    %v7284 = vpop.f32.mrf.mxu0
    %v7285 = vadd.f32 0.0, %v7284
    %7286 = vmatmul.f32.gmra.mxu0 %v7079
    %v7287 = vpop.f32.mrf.mxu0
    %v7288 = vadd.f32 0.0, %v7287
    %7289 = vmatmul.f32.gmra.mxu0 %v7082
    %v7290 = vpop.f32.mrf.mxu0
    %v7291 = vadd.f32 0.0, %v7290
    %7292 = vmatmul.f32.gmra.mxu0 %v7085
    %v7293 = vpop.f32.mrf.mxu0
    %v7294 = vadd.f32 0.0, %v7293
    %7295 = vmatmul.f32.gmra.mxu0 %v7088
    %v7296 = vpop.f32.mrf.mxu0
    %v7297 = vadd.f32 0.0, %v7296
    %7298 = vmatmul.f32.gmra.mxu0 %v7091
    %v7299 = vpop.f32.mrf.mxu0
    %v7300 = vadd.f32 0.0, %v7299
    %7301 = vmatmul.f32.gmra.mxu0 %v7094
    %v7302 = vpop.f32.mrf.mxu0
    %v7303 = vadd.f32 0.0, %v7302
    %7304 = vmatmul.f32.gmra.mxu0 %v7097
    %v7305 = vpop.f32.mrf.mxu0
    %v7306 = vadd.f32 0.0, %v7305
    %7307 = vmatmul.f32.gmra.mxu0 %v7100
    %v7308 = vpop.f32.mrf.mxu0
    %v7309 = vadd.f32 0.0, %v7308
    %7310 = vmatmul.f32.gmra.mxu0 %v7103
    %v7311 = vpop.f32.mrf.mxu0
    %v7312 = vadd.f32 0.0, %v7311
    %7313 = vmatmul.f32.gmra.mxu0 %v7106
    %v7314 = vpop.f32.mrf.mxu0
    %v7315 = vadd.f32 0.0, %v7314
    %7316 = vmatmul.f32.gmra.mxu0 %v7109
    %v7317 = vpop.f32.mrf.mxu0
    %v7318 = vadd.f32 0.0, %v7317
    %7319 = vmatmul.f32.gmra.mxu0 %v7112
    %v7320 = vpop.f32.mrf.mxu0
    %v7321 = vadd.f32 0.0, %v7320
    %7322 = vmatmul.f32.gmra.mxu0 %v7115
    %v7323 = vpop.f32.mrf.mxu0
    %v7324 = vadd.f32 0.0, %v7323
    %7325 = vmatmul.f32.gmra.mxu0 %v7118
    %v7326 = vpop.f32.mrf.mxu0
    %v7327 = vadd.f32 0.0, %v7326
    %7328 = vmatmul.f32.gmra.mxu0 %v7121
    %v7329 = vpop.f32.mrf.mxu0
    %v7330 = vadd.f32 0.0, %v7329
    %7331 = vmatmul.f32.gmra.mxu0 %v7124
    %v7332 = vpop.f32.mrf.mxu0
    %v7333 = vadd.f32 0.0, %v7332
    %7334 = vmatmul.f32.gmra.mxu0 %v7127
    %v7335 = vpop.f32.mrf.mxu0
    %v7336 = vadd.f32 0.0, %v7335
    %7337 = vmatmul.f32.gmra.mxu0 %v7130
    %v7338 = vpop.f32.mrf.mxu0
    %v7339 = vadd.f32 0.0, %v7338
    %7340 = vmatmul.f32.gmra.mxu0 %v7133
    %v7341 = vpop.f32.mrf.mxu0
    %v7342 = vadd.f32 0.0, %v7341
    %7343 = vmatmul.f32.gmra.mxu0 %v7136
    %v7344 = vpop.f32.mrf.mxu0
    %v7345 = vadd.f32 0.0, %v7344
    %7346 = vmatmul.f32.gmra.mxu0 %v7139
    %v7347 = vpop.f32.mrf.mxu0
    %v7348 = vadd.f32 0.0, %v7347
    %7349 = vmatmul.f32.gmra.mxu0 %v7142
    %v7350 = vpop.f32.mrf.mxu0
    %v7351 = vadd.f32 0.0, %v7350
    %7352 = vmatmul.f32.gmra.mxu0 %v7145
    %v7353 = vpop.f32.mrf.mxu0
    %v7354 = vadd.f32 0.0, %v7353
    %7355 = vmatmul.f32.gmra.mxu0 %v7148
    %v7356 = vpop.f32.mrf.mxu0
    %v7357 = vadd.f32 0.0, %v7356
    %7358 = vmatmul.f32.gmra.mxu0 %v7151
    %v7359 = vpop.f32.mrf.mxu0
    %v7360 = vadd.f32 0.0, %v7359
    %7361 = vmatmul.f32.gmra.mxu0 %v7154
    %v7362 = vpop.f32.mrf.mxu0
    %v7363 = vadd.f32 0.0, %v7362
    %7364 = vmatmul.f32.gmra.mxu0 %v7157
    %v7365 = vpop.f32.mrf.mxu0
    %v7366 = vadd.f32 0.0, %v7365
    %7367 = vmatmul.f32.gmra.mxu0 %v7160
    %v7368 = vpop.f32.mrf.mxu0
    %v7369 = vadd.f32 0.0, %v7368
    %7370 = vmatmul.f32.gmra.mxu0 %v7163
    %v7371 = vpop.f32.mrf.mxu0
    %v7372 = vadd.f32 0.0, %v7371
    %7373 = vmatmul.f32.gmra.mxu0 %v7166
    %v7374 = vpop.f32.mrf.mxu0
    %v7375 = vadd.f32 0.0, %v7374
    %7376 = vmatmul.f32.gmra.mxu0 %v7169
    %v7377 = vpop.f32.mrf.mxu0
    %v7378 = vadd.f32 0.0, %v7377
    %7379 = vmatmul.f32.gmra.mxu0 %v7172
    %v7380 = vpop.f32.mrf.mxu0
    %v7381 = vadd.f32 0.0, %v7380
    %7382 = vmatmul.f32.gmra.mxu0 %v7175
    %v7383 = vpop.f32.mrf.mxu0
    %v7384 = vadd.f32 0.0, %v7383
    %7385 = vmatmul.f32.gmra.mxu0 %v7178
    %v7386 = vpop.f32.mrf.mxu0
    %v7387 = vadd.f32 0.0, %v7386
    %7388 = vmatmul.f32.gmra.mxu0 %v7181
    %v7389 = vpop.f32.mrf.mxu0
    %v7390 = vadd.f32 0.0, %v7389
    %7391 = vmatmul.f32.gmra.mxu0 %v7184
    %v7392 = vpop.f32.mrf.mxu0
    %v7393 = vadd.f32 0.0, %v7392
    %7394 = vmatmul.f32.gmra.mxu0 %v7187
    %v7395 = vpop.f32.mrf.mxu0
    %v7396 = vadd.f32 0.0, %v7395
    %7397 = vmatmul.f32.gmra.mxu0 %v7190
    %v7398 = vpop.f32.mrf.mxu0
    %v7399 = vadd.f32 0.0, %v7398
    %7400 = vmatmul.f32.gmra.mxu0 %v7193
    %v7401 = vpop.f32.mrf.mxu0
    %v7402 = vadd.f32 0.0, %v7401
    %7403 = vmatmul.f32.gmra.mxu0 %v7196
    %v7404 = vpop.f32.mrf.mxu0
    %v7405 = vadd.f32 0.0, %v7404
    %7406 = vmatmul.f32.gmra.mxu0 %v7199
    %v7407 = vpop.f32.mrf.mxu0
    %v7408 = vadd.f32 0.0, %v7407
    %7409 = vmatmul.f32.gmra.mxu0 %v7202
    %v7410 = vpop.f32.mrf.mxu0
    %v7411 = vadd.f32 0.0, %v7410
    %7412 = vmatmul.f32.gmra.mxu0 %v7205
    %v7413 = vpop.f32.mrf.mxu0
    %v7414 = vadd.f32 0.0, %v7413
    %7415 = vmatmul.f32.gmra.mxu0 %v7208
    %v7416 = vpop.f32.mrf.mxu0
    %v7417 = vadd.f32 0.0, %v7416
    %7418 = vmatmul.f32.gmra.mxu0 %v7211
    %v7419 = vpop.f32.mrf.mxu0
    %v7420 = vadd.f32 0.0, %v7419
    %7421 = vmatmul.f32.gmra.mxu0 %v7214
    %v7422 = vpop.f32.mrf.mxu0
    %v7423 = vadd.f32 0.0, %v7422
    %7424 = vmatmul.f32.gmra.mxu0 %v7217
    %v7425 = vpop.f32.mrf.mxu0
    %v7426 = vadd.f32 0.0, %v7425
    %7427 = vmatmul.f32.gmra.mxu0 %v7220
    %v7428 = vpop.f32.mrf.mxu0
    %v7429 = vadd.f32 0.0, %v7428
    %7430 = vmatmul.f32.gmra.mxu0 %v7223
    %v7431 = vpop.f32.mrf.mxu0
    %v7432 = vadd.f32 0.0, %v7431
    %7433 = vmatmul.f32.gmra.mxu0 %v7226
    %v7434 = vpop.f32.mrf.mxu0
    %v7435 = vadd.f32 0.0, %v7434
    %7436 = vmatmul.f32.gmra.mxu0 %v7229
    %v7437 = vpop.f32.mrf.mxu0
    %v7438 = vadd.f32 0.0, %v7437
    %7439 = vdwg.mxu0
    %v7440 = vadd.f32 %v6908, %v7249
    %v7441 = vadd.f32 %v6909, %v7252
    %v7442 = vadd.f32 %v6910, %v7255
    %v7443 = vadd.f32 %v6911, %v7258
    %v7444 = vadd.f32 %v6912, %v7261
    %v7445 = vadd.f32 %v6913, %v7264
    %v7446 = vadd.f32 %v6914, %v7267
    %v7447 = vadd.f32 %v6915, %v7270
    %v7448 = vadd.f32 %v6916, %v7273
    %v7449 = vadd.f32 %v6917, %v7276
    %v7450 = vadd.f32 %v6918, %v7279
    %v7451 = vadd.f32 %v6919, %v7282
    %v7452 = vadd.f32 %v6920, %v7285
    %v7453 = vadd.f32 %v6921, %v7288
    %v7454 = vadd.f32 %v6922, %v7291
    %v7455 = vadd.f32 %v6923, %v7294
    %v7456 = vadd.f32 %v6924, %v7297
    %v7457 = vadd.f32 %v6925, %v7300
    %v7458 = vadd.f32 %v6926, %v7303
    %v7459 = vadd.f32 %v6927, %v7306
    %v7460 = vadd.f32 %v6928, %v7309
    %v7461 = vadd.f32 %v6929, %v7312
    %v7462 = vadd.f32 %v6930, %v7315
    %v7463 = vadd.f32 %v6931, %v7318
    %v7464 = vadd.f32 %v6932, %v7321
    %v7465 = vadd.f32 %v6933, %v7324
    %v7466 = vadd.f32 %v6934, %v7327
    %v7467 = vadd.f32 %v6935, %v7330
    %v7468 = vadd.f32 %v6936, %v7333
    %v7469 = vadd.f32 %v6937, %v7336
    %v7470 = vadd.f32 %v6938, %v7339
    %v7471 = vadd.f32 %v6939, %v7342
    %v7472 = vadd.f32 %v6940, %v7345
    %v7473 = vadd.f32 %v6941, %v7348
    %v7474 = vadd.f32 %v6942, %v7351
    %v7475 = vadd.f32 %v6943, %v7354
    %v7476 = vadd.f32 %v6944, %v7357
    %v7477 = vadd.f32 %v6945, %v7360
    %v7478 = vadd.f32 %v6946, %v7363
    %v7479 = vadd.f32 %v6947, %v7366
    %v7480 = vadd.f32 %v6948, %v7369
    %v7481 = vadd.f32 %v6949, %v7372
    %v7482 = vadd.f32 %v6950, %v7375
    %v7483 = vadd.f32 %v6951, %v7378
    %v7484 = vadd.f32 %v6952, %v7381
    %v7485 = vadd.f32 %v6953, %v7384
    %v7486 = vadd.f32 %v6954, %v7387
    %v7487 = vadd.f32 %v6955, %v7390
    %v7488 = vadd.f32 %v6956, %v7393
    %v7489 = vadd.f32 %v6957, %v7396
    %v7490 = vadd.f32 %v6958, %v7399
    %v7491 = vadd.f32 %v6959, %v7402
    %v7492 = vadd.f32 %v6960, %v7405
    %v7493 = vadd.f32 %v6961, %v7408
    %v7494 = vadd.f32 %v6962, %v7411
    %v7495 = vadd.f32 %v6963, %v7414
    %v7496 = vadd.f32 %v6964, %v7417
    %v7497 = vadd.f32 %v6965, %v7420
    %v7498 = vadd.f32 %v6966, %v7423
    %v7499 = vadd.f32 %v6967, %v7426
    %v7500 = vadd.f32 %v6968, %v7429
    %v7501 = vadd.f32 %v6969, %v7432
    %v7502 = vadd.f32 %v6970, %v7435
    %v7503 = vadd.f32 %v6971, %v7438
    %v7504 = vld [vmem:[%s5440 + $0x1] sm:$0xff]
    %v7505 = vld [vmem:[%s5440 + $0x9] sm:$0xff]
    %v7506 = vld [vmem:[%s5440 + $0x19] sm:$0xff]
    %v7507 = vld [vmem:[%s5440 + $0x21] sm:$0xff]
    %v7508 = vld [vmem:[%s5440 + $0x31] sm:$0xff]
    %v7509 = vld [vmem:[%s5440 + $0x39] sm:$0xff]
    %v7510 = vld [vmem:[%s5440 + $0x49] sm:$0xff]
    %v7511 = vld [vmem:[%s5440 + $0x51] sm:$0xff]
    %v7512 = vld [vmem:[%s5440 + $0x61] sm:$0xff]
    %v7513 = vld [vmem:[%s5440 + $0x69] sm:$0xff]
    %v7514 = vld [vmem:[%s5440 + $0x79] sm:$0xff]
    %v7515 = vld [vmem:[%s5440 + $0x81] sm:$0xff]
    %v7516 = vld [vmem:[%s5440 + $0x91] sm:$0xff]
    %v7517 = vld [vmem:[%s5440 + $0x99] sm:$0xff]
    %v7518 = vld [vmem:[%s5440 + $0xa9] sm:$0xff]
    %v7519 = vld [vmem:[%s5440 + $0xb1] sm:$0xff]
    %v7520 = vld [vmem:[%s5440 + $0xc1] sm:$0xff]
    %v7521 = vld [vmem:[%s5440 + $0xc9] sm:$0xff]
    %v7522 = vld [vmem:[%s5440 + $0xd9] sm:$0xff]
    %v7523 = vld [vmem:[%s5440 + $0xe1] sm:$0xff]
    %v7524 = vld [vmem:[%s5440 + $0xf1] sm:$0xff]
    %v7525 = vld [vmem:[%s5440 + $0xf9] sm:$0xff]
    %v7526 = vld [vmem:[%s5440 + $0x109] sm:$0xff]
    %v7527 = vld [vmem:[%s5440 + $0x111] sm:$0xff]
    %v7528 = vld [vmem:[%s5440 + $0x121] sm:$0xff]
    %v7529 = vld [vmem:[%s5440 + $0x129] sm:$0xff]
    %v7530 = vld [vmem:[%s5440 + $0x139] sm:$0xff]
    %v7531 = vld [vmem:[%s5440 + $0x141] sm:$0xff]
    %v7532 = vld [vmem:[%s5440 + $0x151] sm:$0xff]
    %v7533 = vld [vmem:[%s5440 + $0x159] sm:$0xff]
    %v7534 = vld [vmem:[%s5440 + $0x169] sm:$0xff]
    %v7535 = vld [vmem:[%s5440 + $0x171] sm:$0xff]
    %v7536 = vld [vmem:[%s5440 + $0x1b1] sm:$0xff]
    %v7537 = vld [vmem:[%s5440 + $0x1b9] sm:$0xff]
    %v7538 = vld [vmem:[%s5440 + $0x1c9] sm:$0xff]
    %v7539 = vld [vmem:[%s5440 + $0x1d1] sm:$0xff]
    %v7540 = vld [vmem:[%s5440 + $0x1e1] sm:$0xff]
    %v7541 = vld [vmem:[%s5440 + $0x1e9] sm:$0xff]
    %v7542 = vld [vmem:[%s5440 + $0x1f9] sm:$0xff]
    %v7543 = vld [vmem:[%s5440 + $0x201] sm:$0xff]
    %v7544 = vld [vmem:[%s5440 + $0x211] sm:$0xff]
    %v7545 = vld [vmem:[%s5440 + $0x219] sm:$0xff]
    %v7546 = vld [vmem:[%s5440 + $0x229] sm:$0xff]
    %v7547 = vld [vmem:[%s5440 + $0x231] sm:$0xff]
    %v7548 = vld [vmem:[%s5440 + $0x241] sm:$0xff]
    %v7549 = vld [vmem:[%s5440 + $0x249] sm:$0xff]
    %v7550 = vld [vmem:[%s5440 + $0x259] sm:$0xff]
    %v7551 = vld [vmem:[%s5440 + $0x261] sm:$0xff]
    %v7552 = vld [vmem:[%s5440 + $0x271] sm:$0xff]
    %v7553 = vld [vmem:[%s5440 + $0x279] sm:$0xff]
    %v7554 = vld [vmem:[%s5440 + $0x289] sm:$0xff]
    %v7555 = vld [vmem:[%s5440 + $0x291] sm:$0xff]
    %v7556 = vld [vmem:[%s5440 + $0x2a1] sm:$0xff]
    %v7557 = vld [vmem:[%s5440 + $0x2a9] sm:$0xff]
    %v7558 = vld [vmem:[%s5440 + $0x2b9] sm:$0xff]
    %v7559 = vld [vmem:[%s5440 + $0x2c1] sm:$0xff]
    %v7560 = vld [vmem:[%s5440 + $0x2d1] sm:$0xff]
    %v7561 = vld [vmem:[%s5440 + $0x2d9] sm:$0xff]
    %v7562 = vld [vmem:[%s5440 + $0x2e9] sm:$0xff]
    %v7563 = vld [vmem:[%s5440 + $0x2f1] sm:$0xff]
    %v7564 = vld [vmem:[%s5440 + $0x301] sm:$0xff]
    %v7565 = vld [vmem:[%s5440 + $0x309] sm:$0xff]
    %v7566 = vld [vmem:[%s5440 + $0x319] sm:$0xff]
    %v7567 = vld [vmem:[%s5440 + $0x321] sm:$0xff]
    %s7568 = scalar_lea.vmem %s5, 64
    %v7569 = vld [vmem:[%s7568] sm:$0xff]
    %v7570 = vld [vmem:[%s7568 + $0x8] sm:$0xff]
    %v7572 = vsel %vm4782, %v7504, 0
    %v7575 = vsel %vm4782, %v7505, 0
    %v7578 = vsel %vm4782, %v7506, 0
    %v7581 = vsel %vm4782, %v7507, 0
    %v7584 = vsel %vm4782, %v7508, 0
    %v7587 = vsel %vm4782, %v7509, 0
    %v7590 = vsel %vm4782, %v7510, 0
    %v7593 = vsel %vm4782, %v7511, 0
    %v7596 = vsel %vm4782, %v7512, 0
    %v7599 = vsel %vm4782, %v7513, 0
    %v7602 = vsel %vm4782, %v7514, 0
    %v7605 = vsel %vm4782, %v7515, 0
    %v7608 = vsel %vm4782, %v7516, 0
    %v7611 = vsel %vm4782, %v7517, 0
    %v7614 = vsel %vm4782, %v7518, 0
    %v7617 = vsel %vm4782, %v7519, 0
    %v7620 = vsel %vm4782, %v7520, 0
    %v7623 = vsel %vm4782, %v7521, 0
    %v7626 = vsel %vm4782, %v7522, 0
    %v7629 = vsel %vm4782, %v7523, 0
    %v7632 = vsel %vm4782, %v7524, 0
    %v7635 = vsel %vm4782, %v7525, 0
    %v7638 = vsel %vm4782, %v7526, 0
    %v7641 = vsel %vm4782, %v7527, 0
    %v7644 = vsel %vm4782, %v7528, 0
    %v7647 = vsel %vm4782, %v7529, 0
    %v7650 = vsel %vm4782, %v7530, 0
    %v7653 = vsel %vm4782, %v7531, 0
    %v7656 = vsel %vm4782, %v7532, 0
    %v7659 = vsel %vm4782, %v7533, 0
    %v7662 = vsel %vm4782, %v7534, 0
    %v7665 = vsel %vm4782, %v7535, 0
    %v7668 = vsel %vm4782, %v7536, 0
    %v7671 = vsel %vm4782, %v7537, 0
    %v7674 = vsel %vm4782, %v7538, 0
    %v7677 = vsel %vm4782, %v7539, 0
    %v7680 = vsel %vm4782, %v7540, 0
    %v7683 = vsel %vm4782, %v7541, 0
    %v7686 = vsel %vm4782, %v7542, 0
    %v7689 = vsel %vm4782, %v7543, 0
    %v7692 = vsel %vm4782, %v7544, 0
    %v7695 = vsel %vm4782, %v7545, 0
    %v7698 = vsel %vm4782, %v7546, 0
    %v7701 = vsel %vm4782, %v7547, 0
    %v7704 = vsel %vm4782, %v7548, 0
    %v7707 = vsel %vm4782, %v7549, 0
    %v7710 = vsel %vm4782, %v7550, 0
    %v7713 = vsel %vm4782, %v7551, 0
    %v7716 = vsel %vm4782, %v7552, 0
    %v7719 = vsel %vm4782, %v7553, 0
    %v7722 = vsel %vm4782, %v7554, 0
    %v7725 = vsel %vm4782, %v7555, 0
    %v7728 = vsel %vm4782, %v7556, 0
    %v7731 = vsel %vm4782, %v7557, 0
    %v7734 = vsel %vm4782, %v7558, 0
    %v7737 = vsel %vm4782, %v7559, 0
    %v7740 = vsel %vm4782, %v7560, 0
    %v7743 = vsel %vm4782, %v7561, 0
    %v7746 = vsel %vm4782, %v7562, 0
    %v7749 = vsel %vm4782, %v7563, 0
    %v7752 = vsel %vm4782, %v7564, 0
    %v7755 = vsel %vm4782, %v7565, 0
    %v7758 = vsel %vm4782, %v7566, 0
    %v7761 = vsel %vm4782, %v7567, 0
    %7763 = vmatpush.msra.mxu0 0.0
    %7764 = vmatpush.msra.mxu0 0.0
    %7765 = vmatpush.msra.mxu0 0.0
    %7766 = vmatpush.msra.mxu0 0.0
    %7767 = vmatpush.msra.mxu0 0.0
    %7768 = vmatpush.msra.mxu0 0.0
    %7769 = vmatpush.msra.mxu0 0.0
    %7770 = vmatpush.msra.mxu0 0.0
    %7771 = vmatpush.msra.mxu0 0.0
    %7772 = vmatpush.msra.mxu0 0.0
    %7773 = vmatpush.msra.mxu0 0.0
    %7774 = vmatpush.msra.mxu0 0.0
    %7775 = vmatpush.msra.mxu0 0.0
    %7776 = vmatpush.msra.mxu0 0.0
    %7777 = vmatpush.msra.mxu0 %v7570
    %7778 = vmatpush.msra.mxu0 %v7569
    %7779 = vmatmul.f32.gmra.mxu0 %v7572
    %v7780 = vpop.f32.mrf.mxu0
    %v7781 = vadd.f32 0.0, %v7780
    %7782 = vmatmul.f32.gmra.mxu0 %v7575
    %v7783 = vpop.f32.mrf.mxu0
    %v7784 = vadd.f32 0.0, %v7783
    %7785 = vmatmul.f32.gmra.mxu0 %v7578
    %v7786 = vpop.f32.mrf.mxu0
    %v7787 = vadd.f32 0.0, %v7786
    %7788 = vmatmul.f32.gmra.mxu0 %v7581
    %v7789 = vpop.f32.mrf.mxu0
    %v7790 = vadd.f32 0.0, %v7789
    %7791 = vmatmul.f32.gmra.mxu0 %v7584
    %v7792 = vpop.f32.mrf.mxu0
    %v7793 = vadd.f32 0.0, %v7792
    %7794 = vmatmul.f32.gmra.mxu0 %v7587
    %v7795 = vpop.f32.mrf.mxu0
    %v7796 = vadd.f32 0.0, %v7795
    %7797 = vmatmul.f32.gmra.mxu0 %v7590
    %v7798 = vpop.f32.mrf.mxu0
    %v7799 = vadd.f32 0.0, %v7798
    %7800 = vmatmul.f32.gmra.mxu0 %v7593
    %v7801 = vpop.f32.mrf.mxu0
    %v7802 = vadd.f32 0.0, %v7801
    %7803 = vmatmul.f32.gmra.mxu0 %v7596
    %v7804 = vpop.f32.mrf.mxu0
    %v7805 = vadd.f32 0.0, %v7804
    %7806 = vmatmul.f32.gmra.mxu0 %v7599
    %v7807 = vpop.f32.mrf.mxu0
    %v7808 = vadd.f32 0.0, %v7807
    %7809 = vmatmul.f32.gmra.mxu0 %v7602
    %v7810 = vpop.f32.mrf.mxu0
    %v7811 = vadd.f32 0.0, %v7810
    %7812 = vmatmul.f32.gmra.mxu0 %v7605
    %v7813 = vpop.f32.mrf.mxu0
    %v7814 = vadd.f32 0.0, %v7813
    %7815 = vmatmul.f32.gmra.mxu0 %v7608
    %v7816 = vpop.f32.mrf.mxu0
    %v7817 = vadd.f32 0.0, %v7816
    %7818 = vmatmul.f32.gmra.mxu0 %v7611
    %v7819 = vpop.f32.mrf.mxu0
    %v7820 = vadd.f32 0.0, %v7819
    %7821 = vmatmul.f32.gmra.mxu0 %v7614
    %v7822 = vpop.f32.mrf.mxu0
    %v7823 = vadd.f32 0.0, %v7822
    %7824 = vmatmul.f32.gmra.mxu0 %v7617
    %v7825 = vpop.f32.mrf.mxu0
    %v7826 = vadd.f32 0.0, %v7825
    %7827 = vmatmul.f32.gmra.mxu0 %v7620
    %v7828 = vpop.f32.mrf.mxu0
    %v7829 = vadd.f32 0.0, %v7828
    %7830 = vmatmul.f32.gmra.mxu0 %v7623
    %v7831 = vpop.f32.mrf.mxu0
    %v7832 = vadd.f32 0.0, %v7831
    %7833 = vmatmul.f32.gmra.mxu0 %v7626
    %v7834 = vpop.f32.mrf.mxu0
    %v7835 = vadd.f32 0.0, %v7834
    %7836 = vmatmul.f32.gmra.mxu0 %v7629
    %v7837 = vpop.f32.mrf.mxu0
    %v7838 = vadd.f32 0.0, %v7837
    %7839 = vmatmul.f32.gmra.mxu0 %v7632
    %v7840 = vpop.f32.mrf.mxu0
    %v7841 = vadd.f32 0.0, %v7840
    %7842 = vmatmul.f32.gmra.mxu0 %v7635
    %v7843 = vpop.f32.mrf.mxu0
    %v7844 = vadd.f32 0.0, %v7843
    %7845 = vmatmul.f32.gmra.mxu0 %v7638
    %v7846 = vpop.f32.mrf.mxu0
    %v7847 = vadd.f32 0.0, %v7846
    %7848 = vmatmul.f32.gmra.mxu0 %v7641
    %v7849 = vpop.f32.mrf.mxu0
    %v7850 = vadd.f32 0.0, %v7849
    %7851 = vmatmul.f32.gmra.mxu0 %v7644
    %v7852 = vpop.f32.mrf.mxu0
    %v7853 = vadd.f32 0.0, %v7852
    %7854 = vmatmul.f32.gmra.mxu0 %v7647
    %v7855 = vpop.f32.mrf.mxu0
    %v7856 = vadd.f32 0.0, %v7855
    %7857 = vmatmul.f32.gmra.mxu0 %v7650
    %v7858 = vpop.f32.mrf.mxu0
    %v7859 = vadd.f32 0.0, %v7858
    %7860 = vmatmul.f32.gmra.mxu0 %v7653
    %v7861 = vpop.f32.mrf.mxu0
    %v7862 = vadd.f32 0.0, %v7861
    %7863 = vmatmul.f32.gmra.mxu0 %v7656
    %v7864 = vpop.f32.mrf.mxu0
    %v7865 = vadd.f32 0.0, %v7864
    %7866 = vmatmul.f32.gmra.mxu0 %v7659
    %v7867 = vpop.f32.mrf.mxu0
    %v7868 = vadd.f32 0.0, %v7867
    %7869 = vmatmul.f32.gmra.mxu0 %v7662
    %v7870 = vpop.f32.mrf.mxu0
    %v7871 = vadd.f32 0.0, %v7870
    %7872 = vmatmul.f32.gmra.mxu0 %v7665
    %v7873 = vpop.f32.mrf.mxu0
    %v7874 = vadd.f32 0.0, %v7873
    %7875 = vmatmul.f32.gmra.mxu0 %v7668
    %v7876 = vpop.f32.mrf.mxu0
    %v7877 = vadd.f32 0.0, %v7876
    %7878 = vmatmul.f32.gmra.mxu0 %v7671
    %v7879 = vpop.f32.mrf.mxu0
    %v7880 = vadd.f32 0.0, %v7879
    %7881 = vmatmul.f32.gmra.mxu0 %v7674
    %v7882 = vpop.f32.mrf.mxu0
    %v7883 = vadd.f32 0.0, %v7882
    %7884 = vmatmul.f32.gmra.mxu0 %v7677
    %v7885 = vpop.f32.mrf.mxu0
    %v7886 = vadd.f32 0.0, %v7885
    %7887 = vmatmul.f32.gmra.mxu0 %v7680
    %v7888 = vpop.f32.mrf.mxu0
    %v7889 = vadd.f32 0.0, %v7888
    %7890 = vmatmul.f32.gmra.mxu0 %v7683
    %v7891 = vpop.f32.mrf.mxu0
    %v7892 = vadd.f32 0.0, %v7891
    %7893 = vmatmul.f32.gmra.mxu0 %v7686
    %v7894 = vpop.f32.mrf.mxu0
    %v7895 = vadd.f32 0.0, %v7894
    %7896 = vmatmul.f32.gmra.mxu0 %v7689
    %v7897 = vpop.f32.mrf.mxu0
    %v7898 = vadd.f32 0.0, %v7897
    %7899 = vmatmul.f32.gmra.mxu0 %v7692
    %v7900 = vpop.f32.mrf.mxu0
    %v7901 = vadd.f32 0.0, %v7900
    %7902 = vmatmul.f32.gmra.mxu0 %v7695
    %v7903 = vpop.f32.mrf.mxu0
    %v7904 = vadd.f32 0.0, %v7903
    %7905 = vmatmul.f32.gmra.mxu0 %v7698
    %v7906 = vpop.f32.mrf.mxu0
    %v7907 = vadd.f32 0.0, %v7906
    %7908 = vmatmul.f32.gmra.mxu0 %v7701
    %v7909 = vpop.f32.mrf.mxu0
    %v7910 = vadd.f32 0.0, %v7909
    %7911 = vmatmul.f32.gmra.mxu0 %v7704
    %v7912 = vpop.f32.mrf.mxu0
    %v7913 = vadd.f32 0.0, %v7912
    %7914 = vmatmul.f32.gmra.mxu0 %v7707
    %v7915 = vpop.f32.mrf.mxu0
    %v7916 = vadd.f32 0.0, %v7915
    %7917 = vmatmul.f32.gmra.mxu0 %v7710
    %v7918 = vpop.f32.mrf.mxu0
    %v7919 = vadd.f32 0.0, %v7918
    %7920 = vmatmul.f32.gmra.mxu0 %v7713
    %v7921 = vpop.f32.mrf.mxu0
    %v7922 = vadd.f32 0.0, %v7921
    %7923 = vmatmul.f32.gmra.mxu0 %v7716
    %v7924 = vpop.f32.mrf.mxu0
    %v7925 = vadd.f32 0.0, %v7924
    %7926 = vmatmul.f32.gmra.mxu0 %v7719
    %v7927 = vpop.f32.mrf.mxu0
    %v7928 = vadd.f32 0.0, %v7927
    %7929 = vmatmul.f32.gmra.mxu0 %v7722
    %v7930 = vpop.f32.mrf.mxu0
    %v7931 = vadd.f32 0.0, %v7930
    %7932 = vmatmul.f32.gmra.mxu0 %v7725
    %v7933 = vpop.f32.mrf.mxu0
    %v7934 = vadd.f32 0.0, %v7933
    %7935 = vmatmul.f32.gmra.mxu0 %v7728
    %v7936 = vpop.f32.mrf.mxu0
    %v7937 = vadd.f32 0.0, %v7936
    %7938 = vmatmul.f32.gmra.mxu0 %v7731
    %v7939 = vpop.f32.mrf.mxu0
    %v7940 = vadd.f32 0.0, %v7939
    %7941 = vmatmul.f32.gmra.mxu0 %v7734
    %v7942 = vpop.f32.mrf.mxu0
    %v7943 = vadd.f32 0.0, %v7942
    %7944 = vmatmul.f32.gmra.mxu0 %v7737
    %v7945 = vpop.f32.mrf.mxu0
    %v7946 = vadd.f32 0.0, %v7945
    %7947 = vmatmul.f32.gmra.mxu0 %v7740
    %v7948 = vpop.f32.mrf.mxu0
    %v7949 = vadd.f32 0.0, %v7948
    %7950 = vmatmul.f32.gmra.mxu0 %v7743
    %v7951 = vpop.f32.mrf.mxu0
    %v7952 = vadd.f32 0.0, %v7951
    %7953 = vmatmul.f32.gmra.mxu0 %v7746
    %v7954 = vpop.f32.mrf.mxu0
    %v7955 = vadd.f32 0.0, %v7954
    %7956 = vmatmul.f32.gmra.mxu0 %v7749
    %v7957 = vpop.f32.mrf.mxu0
    %v7958 = vadd.f32 0.0, %v7957
    %7959 = vmatmul.f32.gmra.mxu0 %v7752
    %v7960 = vpop.f32.mrf.mxu0
    %v7961 = vadd.f32 0.0, %v7960
    %7962 = vmatmul.f32.gmra.mxu0 %v7755
    %v7963 = vpop.f32.mrf.mxu0
    %v7964 = vadd.f32 0.0, %v7963
    %7965 = vmatmul.f32.gmra.mxu0 %v7758
    %v7966 = vpop.f32.mrf.mxu0
    %v7967 = vadd.f32 0.0, %v7966
    %7968 = vmatmul.f32.gmra.mxu0 %v7761
    %v7969 = vpop.f32.mrf.mxu0
    %v7970 = vadd.f32 0.0, %v7969
    %7971 = vdwg.mxu0
    %v7972 = vadd.f32 %v7440, %v7781
    %v7973 = vadd.f32 %v7441, %v7784
    %v7974 = vadd.f32 %v7442, %v7787
    %v7975 = vadd.f32 %v7443, %v7790
    %v7976 = vadd.f32 %v7444, %v7793
    %v7977 = vadd.f32 %v7445, %v7796
    %v7978 = vadd.f32 %v7446, %v7799
    %v7979 = vadd.f32 %v7447, %v7802
    %v7980 = vadd.f32 %v7448, %v7805
    %v7981 = vadd.f32 %v7449, %v7808
    %v7982 = vadd.f32 %v7450, %v7811
    %v7983 = vadd.f32 %v7451, %v7814
    %v7984 = vadd.f32 %v7452, %v7817
    %v7985 = vadd.f32 %v7453, %v7820
    %v7986 = vadd.f32 %v7454, %v7823
    %v7987 = vadd.f32 %v7455, %v7826
    %v7988 = vadd.f32 %v7456, %v7829
    %v7989 = vadd.f32 %v7457, %v7832
    %v7990 = vadd.f32 %v7458, %v7835
    %v7991 = vadd.f32 %v7459, %v7838
    %v7992 = vadd.f32 %v7460, %v7841
    %v7993 = vadd.f32 %v7461, %v7844
    %v7994 = vadd.f32 %v7462, %v7847
    %v7995 = vadd.f32 %v7463, %v7850
    %v7996 = vadd.f32 %v7464, %v7853
    %v7997 = vadd.f32 %v7465, %v7856
    %v7998 = vadd.f32 %v7466, %v7859
    %v7999 = vadd.f32 %v7467, %v7862
    %v8000 = vadd.f32 %v7468, %v7865
    %v8001 = vadd.f32 %v7469, %v7868
    %v8002 = vadd.f32 %v7470, %v7871
    %v8003 = vadd.f32 %v7471, %v7874
    %v8004 = vadd.f32 %v7472, %v7877
    %v8005 = vadd.f32 %v7473, %v7880
    %v8006 = vadd.f32 %v7474, %v7883
    %v8007 = vadd.f32 %v7475, %v7886
    %v8008 = vadd.f32 %v7476, %v7889
    %v8009 = vadd.f32 %v7477, %v7892
    %v8010 = vadd.f32 %v7478, %v7895
    %v8011 = vadd.f32 %v7479, %v7898
    %v8012 = vadd.f32 %v7480, %v7901
    %v8013 = vadd.f32 %v7481, %v7904
    %v8014 = vadd.f32 %v7482, %v7907
    %v8015 = vadd.f32 %v7483, %v7910
    %v8016 = vadd.f32 %v7484, %v7913
    %v8017 = vadd.f32 %v7485, %v7916
    %v8018 = vadd.f32 %v7486, %v7919
    %v8019 = vadd.f32 %v7487, %v7922
    %v8020 = vadd.f32 %v7488, %v7925
    %v8021 = vadd.f32 %v7489, %v7928
    %v8022 = vadd.f32 %v7490, %v7931
    %v8023 = vadd.f32 %v7491, %v7934
    %v8024 = vadd.f32 %v7492, %v7937
    %v8025 = vadd.f32 %v7493, %v7940
    %v8026 = vadd.f32 %v7494, %v7943
    %v8027 = vadd.f32 %v7495, %v7946
    %v8028 = vadd.f32 %v7496, %v7949
    %v8029 = vadd.f32 %v7497, %v7952
    %v8030 = vadd.f32 %v7498, %v7955
    %v8031 = vadd.f32 %v7499, %v7958
    %v8032 = vadd.f32 %v7500, %v7961
    %v8033 = vadd.f32 %v7501, %v7964
    %v8034 = vadd.f32 %v7502, %v7967
    %v8035 = vadd.f32 %v7503, %v7970
    %v8036 = vld [vmem:[%s5440 + $0x2] sm:$0xff]
    %v8037 = vld [vmem:[%s5440 + $0xa] sm:$0xff]
    %v8038 = vld [vmem:[%s5440 + $0x1a] sm:$0xff]
    %v8039 = vld [vmem:[%s5440 + $0x22] sm:$0xff]
    %v8040 = vld [vmem:[%s5440 + $0x32] sm:$0xff]
    %v8041 = vld [vmem:[%s5440 + $0x3a] sm:$0xff]
    %v8042 = vld [vmem:[%s5440 + $0x4a] sm:$0xff]
    %v8043 = vld [vmem:[%s5440 + $0x52] sm:$0xff]
    %v8044 = vld [vmem:[%s5440 + $0x62] sm:$0xff]
    %v8045 = vld [vmem:[%s5440 + $0x6a] sm:$0xff]
    %v8046 = vld [vmem:[%s5440 + $0x7a] sm:$0xff]
    %v8047 = vld [vmem:[%s5440 + $0x82] sm:$0xff]
    %v8048 = vld [vmem:[%s5440 + $0x92] sm:$0xff]
    %v8049 = vld [vmem:[%s5440 + $0x9a] sm:$0xff]
    %v8050 = vld [vmem:[%s5440 + $0xaa] sm:$0xff]
    %v8051 = vld [vmem:[%s5440 + $0xb2] sm:$0xff]
    %v8052 = vld [vmem:[%s5440 + $0xc2] sm:$0xff]
    %v8053 = vld [vmem:[%s5440 + $0xca] sm:$0xff]
    %v8054 = vld [vmem:[%s5440 + $0xda] sm:$0xff]
    %v8055 = vld [vmem:[%s5440 + $0xe2] sm:$0xff]
    %v8056 = vld [vmem:[%s5440 + $0xf2] sm:$0xff]
    %v8057 = vld [vmem:[%s5440 + $0xfa] sm:$0xff]
    %v8058 = vld [vmem:[%s5440 + $0x10a] sm:$0xff]
    %v8059 = vld [vmem:[%s5440 + $0x112] sm:$0xff]
    %v8060 = vld [vmem:[%s5440 + $0x122] sm:$0xff]
    %v8061 = vld [vmem:[%s5440 + $0x12a] sm:$0xff]
    %v8062 = vld [vmem:[%s5440 + $0x13a] sm:$0xff]
    %v8063 = vld [vmem:[%s5440 + $0x142] sm:$0xff]
    %v8064 = vld [vmem:[%s5440 + $0x152] sm:$0xff]
    %v8065 = vld [vmem:[%s5440 + $0x15a] sm:$0xff]
    %v8066 = vld [vmem:[%s5440 + $0x16a] sm:$0xff]
    %v8067 = vld [vmem:[%s5440 + $0x172] sm:$0xff]
    %v8068 = vld [vmem:[%s5440 + $0x1b2] sm:$0xff]
    %v8069 = vld [vmem:[%s5440 + $0x1ba] sm:$0xff]
    %v8070 = vld [vmem:[%s5440 + $0x1ca] sm:$0xff]
    %v8071 = vld [vmem:[%s5440 + $0x1d2] sm:$0xff]
    %v8072 = vld [vmem:[%s5440 + $0x1e2] sm:$0xff]
    %v8073 = vld [vmem:[%s5440 + $0x1ea] sm:$0xff]
    %v8074 = vld [vmem:[%s5440 + $0x1fa] sm:$0xff]
    %v8075 = vld [vmem:[%s5440 + $0x202] sm:$0xff]
    %v8076 = vld [vmem:[%s5440 + $0x212] sm:$0xff]
    %v8077 = vld [vmem:[%s5440 + $0x21a] sm:$0xff]
    %v8078 = vld [vmem:[%s5440 + $0x22a] sm:$0xff]
    %v8079 = vld [vmem:[%s5440 + $0x232] sm:$0xff]
    %v8080 = vld [vmem:[%s5440 + $0x242] sm:$0xff]
    %v8081 = vld [vmem:[%s5440 + $0x24a] sm:$0xff]
    %v8082 = vld [vmem:[%s5440 + $0x25a] sm:$0xff]
    %v8083 = vld [vmem:[%s5440 + $0x262] sm:$0xff]
    %v8084 = vld [vmem:[%s5440 + $0x272] sm:$0xff]
    %v8085 = vld [vmem:[%s5440 + $0x27a] sm:$0xff]
    %v8086 = vld [vmem:[%s5440 + $0x28a] sm:$0xff]
    %v8087 = vld [vmem:[%s5440 + $0x292] sm:$0xff]
    %v8088 = vld [vmem:[%s5440 + $0x2a2] sm:$0xff]
    %v8089 = vld [vmem:[%s5440 + $0x2aa] sm:$0xff]
    %v8090 = vld [vmem:[%s5440 + $0x2ba] sm:$0xff]
    %v8091 = vld [vmem:[%s5440 + $0x2c2] sm:$0xff]
    %v8092 = vld [vmem:[%s5440 + $0x2d2] sm:$0xff]
    %v8093 = vld [vmem:[%s5440 + $0x2da] sm:$0xff]
    %v8094 = vld [vmem:[%s5440 + $0x2ea] sm:$0xff]
    %v8095 = vld [vmem:[%s5440 + $0x2f2] sm:$0xff]
    %v8096 = vld [vmem:[%s5440 + $0x302] sm:$0xff]
    %v8097 = vld [vmem:[%s5440 + $0x30a] sm:$0xff]
    %v8098 = vld [vmem:[%s5440 + $0x31a] sm:$0xff]
    %v8099 = vld [vmem:[%s5440 + $0x322] sm:$0xff]
    %s8100 = scalar_lea.vmem %s5, 80
    %v8101 = vld [vmem:[%s8100] sm:$0xff]
    %v8102 = vld [vmem:[%s8100 + $0x8] sm:$0xff]
    %v8104 = vsel %vm4782, %v8036, 0
    %v8107 = vsel %vm4782, %v8037, 0
    %v8110 = vsel %vm4782, %v8038, 0
    %v8113 = vsel %vm4782, %v8039, 0
    %v8116 = vsel %vm4782, %v8040, 0
    %v8119 = vsel %vm4782, %v8041, 0
    %v8122 = vsel %vm4782, %v8042, 0
    %v8125 = vsel %vm4782, %v8043, 0
    %v8128 = vsel %vm4782, %v8044, 0
    %v8131 = vsel %vm4782, %v8045, 0
    %v8134 = vsel %vm4782, %v8046, 0
    %v8137 = vsel %vm4782, %v8047, 0
    %v8140 = vsel %vm4782, %v8048, 0
    %v8143 = vsel %vm4782, %v8049, 0
    %v8146 = vsel %vm4782, %v8050, 0
    %v8149 = vsel %vm4782, %v8051, 0
    %v8152 = vsel %vm4782, %v8052, 0
    %v8155 = vsel %vm4782, %v8053, 0
    %v8158 = vsel %vm4782, %v8054, 0
    %v8161 = vsel %vm4782, %v8055, 0
    %v8164 = vsel %vm4782, %v8056, 0
    %v8167 = vsel %vm4782, %v8057, 0
    %v8170 = vsel %vm4782, %v8058, 0
    %v8173 = vsel %vm4782, %v8059, 0
    %v8176 = vsel %vm4782, %v8060, 0
    %v8179 = vsel %vm4782, %v8061, 0
    %v8182 = vsel %vm4782, %v8062, 0
    %v8185 = vsel %vm4782, %v8063, 0
    %v8188 = vsel %vm4782, %v8064, 0
    %v8191 = vsel %vm4782, %v8065, 0
    %v8194 = vsel %vm4782, %v8066, 0
    %v8197 = vsel %vm4782, %v8067, 0
    %v8200 = vsel %vm4782, %v8068, 0
    %v8203 = vsel %vm4782, %v8069, 0
    %v8206 = vsel %vm4782, %v8070, 0
    %v8209 = vsel %vm4782, %v8071, 0
    %v8212 = vsel %vm4782, %v8072, 0
    %v8215 = vsel %vm4782, %v8073, 0
    %v8218 = vsel %vm4782, %v8074, 0
    %v8221 = vsel %vm4782, %v8075, 0
    %v8224 = vsel %vm4782, %v8076, 0
    %v8227 = vsel %vm4782, %v8077, 0
    %v8230 = vsel %vm4782, %v8078, 0
    %v8233 = vsel %vm4782, %v8079, 0
    %v8236 = vsel %vm4782, %v8080, 0
    %v8239 = vsel %vm4782, %v8081, 0
    %v8242 = vsel %vm4782, %v8082, 0
    %v8245 = vsel %vm4782, %v8083, 0
    %v8248 = vsel %vm4782, %v8084, 0
    %v8251 = vsel %vm4782, %v8085, 0
    %v8254 = vsel %vm4782, %v8086, 0
    %v8257 = vsel %vm4782, %v8087, 0
    %v8260 = vsel %vm4782, %v8088, 0
    %v8263 = vsel %vm4782, %v8089, 0
    %v8266 = vsel %vm4782, %v8090, 0
    %v8269 = vsel %vm4782, %v8091, 0
    %v8272 = vsel %vm4782, %v8092, 0
    %v8275 = vsel %vm4782, %v8093, 0
    %v8278 = vsel %vm4782, %v8094, 0
    %v8281 = vsel %vm4782, %v8095, 0
    %v8284 = vsel %vm4782, %v8096, 0
    %v8287 = vsel %vm4782, %v8097, 0
    %v8290 = vsel %vm4782, %v8098, 0
    %v8293 = vsel %vm4782, %v8099, 0
    %8295 = vmatpush.msra.mxu0 0.0
    %8296 = vmatpush.msra.mxu0 0.0
    %8297 = vmatpush.msra.mxu0 0.0
    %8298 = vmatpush.msra.mxu0 0.0
    %8299 = vmatpush.msra.mxu0 0.0
    %8300 = vmatpush.msra.mxu0 0.0
    %8301 = vmatpush.msra.mxu0 0.0
    %8302 = vmatpush.msra.mxu0 0.0
    %8303 = vmatpush.msra.mxu0 0.0
    %8304 = vmatpush.msra.mxu0 0.0
    %8305 = vmatpush.msra.mxu0 0.0
    %8306 = vmatpush.msra.mxu0 0.0
    %8307 = vmatpush.msra.mxu0 0.0
    %8308 = vmatpush.msra.mxu0 0.0
    %8309 = vmatpush.msra.mxu0 %v8102
    %8310 = vmatpush.msra.mxu0 %v8101
    %8311 = vmatmul.f32.gmra.mxu0 %v8104
    %v8312 = vpop.f32.mrf.mxu0
    %v8313 = vadd.f32 0.0, %v8312
    %8314 = vmatmul.f32.gmra.mxu0 %v8107
    %v8315 = vpop.f32.mrf.mxu0
    %v8316 = vadd.f32 0.0, %v8315
    %8317 = vmatmul.f32.gmra.mxu0 %v8110
    %v8318 = vpop.f32.mrf.mxu0
    %v8319 = vadd.f32 0.0, %v8318
    %8320 = vmatmul.f32.gmra.mxu0 %v8113
    %v8321 = vpop.f32.mrf.mxu0
    %v8322 = vadd.f32 0.0, %v8321
    %8323 = vmatmul.f32.gmra.mxu0 %v8116
    %v8324 = vpop.f32.mrf.mxu0
    %v8325 = vadd.f32 0.0, %v8324
    %8326 = vmatmul.f32.gmra.mxu0 %v8119
    %v8327 = vpop.f32.mrf.mxu0
    %v8328 = vadd.f32 0.0, %v8327
    %8329 = vmatmul.f32.gmra.mxu0 %v8122
    %v8330 = vpop.f32.mrf.mxu0
    %v8331 = vadd.f32 0.0, %v8330
    %8332 = vmatmul.f32.gmra.mxu0 %v8125
    %v8333 = vpop.f32.mrf.mxu0
    %v8334 = vadd.f32 0.0, %v8333
    %8335 = vmatmul.f32.gmra.mxu0 %v8128
    %v8336 = vpop.f32.mrf.mxu0
    %v8337 = vadd.f32 0.0, %v8336
    %8338 = vmatmul.f32.gmra.mxu0 %v8131
    %v8339 = vpop.f32.mrf.mxu0
    %v8340 = vadd.f32 0.0, %v8339
    %8341 = vmatmul.f32.gmra.mxu0 %v8134
    %v8342 = vpop.f32.mrf.mxu0
    %v8343 = vadd.f32 0.0, %v8342
    %8344 = vmatmul.f32.gmra.mxu0 %v8137
    %v8345 = vpop.f32.mrf.mxu0
    %v8346 = vadd.f32 0.0, %v8345
    %8347 = vmatmul.f32.gmra.mxu0 %v8140
    %v8348 = vpop.f32.mrf.mxu0
    %v8349 = vadd.f32 0.0, %v8348
    %8350 = vmatmul.f32.gmra.mxu0 %v8143
    %v8351 = vpop.f32.mrf.mxu0
    %v8352 = vadd.f32 0.0, %v8351
    %8353 = vmatmul.f32.gmra.mxu0 %v8146
    %v8354 = vpop.f32.mrf.mxu0
    %v8355 = vadd.f32 0.0, %v8354
    %8356 = vmatmul.f32.gmra.mxu0 %v8149
    %v8357 = vpop.f32.mrf.mxu0
    %v8358 = vadd.f32 0.0, %v8357
    %8359 = vmatmul.f32.gmra.mxu0 %v8152
    %v8360 = vpop.f32.mrf.mxu0
    %v8361 = vadd.f32 0.0, %v8360
    %8362 = vmatmul.f32.gmra.mxu0 %v8155
    %v8363 = vpop.f32.mrf.mxu0
    %v8364 = vadd.f32 0.0, %v8363
    %8365 = vmatmul.f32.gmra.mxu0 %v8158
    %v8366 = vpop.f32.mrf.mxu0
    %v8367 = vadd.f32 0.0, %v8366
    %8368 = vmatmul.f32.gmra.mxu0 %v8161
    %v8369 = vpop.f32.mrf.mxu0
    %v8370 = vadd.f32 0.0, %v8369
    %8371 = vmatmul.f32.gmra.mxu0 %v8164
    %v8372 = vpop.f32.mrf.mxu0
    %v8373 = vadd.f32 0.0, %v8372
    %8374 = vmatmul.f32.gmra.mxu0 %v8167
    %v8375 = vpop.f32.mrf.mxu0
    %v8376 = vadd.f32 0.0, %v8375
    %8377 = vmatmul.f32.gmra.mxu0 %v8170
    %v8378 = vpop.f32.mrf.mxu0
    %v8379 = vadd.f32 0.0, %v8378
    %8380 = vmatmul.f32.gmra.mxu0 %v8173
    %v8381 = vpop.f32.mrf.mxu0
    %v8382 = vadd.f32 0.0, %v8381
    %8383 = vmatmul.f32.gmra.mxu0 %v8176
    %v8384 = vpop.f32.mrf.mxu0
    %v8385 = vadd.f32 0.0, %v8384
    %8386 = vmatmul.f32.gmra.mxu0 %v8179
    %v8387 = vpop.f32.mrf.mxu0
    %v8388 = vadd.f32 0.0, %v8387
    %8389 = vmatmul.f32.gmra.mxu0 %v8182
    %v8390 = vpop.f32.mrf.mxu0
    %v8391 = vadd.f32 0.0, %v8390
    %8392 = vmatmul.f32.gmra.mxu0 %v8185
    %v8393 = vpop.f32.mrf.mxu0
    %v8394 = vadd.f32 0.0, %v8393
    %8395 = vmatmul.f32.gmra.mxu0 %v8188
    %v8396 = vpop.f32.mrf.mxu0
    %v8397 = vadd.f32 0.0, %v8396
    %8398 = vmatmul.f32.gmra.mxu0 %v8191
    %v8399 = vpop.f32.mrf.mxu0
    %v8400 = vadd.f32 0.0, %v8399
    %8401 = vmatmul.f32.gmra.mxu0 %v8194
    %v8402 = vpop.f32.mrf.mxu0
    %v8403 = vadd.f32 0.0, %v8402
    %8404 = vmatmul.f32.gmra.mxu0 %v8197
    %v8405 = vpop.f32.mrf.mxu0
    %v8406 = vadd.f32 0.0, %v8405
    %8407 = vmatmul.f32.gmra.mxu0 %v8200
    %v8408 = vpop.f32.mrf.mxu0
    %v8409 = vadd.f32 0.0, %v8408
    %8410 = vmatmul.f32.gmra.mxu0 %v8203
    %v8411 = vpop.f32.mrf.mxu0
    %v8412 = vadd.f32 0.0, %v8411
    %8413 = vmatmul.f32.gmra.mxu0 %v8206
    %v8414 = vpop.f32.mrf.mxu0
    %v8415 = vadd.f32 0.0, %v8414
    %8416 = vmatmul.f32.gmra.mxu0 %v8209
    %v8417 = vpop.f32.mrf.mxu0
    %v8418 = vadd.f32 0.0, %v8417
    %8419 = vmatmul.f32.gmra.mxu0 %v8212
    %v8420 = vpop.f32.mrf.mxu0
    %v8421 = vadd.f32 0.0, %v8420
    %8422 = vmatmul.f32.gmra.mxu0 %v8215
    %v8423 = vpop.f32.mrf.mxu0
    %v8424 = vadd.f32 0.0, %v8423
    %8425 = vmatmul.f32.gmra.mxu0 %v8218
    %v8426 = vpop.f32.mrf.mxu0
    %v8427 = vadd.f32 0.0, %v8426
    %8428 = vmatmul.f32.gmra.mxu0 %v8221
    %v8429 = vpop.f32.mrf.mxu0
    %v8430 = vadd.f32 0.0, %v8429
    %8431 = vmatmul.f32.gmra.mxu0 %v8224
    %v8432 = vpop.f32.mrf.mxu0
    %v8433 = vadd.f32 0.0, %v8432
    %8434 = vmatmul.f32.gmra.mxu0 %v8227
    %v8435 = vpop.f32.mrf.mxu0
    %v8436 = vadd.f32 0.0, %v8435
    %8437 = vmatmul.f32.gmra.mxu0 %v8230
    %v8438 = vpop.f32.mrf.mxu0
    %v8439 = vadd.f32 0.0, %v8438
    %8440 = vmatmul.f32.gmra.mxu0 %v8233
    %v8441 = vpop.f32.mrf.mxu0
    %v8442 = vadd.f32 0.0, %v8441
    %8443 = vmatmul.f32.gmra.mxu0 %v8236
    %v8444 = vpop.f32.mrf.mxu0
    %v8445 = vadd.f32 0.0, %v8444
    %8446 = vmatmul.f32.gmra.mxu0 %v8239
    %v8447 = vpop.f32.mrf.mxu0
    %v8448 = vadd.f32 0.0, %v8447
    %8449 = vmatmul.f32.gmra.mxu0 %v8242
    %v8450 = vpop.f32.mrf.mxu0
    %v8451 = vadd.f32 0.0, %v8450
    %8452 = vmatmul.f32.gmra.mxu0 %v8245
    %v8453 = vpop.f32.mrf.mxu0
    %v8454 = vadd.f32 0.0, %v8453
    %8455 = vmatmul.f32.gmra.mxu0 %v8248
    %v8456 = vpop.f32.mrf.mxu0
    %v8457 = vadd.f32 0.0, %v8456
    %8458 = vmatmul.f32.gmra.mxu0 %v8251
    %v8459 = vpop.f32.mrf.mxu0
    %v8460 = vadd.f32 0.0, %v8459
    %8461 = vmatmul.f32.gmra.mxu0 %v8254
    %v8462 = vpop.f32.mrf.mxu0
    %v8463 = vadd.f32 0.0, %v8462
    %8464 = vmatmul.f32.gmra.mxu0 %v8257
    %v8465 = vpop.f32.mrf.mxu0
    %v8466 = vadd.f32 0.0, %v8465
    %8467 = vmatmul.f32.gmra.mxu0 %v8260
    %v8468 = vpop.f32.mrf.mxu0
    %v8469 = vadd.f32 0.0, %v8468
    %8470 = vmatmul.f32.gmra.mxu0 %v8263
    %v8471 = vpop.f32.mrf.mxu0
    %v8472 = vadd.f32 0.0, %v8471
    %8473 = vmatmul.f32.gmra.mxu0 %v8266
    %v8474 = vpop.f32.mrf.mxu0
    %v8475 = vadd.f32 0.0, %v8474
    %8476 = vmatmul.f32.gmra.mxu0 %v8269
    %v8477 = vpop.f32.mrf.mxu0
    %v8478 = vadd.f32 0.0, %v8477
    %8479 = vmatmul.f32.gmra.mxu0 %v8272
    %v8480 = vpop.f32.mrf.mxu0
    %v8481 = vadd.f32 0.0, %v8480
    %8482 = vmatmul.f32.gmra.mxu0 %v8275
    %v8483 = vpop.f32.mrf.mxu0
    %v8484 = vadd.f32 0.0, %v8483
    %8485 = vmatmul.f32.gmra.mxu0 %v8278
    %v8486 = vpop.f32.mrf.mxu0
    %v8487 = vadd.f32 0.0, %v8486
    %8488 = vmatmul.f32.gmra.mxu0 %v8281
    %v8489 = vpop.f32.mrf.mxu0
    %v8490 = vadd.f32 0.0, %v8489
    %8491 = vmatmul.f32.gmra.mxu0 %v8284
    %v8492 = vpop.f32.mrf.mxu0
    %v8493 = vadd.f32 0.0, %v8492
    %8494 = vmatmul.f32.gmra.mxu0 %v8287
    %v8495 = vpop.f32.mrf.mxu0
    %v8496 = vadd.f32 0.0, %v8495
    %8497 = vmatmul.f32.gmra.mxu0 %v8290
    %v8498 = vpop.f32.mrf.mxu0
    %v8499 = vadd.f32 0.0, %v8498
    %8500 = vmatmul.f32.gmra.mxu0 %v8293
    %v8501 = vpop.f32.mrf.mxu0
    %v8502 = vadd.f32 0.0, %v8501
    %8503 = vdwg.mxu0
    %v8504 = vadd.f32 %v7972, %v8313
    %v8505 = vadd.f32 %v7973, %v8316
    %v8506 = vadd.f32 %v7974, %v8319
    %v8507 = vadd.f32 %v7975, %v8322
    %v8508 = vadd.f32 %v7976, %v8325
    %v8509 = vadd.f32 %v7977, %v8328
    %v8510 = vadd.f32 %v7978, %v8331
    %v8511 = vadd.f32 %v7979, %v8334
    %v8512 = vadd.f32 %v7980, %v8337
    %v8513 = vadd.f32 %v7981, %v8340
    %v8514 = vadd.f32 %v7982, %v8343
    %v8515 = vadd.f32 %v7983, %v8346
    %v8516 = vadd.f32 %v7984, %v8349
    %v8517 = vadd.f32 %v7985, %v8352
    %v8518 = vadd.f32 %v7986, %v8355
    %v8519 = vadd.f32 %v7987, %v8358
    %v8520 = vadd.f32 %v7988, %v8361
    %v8521 = vadd.f32 %v7989, %v8364
    %v8522 = vadd.f32 %v7990, %v8367
    %v8523 = vadd.f32 %v7991, %v8370
    %v8524 = vadd.f32 %v7992, %v8373
    %v8525 = vadd.f32 %v7993, %v8376
    %v8526 = vadd.f32 %v7994, %v8379
    %v8527 = vadd.f32 %v7995, %v8382
    %v8528 = vadd.f32 %v7996, %v8385
    %v8529 = vadd.f32 %v7997, %v8388
    %v8530 = vadd.f32 %v7998, %v8391
    %v8531 = vadd.f32 %v7999, %v8394
    %v8532 = vadd.f32 %v8000, %v8397
    %v8533 = vadd.f32 %v8001, %v8400
    %v8534 = vadd.f32 %v8002, %v8403
    %v8535 = vadd.f32 %v8003, %v8406
    %v8536 = vadd.f32 %v8004, %v8409
    %v8537 = vadd.f32 %v8005, %v8412
    %v8538 = vadd.f32 %v8006, %v8415
    %v8539 = vadd.f32 %v8007, %v8418
    %v8540 = vadd.f32 %v8008, %v8421
    %v8541 = vadd.f32 %v8009, %v8424
    %v8542 = vadd.f32 %v8010, %v8427
    %v8543 = vadd.f32 %v8011, %v8430
    %v8544 = vadd.f32 %v8012, %v8433
    %v8545 = vadd.f32 %v8013, %v8436
    %v8546 = vadd.f32 %v8014, %v8439
    %v8547 = vadd.f32 %v8015, %v8442
    %v8548 = vadd.f32 %v8016, %v8445
    %v8549 = vadd.f32 %v8017, %v8448
    %v8550 = vadd.f32 %v8018, %v8451
    %v8551 = vadd.f32 %v8019, %v8454
    %v8552 = vadd.f32 %v8020, %v8457
    %v8553 = vadd.f32 %v8021, %v8460
    %v8554 = vadd.f32 %v8022, %v8463
    %v8555 = vadd.f32 %v8023, %v8466
    %v8556 = vadd.f32 %v8024, %v8469
    %v8557 = vadd.f32 %v8025, %v8472
    %v8558 = vadd.f32 %v8026, %v8475
    %v8559 = vadd.f32 %v8027, %v8478
    %v8560 = vadd.f32 %v8028, %v8481
    %v8561 = vadd.f32 %v8029, %v8484
    %v8562 = vadd.f32 %v8030, %v8487
    %v8563 = vadd.f32 %v8031, %v8490
    %v8564 = vadd.f32 %v8032, %v8493
    %v8565 = vadd.f32 %v8033, %v8496
    %v8566 = vadd.f32 %v8034, %v8499
    %v8567 = vadd.f32 %v8035, %v8502
    %s8568 = scalar_lea.vmem [#allocation2], 48
    %v8569 = vld [vmem:[%s8568] sm:$0xff]
    %v8570 = vld [vmem:[%s8568 + $0x8] sm:$0xff]
    %v8571 = vld [vmem:[%s8568 + $0x18] sm:$0xff]
    %v8572 = vld [vmem:[%s8568 + $0x20] sm:$0xff]
    %v8573 = vld [vmem:[%s8568 + $0x30] sm:$0xff]
    %v8574 = vld [vmem:[%s8568 + $0x38] sm:$0xff]
    %v8575 = vld [vmem:[%s8568 + $0x48] sm:$0xff]
    %v8576 = vld [vmem:[%s8568 + $0x50] sm:$0xff]
    %v8577 = vld [vmem:[%s8568 + $0x60] sm:$0xff]
    %v8578 = vld [vmem:[%s8568 + $0x68] sm:$0xff]
    %v8579 = vld [vmem:[%s8568 + $0x78] sm:$0xff]
    %v8580 = vld [vmem:[%s8568 + $0x80] sm:$0xff]
    %v8581 = vld [vmem:[%s8568 + $0x90] sm:$0xff]
    %v8582 = vld [vmem:[%s8568 + $0x98] sm:$0xff]
    %v8583 = vld [vmem:[%s8568 + $0xa8] sm:$0xff]
    %v8584 = vld [vmem:[%s8568 + $0xb0] sm:$0xff]
    %v8585 = vld [vmem:[%s8568 + $0xc0] sm:$0xff]
    %v8586 = vld [vmem:[%s8568 + $0xc8] sm:$0xff]
    %v8587 = vld [vmem:[%s8568 + $0xd8] sm:$0xff]
    %v8588 = vld [vmem:[%s8568 + $0xe0] sm:$0xff]
    %v8589 = vld [vmem:[%s8568 + $0xf0] sm:$0xff]
    %v8590 = vld [vmem:[%s8568 + $0xf8] sm:$0xff]
    %v8591 = vld [vmem:[%s8568 + $0x108] sm:$0xff]
    %v8592 = vld [vmem:[%s8568 + $0x110] sm:$0xff]
    %v8593 = vld [vmem:[%s8568 + $0x120] sm:$0xff]
    %v8594 = vld [vmem:[%s8568 + $0x128] sm:$0xff]
    %v8595 = vld [vmem:[%s8568 + $0x138] sm:$0xff]
    %v8596 = vld [vmem:[%s8568 + $0x140] sm:$0xff]
    %v8597 = vld [vmem:[%s8568 + $0x150] sm:$0xff]
    %v8598 = vld [vmem:[%s8568 + $0x158] sm:$0xff]
    %v8599 = vld [vmem:[%s8568 + $0x168] sm:$0xff]
    %v8600 = vld [vmem:[%s8568 + $0x170] sm:$0xff]
    %v8601 = vld [vmem:[%s8568 + $0x1b0] sm:$0xff]
    %v8602 = vld [vmem:[%s8568 + $0x1b8] sm:$0xff]
    %v8603 = vld [vmem:[%s8568 + $0x1c8] sm:$0xff]
    %v8604 = vld [vmem:[%s8568 + $0x1d0] sm:$0xff]
    %v8605 = vld [vmem:[%s8568 + $0x1e0] sm:$0xff]
    %v8606 = vld [vmem:[%s8568 + $0x1e8] sm:$0xff]
    %v8607 = vld [vmem:[%s8568 + $0x1f8] sm:$0xff]
    %v8608 = vld [vmem:[%s8568 + $0x200] sm:$0xff]
    %v8609 = vld [vmem:[%s8568 + $0x210] sm:$0xff]
    %v8610 = vld [vmem:[%s8568 + $0x218] sm:$0xff]
    %v8611 = vld [vmem:[%s8568 + $0x228] sm:$0xff]
    %v8612 = vld [vmem:[%s8568 + $0x230] sm:$0xff]
    %v8613 = vld [vmem:[%s8568 + $0x240] sm:$0xff]
    %v8614 = vld [vmem:[%s8568 + $0x248] sm:$0xff]
    %v8615 = vld [vmem:[%s8568 + $0x258] sm:$0xff]
    %v8616 = vld [vmem:[%s8568 + $0x260] sm:$0xff]
    %v8617 = vld [vmem:[%s8568 + $0x270] sm:$0xff]
    %v8618 = vld [vmem:[%s8568 + $0x278] sm:$0xff]
    %v8619 = vld [vmem:[%s8568 + $0x288] sm:$0xff]
    %v8620 = vld [vmem:[%s8568 + $0x290] sm:$0xff]
    %v8621 = vld [vmem:[%s8568 + $0x2a0] sm:$0xff]
    %v8622 = vld [vmem:[%s8568 + $0x2a8] sm:$0xff]
    %v8623 = vld [vmem:[%s8568 + $0x2b8] sm:$0xff]
    %v8624 = vld [vmem:[%s8568 + $0x2c0] sm:$0xff]
    %v8625 = vld [vmem:[%s8568 + $0x2d0] sm:$0xff]
    %v8626 = vld [vmem:[%s8568 + $0x2d8] sm:$0xff]
    %v8627 = vld [vmem:[%s8568 + $0x2e8] sm:$0xff]
    %v8628 = vld [vmem:[%s8568 + $0x2f0] sm:$0xff]
    %v8629 = vld [vmem:[%s8568 + $0x300] sm:$0xff]
    %v8630 = vld [vmem:[%s8568 + $0x308] sm:$0xff]
    %v8631 = vld [vmem:[%s8568 + $0x318] sm:$0xff]
    %v8632 = vld [vmem:[%s8568 + $0x320] sm:$0xff]
    %s8633 = scalar_lea.vmem %s5, 96
    %v8634 = vld [vmem:[%s8633] sm:$0xff]
    %v8635 = vld [vmem:[%s8633 + $0x8] sm:$0xff]
    %v8637 = vsel %vm4782, %v8569, 0
    %v8640 = vsel %vm4782, %v8570, 0
    %v8643 = vsel %vm4782, %v8571, 0
    %v8646 = vsel %vm4782, %v8572, 0
    %v8649 = vsel %vm4782, %v8573, 0
    %v8652 = vsel %vm4782, %v8574, 0
    %v8655 = vsel %vm4782, %v8575, 0
    %v8658 = vsel %vm4782, %v8576, 0
    %v8661 = vsel %vm4782, %v8577, 0
    %v8664 = vsel %vm4782, %v8578, 0
    %v8667 = vsel %vm4782, %v8579, 0
    %v8670 = vsel %vm4782, %v8580, 0
    %v8673 = vsel %vm4782, %v8581, 0
    %v8676 = vsel %vm4782, %v8582, 0
    %v8679 = vsel %vm4782, %v8583, 0
    %v8682 = vsel %vm4782, %v8584, 0
    %v8685 = vsel %vm4782, %v8585, 0
    %v8688 = vsel %vm4782, %v8586, 0
    %v8691 = vsel %vm4782, %v8587, 0
    %v8694 = vsel %vm4782, %v8588, 0
    %v8697 = vsel %vm4782, %v8589, 0
    %v8700 = vsel %vm4782, %v8590, 0
    %v8703 = vsel %vm4782, %v8591, 0
    %v8706 = vsel %vm4782, %v8592, 0
    %v8709 = vsel %vm4782, %v8593, 0
    %v8712 = vsel %vm4782, %v8594, 0
    %v8715 = vsel %vm4782, %v8595, 0
    %v8718 = vsel %vm4782, %v8596, 0
    %v8721 = vsel %vm4782, %v8597, 0
    %v8724 = vsel %vm4782, %v8598, 0
    %v8727 = vsel %vm4782, %v8599, 0
    %v8730 = vsel %vm4782, %v8600, 0
    %v8733 = vsel %vm4782, %v8601, 0
    %v8736 = vsel %vm4782, %v8602, 0
    %v8739 = vsel %vm4782, %v8603, 0
    %v8742 = vsel %vm4782, %v8604, 0
    %v8745 = vsel %vm4782, %v8605, 0
    %v8748 = vsel %vm4782, %v8606, 0
    %v8751 = vsel %vm4782, %v8607, 0
    %v8754 = vsel %vm4782, %v8608, 0
    %v8757 = vsel %vm4782, %v8609, 0
    %v8760 = vsel %vm4782, %v8610, 0
    %v8763 = vsel %vm4782, %v8611, 0
    %v8766 = vsel %vm4782, %v8612, 0
    %v8769 = vsel %vm4782, %v8613, 0
    %v8772 = vsel %vm4782, %v8614, 0
    %v8775 = vsel %vm4782, %v8615, 0
    %v8778 = vsel %vm4782, %v8616, 0
    %v8781 = vsel %vm4782, %v8617, 0
    %v8784 = vsel %vm4782, %v8618, 0
    %v8787 = vsel %vm4782, %v8619, 0
    %v8790 = vsel %vm4782, %v8620, 0
    %v8793 = vsel %vm4782, %v8621, 0
    %v8796 = vsel %vm4782, %v8622, 0
    %v8799 = vsel %vm4782, %v8623, 0
    %v8802 = vsel %vm4782, %v8624, 0
    %v8805 = vsel %vm4782, %v8625, 0
    %v8808 = vsel %vm4782, %v8626, 0
    %v8811 = vsel %vm4782, %v8627, 0
    %v8814 = vsel %vm4782, %v8628, 0
    %v8817 = vsel %vm4782, %v8629, 0
    %v8820 = vsel %vm4782, %v8630, 0
    %v8823 = vsel %vm4782, %v8631, 0
    %v8826 = vsel %vm4782, %v8632, 0
    %8828 = vmatpush.msra.mxu0 0.0
    %8829 = vmatpush.msra.mxu0 0.0
    %8830 = vmatpush.msra.mxu0 0.0
    %8831 = vmatpush.msra.mxu0 0.0
    %8832 = vmatpush.msra.mxu0 0.0
    %8833 = vmatpush.msra.mxu0 0.0
    %8834 = vmatpush.msra.mxu0 0.0
    %8835 = vmatpush.msra.mxu0 0.0
    %8836 = vmatpush.msra.mxu0 0.0
    %8837 = vmatpush.msra.mxu0 0.0
    %8838 = vmatpush.msra.mxu0 0.0
    %8839 = vmatpush.msra.mxu0 0.0
    %8840 = vmatpush.msra.mxu0 0.0
    %8841 = vmatpush.msra.mxu0 0.0
    %8842 = vmatpush.msra.mxu0 %v8635
    %8843 = vmatpush.msra.mxu0 %v8634
    %8844 = vmatmul.f32.gmra.mxu0 %v8637
    %v8845 = vpop.f32.mrf.mxu0
    %v8846 = vadd.f32 0.0, %v8845
    %8847 = vmatmul.f32.gmra.mxu0 %v8640
    %v8848 = vpop.f32.mrf.mxu0
    %v8849 = vadd.f32 0.0, %v8848
    %8850 = vmatmul.f32.gmra.mxu0 %v8643
    %v8851 = vpop.f32.mrf.mxu0
    %v8852 = vadd.f32 0.0, %v8851
    %8853 = vmatmul.f32.gmra.mxu0 %v8646
    %v8854 = vpop.f32.mrf.mxu0
    %v8855 = vadd.f32 0.0, %v8854
    %8856 = vmatmul.f32.gmra.mxu0 %v8649
    %v8857 = vpop.f32.mrf.mxu0
    %v8858 = vadd.f32 0.0, %v8857
    %8859 = vmatmul.f32.gmra.mxu0 %v8652
    %v8860 = vpop.f32.mrf.mxu0
    %v8861 = vadd.f32 0.0, %v8860
    %8862 = vmatmul.f32.gmra.mxu0 %v8655
    %v8863 = vpop.f32.mrf.mxu0
    %v8864 = vadd.f32 0.0, %v8863
    %8865 = vmatmul.f32.gmra.mxu0 %v8658
    %v8866 = vpop.f32.mrf.mxu0
    %v8867 = vadd.f32 0.0, %v8866
    %8868 = vmatmul.f32.gmra.mxu0 %v8661
    %v8869 = vpop.f32.mrf.mxu0
    %v8870 = vadd.f32 0.0, %v8869
    %8871 = vmatmul.f32.gmra.mxu0 %v8664
    %v8872 = vpop.f32.mrf.mxu0
    %v8873 = vadd.f32 0.0, %v8872
    %8874 = vmatmul.f32.gmra.mxu0 %v8667
    %v8875 = vpop.f32.mrf.mxu0
    %v8876 = vadd.f32 0.0, %v8875
    %8877 = vmatmul.f32.gmra.mxu0 %v8670
    %v8878 = vpop.f32.mrf.mxu0
    %v8879 = vadd.f32 0.0, %v8878
    %8880 = vmatmul.f32.gmra.mxu0 %v8673
    %v8881 = vpop.f32.mrf.mxu0
    %v8882 = vadd.f32 0.0, %v8881
    %8883 = vmatmul.f32.gmra.mxu0 %v8676
    %v8884 = vpop.f32.mrf.mxu0
    %v8885 = vadd.f32 0.0, %v8884
    %8886 = vmatmul.f32.gmra.mxu0 %v8679
    %v8887 = vpop.f32.mrf.mxu0
    %v8888 = vadd.f32 0.0, %v8887
    %8889 = vmatmul.f32.gmra.mxu0 %v8682
    %v8890 = vpop.f32.mrf.mxu0
    %v8891 = vadd.f32 0.0, %v8890
    %8892 = vmatmul.f32.gmra.mxu0 %v8685
    %v8893 = vpop.f32.mrf.mxu0
    %v8894 = vadd.f32 0.0, %v8893
    %8895 = vmatmul.f32.gmra.mxu0 %v8688
    %v8896 = vpop.f32.mrf.mxu0
    %v8897 = vadd.f32 0.0, %v8896
    %8898 = vmatmul.f32.gmra.mxu0 %v8691
    %v8899 = vpop.f32.mrf.mxu0
    %v8900 = vadd.f32 0.0, %v8899
    %8901 = vmatmul.f32.gmra.mxu0 %v8694
    %v8902 = vpop.f32.mrf.mxu0
    %v8903 = vadd.f32 0.0, %v8902
    %8904 = vmatmul.f32.gmra.mxu0 %v8697
    %v8905 = vpop.f32.mrf.mxu0
    %v8906 = vadd.f32 0.0, %v8905
    %8907 = vmatmul.f32.gmra.mxu0 %v8700
    %v8908 = vpop.f32.mrf.mxu0
    %v8909 = vadd.f32 0.0, %v8908
    %8910 = vmatmul.f32.gmra.mxu0 %v8703
    %v8911 = vpop.f32.mrf.mxu0
    %v8912 = vadd.f32 0.0, %v8911
    %8913 = vmatmul.f32.gmra.mxu0 %v8706
    %v8914 = vpop.f32.mrf.mxu0
    %v8915 = vadd.f32 0.0, %v8914
    %8916 = vmatmul.f32.gmra.mxu0 %v8709
    %v8917 = vpop.f32.mrf.mxu0
    %v8918 = vadd.f32 0.0, %v8917
    %8919 = vmatmul.f32.gmra.mxu0 %v8712
    %v8920 = vpop.f32.mrf.mxu0
    %v8921 = vadd.f32 0.0, %v8920
    %8922 = vmatmul.f32.gmra.mxu0 %v8715
    %v8923 = vpop.f32.mrf.mxu0
    %v8924 = vadd.f32 0.0, %v8923
    %8925 = vmatmul.f32.gmra.mxu0 %v8718
    %v8926 = vpop.f32.mrf.mxu0
    %v8927 = vadd.f32 0.0, %v8926
    %8928 = vmatmul.f32.gmra.mxu0 %v8721
    %v8929 = vpop.f32.mrf.mxu0
    %v8930 = vadd.f32 0.0, %v8929
    %8931 = vmatmul.f32.gmra.mxu0 %v8724
    %v8932 = vpop.f32.mrf.mxu0
    %v8933 = vadd.f32 0.0, %v8932
    %8934 = vmatmul.f32.gmra.mxu0 %v8727
    %v8935 = vpop.f32.mrf.mxu0
    %v8936 = vadd.f32 0.0, %v8935
    %8937 = vmatmul.f32.gmra.mxu0 %v8730
    %v8938 = vpop.f32.mrf.mxu0
    %v8939 = vadd.f32 0.0, %v8938
    %8940 = vmatmul.f32.gmra.mxu0 %v8733
    %v8941 = vpop.f32.mrf.mxu0
    %v8942 = vadd.f32 0.0, %v8941
    %8943 = vmatmul.f32.gmra.mxu0 %v8736
    %v8944 = vpop.f32.mrf.mxu0
    %v8945 = vadd.f32 0.0, %v8944
    %8946 = vmatmul.f32.gmra.mxu0 %v8739
    %v8947 = vpop.f32.mrf.mxu0
    %v8948 = vadd.f32 0.0, %v8947
    %8949 = vmatmul.f32.gmra.mxu0 %v8742
    %v8950 = vpop.f32.mrf.mxu0
    %v8951 = vadd.f32 0.0, %v8950
    %8952 = vmatmul.f32.gmra.mxu0 %v8745
    %v8953 = vpop.f32.mrf.mxu0
    %v8954 = vadd.f32 0.0, %v8953
    %8955 = vmatmul.f32.gmra.mxu0 %v8748
    %v8956 = vpop.f32.mrf.mxu0
    %v8957 = vadd.f32 0.0, %v8956
    %8958 = vmatmul.f32.gmra.mxu0 %v8751
    %v8959 = vpop.f32.mrf.mxu0
    %v8960 = vadd.f32 0.0, %v8959
    %8961 = vmatmul.f32.gmra.mxu0 %v8754
    %v8962 = vpop.f32.mrf.mxu0
    %v8963 = vadd.f32 0.0, %v8962
    %8964 = vmatmul.f32.gmra.mxu0 %v8757
    %v8965 = vpop.f32.mrf.mxu0
    %v8966 = vadd.f32 0.0, %v8965
    %8967 = vmatmul.f32.gmra.mxu0 %v8760
    %v8968 = vpop.f32.mrf.mxu0
    %v8969 = vadd.f32 0.0, %v8968
    %8970 = vmatmul.f32.gmra.mxu0 %v8763
    %v8971 = vpop.f32.mrf.mxu0
    %v8972 = vadd.f32 0.0, %v8971
    %8973 = vmatmul.f32.gmra.mxu0 %v8766
    %v8974 = vpop.f32.mrf.mxu0
    %v8975 = vadd.f32 0.0, %v8974
    %8976 = vmatmul.f32.gmra.mxu0 %v8769
    %v8977 = vpop.f32.mrf.mxu0
    %v8978 = vadd.f32 0.0, %v8977
    %8979 = vmatmul.f32.gmra.mxu0 %v8772
    %v8980 = vpop.f32.mrf.mxu0
    %v8981 = vadd.f32 0.0, %v8980
    %8982 = vmatmul.f32.gmra.mxu0 %v8775
    %v8983 = vpop.f32.mrf.mxu0
    %v8984 = vadd.f32 0.0, %v8983
    %8985 = vmatmul.f32.gmra.mxu0 %v8778
    %v8986 = vpop.f32.mrf.mxu0
    %v8987 = vadd.f32 0.0, %v8986
    %8988 = vmatmul.f32.gmra.mxu0 %v8781
    %v8989 = vpop.f32.mrf.mxu0
    %v8990 = vadd.f32 0.0, %v8989
    %8991 = vmatmul.f32.gmra.mxu0 %v8784
    %v8992 = vpop.f32.mrf.mxu0
    %v8993 = vadd.f32 0.0, %v8992
    %8994 = vmatmul.f32.gmra.mxu0 %v8787
    %v8995 = vpop.f32.mrf.mxu0
    %v8996 = vadd.f32 0.0, %v8995
    %8997 = vmatmul.f32.gmra.mxu0 %v8790
    %v8998 = vpop.f32.mrf.mxu0
    %v8999 = vadd.f32 0.0, %v8998
    %9000 = vmatmul.f32.gmra.mxu0 %v8793
    %v9001 = vpop.f32.mrf.mxu0
    %v9002 = vadd.f32 0.0, %v9001
    %9003 = vmatmul.f32.gmra.mxu0 %v8796
    %v9004 = vpop.f32.mrf.mxu0
    %v9005 = vadd.f32 0.0, %v9004
    %9006 = vmatmul.f32.gmra.mxu0 %v8799
    %v9007 = vpop.f32.mrf.mxu0
    %v9008 = vadd.f32 0.0, %v9007
    %9009 = vmatmul.f32.gmra.mxu0 %v8802
    %v9010 = vpop.f32.mrf.mxu0
    %v9011 = vadd.f32 0.0, %v9010
    %9012 = vmatmul.f32.gmra.mxu0 %v8805
    %v9013 = vpop.f32.mrf.mxu0
    %v9014 = vadd.f32 0.0, %v9013
    %9015 = vmatmul.f32.gmra.mxu0 %v8808
    %v9016 = vpop.f32.mrf.mxu0
    %v9017 = vadd.f32 0.0, %v9016
    %9018 = vmatmul.f32.gmra.mxu0 %v8811
    %v9019 = vpop.f32.mrf.mxu0
    %v9020 = vadd.f32 0.0, %v9019
    %9021 = vmatmul.f32.gmra.mxu0 %v8814
    %v9022 = vpop.f32.mrf.mxu0
    %v9023 = vadd.f32 0.0, %v9022
    %9024 = vmatmul.f32.gmra.mxu0 %v8817
    %v9025 = vpop.f32.mrf.mxu0
    %v9026 = vadd.f32 0.0, %v9025
    %9027 = vmatmul.f32.gmra.mxu0 %v8820
    %v9028 = vpop.f32.mrf.mxu0
    %v9029 = vadd.f32 0.0, %v9028
    %9030 = vmatmul.f32.gmra.mxu0 %v8823
    %v9031 = vpop.f32.mrf.mxu0
    %v9032 = vadd.f32 0.0, %v9031
    %9033 = vmatmul.f32.gmra.mxu0 %v8826
    %v9034 = vpop.f32.mrf.mxu0
    %v9035 = vadd.f32 0.0, %v9034
    %9036 = vdwg.mxu0
    %v9037 = vadd.f32 %v8504, %v8846
    %v9038 = vadd.f32 %v8505, %v8849
    %v9039 = vadd.f32 %v8506, %v8852
    %v9040 = vadd.f32 %v8507, %v8855
    %v9041 = vadd.f32 %v8508, %v8858
    %v9042 = vadd.f32 %v8509, %v8861
    %v9043 = vadd.f32 %v8510, %v8864
    %v9044 = vadd.f32 %v8511, %v8867
    %v9045 = vadd.f32 %v8512, %v8870
    %v9046 = vadd.f32 %v8513, %v8873
    %v9047 = vadd.f32 %v8514, %v8876
    %v9048 = vadd.f32 %v8515, %v8879
    %v9049 = vadd.f32 %v8516, %v8882
    %v9050 = vadd.f32 %v8517, %v8885
    %v9051 = vadd.f32 %v8518, %v8888
    %v9052 = vadd.f32 %v8519, %v8891
    %v9053 = vadd.f32 %v8520, %v8894
    %v9054 = vadd.f32 %v8521, %v8897
    %v9055 = vadd.f32 %v8522, %v8900
    %v9056 = vadd.f32 %v8523, %v8903
    %v9057 = vadd.f32 %v8524, %v8906
    %v9058 = vadd.f32 %v8525, %v8909
    %v9059 = vadd.f32 %v8526, %v8912
    %v9060 = vadd.f32 %v8527, %v8915
    %v9061 = vadd.f32 %v8528, %v8918
    %v9062 = vadd.f32 %v8529, %v8921
    %v9063 = vadd.f32 %v8530, %v8924
    %v9064 = vadd.f32 %v8531, %v8927
    %v9065 = vadd.f32 %v8532, %v8930
    %v9066 = vadd.f32 %v8533, %v8933
    %v9067 = vadd.f32 %v8534, %v8936
    %v9068 = vadd.f32 %v8535, %v8939
    %v9069 = vadd.f32 %v8536, %v8942
    %v9070 = vadd.f32 %v8537, %v8945
    %v9071 = vadd.f32 %v8538, %v8948
    %v9072 = vadd.f32 %v8539, %v8951
    %v9073 = vadd.f32 %v8540, %v8954
    %v9074 = vadd.f32 %v8541, %v8957
    %v9075 = vadd.f32 %v8542, %v8960
    %v9076 = vadd.f32 %v8543, %v8963
    %v9077 = vadd.f32 %v8544, %v8966
    %v9078 = vadd.f32 %v8545, %v8969
    %v9079 = vadd.f32 %v8546, %v8972
    %v9080 = vadd.f32 %v8547, %v8975
    %v9081 = vadd.f32 %v8548, %v8978
    %v9082 = vadd.f32 %v8549, %v8981
    %v9083 = vadd.f32 %v8550, %v8984
    %v9084 = vadd.f32 %v8551, %v8987
    %v9085 = vadd.f32 %v8552, %v8990
    %v9086 = vadd.f32 %v8553, %v8993
    %v9087 = vadd.f32 %v8554, %v8996
    %v9088 = vadd.f32 %v8555, %v8999
    %v9089 = vadd.f32 %v8556, %v9002
    %v9090 = vadd.f32 %v8557, %v9005
    %v9091 = vadd.f32 %v8558, %v9008
    %v9092 = vadd.f32 %v8559, %v9011
    %v9093 = vadd.f32 %v8560, %v9014
    %v9094 = vadd.f32 %v8561, %v9017
    %v9095 = vadd.f32 %v8562, %v9020
    %v9096 = vadd.f32 %v8563, %v9023
    %v9097 = vadd.f32 %v8564, %v9026
    %v9098 = vadd.f32 %v8565, %v9029
    %v9099 = vadd.f32 %v8566, %v9032
    %v9100 = vadd.f32 %v8567, %v9035
    %v9101 = vld [vmem:[%s8568 + $0x1] sm:$0xff]
    %v9102 = vld [vmem:[%s8568 + $0x9] sm:$0xff]
    %v9103 = vld [vmem:[%s8568 + $0x19] sm:$0xff]
    %v9104 = vld [vmem:[%s8568 + $0x21] sm:$0xff]
    %v9105 = vld [vmem:[%s8568 + $0x31] sm:$0xff]
    %v9106 = vld [vmem:[%s8568 + $0x39] sm:$0xff]
    %v9107 = vld [vmem:[%s8568 + $0x49] sm:$0xff]
    %v9108 = vld [vmem:[%s8568 + $0x51] sm:$0xff]
    %v9109 = vld [vmem:[%s8568 + $0x61] sm:$0xff]
    %v9110 = vld [vmem:[%s8568 + $0x69] sm:$0xff]
    %v9111 = vld [vmem:[%s8568 + $0x79] sm:$0xff]
    %v9112 = vld [vmem:[%s8568 + $0x81] sm:$0xff]
    %v9113 = vld [vmem:[%s8568 + $0x91] sm:$0xff]
    %v9114 = vld [vmem:[%s8568 + $0x99] sm:$0xff]
    %v9115 = vld [vmem:[%s8568 + $0xa9] sm:$0xff]
    %v9116 = vld [vmem:[%s8568 + $0xb1] sm:$0xff]
    %v9117 = vld [vmem:[%s8568 + $0xc1] sm:$0xff]
    %v9118 = vld [vmem:[%s8568 + $0xc9] sm:$0xff]
    %v9119 = vld [vmem:[%s8568 + $0xd9] sm:$0xff]
    %v9120 = vld [vmem:[%s8568 + $0xe1] sm:$0xff]
    %v9121 = vld [vmem:[%s8568 + $0xf1] sm:$0xff]
    %v9122 = vld [vmem:[%s8568 + $0xf9] sm:$0xff]
    %v9123 = vld [vmem:[%s8568 + $0x109] sm:$0xff]
    %v9124 = vld [vmem:[%s8568 + $0x111] sm:$0xff]
    %v9125 = vld [vmem:[%s8568 + $0x121] sm:$0xff]
    %v9126 = vld [vmem:[%s8568 + $0x129] sm:$0xff]
    %v9127 = vld [vmem:[%s8568 + $0x139] sm:$0xff]
    %v9128 = vld [vmem:[%s8568 + $0x141] sm:$0xff]
    %v9129 = vld [vmem:[%s8568 + $0x151] sm:$0xff]
    %v9130 = vld [vmem:[%s8568 + $0x159] sm:$0xff]
    %v9131 = vld [vmem:[%s8568 + $0x169] sm:$0xff]
    %v9132 = vld [vmem:[%s8568 + $0x171] sm:$0xff]
    %v9133 = vld [vmem:[%s8568 + $0x1b1] sm:$0xff]
    %v9134 = vld [vmem:[%s8568 + $0x1b9] sm:$0xff]
    %v9135 = vld [vmem:[%s8568 + $0x1c9] sm:$0xff]
    %v9136 = vld [vmem:[%s8568 + $0x1d1] sm:$0xff]
    %v9137 = vld [vmem:[%s8568 + $0x1e1] sm:$0xff]
    %v9138 = vld [vmem:[%s8568 + $0x1e9] sm:$0xff]
    %v9139 = vld [vmem:[%s8568 + $0x1f9] sm:$0xff]
    %v9140 = vld [vmem:[%s8568 + $0x201] sm:$0xff]
    %v9141 = vld [vmem:[%s8568 + $0x211] sm:$0xff]
    %v9142 = vld [vmem:[%s8568 + $0x219] sm:$0xff]
    %v9143 = vld [vmem:[%s8568 + $0x229] sm:$0xff]
    %v9144 = vld [vmem:[%s8568 + $0x231] sm:$0xff]
    %v9145 = vld [vmem:[%s8568 + $0x241] sm:$0xff]
    %v9146 = vld [vmem:[%s8568 + $0x249] sm:$0xff]
    %v9147 = vld [vmem:[%s8568 + $0x259] sm:$0xff]
    %v9148 = vld [vmem:[%s8568 + $0x261] sm:$0xff]
    %v9149 = vld [vmem:[%s8568 + $0x271] sm:$0xff]
    %v9150 = vld [vmem:[%s8568 + $0x279] sm:$0xff]
    %v9151 = vld [vmem:[%s8568 + $0x289] sm:$0xff]
    %v9152 = vld [vmem:[%s8568 + $0x291] sm:$0xff]
    %v9153 = vld [vmem:[%s8568 + $0x2a1] sm:$0xff]
    %v9154 = vld [vmem:[%s8568 + $0x2a9] sm:$0xff]
    %v9155 = vld [vmem:[%s8568 + $0x2b9] sm:$0xff]
    %v9156 = vld [vmem:[%s8568 + $0x2c1] sm:$0xff]
    %v9157 = vld [vmem:[%s8568 + $0x2d1] sm:$0xff]
    %v9158 = vld [vmem:[%s8568 + $0x2d9] sm:$0xff]
    %v9159 = vld [vmem:[%s8568 + $0x2e9] sm:$0xff]
    %v9160 = vld [vmem:[%s8568 + $0x2f1] sm:$0xff]
    %v9161 = vld [vmem:[%s8568 + $0x301] sm:$0xff]
    %v9162 = vld [vmem:[%s8568 + $0x309] sm:$0xff]
    %v9163 = vld [vmem:[%s8568 + $0x319] sm:$0xff]
    %v9164 = vld [vmem:[%s8568 + $0x321] sm:$0xff]
    %s9165 = scalar_lea.vmem %s5, 112
    %v9166 = vld [vmem:[%s9165] sm:$0xff]
    %v9167 = vld [vmem:[%s9165 + $0x8] sm:$0xff]
    %v9169 = vsel %vm4782, %v9101, 0
    %v9172 = vsel %vm4782, %v9102, 0
    %v9175 = vsel %vm4782, %v9103, 0
    %v9178 = vsel %vm4782, %v9104, 0
    %v9181 = vsel %vm4782, %v9105, 0
    %v9184 = vsel %vm4782, %v9106, 0
    %v9187 = vsel %vm4782, %v9107, 0
    %v9190 = vsel %vm4782, %v9108, 0
    %v9193 = vsel %vm4782, %v9109, 0
    %v9196 = vsel %vm4782, %v9110, 0
    %v9199 = vsel %vm4782, %v9111, 0
    %v9202 = vsel %vm4782, %v9112, 0
    %v9205 = vsel %vm4782, %v9113, 0
    %v9208 = vsel %vm4782, %v9114, 0
    %v9211 = vsel %vm4782, %v9115, 0
    %v9214 = vsel %vm4782, %v9116, 0
    %v9217 = vsel %vm4782, %v9117, 0
    %v9220 = vsel %vm4782, %v9118, 0
    %v9223 = vsel %vm4782, %v9119, 0
    %v9226 = vsel %vm4782, %v9120, 0
    %v9229 = vsel %vm4782, %v9121, 0
    %v9232 = vsel %vm4782, %v9122, 0
    %v9235 = vsel %vm4782, %v9123, 0
    %v9238 = vsel %vm4782, %v9124, 0
    %v9241 = vsel %vm4782, %v9125, 0
    %v9244 = vsel %vm4782, %v9126, 0
    %v9247 = vsel %vm4782, %v9127, 0
    %v9250 = vsel %vm4782, %v9128, 0
    %v9253 = vsel %vm4782, %v9129, 0
    %v9256 = vsel %vm4782, %v9130, 0
    %v9259 = vsel %vm4782, %v9131, 0
    %v9262 = vsel %vm4782, %v9132, 0
    %v9265 = vsel %vm4782, %v9133, 0
    %v9268 = vsel %vm4782, %v9134, 0
    %v9271 = vsel %vm4782, %v9135, 0
    %v9274 = vsel %vm4782, %v9136, 0
    %v9277 = vsel %vm4782, %v9137, 0
    %v9280 = vsel %vm4782, %v9138, 0
    %v9283 = vsel %vm4782, %v9139, 0
    %v9286 = vsel %vm4782, %v9140, 0
    %v9289 = vsel %vm4782, %v9141, 0
    %v9292 = vsel %vm4782, %v9142, 0
    %v9295 = vsel %vm4782, %v9143, 0
    %v9298 = vsel %vm4782, %v9144, 0
    %v9301 = vsel %vm4782, %v9145, 0
    %v9304 = vsel %vm4782, %v9146, 0
    %v9307 = vsel %vm4782, %v9147, 0
    %v9310 = vsel %vm4782, %v9148, 0
    %v9313 = vsel %vm4782, %v9149, 0
    %v9316 = vsel %vm4782, %v9150, 0
    %v9319 = vsel %vm4782, %v9151, 0
    %v9322 = vsel %vm4782, %v9152, 0
    %v9325 = vsel %vm4782, %v9153, 0
    %v9328 = vsel %vm4782, %v9154, 0
    %v9331 = vsel %vm4782, %v9155, 0
    %v9334 = vsel %vm4782, %v9156, 0
    %v9337 = vsel %vm4782, %v9157, 0
    %v9340 = vsel %vm4782, %v9158, 0
    %v9343 = vsel %vm4782, %v9159, 0
    %v9346 = vsel %vm4782, %v9160, 0
    %v9349 = vsel %vm4782, %v9161, 0
    %v9352 = vsel %vm4782, %v9162, 0
    %v9355 = vsel %vm4782, %v9163, 0
    %v9358 = vsel %vm4782, %v9164, 0
    %9360 = vmatpush.msra.mxu0 0.0
    %9361 = vmatpush.msra.mxu0 0.0
    %9362 = vmatpush.msra.mxu0 0.0
    %9363 = vmatpush.msra.mxu0 0.0
    %9364 = vmatpush.msra.mxu0 0.0
    %9365 = vmatpush.msra.mxu0 0.0
    %9366 = vmatpush.msra.mxu0 0.0
    %9367 = vmatpush.msra.mxu0 0.0
    %9368 = vmatpush.msra.mxu0 0.0
    %9369 = vmatpush.msra.mxu0 0.0
    %9370 = vmatpush.msra.mxu0 0.0
    %9371 = vmatpush.msra.mxu0 0.0
    %9372 = vmatpush.msra.mxu0 0.0
    %9373 = vmatpush.msra.mxu0 0.0
    %9374 = vmatpush.msra.mxu0 %v9167
    %9375 = vmatpush.msra.mxu0 %v9166
    %9376 = vmatmul.f32.gmra.mxu0 %v9169
    %v9377 = vpop.f32.mrf.mxu0
    %v9378 = vadd.f32 0.0, %v9377
    %9379 = vmatmul.f32.gmra.mxu0 %v9172
    %v9380 = vpop.f32.mrf.mxu0
    %v9381 = vadd.f32 0.0, %v9380
    %9382 = vmatmul.f32.gmra.mxu0 %v9175
    %v9383 = vpop.f32.mrf.mxu0
    %v9384 = vadd.f32 0.0, %v9383
    %9385 = vmatmul.f32.gmra.mxu0 %v9178
    %v9386 = vpop.f32.mrf.mxu0
    %v9387 = vadd.f32 0.0, %v9386
    %9388 = vmatmul.f32.gmra.mxu0 %v9181
    %v9389 = vpop.f32.mrf.mxu0
    %v9390 = vadd.f32 0.0, %v9389
    %9391 = vmatmul.f32.gmra.mxu0 %v9184
    %v9392 = vpop.f32.mrf.mxu0
    %v9393 = vadd.f32 0.0, %v9392
    %9394 = vmatmul.f32.gmra.mxu0 %v9187
    %v9395 = vpop.f32.mrf.mxu0
    %v9396 = vadd.f32 0.0, %v9395
    %9397 = vmatmul.f32.gmra.mxu0 %v9190
    %v9398 = vpop.f32.mrf.mxu0
    %v9399 = vadd.f32 0.0, %v9398
    %9400 = vmatmul.f32.gmra.mxu0 %v9193
    %v9401 = vpop.f32.mrf.mxu0
    %v9402 = vadd.f32 0.0, %v9401
    %9403 = vmatmul.f32.gmra.mxu0 %v9196
    %v9404 = vpop.f32.mrf.mxu0
    %v9405 = vadd.f32 0.0, %v9404
    %9406 = vmatmul.f32.gmra.mxu0 %v9199
    %v9407 = vpop.f32.mrf.mxu0
    %v9408 = vadd.f32 0.0, %v9407
    %9409 = vmatmul.f32.gmra.mxu0 %v9202
    %v9410 = vpop.f32.mrf.mxu0
    %v9411 = vadd.f32 0.0, %v9410
    %9412 = vmatmul.f32.gmra.mxu0 %v9205
    %v9413 = vpop.f32.mrf.mxu0
    %v9414 = vadd.f32 0.0, %v9413
    %9415 = vmatmul.f32.gmra.mxu0 %v9208
    %v9416 = vpop.f32.mrf.mxu0
    %v9417 = vadd.f32 0.0, %v9416
    %9418 = vmatmul.f32.gmra.mxu0 %v9211
    %v9419 = vpop.f32.mrf.mxu0
    %v9420 = vadd.f32 0.0, %v9419
    %9421 = vmatmul.f32.gmra.mxu0 %v9214
    %v9422 = vpop.f32.mrf.mxu0
    %v9423 = vadd.f32 0.0, %v9422
    %9424 = vmatmul.f32.gmra.mxu0 %v9217
    %v9425 = vpop.f32.mrf.mxu0
    %v9426 = vadd.f32 0.0, %v9425
    %9427 = vmatmul.f32.gmra.mxu0 %v9220
    %v9428 = vpop.f32.mrf.mxu0
    %v9429 = vadd.f32 0.0, %v9428
    %9430 = vmatmul.f32.gmra.mxu0 %v9223
    %v9431 = vpop.f32.mrf.mxu0
    %v9432 = vadd.f32 0.0, %v9431
    %9433 = vmatmul.f32.gmra.mxu0 %v9226
    %v9434 = vpop.f32.mrf.mxu0
    %v9435 = vadd.f32 0.0, %v9434
    %9436 = vmatmul.f32.gmra.mxu0 %v9229
    %v9437 = vpop.f32.mrf.mxu0
    %v9438 = vadd.f32 0.0, %v9437
    %9439 = vmatmul.f32.gmra.mxu0 %v9232
    %v9440 = vpop.f32.mrf.mxu0
    %v9441 = vadd.f32 0.0, %v9440
    %9442 = vmatmul.f32.gmra.mxu0 %v9235
    %v9443 = vpop.f32.mrf.mxu0
    %v9444 = vadd.f32 0.0, %v9443
    %9445 = vmatmul.f32.gmra.mxu0 %v9238
    %v9446 = vpop.f32.mrf.mxu0
    %v9447 = vadd.f32 0.0, %v9446
    %9448 = vmatmul.f32.gmra.mxu0 %v9241
    %v9449 = vpop.f32.mrf.mxu0
    %v9450 = vadd.f32 0.0, %v9449
    %9451 = vmatmul.f32.gmra.mxu0 %v9244
    %v9452 = vpop.f32.mrf.mxu0
    %v9453 = vadd.f32 0.0, %v9452
    %9454 = vmatmul.f32.gmra.mxu0 %v9247
    %v9455 = vpop.f32.mrf.mxu0
    %v9456 = vadd.f32 0.0, %v9455
    %9457 = vmatmul.f32.gmra.mxu0 %v9250
    %v9458 = vpop.f32.mrf.mxu0
    %v9459 = vadd.f32 0.0, %v9458
    %9460 = vmatmul.f32.gmra.mxu0 %v9253
    %v9461 = vpop.f32.mrf.mxu0
    %v9462 = vadd.f32 0.0, %v9461
    %9463 = vmatmul.f32.gmra.mxu0 %v9256
    %v9464 = vpop.f32.mrf.mxu0
    %v9465 = vadd.f32 0.0, %v9464
    %9466 = vmatmul.f32.gmra.mxu0 %v9259
    %v9467 = vpop.f32.mrf.mxu0
    %v9468 = vadd.f32 0.0, %v9467
    %9469 = vmatmul.f32.gmra.mxu0 %v9262
    %v9470 = vpop.f32.mrf.mxu0
    %v9471 = vadd.f32 0.0, %v9470
    %9472 = vmatmul.f32.gmra.mxu0 %v9265
    %v9473 = vpop.f32.mrf.mxu0
    %v9474 = vadd.f32 0.0, %v9473
    %9475 = vmatmul.f32.gmra.mxu0 %v9268
    %v9476 = vpop.f32.mrf.mxu0
    %v9477 = vadd.f32 0.0, %v9476
    %9478 = vmatmul.f32.gmra.mxu0 %v9271
    %v9479 = vpop.f32.mrf.mxu0
    %v9480 = vadd.f32 0.0, %v9479
    %9481 = vmatmul.f32.gmra.mxu0 %v9274
    %v9482 = vpop.f32.mrf.mxu0
    %v9483 = vadd.f32 0.0, %v9482
    %9484 = vmatmul.f32.gmra.mxu0 %v9277
    %v9485 = vpop.f32.mrf.mxu0
    %v9486 = vadd.f32 0.0, %v9485
    %9487 = vmatmul.f32.gmra.mxu0 %v9280
    %v9488 = vpop.f32.mrf.mxu0
    %v9489 = vadd.f32 0.0, %v9488
    %9490 = vmatmul.f32.gmra.mxu0 %v9283
    %v9491 = vpop.f32.mrf.mxu0
    %v9492 = vadd.f32 0.0, %v9491
    %9493 = vmatmul.f32.gmra.mxu0 %v9286
    %v9494 = vpop.f32.mrf.mxu0
    %v9495 = vadd.f32 0.0, %v9494
    %9496 = vmatmul.f32.gmra.mxu0 %v9289
    %v9497 = vpop.f32.mrf.mxu0
    %v9498 = vadd.f32 0.0, %v9497
    %9499 = vmatmul.f32.gmra.mxu0 %v9292
    %v9500 = vpop.f32.mrf.mxu0
    %v9501 = vadd.f32 0.0, %v9500
    %9502 = vmatmul.f32.gmra.mxu0 %v9295
    %v9503 = vpop.f32.mrf.mxu0
    %v9504 = vadd.f32 0.0, %v9503
    %9505 = vmatmul.f32.gmra.mxu0 %v9298
    %v9506 = vpop.f32.mrf.mxu0
    %v9507 = vadd.f32 0.0, %v9506
    %9508 = vmatmul.f32.gmra.mxu0 %v9301
    %v9509 = vpop.f32.mrf.mxu0
    %v9510 = vadd.f32 0.0, %v9509
    %9511 = vmatmul.f32.gmra.mxu0 %v9304
    %v9512 = vpop.f32.mrf.mxu0
    %v9513 = vadd.f32 0.0, %v9512
    %9514 = vmatmul.f32.gmra.mxu0 %v9307
    %v9515 = vpop.f32.mrf.mxu0
    %v9516 = vadd.f32 0.0, %v9515
    %9517 = vmatmul.f32.gmra.mxu0 %v9310
    %v9518 = vpop.f32.mrf.mxu0
    %v9519 = vadd.f32 0.0, %v9518
    %9520 = vmatmul.f32.gmra.mxu0 %v9313
    %v9521 = vpop.f32.mrf.mxu0
    %v9522 = vadd.f32 0.0, %v9521
    %9523 = vmatmul.f32.gmra.mxu0 %v9316
    %v9524 = vpop.f32.mrf.mxu0
    %v9525 = vadd.f32 0.0, %v9524
    %9526 = vmatmul.f32.gmra.mxu0 %v9319
    %v9527 = vpop.f32.mrf.mxu0
    %v9528 = vadd.f32 0.0, %v9527
    %9529 = vmatmul.f32.gmra.mxu0 %v9322
    %v9530 = vpop.f32.mrf.mxu0
    %v9531 = vadd.f32 0.0, %v9530
    %9532 = vmatmul.f32.gmra.mxu0 %v9325
    %v9533 = vpop.f32.mrf.mxu0
    %v9534 = vadd.f32 0.0, %v9533
    %9535 = vmatmul.f32.gmra.mxu0 %v9328
    %v9536 = vpop.f32.mrf.mxu0
    %v9537 = vadd.f32 0.0, %v9536
    %9538 = vmatmul.f32.gmra.mxu0 %v9331
    %v9539 = vpop.f32.mrf.mxu0
    %v9540 = vadd.f32 0.0, %v9539
    %9541 = vmatmul.f32.gmra.mxu0 %v9334
    %v9542 = vpop.f32.mrf.mxu0
    %v9543 = vadd.f32 0.0, %v9542
    %9544 = vmatmul.f32.gmra.mxu0 %v9337
    %v9545 = vpop.f32.mrf.mxu0
    %v9546 = vadd.f32 0.0, %v9545
    %9547 = vmatmul.f32.gmra.mxu0 %v9340
    %v9548 = vpop.f32.mrf.mxu0
    %v9549 = vadd.f32 0.0, %v9548
    %9550 = vmatmul.f32.gmra.mxu0 %v9343
    %v9551 = vpop.f32.mrf.mxu0
    %v9552 = vadd.f32 0.0, %v9551
    %9553 = vmatmul.f32.gmra.mxu0 %v9346
    %v9554 = vpop.f32.mrf.mxu0
    %v9555 = vadd.f32 0.0, %v9554
    %9556 = vmatmul.f32.gmra.mxu0 %v9349
    %v9557 = vpop.f32.mrf.mxu0
    %v9558 = vadd.f32 0.0, %v9557
    %9559 = vmatmul.f32.gmra.mxu0 %v9352
    %v9560 = vpop.f32.mrf.mxu0
    %v9561 = vadd.f32 0.0, %v9560
    %9562 = vmatmul.f32.gmra.mxu0 %v9355
    %v9563 = vpop.f32.mrf.mxu0
    %v9564 = vadd.f32 0.0, %v9563
    %9565 = vmatmul.f32.gmra.mxu0 %v9358
    %v9566 = vpop.f32.mrf.mxu0
    %v9567 = vadd.f32 0.0, %v9566
    %9568 = vdwg.mxu0
    %v9569 = vadd.f32 %v9037, %v9378
    %v9570 = vadd.f32 %v9038, %v9381
    %v9571 = vadd.f32 %v9039, %v9384
    %v9572 = vadd.f32 %v9040, %v9387
    %v9573 = vadd.f32 %v9041, %v9390
    %v9574 = vadd.f32 %v9042, %v9393
    %v9575 = vadd.f32 %v9043, %v9396
    %v9576 = vadd.f32 %v9044, %v9399
    %v9577 = vadd.f32 %v9045, %v9402
    %v9578 = vadd.f32 %v9046, %v9405
    %v9579 = vadd.f32 %v9047, %v9408
    %v9580 = vadd.f32 %v9048, %v9411
    %v9581 = vadd.f32 %v9049, %v9414
    %v9582 = vadd.f32 %v9050, %v9417
    %v9583 = vadd.f32 %v9051, %v9420
    %v9584 = vadd.f32 %v9052, %v9423
    %v9585 = vadd.f32 %v9053, %v9426
    %v9586 = vadd.f32 %v9054, %v9429
    %v9587 = vadd.f32 %v9055, %v9432
    %v9588 = vadd.f32 %v9056, %v9435
    %v9589 = vadd.f32 %v9057, %v9438
    %v9590 = vadd.f32 %v9058, %v9441
    %v9591 = vadd.f32 %v9059, %v9444
    %v9592 = vadd.f32 %v9060, %v9447
    %v9593 = vadd.f32 %v9061, %v9450
    %v9594 = vadd.f32 %v9062, %v9453
    %v9595 = vadd.f32 %v9063, %v9456
    %v9596 = vadd.f32 %v9064, %v9459
    %v9597 = vadd.f32 %v9065, %v9462
    %v9598 = vadd.f32 %v9066, %v9465
    %v9599 = vadd.f32 %v9067, %v9468
    %v9600 = vadd.f32 %v9068, %v9471
    %v9601 = vadd.f32 %v9069, %v9474
    %v9602 = vadd.f32 %v9070, %v9477
    %v9603 = vadd.f32 %v9071, %v9480
    %v9604 = vadd.f32 %v9072, %v9483
    %v9605 = vadd.f32 %v9073, %v9486
    %v9606 = vadd.f32 %v9074, %v9489
    %v9607 = vadd.f32 %v9075, %v9492
    %v9608 = vadd.f32 %v9076, %v9495
    %v9609 = vadd.f32 %v9077, %v9498
    %v9610 = vadd.f32 %v9078, %v9501
    %v9611 = vadd.f32 %v9079, %v9504
    %v9612 = vadd.f32 %v9080, %v9507
    %v9613 = vadd.f32 %v9081, %v9510
    %v9614 = vadd.f32 %v9082, %v9513
    %v9615 = vadd.f32 %v9083, %v9516
    %v9616 = vadd.f32 %v9084, %v9519
    %v9617 = vadd.f32 %v9085, %v9522
    %v9618 = vadd.f32 %v9086, %v9525
    %v9619 = vadd.f32 %v9087, %v9528
    %v9620 = vadd.f32 %v9088, %v9531
    %v9621 = vadd.f32 %v9089, %v9534
    %v9622 = vadd.f32 %v9090, %v9537
    %v9623 = vadd.f32 %v9091, %v9540
    %v9624 = vadd.f32 %v9092, %v9543
    %v9625 = vadd.f32 %v9093, %v9546
    %v9626 = vadd.f32 %v9094, %v9549
    %v9627 = vadd.f32 %v9095, %v9552
    %v9628 = vadd.f32 %v9096, %v9555
    %v9629 = vadd.f32 %v9097, %v9558
    %v9630 = vadd.f32 %v9098, %v9561
    %v9631 = vadd.f32 %v9099, %v9564
    %v9632 = vadd.f32 %v9100, %v9567
    %v9633 = vld [vmem:[%s8568 + $0x2] sm:$0xff]
    %v9634 = vld [vmem:[%s8568 + $0xa] sm:$0xff]
    %v9635 = vld [vmem:[%s8568 + $0x1a] sm:$0xff]
    %v9636 = vld [vmem:[%s8568 + $0x22] sm:$0xff]
    %v9637 = vld [vmem:[%s8568 + $0x32] sm:$0xff]
    %v9638 = vld [vmem:[%s8568 + $0x3a] sm:$0xff]
    %v9639 = vld [vmem:[%s8568 + $0x4a] sm:$0xff]
    %v9640 = vld [vmem:[%s8568 + $0x52] sm:$0xff]
    %v9641 = vld [vmem:[%s8568 + $0x62] sm:$0xff]
    %v9642 = vld [vmem:[%s8568 + $0x6a] sm:$0xff]
    %v9643 = vld [vmem:[%s8568 + $0x7a] sm:$0xff]
    %v9644 = vld [vmem:[%s8568 + $0x82] sm:$0xff]
    %v9645 = vld [vmem:[%s8568 + $0x92] sm:$0xff]
    %v9646 = vld [vmem:[%s8568 + $0x9a] sm:$0xff]
    %v9647 = vld [vmem:[%s8568 + $0xaa] sm:$0xff]
    %v9648 = vld [vmem:[%s8568 + $0xb2] sm:$0xff]
    %v9649 = vld [vmem:[%s8568 + $0xc2] sm:$0xff]
    %v9650 = vld [vmem:[%s8568 + $0xca] sm:$0xff]
    %v9651 = vld [vmem:[%s8568 + $0xda] sm:$0xff]
    %v9652 = vld [vmem:[%s8568 + $0xe2] sm:$0xff]
    %v9653 = vld [vmem:[%s8568 + $0xf2] sm:$0xff]
    %v9654 = vld [vmem:[%s8568 + $0xfa] sm:$0xff]
    %v9655 = vld [vmem:[%s8568 + $0x10a] sm:$0xff]
    %v9656 = vld [vmem:[%s8568 + $0x112] sm:$0xff]
    %v9657 = vld [vmem:[%s8568 + $0x122] sm:$0xff]
    %v9658 = vld [vmem:[%s8568 + $0x12a] sm:$0xff]
    %v9659 = vld [vmem:[%s8568 + $0x13a] sm:$0xff]
    %v9660 = vld [vmem:[%s8568 + $0x142] sm:$0xff]
    %v9661 = vld [vmem:[%s8568 + $0x152] sm:$0xff]
    %v9662 = vld [vmem:[%s8568 + $0x15a] sm:$0xff]
    %v9663 = vld [vmem:[%s8568 + $0x16a] sm:$0xff]
    %v9664 = vld [vmem:[%s8568 + $0x172] sm:$0xff]
    %v9665 = vld [vmem:[%s8568 + $0x1b2] sm:$0xff]
    %v9666 = vld [vmem:[%s8568 + $0x1ba] sm:$0xff]
    %v9667 = vld [vmem:[%s8568 + $0x1ca] sm:$0xff]
    %v9668 = vld [vmem:[%s8568 + $0x1d2] sm:$0xff]
    %v9669 = vld [vmem:[%s8568 + $0x1e2] sm:$0xff]
    %v9670 = vld [vmem:[%s8568 + $0x1ea] sm:$0xff]
    %v9671 = vld [vmem:[%s8568 + $0x1fa] sm:$0xff]
    %v9672 = vld [vmem:[%s8568 + $0x202] sm:$0xff]
    %v9673 = vld [vmem:[%s8568 + $0x212] sm:$0xff]
    %v9674 = vld [vmem:[%s8568 + $0x21a] sm:$0xff]
    %v9675 = vld [vmem:[%s8568 + $0x22a] sm:$0xff]
    %v9676 = vld [vmem:[%s8568 + $0x232] sm:$0xff]
    %v9677 = vld [vmem:[%s8568 + $0x242] sm:$0xff]
    %v9678 = vld [vmem:[%s8568 + $0x24a] sm:$0xff]
    %v9679 = vld [vmem:[%s8568 + $0x25a] sm:$0xff]
    %v9680 = vld [vmem:[%s8568 + $0x262] sm:$0xff]
    %v9681 = vld [vmem:[%s8568 + $0x272] sm:$0xff]
    %v9682 = vld [vmem:[%s8568 + $0x27a] sm:$0xff]
    %v9683 = vld [vmem:[%s8568 + $0x28a] sm:$0xff]
    %v9684 = vld [vmem:[%s8568 + $0x292] sm:$0xff]
    %v9685 = vld [vmem:[%s8568 + $0x2a2] sm:$0xff]
    %v9686 = vld [vmem:[%s8568 + $0x2aa] sm:$0xff]
    %v9687 = vld [vmem:[%s8568 + $0x2ba] sm:$0xff]
    %v9688 = vld [vmem:[%s8568 + $0x2c2] sm:$0xff]
    %v9689 = vld [vmem:[%s8568 + $0x2d2] sm:$0xff]
    %v9690 = vld [vmem:[%s8568 + $0x2da] sm:$0xff]
    %v9691 = vld [vmem:[%s8568 + $0x2ea] sm:$0xff]
    %v9692 = vld [vmem:[%s8568 + $0x2f2] sm:$0xff]
    %v9693 = vld [vmem:[%s8568 + $0x302] sm:$0xff]
    %v9694 = vld [vmem:[%s8568 + $0x30a] sm:$0xff]
    %v9695 = vld [vmem:[%s8568 + $0x31a] sm:$0xff]
    %v9696 = vld [vmem:[%s8568 + $0x322] sm:$0xff]
    %s9697 = scalar_lea.vmem %s5, 128
    %v9698 = vld [vmem:[%s9697] sm:$0xff]
    %v9699 = vld [vmem:[%s9697 + $0x8] sm:$0xff]
    %v9701 = vsel %vm4782, %v9633, 0
    %v9704 = vsel %vm4782, %v9634, 0
    %v9707 = vsel %vm4782, %v9635, 0
    %v9710 = vsel %vm4782, %v9636, 0
    %v9713 = vsel %vm4782, %v9637, 0
    %v9716 = vsel %vm4782, %v9638, 0
    %v9719 = vsel %vm4782, %v9639, 0
    %v9722 = vsel %vm4782, %v9640, 0
    %v9725 = vsel %vm4782, %v9641, 0
    %v9728 = vsel %vm4782, %v9642, 0
    %v9731 = vsel %vm4782, %v9643, 0
    %v9734 = vsel %vm4782, %v9644, 0
    %v9737 = vsel %vm4782, %v9645, 0
    %v9740 = vsel %vm4782, %v9646, 0
    %v9743 = vsel %vm4782, %v9647, 0
    %v9746 = vsel %vm4782, %v9648, 0
    %v9749 = vsel %vm4782, %v9649, 0
    %v9752 = vsel %vm4782, %v9650, 0
    %v9755 = vsel %vm4782, %v9651, 0
    %v9758 = vsel %vm4782, %v9652, 0
    %v9761 = vsel %vm4782, %v9653, 0
    %v9764 = vsel %vm4782, %v9654, 0
    %v9767 = vsel %vm4782, %v9655, 0
    %v9770 = vsel %vm4782, %v9656, 0
    %v9773 = vsel %vm4782, %v9657, 0
    %v9776 = vsel %vm4782, %v9658, 0
    %v9779 = vsel %vm4782, %v9659, 0
    %v9782 = vsel %vm4782, %v9660, 0
    %v9785 = vsel %vm4782, %v9661, 0
    %v9788 = vsel %vm4782, %v9662, 0
    %v9791 = vsel %vm4782, %v9663, 0
    %v9794 = vsel %vm4782, %v9664, 0
    %v9797 = vsel %vm4782, %v9665, 0
    %v9800 = vsel %vm4782, %v9666, 0
    %v9803 = vsel %vm4782, %v9667, 0
    %v9806 = vsel %vm4782, %v9668, 0
    %v9809 = vsel %vm4782, %v9669, 0
    %v9812 = vsel %vm4782, %v9670, 0
    %v9815 = vsel %vm4782, %v9671, 0
    %v9818 = vsel %vm4782, %v9672, 0
    %v9821 = vsel %vm4782, %v9673, 0
    %v9824 = vsel %vm4782, %v9674, 0
    %v9827 = vsel %vm4782, %v9675, 0
    %v9830 = vsel %vm4782, %v9676, 0
    %v9833 = vsel %vm4782, %v9677, 0
    %v9836 = vsel %vm4782, %v9678, 0
    %v9839 = vsel %vm4782, %v9679, 0
    %v9842 = vsel %vm4782, %v9680, 0
    %v9845 = vsel %vm4782, %v9681, 0
    %v9848 = vsel %vm4782, %v9682, 0
    %v9851 = vsel %vm4782, %v9683, 0
    %v9854 = vsel %vm4782, %v9684, 0
    %v9857 = vsel %vm4782, %v9685, 0
    %v9860 = vsel %vm4782, %v9686, 0
    %v9863 = vsel %vm4782, %v9687, 0
    %v9866 = vsel %vm4782, %v9688, 0
    %v9869 = vsel %vm4782, %v9689, 0
    %v9872 = vsel %vm4782, %v9690, 0
    %v9875 = vsel %vm4782, %v9691, 0
    %v9878 = vsel %vm4782, %v9692, 0
    %v9881 = vsel %vm4782, %v9693, 0
    %v9884 = vsel %vm4782, %v9694, 0
    %v9887 = vsel %vm4782, %v9695, 0
    %v9890 = vsel %vm4782, %v9696, 0
    %9892 = vmatpush.msra.mxu0 0.0
    %9893 = vmatpush.msra.mxu0 0.0
    %9894 = vmatpush.msra.mxu0 0.0
    %9895 = vmatpush.msra.mxu0 0.0
    %9896 = vmatpush.msra.mxu0 0.0
    %9897 = vmatpush.msra.mxu0 0.0
    %9898 = vmatpush.msra.mxu0 0.0
    %9899 = vmatpush.msra.mxu0 0.0
    %9900 = vmatpush.msra.mxu0 0.0
    %9901 = vmatpush.msra.mxu0 0.0
    %9902 = vmatpush.msra.mxu0 0.0
    %9903 = vmatpush.msra.mxu0 0.0
    %9904 = vmatpush.msra.mxu0 0.0
    %9905 = vmatpush.msra.mxu0 0.0
    %9906 = vmatpush.msra.mxu0 %v9699
    %9907 = vmatpush.msra.mxu0 %v9698
    %9908 = vmatmul.f32.gmra.mxu0 %v9701
    %v9909 = vpop.f32.mrf.mxu0
    %v9910 = vadd.f32 0.0, %v9909
    %9911 = vmatmul.f32.gmra.mxu0 %v9704
    %v9912 = vpop.f32.mrf.mxu0
    %v9913 = vadd.f32 0.0, %v9912
    %9914 = vmatmul.f32.gmra.mxu0 %v9707
    %v9915 = vpop.f32.mrf.mxu0
    %v9916 = vadd.f32 0.0, %v9915
    %9917 = vmatmul.f32.gmra.mxu0 %v9710
    %v9918 = vpop.f32.mrf.mxu0
    %v9919 = vadd.f32 0.0, %v9918
    %9920 = vmatmul.f32.gmra.mxu0 %v9713
    %v9921 = vpop.f32.mrf.mxu0
    %v9922 = vadd.f32 0.0, %v9921
    %9923 = vmatmul.f32.gmra.mxu0 %v9716
    %v9924 = vpop.f32.mrf.mxu0
    %v9925 = vadd.f32 0.0, %v9924
    %9926 = vmatmul.f32.gmra.mxu0 %v9719
    %v9927 = vpop.f32.mrf.mxu0
    %v9928 = vadd.f32 0.0, %v9927
    %9929 = vmatmul.f32.gmra.mxu0 %v9722
    %v9930 = vpop.f32.mrf.mxu0
    %v9931 = vadd.f32 0.0, %v9930
    %9932 = vmatmul.f32.gmra.mxu0 %v9725
    %v9933 = vpop.f32.mrf.mxu0
    %v9934 = vadd.f32 0.0, %v9933
    %9935 = vmatmul.f32.gmra.mxu0 %v9728
    %v9936 = vpop.f32.mrf.mxu0
    %v9937 = vadd.f32 0.0, %v9936
    %9938 = vmatmul.f32.gmra.mxu0 %v9731
    %v9939 = vpop.f32.mrf.mxu0
    %v9940 = vadd.f32 0.0, %v9939
    %9941 = vmatmul.f32.gmra.mxu0 %v9734
    %v9942 = vpop.f32.mrf.mxu0
    %v9943 = vadd.f32 0.0, %v9942
    %9944 = vmatmul.f32.gmra.mxu0 %v9737
    %v9945 = vpop.f32.mrf.mxu0
    %v9946 = vadd.f32 0.0, %v9945
    %9947 = vmatmul.f32.gmra.mxu0 %v9740
    %v9948 = vpop.f32.mrf.mxu0
    %v9949 = vadd.f32 0.0, %v9948
    %9950 = vmatmul.f32.gmra.mxu0 %v9743
    %v9951 = vpop.f32.mrf.mxu0
    %v9952 = vadd.f32 0.0, %v9951
    %9953 = vmatmul.f32.gmra.mxu0 %v9746
    %v9954 = vpop.f32.mrf.mxu0
    %v9955 = vadd.f32 0.0, %v9954
    %9956 = vmatmul.f32.gmra.mxu0 %v9749
    %v9957 = vpop.f32.mrf.mxu0
    %v9958 = vadd.f32 0.0, %v9957
    %9959 = vmatmul.f32.gmra.mxu0 %v9752
    %v9960 = vpop.f32.mrf.mxu0
    %v9961 = vadd.f32 0.0, %v9960
    %9962 = vmatmul.f32.gmra.mxu0 %v9755
    %v9963 = vpop.f32.mrf.mxu0
    %v9964 = vadd.f32 0.0, %v9963
    %9965 = vmatmul.f32.gmra.mxu0 %v9758
    %v9966 = vpop.f32.mrf.mxu0
    %v9967 = vadd.f32 0.0, %v9966
    %9968 = vmatmul.f32.gmra.mxu0 %v9761
    %v9969 = vpop.f32.mrf.mxu0
    %v9970 = vadd.f32 0.0, %v9969
    %9971 = vmatmul.f32.gmra.mxu0 %v9764
    %v9972 = vpop.f32.mrf.mxu0
    %v9973 = vadd.f32 0.0, %v9972
    %9974 = vmatmul.f32.gmra.mxu0 %v9767
    %v9975 = vpop.f32.mrf.mxu0
    %v9976 = vadd.f32 0.0, %v9975
    %9977 = vmatmul.f32.gmra.mxu0 %v9770
    %v9978 = vpop.f32.mrf.mxu0
    %v9979 = vadd.f32 0.0, %v9978
    %9980 = vmatmul.f32.gmra.mxu0 %v9773
    %v9981 = vpop.f32.mrf.mxu0
    %v9982 = vadd.f32 0.0, %v9981
    %9983 = vmatmul.f32.gmra.mxu0 %v9776
    %v9984 = vpop.f32.mrf.mxu0
    %v9985 = vadd.f32 0.0, %v9984
    %9986 = vmatmul.f32.gmra.mxu0 %v9779
    %v9987 = vpop.f32.mrf.mxu0
    %v9988 = vadd.f32 0.0, %v9987
    %9989 = vmatmul.f32.gmra.mxu0 %v9782
    %v9990 = vpop.f32.mrf.mxu0
    %v9991 = vadd.f32 0.0, %v9990
    %9992 = vmatmul.f32.gmra.mxu0 %v9785
    %v9993 = vpop.f32.mrf.mxu0
    %v9994 = vadd.f32 0.0, %v9993
    %9995 = vmatmul.f32.gmra.mxu0 %v9788
    %v9996 = vpop.f32.mrf.mxu0
    %v9997 = vadd.f32 0.0, %v9996
    %9998 = vmatmul.f32.gmra.mxu0 %v9791
    %v9999 = vpop.f32.mrf.mxu0
    %v10000 = vadd.f32 0.0, %v9999
    %10001 = vmatmul.f32.gmra.mxu0 %v9794
    %v10002 = vpop.f32.mrf.mxu0
    %v10003 = vadd.f32 0.0, %v10002
    %10004 = vmatmul.f32.gmra.mxu0 %v9797
    %v10005 = vpop.f32.mrf.mxu0
    %v10006 = vadd.f32 0.0, %v10005
    %10007 = vmatmul.f32.gmra.mxu0 %v9800
    %v10008 = vpop.f32.mrf.mxu0
    %v10009 = vadd.f32 0.0, %v10008
    %10010 = vmatmul.f32.gmra.mxu0 %v9803
    %v10011 = vpop.f32.mrf.mxu0
    %v10012 = vadd.f32 0.0, %v10011
    %10013 = vmatmul.f32.gmra.mxu0 %v9806
    %v10014 = vpop.f32.mrf.mxu0
    %v10015 = vadd.f32 0.0, %v10014
    %10016 = vmatmul.f32.gmra.mxu0 %v9809
    %v10017 = vpop.f32.mrf.mxu0
    %v10018 = vadd.f32 0.0, %v10017
    %10019 = vmatmul.f32.gmra.mxu0 %v9812
    %v10020 = vpop.f32.mrf.mxu0
    %v10021 = vadd.f32 0.0, %v10020
    %10022 = vmatmul.f32.gmra.mxu0 %v9815
    %v10023 = vpop.f32.mrf.mxu0
    %v10024 = vadd.f32 0.0, %v10023
    %10025 = vmatmul.f32.gmra.mxu0 %v9818
    %v10026 = vpop.f32.mrf.mxu0
    %v10027 = vadd.f32 0.0, %v10026
    %10028 = vmatmul.f32.gmra.mxu0 %v9821
    %v10029 = vpop.f32.mrf.mxu0
    %v10030 = vadd.f32 0.0, %v10029
    %10031 = vmatmul.f32.gmra.mxu0 %v9824
    %v10032 = vpop.f32.mrf.mxu0
    %v10033 = vadd.f32 0.0, %v10032
    %10034 = vmatmul.f32.gmra.mxu0 %v9827
    %v10035 = vpop.f32.mrf.mxu0
    %v10036 = vadd.f32 0.0, %v10035
    %10037 = vmatmul.f32.gmra.mxu0 %v9830
    %v10038 = vpop.f32.mrf.mxu0
    %v10039 = vadd.f32 0.0, %v10038
    %10040 = vmatmul.f32.gmra.mxu0 %v9833
    %v10041 = vpop.f32.mrf.mxu0
    %v10042 = vadd.f32 0.0, %v10041
    %10043 = vmatmul.f32.gmra.mxu0 %v9836
    %v10044 = vpop.f32.mrf.mxu0
    %v10045 = vadd.f32 0.0, %v10044
    %10046 = vmatmul.f32.gmra.mxu0 %v9839
    %v10047 = vpop.f32.mrf.mxu0
    %v10048 = vadd.f32 0.0, %v10047
    %10049 = vmatmul.f32.gmra.mxu0 %v9842
    %v10050 = vpop.f32.mrf.mxu0
    %v10051 = vadd.f32 0.0, %v10050
    %10052 = vmatmul.f32.gmra.mxu0 %v9845
    %v10053 = vpop.f32.mrf.mxu0
    %v10054 = vadd.f32 0.0, %v10053
    %10055 = vmatmul.f32.gmra.mxu0 %v9848
    %v10056 = vpop.f32.mrf.mxu0
    %v10057 = vadd.f32 0.0, %v10056
    %10058 = vmatmul.f32.gmra.mxu0 %v9851
    %v10059 = vpop.f32.mrf.mxu0
    %v10060 = vadd.f32 0.0, %v10059
    %10061 = vmatmul.f32.gmra.mxu0 %v9854
    %v10062 = vpop.f32.mrf.mxu0
    %v10063 = vadd.f32 0.0, %v10062
    %10064 = vmatmul.f32.gmra.mxu0 %v9857
    %v10065 = vpop.f32.mrf.mxu0
    %v10066 = vadd.f32 0.0, %v10065
    %10067 = vmatmul.f32.gmra.mxu0 %v9860
    %v10068 = vpop.f32.mrf.mxu0
    %v10069 = vadd.f32 0.0, %v10068
    %10070 = vmatmul.f32.gmra.mxu0 %v9863
    %v10071 = vpop.f32.mrf.mxu0
    %v10072 = vadd.f32 0.0, %v10071
    %10073 = vmatmul.f32.gmra.mxu0 %v9866
    %v10074 = vpop.f32.mrf.mxu0
    %v10075 = vadd.f32 0.0, %v10074
    %10076 = vmatmul.f32.gmra.mxu0 %v9869
    %v10077 = vpop.f32.mrf.mxu0
    %v10078 = vadd.f32 0.0, %v10077
    %10079 = vmatmul.f32.gmra.mxu0 %v9872
    %v10080 = vpop.f32.mrf.mxu0
    %v10081 = vadd.f32 0.0, %v10080
    %10082 = vmatmul.f32.gmra.mxu0 %v9875
    %v10083 = vpop.f32.mrf.mxu0
    %v10084 = vadd.f32 0.0, %v10083
    %10085 = vmatmul.f32.gmra.mxu0 %v9878
    %v10086 = vpop.f32.mrf.mxu0
    %v10087 = vadd.f32 0.0, %v10086
    %10088 = vmatmul.f32.gmra.mxu0 %v9881
    %v10089 = vpop.f32.mrf.mxu0
    %v10090 = vadd.f32 0.0, %v10089
    %10091 = vmatmul.f32.gmra.mxu0 %v9884
    %v10092 = vpop.f32.mrf.mxu0
    %v10093 = vadd.f32 0.0, %v10092
    %10094 = vmatmul.f32.gmra.mxu0 %v9887
    %v10095 = vpop.f32.mrf.mxu0
    %v10096 = vadd.f32 0.0, %v10095
    %10097 = vmatmul.f32.gmra.mxu0 %v9890
    %v10098 = vpop.f32.mrf.mxu0
    %v10099 = vadd.f32 0.0, %v10098
    %10100 = vdwg.mxu0
    %v10101 = vadd.f32 %v9569, %v9910
    %v10102 = vadd.f32 %v9570, %v9913
    %v10103 = vadd.f32 %v9571, %v9916
    %v10104 = vadd.f32 %v9572, %v9919
    %v10105 = vadd.f32 %v9573, %v9922
    %v10106 = vadd.f32 %v9574, %v9925
    %v10107 = vadd.f32 %v9575, %v9928
    %v10108 = vadd.f32 %v9576, %v9931
    %v10109 = vadd.f32 %v9577, %v9934
    %v10110 = vadd.f32 %v9578, %v9937
    %v10111 = vadd.f32 %v9579, %v9940
    %v10112 = vadd.f32 %v9580, %v9943
    %v10113 = vadd.f32 %v9581, %v9946
    %v10114 = vadd.f32 %v9582, %v9949
    %v10115 = vadd.f32 %v9583, %v9952
    %v10116 = vadd.f32 %v9584, %v9955
    %v10117 = vadd.f32 %v9585, %v9958
    %v10118 = vadd.f32 %v9586, %v9961
    %v10119 = vadd.f32 %v9587, %v9964
    %v10120 = vadd.f32 %v9588, %v9967
    %v10121 = vadd.f32 %v9589, %v9970
    %v10122 = vadd.f32 %v9590, %v9973
    %v10123 = vadd.f32 %v9591, %v9976
    %v10124 = vadd.f32 %v9592, %v9979
    %v10125 = vadd.f32 %v9593, %v9982
    %v10126 = vadd.f32 %v9594, %v9985
    %v10127 = vadd.f32 %v9595, %v9988
    %v10128 = vadd.f32 %v9596, %v9991
    %v10129 = vadd.f32 %v9597, %v9994
    %v10130 = vadd.f32 %v9598, %v9997
    %v10131 = vadd.f32 %v9599, %v10000
    %v10132 = vadd.f32 %v9600, %v10003
    %v10133 = vadd.f32 %v9601, %v10006
    %v10134 = vadd.f32 %v9602, %v10009
    %v10135 = vadd.f32 %v9603, %v10012
    %v10136 = vadd.f32 %v9604, %v10015
    %v10137 = vadd.f32 %v9605, %v10018
    %v10138 = vadd.f32 %v9606, %v10021
    %v10139 = vadd.f32 %v9607, %v10024
    %v10140 = vadd.f32 %v9608, %v10027
    %v10141 = vadd.f32 %v9609, %v10030
    %v10142 = vadd.f32 %v9610, %v10033
    %v10143 = vadd.f32 %v9611, %v10036
    %v10144 = vadd.f32 %v9612, %v10039
    %v10145 = vadd.f32 %v9613, %v10042
    %v10146 = vadd.f32 %v9614, %v10045
    %v10147 = vadd.f32 %v9615, %v10048
    %v10148 = vadd.f32 %v9616, %v10051
    %v10149 = vadd.f32 %v9617, %v10054
    %v10150 = vadd.f32 %v9618, %v10057
    %v10151 = vadd.f32 %v9619, %v10060
    %v10152 = vadd.f32 %v9620, %v10063
    %v10153 = vadd.f32 %v9621, %v10066
    %v10154 = vadd.f32 %v9622, %v10069
    %v10155 = vadd.f32 %v9623, %v10072
    %v10156 = vadd.f32 %v9624, %v10075
    %v10157 = vadd.f32 %v9625, %v10078
    %v10158 = vadd.f32 %v9626, %v10081
    %v10159 = vadd.f32 %v9627, %v10084
    %v10160 = vadd.f32 %v9628, %v10087
    %v10161 = vadd.f32 %v9629, %v10090
    %v10162 = vadd.f32 %v9630, %v10093
    %v10163 = vadd.f32 %v9631, %v10096
    %v10164 = vadd.f32 %v9632, %v10099
    %v10165 = vld [vmem:[%s6] sm:$0x1]
    %v10167 = vperm.slane %v10165, 0
    %v10169 = vadd.f32 %v10101, %v10167
    %v10170 = vadd.f32 %v10102, %v10167
    %v10171 = vadd.f32 %v10103, %v10167
    %v10172 = vadd.f32 %v10104, %v10167
    %v10173 = vadd.f32 %v10105, %v10167
    %v10174 = vadd.f32 %v10106, %v10167
    %v10175 = vadd.f32 %v10107, %v10167
    %v10176 = vadd.f32 %v10108, %v10167
    %v10177 = vadd.f32 %v10109, %v10167
    %v10178 = vadd.f32 %v10110, %v10167
    %v10179 = vadd.f32 %v10111, %v10167
    %v10180 = vadd.f32 %v10112, %v10167
    %v10181 = vadd.f32 %v10113, %v10167
    %v10182 = vadd.f32 %v10114, %v10167
    %v10183 = vadd.f32 %v10115, %v10167
    %v10184 = vadd.f32 %v10116, %v10167
    %v10185 = vadd.f32 %v10117, %v10167
    %v10186 = vadd.f32 %v10118, %v10167
    %v10187 = vadd.f32 %v10119, %v10167
    %v10188 = vadd.f32 %v10120, %v10167
    %v10189 = vadd.f32 %v10121, %v10167
    %v10190 = vadd.f32 %v10122, %v10167
    %v10191 = vadd.f32 %v10123, %v10167
    %v10192 = vadd.f32 %v10124, %v10167
    %v10193 = vadd.f32 %v10125, %v10167
    %v10194 = vadd.f32 %v10126, %v10167
    %v10195 = vadd.f32 %v10127, %v10167
    %v10196 = vadd.f32 %v10128, %v10167
    %v10197 = vadd.f32 %v10129, %v10167
    %v10198 = vadd.f32 %v10130, %v10167
    %v10199 = vadd.f32 %v10131, %v10167
    %v10200 = vadd.f32 %v10132, %v10167
    %v10201 = vadd.f32 %v10133, %v10167
    %v10202 = vadd.f32 %v10134, %v10167
    %v10203 = vadd.f32 %v10135, %v10167
    %v10204 = vadd.f32 %v10136, %v10167
    %v10205 = vadd.f32 %v10137, %v10167
    %v10206 = vadd.f32 %v10138, %v10167
    %v10207 = vadd.f32 %v10139, %v10167
    %v10208 = vadd.f32 %v10140, %v10167
    %v10209 = vadd.f32 %v10141, %v10167
    %v10210 = vadd.f32 %v10142, %v10167
    %v10211 = vadd.f32 %v10143, %v10167
    %v10212 = vadd.f32 %v10144, %v10167
    %v10213 = vadd.f32 %v10145, %v10167
    %v10214 = vadd.f32 %v10146, %v10167
    %v10215 = vadd.f32 %v10147, %v10167
    %v10216 = vadd.f32 %v10148, %v10167
    %v10217 = vadd.f32 %v10149, %v10167
    %v10218 = vadd.f32 %v10150, %v10167
    %v10219 = vadd.f32 %v10151, %v10167
    %v10220 = vadd.f32 %v10152, %v10167
    %v10221 = vadd.f32 %v10153, %v10167
    %v10222 = vadd.f32 %v10154, %v10167
    %v10223 = vadd.f32 %v10155, %v10167
    %v10224 = vadd.f32 %v10156, %v10167
    %v10225 = vadd.f32 %v10157, %v10167
    %v10226 = vadd.f32 %v10158, %v10167
    %v10227 = vadd.f32 %v10159, %v10167
    %v10228 = vadd.f32 %v10160, %v10167
    %v10229 = vadd.f32 %v10161, %v10167
    %v10230 = vadd.f32 %v10162, %v10167
    %v10231 = vadd.f32 %v10163, %v10167
    %v10232 = vadd.f32 %v10164, %v10167
    %v10233 = vsel %vm4782, %v10169, 0.0
    %v10234 = vsel %vm4782, %v10170, 0.0
    %v10235 = vadd.f32 %v10233, %v10234
    %v10236 = vsel %vm4782, %v10171, 0.0
    %v10237 = vadd.f32 %v10235, %v10236
    %v10238 = vsel %vm4782, %v10172, 0.0
    %v10239 = vadd.f32 %v10237, %v10238
    %v10240 = vsel %vm4782, %v10173, 0.0
    %v10241 = vadd.f32 %v10239, %v10240
    %v10242 = vsel %vm4782, %v10174, 0.0
    %v10243 = vadd.f32 %v10241, %v10242
    %v10244 = vsel %vm4782, %v10175, 0.0
    %v10245 = vadd.f32 %v10243, %v10244
    %v10246 = vsel %vm4782, %v10176, 0.0
    %v10247 = vadd.f32 %v10245, %v10246
    %v10248 = vsel %vm4782, %v10177, 0.0
    %v10249 = vadd.f32 %v10247, %v10248
    %v10250 = vsel %vm4782, %v10178, 0.0
    %v10251 = vadd.f32 %v10249, %v10250
    %v10252 = vsel %vm4782, %v10179, 0.0
    %v10253 = vadd.f32 %v10251, %v10252
    %v10254 = vsel %vm4782, %v10180, 0.0
    %v10255 = vadd.f32 %v10253, %v10254
    %v10256 = vsel %vm4782, %v10181, 0.0
    %v10257 = vadd.f32 %v10255, %v10256
    %v10258 = vsel %vm4782, %v10182, 0.0
    %v10259 = vadd.f32 %v10257, %v10258
    %v10260 = vsel %vm4782, %v10183, 0.0
    %v10261 = vadd.f32 %v10259, %v10260
    %v10262 = vsel %vm4782, %v10184, 0.0
    %v10263 = vadd.f32 %v10261, %v10262
    %v10264 = vsel %vm4782, %v10185, 0.0
    %v10265 = vadd.f32 %v10263, %v10264
    %v10266 = vsel %vm4782, %v10186, 0.0
    %v10267 = vadd.f32 %v10265, %v10266
    %v10268 = vsel %vm4782, %v10187, 0.0
    %v10269 = vadd.f32 %v10267, %v10268
    %v10270 = vsel %vm4782, %v10188, 0.0
    %v10271 = vadd.f32 %v10269, %v10270
    %v10272 = vsel %vm4782, %v10189, 0.0
    %v10273 = vadd.f32 %v10271, %v10272
    %v10274 = vsel %vm4782, %v10190, 0.0
    %v10275 = vadd.f32 %v10273, %v10274
    %v10276 = vsel %vm4782, %v10191, 0.0
    %v10277 = vadd.f32 %v10275, %v10276
    %v10278 = vsel %vm4782, %v10192, 0.0
    %v10279 = vadd.f32 %v10277, %v10278
    %v10280 = vsel %vm4782, %v10193, 0.0
    %v10281 = vadd.f32 %v10279, %v10280
    %v10282 = vsel %vm4782, %v10194, 0.0
    %v10283 = vadd.f32 %v10281, %v10282
    %v10284 = vsel %vm4782, %v10195, 0.0
    %v10285 = vadd.f32 %v10283, %v10284
    %v10286 = vsel %vm4782, %v10196, 0.0
    %v10287 = vadd.f32 %v10285, %v10286
    %v10288 = vsel %vm4782, %v10197, 0.0
    %v10289 = vadd.f32 %v10287, %v10288
    %v10290 = vsel %vm4782, %v10198, 0.0
    %v10291 = vadd.f32 %v10289, %v10290
    %v10292 = vsel %vm4782, %v10199, 0.0
    %v10293 = vadd.f32 %v10291, %v10292
    %v10294 = vsel %vm4782, %v10200, 0.0
    %v10295 = vadd.f32 %v10293, %v10294
    %v10296 = vsel %vm4782, %v10201, 0.0
    %v10297 = vadd.f32 %v10295, %v10296
    %v10298 = vsel %vm4782, %v10202, 0.0
    %v10299 = vadd.f32 %v10297, %v10298
    %v10300 = vsel %vm4782, %v10203, 0.0
    %v10301 = vadd.f32 %v10299, %v10300
    %v10302 = vsel %vm4782, %v10204, 0.0
    %v10303 = vadd.f32 %v10301, %v10302
    %v10304 = vsel %vm4782, %v10205, 0.0
    %v10305 = vadd.f32 %v10303, %v10304
    %v10306 = vsel %vm4782, %v10206, 0.0
    %v10307 = vadd.f32 %v10305, %v10306
    %v10308 = vsel %vm4782, %v10207, 0.0
    %v10309 = vadd.f32 %v10307, %v10308
    %v10310 = vsel %vm4782, %v10208, 0.0
    %v10311 = vadd.f32 %v10309, %v10310
    %v10312 = vsel %vm4782, %v10209, 0.0
    %v10313 = vadd.f32 %v10311, %v10312
    %v10314 = vsel %vm4782, %v10210, 0.0
    %v10315 = vadd.f32 %v10313, %v10314
    %v10316 = vsel %vm4782, %v10211, 0.0
    %v10317 = vadd.f32 %v10315, %v10316
    %v10318 = vsel %vm4782, %v10212, 0.0
    %v10319 = vadd.f32 %v10317, %v10318
    %v10320 = vsel %vm4782, %v10213, 0.0
    %v10321 = vadd.f32 %v10319, %v10320
    %v10322 = vsel %vm4782, %v10214, 0.0
    %v10323 = vadd.f32 %v10321, %v10322
    %v10324 = vsel %vm4782, %v10215, 0.0
    %v10325 = vadd.f32 %v10323, %v10324
    %v10326 = vsel %vm4782, %v10216, 0.0
    %v10327 = vadd.f32 %v10325, %v10326
    %v10328 = vsel %vm4782, %v10217, 0.0
    %v10329 = vadd.f32 %v10327, %v10328
    %v10330 = vsel %vm4782, %v10218, 0.0
    %v10331 = vadd.f32 %v10329, %v10330
    %v10332 = vsel %vm4782, %v10219, 0.0
    %v10333 = vadd.f32 %v10331, %v10332
    %v10334 = vsel %vm4782, %v10220, 0.0
    %v10335 = vadd.f32 %v10333, %v10334
    %v10336 = vsel %vm4782, %v10221, 0.0
    %v10337 = vadd.f32 %v10335, %v10336
    %v10338 = vsel %vm4782, %v10222, 0.0
    %v10339 = vadd.f32 %v10337, %v10338
    %v10340 = vsel %vm4782, %v10223, 0.0
    %v10341 = vadd.f32 %v10339, %v10340
    %v10342 = vsel %vm4782, %v10224, 0.0
    %v10343 = vadd.f32 %v10341, %v10342
    %v10344 = vsel %vm4782, %v10225, 0.0
    %v10345 = vadd.f32 %v10343, %v10344
    %v10346 = vsel %vm4782, %v10226, 0.0
    %v10347 = vadd.f32 %v10345, %v10346
    %v10348 = vsel %vm4782, %v10227, 0.0
    %v10349 = vadd.f32 %v10347, %v10348
    %v10350 = vsel %vm4782, %v10228, 0.0
    %v10351 = vadd.f32 %v10349, %v10350
    %v10352 = vsel %vm4782, %v10229, 0.0
    %v10353 = vadd.f32 %v10351, %v10352
    %v10354 = vsel %vm4782, %v10230, 0.0
    %v10355 = vadd.f32 %v10353, %v10354
    %v10356 = vsel %vm4782, %v10231, 0.0
    %v10357 = vadd.f32 %v10355, %v10356
    %v10358 = vsel %vm4782, %v10232, 0.0
    %v10359 = vadd.f32 %v10357, %v10358
    %v10360 = vrot.slane %v10359, 4
    %v10361 = vadd.f32 %v10359, %v10360
    %v10362 = vrot.slane %v10361, 2
    %v10363 = vadd.f32 %v10361, %v10362
    %v10364 = vrot.slane %v10363, 1
    %v10365 = vadd.f32 %v10363, %v10364
    %v10366 = vmul.f32 %v10169, %v10169
    %v10367 = vmul.f32 %v10170, %v10170
    %v10368 = vmul.f32 %v10171, %v10171
    %v10369 = vmul.f32 %v10172, %v10172
    %v10370 = vmul.f32 %v10173, %v10173
    %v10371 = vmul.f32 %v10174, %v10174
    %v10372 = vmul.f32 %v10175, %v10175
    %v10373 = vmul.f32 %v10176, %v10176
    %v10374 = vmul.f32 %v10177, %v10177
    %v10375 = vmul.f32 %v10178, %v10178
    %v10376 = vmul.f32 %v10179, %v10179
    %v10377 = vmul.f32 %v10180, %v10180
    %v10378 = vmul.f32 %v10181, %v10181
    %v10379 = vmul.f32 %v10182, %v10182
    %v10380 = vmul.f32 %v10183, %v10183
    %v10381 = vmul.f32 %v10184, %v10184
    %v10382 = vmul.f32 %v10185, %v10185
    %v10383 = vmul.f32 %v10186, %v10186
    %v10384 = vmul.f32 %v10187, %v10187
    %v10385 = vmul.f32 %v10188, %v10188
    %v10386 = vmul.f32 %v10189, %v10189
    %v10387 = vmul.f32 %v10190, %v10190
    %v10388 = vmul.f32 %v10191, %v10191
    %v10389 = vmul.f32 %v10192, %v10192
    %v10390 = vmul.f32 %v10193, %v10193
    %v10391 = vmul.f32 %v10194, %v10194
    %v10392 = vmul.f32 %v10195, %v10195
    %v10393 = vmul.f32 %v10196, %v10196
    %v10394 = vmul.f32 %v10197, %v10197
    %v10395 = vmul.f32 %v10198, %v10198
    %v10396 = vmul.f32 %v10199, %v10199
    %v10397 = vmul.f32 %v10200, %v10200
    %v10398 = vmul.f32 %v10201, %v10201
    %v10399 = vmul.f32 %v10202, %v10202
    %v10400 = vmul.f32 %v10203, %v10203
    %v10401 = vmul.f32 %v10204, %v10204
    %v10402 = vmul.f32 %v10205, %v10205
    %v10403 = vmul.f32 %v10206, %v10206
    %v10404 = vmul.f32 %v10207, %v10207
    %v10405 = vmul.f32 %v10208, %v10208
    %v10406 = vmul.f32 %v10209, %v10209
    %v10407 = vmul.f32 %v10210, %v10210
    %v10408 = vmul.f32 %v10211, %v10211
    %v10409 = vmul.f32 %v10212, %v10212
    %v10410 = vmul.f32 %v10213, %v10213
    %v10411 = vmul.f32 %v10214, %v10214
    %v10412 = vmul.f32 %v10215, %v10215
    %v10413 = vmul.f32 %v10216, %v10216
    %v10414 = vmul.f32 %v10217, %v10217
    %v10415 = vmul.f32 %v10218, %v10218
    %v10416 = vmul.f32 %v10219, %v10219
    %v10417 = vmul.f32 %v10220, %v10220
    %v10418 = vmul.f32 %v10221, %v10221
    %v10419 = vmul.f32 %v10222, %v10222
    %v10420 = vmul.f32 %v10223, %v10223
    %v10421 = vmul.f32 %v10224, %v10224
    %v10422 = vmul.f32 %v10225, %v10225
    %v10423 = vmul.f32 %v10226, %v10226
    %v10424 = vmul.f32 %v10227, %v10227
    %v10425 = vmul.f32 %v10228, %v10228
    %v10426 = vmul.f32 %v10229, %v10229
    %v10427 = vmul.f32 %v10230, %v10230
    %v10428 = vmul.f32 %v10231, %v10231
    %v10429 = vmul.f32 %v10232, %v10232
    %v10430 = vsel %vm4782, %v10366, 0.0
    %v10431 = vsel %vm4782, %v10367, 0.0
    %v10432 = vadd.f32 %v10430, %v10431
    %v10433 = vsel %vm4782, %v10368, 0.0
    %v10434 = vadd.f32 %v10432, %v10433
    %v10435 = vsel %vm4782, %v10369, 0.0
    %v10436 = vadd.f32 %v10434, %v10435
    %v10437 = vsel %vm4782, %v10370, 0.0
    %v10438 = vadd.f32 %v10436, %v10437
    %v10439 = vsel %vm4782, %v10371, 0.0
    %v10440 = vadd.f32 %v10438, %v10439
    %v10441 = vsel %vm4782, %v10372, 0.0
    %v10442 = vadd.f32 %v10440, %v10441
    %v10443 = vsel %vm4782, %v10373, 0.0
    %v10444 = vadd.f32 %v10442, %v10443
    %v10445 = vsel %vm4782, %v10374, 0.0
    %v10446 = vadd.f32 %v10444, %v10445
    %v10447 = vsel %vm4782, %v10375, 0.0
    %v10448 = vadd.f32 %v10446, %v10447
    %v10449 = vsel %vm4782, %v10376, 0.0
    %v10450 = vadd.f32 %v10448, %v10449
    %v10451 = vsel %vm4782, %v10377, 0.0
    %v10452 = vadd.f32 %v10450, %v10451
    %v10453 = vsel %vm4782, %v10378, 0.0
    %v10454 = vadd.f32 %v10452, %v10453
    %v10455 = vsel %vm4782, %v10379, 0.0
    %v10456 = vadd.f32 %v10454, %v10455
    %v10457 = vsel %vm4782, %v10380, 0.0
    %v10458 = vadd.f32 %v10456, %v10457
    %v10459 = vsel %vm4782, %v10381, 0.0
    %v10460 = vadd.f32 %v10458, %v10459
    %v10461 = vsel %vm4782, %v10382, 0.0
    %v10462 = vadd.f32 %v10460, %v10461
    %v10463 = vsel %vm4782, %v10383, 0.0
    %v10464 = vadd.f32 %v10462, %v10463
    %v10465 = vsel %vm4782, %v10384, 0.0
    %v10466 = vadd.f32 %v10464, %v10465
    %v10467 = vsel %vm4782, %v10385, 0.0
    %v10468 = vadd.f32 %v10466, %v10467
    %v10469 = vsel %vm4782, %v10386, 0.0
    %v10470 = vadd.f32 %v10468, %v10469
    %v10471 = vsel %vm4782, %v10387, 0.0
    %v10472 = vadd.f32 %v10470, %v10471
    %v10473 = vsel %vm4782, %v10388, 0.0
    %v10474 = vadd.f32 %v10472, %v10473
    %v10475 = vsel %vm4782, %v10389, 0.0
    %v10476 = vadd.f32 %v10474, %v10475
    %v10477 = vsel %vm4782, %v10390, 0.0
    %v10478 = vadd.f32 %v10476, %v10477
    %v10479 = vsel %vm4782, %v10391, 0.0
    %v10480 = vadd.f32 %v10478, %v10479
    %v10481 = vsel %vm4782, %v10392, 0.0
    %v10482 = vadd.f32 %v10480, %v10481
    %v10483 = vsel %vm4782, %v10393, 0.0
    %v10484 = vadd.f32 %v10482, %v10483
    %v10485 = vsel %vm4782, %v10394, 0.0
    %v10486 = vadd.f32 %v10484, %v10485
    %v10487 = vsel %vm4782, %v10395, 0.0
    %v10488 = vadd.f32 %v10486, %v10487
    %v10489 = vsel %vm4782, %v10396, 0.0
    %v10490 = vadd.f32 %v10488, %v10489
    %v10491 = vsel %vm4782, %v10397, 0.0
    %v10492 = vadd.f32 %v10490, %v10491
    %v10493 = vsel %vm4782, %v10398, 0.0
    %v10494 = vadd.f32 %v10492, %v10493
    %v10495 = vsel %vm4782, %v10399, 0.0
    %v10496 = vadd.f32 %v10494, %v10495
    %v10497 = vsel %vm4782, %v10400, 0.0
    %v10498 = vadd.f32 %v10496, %v10497
    %v10499 = vsel %vm4782, %v10401, 0.0
    %v10500 = vadd.f32 %v10498, %v10499
    %v10501 = vsel %vm4782, %v10402, 0.0
    %v10502 = vadd.f32 %v10500, %v10501
    %v10503 = vsel %vm4782, %v10403, 0.0
    %v10504 = vadd.f32 %v10502, %v10503
    %v10505 = vsel %vm4782, %v10404, 0.0
    %v10506 = vadd.f32 %v10504, %v10505
    %v10507 = vsel %vm4782, %v10405, 0.0
    %v10508 = vadd.f32 %v10506, %v10507
    %v10509 = vsel %vm4782, %v10406, 0.0
    %v10510 = vadd.f32 %v10508, %v10509
    %v10511 = vsel %vm4782, %v10407, 0.0
    %v10512 = vadd.f32 %v10510, %v10511
    %v10513 = vsel %vm4782, %v10408, 0.0
    %v10514 = vadd.f32 %v10512, %v10513
    %v10515 = vsel %vm4782, %v10409, 0.0
    %v10516 = vadd.f32 %v10514, %v10515
    %v10517 = vsel %vm4782, %v10410, 0.0
    %v10518 = vadd.f32 %v10516, %v10517
    %v10519 = vsel %vm4782, %v10411, 0.0
    %v10520 = vadd.f32 %v10518, %v10519
    %v10521 = vsel %vm4782, %v10412, 0.0
    %v10522 = vadd.f32 %v10520, %v10521
    %v10523 = vsel %vm4782, %v10413, 0.0
    %v10524 = vadd.f32 %v10522, %v10523
    %v10525 = vsel %vm4782, %v10414, 0.0
    %v10526 = vadd.f32 %v10524, %v10525
    %v10527 = vsel %vm4782, %v10415, 0.0
    %v10528 = vadd.f32 %v10526, %v10527
    %v10529 = vsel %vm4782, %v10416, 0.0
    %v10530 = vadd.f32 %v10528, %v10529
    %v10531 = vsel %vm4782, %v10417, 0.0
    %v10532 = vadd.f32 %v10530, %v10531
    %v10533 = vsel %vm4782, %v10418, 0.0
    %v10534 = vadd.f32 %v10532, %v10533
    %v10535 = vsel %vm4782, %v10419, 0.0
    %v10536 = vadd.f32 %v10534, %v10535
    %v10537 = vsel %vm4782, %v10420, 0.0
    %v10538 = vadd.f32 %v10536, %v10537
    %v10539 = vsel %vm4782, %v10421, 0.0
    %v10540 = vadd.f32 %v10538, %v10539
    %v10541 = vsel %vm4782, %v10422, 0.0
    %v10542 = vadd.f32 %v10540, %v10541
    %v10543 = vsel %vm4782, %v10423, 0.0
    %v10544 = vadd.f32 %v10542, %v10543
    %v10545 = vsel %vm4782, %v10424, 0.0
    %v10546 = vadd.f32 %v10544, %v10545
    %v10547 = vsel %vm4782, %v10425, 0.0
    %v10548 = vadd.f32 %v10546, %v10547
    %v10549 = vsel %vm4782, %v10426, 0.0
    %v10550 = vadd.f32 %v10548, %v10549
    %v10551 = vsel %vm4782, %v10427, 0.0
    %v10552 = vadd.f32 %v10550, %v10551
    %v10553 = vsel %vm4782, %v10428, 0.0
    %v10554 = vadd.f32 %v10552, %v10553
    %v10555 = vsel %vm4782, %v10429, 0.0
    %v10556 = vadd.f32 %v10554, %v10555
    %v10557 = vrot.slane %v10556, 4
    %v10558 = vadd.f32 %v10556, %v10557
    %v10559 = vrot.slane %v10558, 2
    %v10560 = vadd.f32 %v10558, %v10559
    %v10561 = vrot.slane %v10560, 1
    %v10562 = vadd.f32 %v10560, %v10561
    %v10563 = vmul.f32 %v10365, 0.001953125
    %v10564 = vmul.f32 %v10562, 0.001953125
    %v10565 = vmul.f32 %v10563, %v10563
    %v10566 = vsub.f32 %v10564, %v10565
    %v10567 = vld [vmem:[%s7] sm:$0x1]
    %v10568 = vadd.f32 %v10566, 1e-05
    %v10569 = vrsqrt.pop %v10568
    %v10570 = vmul.f32 %v10569, %v10568
    %v10571 = vmul.f32 %v10570, %v10569
    %v10572 = vmul.f32 0.5, %v10571
    %v10573 = vsub.f32 1.5, %v10572
    %v10574 = vmul.f32 %v10569, %v10573
    %vm10575 = vweird.f32 %v10568
    %vm10576 = vweird.f32 %v10569
    %vm10577 = vmor %vm10575, %vm10576
    %v10578 = vsel %vm10577, %v10569, %v10574
    %v10579 = vmul.f32 %v10567, %v10578
    %v10580 = vld [vmem:[%s8] sm:$0x1]
    %v10581 = vmul.f32 %v10563, %v10579
    %v10582 = vsub.f32 %v10580, %v10581
    %v10584 = vperm.slane %v10579, 0
    %v10586 = vmul.f32 %v10169, %v10584
    %v10587 = vmul.f32 %v10170, %v10584
    %v10588 = vmul.f32 %v10171, %v10584
    %v10589 = vmul.f32 %v10172, %v10584
    %v10590 = vmul.f32 %v10173, %v10584
    %v10591 = vmul.f32 %v10174, %v10584
    %v10592 = vmul.f32 %v10175, %v10584
    %v10593 = vmul.f32 %v10176, %v10584
    %v10594 = vmul.f32 %v10177, %v10584
    %v10595 = vmul.f32 %v10178, %v10584
    %v10596 = vmul.f32 %v10179, %v10584
    %v10597 = vmul.f32 %v10180, %v10584
    %v10598 = vmul.f32 %v10181, %v10584
    %v10599 = vmul.f32 %v10182, %v10584
    %v10600 = vmul.f32 %v10183, %v10584
    %v10601 = vmul.f32 %v10184, %v10584
    %v10602 = vmul.f32 %v10185, %v10584
    %v10603 = vmul.f32 %v10186, %v10584
    %v10604 = vmul.f32 %v10187, %v10584
    %v10605 = vmul.f32 %v10188, %v10584
    %v10606 = vmul.f32 %v10189, %v10584
    %v10607 = vmul.f32 %v10190, %v10584
    %v10608 = vmul.f32 %v10191, %v10584
    %v10609 = vmul.f32 %v10192, %v10584
    %v10610 = vmul.f32 %v10193, %v10584
    %v10611 = vmul.f32 %v10194, %v10584
    %v10612 = vmul.f32 %v10195, %v10584
    %v10613 = vmul.f32 %v10196, %v10584
    %v10614 = vmul.f32 %v10197, %v10584
    %v10615 = vmul.f32 %v10198, %v10584
    %v10616 = vmul.f32 %v10199, %v10584
    %v10617 = vmul.f32 %v10200, %v10584
    %v10618 = vmul.f32 %v10201, %v10584
    %v10619 = vmul.f32 %v10202, %v10584
    %v10620 = vmul.f32 %v10203, %v10584
    %v10621 = vmul.f32 %v10204, %v10584
    %v10622 = vmul.f32 %v10205, %v10584
    %v10623 = vmul.f32 %v10206, %v10584
    %v10624 = vmul.f32 %v10207, %v10584
    %v10625 = vmul.f32 %v10208, %v10584
    %v10626 = vmul.f32 %v10209, %v10584
    %v10627 = vmul.f32 %v10210, %v10584
    %v10628 = vmul.f32 %v10211, %v10584
    %v10629 = vmul.f32 %v10212, %v10584
    %v10630 = vmul.f32 %v10213, %v10584
    %v10631 = vmul.f32 %v10214, %v10584
    %v10632 = vmul.f32 %v10215, %v10584
    %v10633 = vmul.f32 %v10216, %v10584
    %v10634 = vmul.f32 %v10217, %v10584
    %v10635 = vmul.f32 %v10218, %v10584
    %v10636 = vmul.f32 %v10219, %v10584
    %v10637 = vmul.f32 %v10220, %v10584
    %v10638 = vmul.f32 %v10221, %v10584
    %v10639 = vmul.f32 %v10222, %v10584
    %v10640 = vmul.f32 %v10223, %v10584
    %v10641 = vmul.f32 %v10224, %v10584
    %v10642 = vmul.f32 %v10225, %v10584
    %v10643 = vmul.f32 %v10226, %v10584
    %v10644 = vmul.f32 %v10227, %v10584
    %v10645 = vmul.f32 %v10228, %v10584
    %v10646 = vmul.f32 %v10229, %v10584
    %v10647 = vmul.f32 %v10230, %v10584
    %v10648 = vmul.f32 %v10231, %v10584
    %v10649 = vmul.f32 %v10232, %v10584
    %v10651 = vperm.slane %v10582, 0
    %v10653 = vadd.f32 %v10586, %v10651
    %v10654 = vadd.f32 %v10587, %v10651
    %v10655 = vadd.f32 %v10588, %v10651
    %v10656 = vadd.f32 %v10589, %v10651
    %v10657 = vadd.f32 %v10590, %v10651
    %v10658 = vadd.f32 %v10591, %v10651
    %v10659 = vadd.f32 %v10592, %v10651
    %v10660 = vadd.f32 %v10593, %v10651
    %v10661 = vadd.f32 %v10594, %v10651
    %v10662 = vadd.f32 %v10595, %v10651
    %v10663 = vadd.f32 %v10596, %v10651
    %v10664 = vadd.f32 %v10597, %v10651
    %v10665 = vadd.f32 %v10598, %v10651
    %v10666 = vadd.f32 %v10599, %v10651
    %v10667 = vadd.f32 %v10600, %v10651
    %v10668 = vadd.f32 %v10601, %v10651
    %v10669 = vadd.f32 %v10602, %v10651
    %v10670 = vadd.f32 %v10603, %v10651
    %v10671 = vadd.f32 %v10604, %v10651
    %v10672 = vadd.f32 %v10605, %v10651
    %v10673 = vadd.f32 %v10606, %v10651
    %v10674 = vadd.f32 %v10607, %v10651
    %v10675 = vadd.f32 %v10608, %v10651
    %v10676 = vadd.f32 %v10609, %v10651
    %v10677 = vadd.f32 %v10610, %v10651
    %v10678 = vadd.f32 %v10611, %v10651
    %v10679 = vadd.f32 %v10612, %v10651
    %v10680 = vadd.f32 %v10613, %v10651
    %v10681 = vadd.f32 %v10614, %v10651
    %v10682 = vadd.f32 %v10615, %v10651
    %v10683 = vadd.f32 %v10616, %v10651
    %v10684 = vadd.f32 %v10617, %v10651
    %v10685 = vadd.f32 %v10618, %v10651
    %v10686 = vadd.f32 %v10619, %v10651
    %v10687 = vadd.f32 %v10620, %v10651
    %v10688 = vadd.f32 %v10621, %v10651
    %v10689 = vadd.f32 %v10622, %v10651
    %v10690 = vadd.f32 %v10623, %v10651
    %v10691 = vadd.f32 %v10624, %v10651
    %v10692 = vadd.f32 %v10625, %v10651
    %v10693 = vadd.f32 %v10626, %v10651
    %v10694 = vadd.f32 %v10627, %v10651
    %v10695 = vadd.f32 %v10628, %v10651
    %v10696 = vadd.f32 %v10629, %v10651
    %v10697 = vadd.f32 %v10630, %v10651
    %v10698 = vadd.f32 %v10631, %v10651
    %v10699 = vadd.f32 %v10632, %v10651
    %v10700 = vadd.f32 %v10633, %v10651
    %v10701 = vadd.f32 %v10634, %v10651
    %v10702 = vadd.f32 %v10635, %v10651
    %v10703 = vadd.f32 %v10636, %v10651
    %v10704 = vadd.f32 %v10637, %v10651
    %v10705 = vadd.f32 %v10638, %v10651
    %v10706 = vadd.f32 %v10639, %v10651
    %v10707 = vadd.f32 %v10640, %v10651
    %v10708 = vadd.f32 %v10641, %v10651
    %v10709 = vadd.f32 %v10642, %v10651
    %v10710 = vadd.f32 %v10643, %v10651
    %v10711 = vadd.f32 %v10644, %v10651
    %v10712 = vadd.f32 %v10645, %v10651
    %v10713 = vadd.f32 %v10646, %v10651
    %v10714 = vadd.f32 %v10647, %v10651
    %v10715 = vadd.f32 %v10648, %v10651
    %v10716 = vadd.f32 %v10649, %v10651
    %v10717 = vmax.f32 %v10653, 0.0
    %v10718 = vmax.f32 %v10654, 0.0
    %v10719 = vmax.f32 %v10655, 0.0
    %v10720 = vmax.f32 %v10656, 0.0
    %v10721 = vmax.f32 %v10657, 0.0
    %v10722 = vmax.f32 %v10658, 0.0
    %v10723 = vmax.f32 %v10659, 0.0
    %v10724 = vmax.f32 %v10660, 0.0
    %v10725 = vmax.f32 %v10661, 0.0
    %v10726 = vmax.f32 %v10662, 0.0
    %v10727 = vmax.f32 %v10663, 0.0
    %v10728 = vmax.f32 %v10664, 0.0
    %v10729 = vmax.f32 %v10665, 0.0
    %v10730 = vmax.f32 %v10666, 0.0
    %v10731 = vmax.f32 %v10667, 0.0
    %v10732 = vmax.f32 %v10668, 0.0
    %v10733 = vmax.f32 %v10669, 0.0
    %v10734 = vmax.f32 %v10670, 0.0
    %v10735 = vmax.f32 %v10671, 0.0
    %v10736 = vmax.f32 %v10672, 0.0
    %v10737 = vmax.f32 %v10673, 0.0
    %v10738 = vmax.f32 %v10674, 0.0
    %v10739 = vmax.f32 %v10675, 0.0
    %v10740 = vmax.f32 %v10676, 0.0
    %v10741 = vmax.f32 %v10677, 0.0
    %v10742 = vmax.f32 %v10678, 0.0
    %v10743 = vmax.f32 %v10679, 0.0
    %v10744 = vmax.f32 %v10680, 0.0
    %v10745 = vmax.f32 %v10681, 0.0
    %v10746 = vmax.f32 %v10682, 0.0
    %v10747 = vmax.f32 %v10683, 0.0
    %v10748 = vmax.f32 %v10684, 0.0
    %v10749 = vmax.f32 %v10685, 0.0
    %v10750 = vmax.f32 %v10686, 0.0
    %v10751 = vmax.f32 %v10687, 0.0
    %v10752 = vmax.f32 %v10688, 0.0
    %v10753 = vmax.f32 %v10689, 0.0
    %v10754 = vmax.f32 %v10690, 0.0
    %v10755 = vmax.f32 %v10691, 0.0
    %v10756 = vmax.f32 %v10692, 0.0
    %v10757 = vmax.f32 %v10693, 0.0
    %v10758 = vmax.f32 %v10694, 0.0
    %v10759 = vmax.f32 %v10695, 0.0
    %v10760 = vmax.f32 %v10696, 0.0
    %v10761 = vmax.f32 %v10697, 0.0
    %v10762 = vmax.f32 %v10698, 0.0
    %v10763 = vmax.f32 %v10699, 0.0
    %v10764 = vmax.f32 %v10700, 0.0
    %v10765 = vmax.f32 %v10701, 0.0
    %v10766 = vmax.f32 %v10702, 0.0
    %v10767 = vmax.f32 %v10703, 0.0
    %v10768 = vmax.f32 %v10704, 0.0
    %v10769 = vmax.f32 %v10705, 0.0
    %v10770 = vmax.f32 %v10706, 0.0
    %v10771 = vmax.f32 %v10707, 0.0
    %v10772 = vmax.f32 %v10708, 0.0
    %v10773 = vmax.f32 %v10709, 0.0
    %v10774 = vmax.f32 %v10710, 0.0
    %v10775 = vmax.f32 %v10711, 0.0
    %v10776 = vmax.f32 %v10712, 0.0
    %v10777 = vmax.f32 %v10713, 0.0
    %v10778 = vmax.f32 %v10714, 0.0
    %v10779 = vmax.f32 %v10715, 0.0
    %v10780 = vmax.f32 %v10716, 0.0
    %v10781 = vmax.f32 %v10717, %v10719
    %v10782 = vmax.f32 %v10718, %v10720
    %v10783 = vmax.f32 %v10721, %v10723
    %v10784 = vmax.f32 %v10722, %v10724
    %v10785 = vmax.f32 %v10725, %v10727
    %v10786 = vmax.f32 %v10726, %v10728
    %v10787 = vmax.f32 %v10729, %v10731
    %v10788 = vmax.f32 %v10730, %v10732
    %v10789 = vmax.f32 %v10733, %v10735
    %v10790 = vmax.f32 %v10734, %v10736
    %v10791 = vmax.f32 %v10737, %v10739
    %v10792 = vmax.f32 %v10738, %v10740
    %v10793 = vmax.f32 %v10741, %v10743
    %v10794 = vmax.f32 %v10742, %v10744
    %v10795 = vmax.f32 %v10745, %v10747
    %v10796 = vmax.f32 %v10746, %v10748
    %v10797 = vmax.f32 %v10749, %v10751
    %v10798 = vmax.f32 %v10750, %v10752
    %v10799 = vmax.f32 %v10753, %v10755
    %v10800 = vmax.f32 %v10754, %v10756
    %v10801 = vmax.f32 %v10757, %v10759
    %v10802 = vmax.f32 %v10758, %v10760
    %v10803 = vmax.f32 %v10761, %v10763
    %v10804 = vmax.f32 %v10762, %v10764
    %v10805 = vmax.f32 %v10765, %v10767
    %v10806 = vmax.f32 %v10766, %v10768
    %v10807 = vmax.f32 %v10769, %v10771
    %v10808 = vmax.f32 %v10770, %v10772
    %v10809 = vmax.f32 %v10773, %v10775
    %v10810 = vmax.f32 %v10774, %v10776
    %v10811 = vmax.f32 %v10777, %v10779
    %v10812 = vmax.f32 %v10778, %v10780
    %10813 = vst.msk [vmem:[#allocation3] sm:$0xff] %vm4782, %v10781
    %10814 = vst.msk [vmem:[#allocation3 + $0x8] sm:$0xff] %vm4782, %v10782
    %10815 = vst.msk [vmem:[#allocation3 + $0x10] sm:$0xff] %vm4782, %v10783
    %10816 = vst.msk [vmem:[#allocation3 + $0x18] sm:$0xff] %vm4782, %v10784
    %10817 = vst.msk [vmem:[#allocation3 + $0x20] sm:$0xff] %vm4782, %v10785
    %10818 = vst.msk [vmem:[#allocation3 + $0x28] sm:$0xff] %vm4782, %v10786
    %10819 = vst.msk [vmem:[#allocation3 + $0x30] sm:$0xff] %vm4782, %v10787
    %10820 = vst.msk [vmem:[#allocation3 + $0x38] sm:$0xff] %vm4782, %v10788
    %10821 = vst.msk [vmem:[#allocation3 + $0x40] sm:$0xff] %vm4782, %v10789
    %10822 = vst.msk [vmem:[#allocation3 + $0x48] sm:$0xff] %vm4782, %v10790
    %10823 = vst.msk [vmem:[#allocation3 + $0x50] sm:$0xff] %vm4782, %v10791
    %10824 = vst.msk [vmem:[#allocation3 + $0x58] sm:$0xff] %vm4782, %v10792
    %10825 = vst.msk [vmem:[#allocation3 + $0x60] sm:$0xff] %vm4782, %v10793
    %10826 = vst.msk [vmem:[#allocation3 + $0x68] sm:$0xff] %vm4782, %v10794
    %10827 = vst.msk [vmem:[#allocation3 + $0x70] sm:$0xff] %vm4782, %v10795
    %10828 = vst.msk [vmem:[#allocation3 + $0x78] sm:$0xff] %vm4782, %v10796
    %10829 = vst.msk [vmem:[#allocation3 + $0x80] sm:$0xff] %vm4782, %v10797
    %10830 = vst.msk [vmem:[#allocation3 + $0x88] sm:$0xff] %vm4782, %v10798
    %10831 = vst.msk [vmem:[#allocation3 + $0x90] sm:$0xff] %vm4782, %v10799
    %10832 = vst.msk [vmem:[#allocation3 + $0x98] sm:$0xff] %vm4782, %v10800
    %10833 = vst.msk [vmem:[#allocation3 + $0xa0] sm:$0xff] %vm4782, %v10801
    %10834 = vst.msk [vmem:[#allocation3 + $0xa8] sm:$0xff] %vm4782, %v10802
    %10835 = vst.msk [vmem:[#allocation3 + $0xb0] sm:$0xff] %vm4782, %v10803
    %10836 = vst.msk [vmem:[#allocation3 + $0xb8] sm:$0xff] %vm4782, %v10804
    %10837 = vst.msk [vmem:[#allocation3 + $0xc0] sm:$0xff] %vm4782, %v10805
    %10838 = vst.msk [vmem:[#allocation3 + $0xc8] sm:$0xff] %vm4782, %v10806
    %10839 = vst.msk [vmem:[#allocation3 + $0xd0] sm:$0xff] %vm4782, %v10807
    %10840 = vst.msk [vmem:[#allocation3 + $0xd8] sm:$0xff] %vm4782, %v10808
    %10841 = vst.msk [vmem:[#allocation3 + $0xe0] sm:$0xff] %vm4782, %v10809
    %10842 = vst.msk [vmem:[#allocation3 + $0xe8] sm:$0xff] %vm4782, %v10810
    %10843 = vst.msk [vmem:[#allocation3 + $0xf0] sm:$0xff] %vm4782, %v10811
    %10844 = vst.msk [vmem:[#allocation3 + $0xf8] sm:$0xff] %vm4782, %v10812
    %v10845 = vld [vmem:[#allocation3] ss:$2 sm:$0xff]
    %s10846 = scalar_lea.vmem [#allocation3], 16
    %v10847 = vld [vmem:[%s10846] ss:$2 sm:$0xff]
    %s10848 = scalar_lea.vmem [#allocation3], 32
    %v10849 = vld [vmem:[%s10848] ss:$2 sm:$0xff]
    %s10850 = scalar_lea.vmem [#allocation3], 48
    %v10851 = vld [vmem:[%s10850] ss:$2 sm:$0xff]
    %s10852 = scalar_lea.vmem [#allocation3], 64
    %v10853 = vld [vmem:[%s10852] ss:$2 sm:$0xff]
    %s10854 = scalar_lea.vmem [#allocation3], 80
    %v10855 = vld [vmem:[%s10854] ss:$2 sm:$0xff]
    %s10856 = scalar_lea.vmem [#allocation3], 96
    %v10857 = vld [vmem:[%s10856] ss:$2 sm:$0xff]
    %s10858 = scalar_lea.vmem [#allocation3], 112
    %v10859 = vld [vmem:[%s10858] ss:$2 sm:$0xff]
    %s10860 = scalar_lea.vmem [#allocation3], 128
    %v10861 = vld [vmem:[%s10860] ss:$2 sm:$0xff]
    %s10862 = scalar_lea.vmem [#allocation3], 144
    %v10863 = vld [vmem:[%s10862] ss:$2 sm:$0xff]
    %s10864 = scalar_lea.vmem [#allocation3], 160
    %v10865 = vld [vmem:[%s10864] ss:$2 sm:$0xff]
    %s10866 = scalar_lea.vmem [#allocation3], 176
    %v10867 = vld [vmem:[%s10866] ss:$2 sm:$0xff]
    %s10868 = scalar_lea.vmem [#allocation3], 192
    %v10869 = vld [vmem:[%s10868] ss:$2 sm:$0xff]
    %s10870 = scalar_lea.vmem [#allocation3], 208
    %v10871 = vld [vmem:[%s10870] ss:$2 sm:$0xff]
    %s10872 = scalar_lea.vmem [#allocation3], 224
    %v10873 = vld [vmem:[%s10872] ss:$2 sm:$0xff]
    %s10874 = scalar_lea.vmem [#allocation3], 240
    %v10875 = vld [vmem:[%s10874] ss:$2 sm:$0xff]
    %s10876 = scalar_lea.vmem [#allocation3], 1
    %v10877 = vld [vmem:[%s10876] ss:$2 sm:$0xff]
    %s10878 = scalar_lea.vmem [#allocation3], 17
    %v10879 = vld [vmem:[%s10878] ss:$2 sm:$0xff]
    %s10880 = scalar_lea.vmem [#allocation3], 33
    %v10881 = vld [vmem:[%s10880] ss:$2 sm:$0xff]
    %s10882 = scalar_lea.vmem [#allocation3], 49
    %v10883 = vld [vmem:[%s10882] ss:$2 sm:$0xff]
    %s10884 = scalar_lea.vmem [#allocation3], 65
    %v10885 = vld [vmem:[%s10884] ss:$2 sm:$0xff]
    %s10886 = scalar_lea.vmem [#allocation3], 81
    %v10887 = vld [vmem:[%s10886] ss:$2 sm:$0xff]
    %s10888 = scalar_lea.vmem [#allocation3], 97
    %v10889 = vld [vmem:[%s10888] ss:$2 sm:$0xff]
    %s10890 = scalar_lea.vmem [#allocation3], 113
    %v10891 = vld [vmem:[%s10890] ss:$2 sm:$0xff]
    %s10892 = scalar_lea.vmem [#allocation3], 129
    %v10893 = vld [vmem:[%s10892] ss:$2 sm:$0xff]
    %s10894 = scalar_lea.vmem [#allocation3], 145
    %v10895 = vld [vmem:[%s10894] ss:$2 sm:$0xff]
    %s10896 = scalar_lea.vmem [#allocation3], 161
    %v10897 = vld [vmem:[%s10896] ss:$2 sm:$0xff]
    %s10898 = scalar_lea.vmem [#allocation3], 177
    %v10899 = vld [vmem:[%s10898] ss:$2 sm:$0xff]
    %s10900 = scalar_lea.vmem [#allocation3], 193
    %v10901 = vld [vmem:[%s10900] ss:$2 sm:$0xff]
    %s10902 = scalar_lea.vmem [#allocation3], 209
    %v10903 = vld [vmem:[%s10902] ss:$2 sm:$0xff]
    %s10904 = scalar_lea.vmem [#allocation3], 225
    %v10905 = vld [vmem:[%s10904] ss:$2 sm:$0xff]
    %s10906 = scalar_lea.vmem [#allocation3], 241
    %v10907 = vld [vmem:[%s10906] ss:$2 sm:$0xff]
    %v10908 = vmax.f32 %v10845, %v10877
    %v10909 = vmax.f32 %v10847, %v10879
    %v10910 = vmax.f32 %v10849, %v10881
    %v10911 = vmax.f32 %v10851, %v10883
    %v10912 = vmax.f32 %v10853, %v10885
    %v10913 = vmax.f32 %v10855, %v10887
    %v10914 = vmax.f32 %v10857, %v10889
    %v10915 = vmax.f32 %v10859, %v10891
    %v10916 = vmax.f32 %v10861, %v10893
    %v10917 = vmax.f32 %v10863, %v10895
    %v10918 = vmax.f32 %v10865, %v10897
    %v10919 = vmax.f32 %v10867, %v10899
    %v10920 = vmax.f32 %v10869, %v10901
    %v10921 = vmax.f32 %v10871, %v10903
    %v10922 = vmax.f32 %v10873, %v10905
    %v10923 = vmax.f32 %v10875, %v10907
    %10924 = vst.msk [vmem:[#allocation4] sm:$0xff] %vm4782, %v10908
    %10925 = vst.msk [vmem:[#allocation4 + $0x8] sm:$0xff] %vm4782, %v10909
    %10926 = vst.msk [vmem:[#allocation4 + $0x10] sm:$0xff] %vm4782, %v10910
    %10927 = vst.msk [vmem:[#allocation4 + $0x18] sm:$0xff] %vm4782, %v10911
    %10928 = vst.msk [vmem:[#allocation4 + $0x20] sm:$0xff] %vm4782, %v10912
    %10929 = vst.msk [vmem:[#allocation4 + $0x28] sm:$0xff] %vm4782, %v10913
    %10930 = vst.msk [vmem:[#allocation4 + $0x30] sm:$0xff] %vm4782, %v10914
    %10931 = vst.msk [vmem:[#allocation4 + $0x38] sm:$0xff] %vm4782, %v10915
    %10932 = vst.msk [vmem:[#allocation4 + $0x40] sm:$0xff] %vm4782, %v10916
    %10933 = vst.msk [vmem:[#allocation4 + $0x48] sm:$0xff] %vm4782, %v10917
    %10934 = vst.msk [vmem:[#allocation4 + $0x50] sm:$0xff] %vm4782, %v10918
    %10935 = vst.msk [vmem:[#allocation4 + $0x58] sm:$0xff] %vm4782, %v10919
    %10936 = vst.msk [vmem:[#allocation4 + $0x60] sm:$0xff] %vm4782, %v10920
    %10937 = vst.msk [vmem:[#allocation4 + $0x68] sm:$0xff] %vm4782, %v10921
    %10938 = vst.msk [vmem:[#allocation4 + $0x70] sm:$0xff] %vm4782, %v10922
    %10939 = vst.msk [vmem:[#allocation4 + $0x78] sm:$0xff] %vm4782, %v10923
    // Predicated region
    $region38: #{down_sample_blk_forward.1} parent=1 // pred_check
      _
    $region39: #{down_sample_blk_forward.1} parent=1 // pred_check_branch
      %10941 = sbr.rel (0) target = $region41
    $region40: #{down_sample_blk_forward.1} parent=1 // pred_region
      %10943 = vsyncadd [#allocation5], 0
      %s10944 = sshll.u32 [#allocation4], 4
      %s10945 = int_to_ptr.vmem [resolvable:$true] %s10944
      %s10946 = sshll.u32 %s9, 4
      %s10947 = int_to_ptr.hbm [resolvable:$true] %s10946
      %10952 = dma.vmem_to_hbm [thread:$0]  %s10945, 2048, %s10947, [#allocation5], 128, 128, 8
    $region41: #{down_sample_blk_forward.1} parent=1 // pred_fallthru
      _
    // Predicated region
    $region42: #{down_sample_blk_forward.1} parent=1 // pred_check
      _
    $region43: #{down_sample_blk_forward.1} parent=1 // pred_check_branch
      %10954 = sbr.rel (0) target = $region45
    $region44: #{down_sample_blk_forward.1} parent=1 // pred_region
      %10956 = dma.done [#allocation5], 2048
    $region45: #{down_sample_blk_forward.1} parent=1 // pred_fallthru
      _
    %10957 = vsyncpa [#allocation5], 1

</llo_original>
